<compile_context>
chip_gen: v7x
topology: tpu7x:2x2x1
jax: 0.10.0
libtpu: 0.0.40
codegen_flags: <defaults>
</compile_context>

<pallas_src>
import jax
import jax.numpy as jnp
from jax.experimental import pallas as pl
from jax.experimental.pallas import tpu as pltpu


LAYER_DIMS = [(5000, 1024), (1024, 512), (512, 256), (256, 128), (128, 64), (64, 5)]
K_LOGICAL = 5000   # layer-1 fan-in from the PyTorch module
K_PAD = 5120       # padded fan-in (multiple of 256) -> aligned, evenly tileable
TK = 2560          # K-rows of W1 streamed per grid step (K_PAD // TK = 2 steps)


def _fused_mlp_kernel(x_ref,
                      w1_ref, b1_ref, w2_ref, b2_ref, w3_ref, b3_ref,
                      w4_ref, b4_ref, w5_ref, b5_ref, w6_ref, b6_ref,
                      o_ref, h1_ref):
    k = pl.program_id(0)

    # ---- Layer 1 (5120(pad) -> 1024): accumulate one contiguous K-slab. ----
    @pl.when(k == 0)
    def _():
        h1_ref[...] = jnp.zeros_like(h1_ref)

    # bf16 x bf16 on the MXU, f32 accumulation into VMEM scratch.
    h1_ref[...] += jnp.dot(x_ref[...], w1_ref[...],
                           preferred_element_type=jnp.float32)

    # ---- Epilogue: layers 2-6 are VMEM-resident; run once h1 is complete. ----
    @pl.when(k == pl.num_programs(0) - 1)
    def _():
        h = h1_ref[...] + b1_ref[...]          # add layer-1 bias exactly once
        for w_ref, b_ref in ((w2_ref, b2_ref), (w3_ref, b3_ref),
                             (w4_ref, b4_ref), (w5_ref, b5_ref),
                             (w6_ref, b6_ref)):
            h = (jnp.dot(h.astype(jnp.bfloat16), w_ref[...],
                         preferred_element_type=jnp.float32)
                 + b_ref[...])
        o_ref[...] = h.astype(o_ref.dtype)


def _mydnn_forward_impl(x, kparams):
    (w1, b1) = kparams[0]
    rest = kparams[1:]
    B = x.shape[0]
    Kp, N1 = w1.shape                       # (K_PAD, 1024), already padded
    assert Kp % TK == 0
    assert x.shape[1] <= Kp

    # Pad features to K_PAD and cast to bf16 once per call (tiny: B x 5120 bf16).
    x = jnp.pad(x, ((0, 0), (0, Kp - x.shape[1]))).astype(jnp.bfloat16)

    grid = (Kp // TK,)

    in_specs = [
        pl.BlockSpec((B, TK), lambda k: (0, k)),    # x: matching K-slab
        pl.BlockSpec((TK, N1), lambda k: (k, 0)),   # W1: contiguous row slab
        pl.BlockSpec((1, N1), lambda k: (0, 0)),    # b1: VMEM-resident
    ]
    args = [x, w1, b1]
    for (w, b) in rest:                             # layers 2-6: VMEM-resident
        kk, n = w.shape
        in_specs.append(pl.BlockSpec((kk, n), lambda k: (0, 0)))
        in_specs.append(pl.BlockSpec((1, n), lambda k: (0, 0)))
        args.append(w)
        args.append(b)

    n_out = rest[-1][0].shape[1]

    flops = 2 * B * sum(w.shape[0] * w.shape[1] for (w, _) in kparams)
    bytes_accessed = (
        x.size * x.dtype.itemsize
        + sum(w.size * w.dtype.itemsize + b.size * b.dtype.itemsize
              for (w, b) in kparams)
        + B * n_out * 4
    )

    return pl.pallas_call(
        _fused_mlp_kernel,
        out_shape=jax.ShapeDtypeStruct((B, n_out), jnp.float32),
        grid_spec=pltpu.PrefetchScalarGridSpec(
            num_scalar_prefetch=0,
            grid=grid,
            in_specs=in_specs,
            out_specs=pl.BlockSpec((B, n_out), lambda k: (0, 0)),
            scratch_shapes=[pltpu.VMEM((B, N1), jnp.float32)],  # layer-1 activation
        ),
        compiler_params=pltpu.CompilerParams(
            # K axis carries h1 scratch + last-step output -> must stay sequential.
            dimension_semantics=("arbitrary",),
            vmem_limit_bytes=32 * 1024 * 1024,   # ~13 MB used; raise v5e's 16 MiB default
        ),
        cost_estimate=pl.CostEstimate(
            flops=flops, transcendentals=0, bytes_accessed=bytes_accessed),
    )(*args)


mydnn_forward = jax.jit(_mydnn_forward_impl)


# ----------------------------------------------------------------------------
# Parameter construction (deterministic, mimics nn.Linear default init scale).
# Weights stored bf16 (memory-bound kernel), biases fp32.
# ----------------------------------------------------------------------------
def init_params(key):
    params = []
    for fan_in, fan_out in LAYER_DIMS:
        key, kw, kb = jax.random.split(key, 3)
        bound = 1.0 / jnp.sqrt(fan_in)
        w = jax.random.uniform(
            kw, (fan_in, fan_out), jnp.float32, minval=-bound, maxval=bound
        ).astype(jnp.bfloat16)
        b = jax.random.uniform(
            kb, (fan_out,), jnp.float32, minval=-bound, maxval=bound
        )
        params.append((w, b))
    return params


def prepare_params(params, k_pad=K_PAD):
    """One-time layout prep for the kernel: zero-pad W1's fan-in to K_PAD
    (padded rows multiply padded-zero x columns -> no effect) and reshape
    biases to (1, n). Done outside jit so weights are never copied per call."""
    (w1, b1) = params[0]
    w1p = jnp.pad(w1, ((0, k_pad - w1.shape[0]), (0, 0)))
    prepared = [(w1p, b1.reshape(1, -1))]
    for (w, b) in params[1:]:
        prepared.append((w, b.reshape(1, -1)))
    return prepared


# ----------------------------------------------------------------------------
# References.
# ----------------------------------------------------------------------------
def mydnn_reference_bf16(x, params):
    """Precision-matched reference: bf16 activations x bf16 weights, f32 acc —
    exactly the arithmetic the kernel performs."""
    out = x
    for (w, b) in params:
        out = jnp.dot(out.astype(jnp.bfloat16), w,
                      preferred_element_type=jnp.float32) + b
    return out


def mydnn_reference_f32(x, params):
    """Module-style reference: f32 activations, weights upcast to f32."""
    out = x
    for (w, b) in params:
        out = out @ w.astype(jnp.float32) + b
    return out


if __name__ == "__main__":
    key = jax.random.PRNGKey(0)
    key, kx, kp = jax.random.split(key, 3)

    batch = 8
    x = jax.random.normal(kx, (batch, K_LOGICAL), jnp.float32)
    params = init_params(kp)
    kparams = prepare_params(params)

    y = mydnn_forward(x, kparams)
    jax.block_until_ready(y)
    assert y.shape == (batch, 5)

    # Tight check against the precision-matched (bf16 MXU) reference.
    y_ref = mydnn_reference_bf16(x, params)
    assert jnp.allclose(y, y_ref, rtol=1e-3, atol=1e-3), float(
        jnp.max(jnp.abs(y - y_ref)))

    # Looser sanity check against module-style f32 math.
    y_f32 = mydnn_reference_f32(x, params)
    assert jnp.allclose(y, y_f32, rtol=1e-2, atol=1e-2), float(
        jnp.max(jnp.abs(y - y_f32)))

    print("KERNEL_OK")
</pallas_src>

<mosaic_0001>
module attributes {stable_mosaic.version = 11 : i64} {
  func.func @_fused_mlp_kernel(%arg0: i32, %arg1: memref<8x2560xbf16, #tpu.memory_space<vmem>>, %arg2: memref<2560x1024xbf16, #tpu.memory_space<vmem>>, %arg3: memref<1x1024xf32, #tpu.memory_space<vmem>>, %arg4: memref<1024x512xbf16, #tpu.memory_space<vmem>>, %arg5: memref<1x512xf32, #tpu.memory_space<vmem>>, %arg6: memref<512x256xbf16, #tpu.memory_space<vmem>>, %arg7: memref<1x256xf32, #tpu.memory_space<vmem>>, %arg8: memref<256x128xbf16, #tpu.memory_space<vmem>>, %arg9: memref<1x128xf32, #tpu.memory_space<vmem>>, %arg10: memref<128x64xbf16, #tpu.memory_space<vmem>>, %arg11: memref<1x64xf32, #tpu.memory_space<vmem>>, %arg12: memref<64x5xbf16, #tpu.memory_space<vmem>>, %arg13: memref<1x5xf32, #tpu.memory_space<vmem>>, %arg14: memref<8x5xf32, #tpu.memory_space<vmem>>, %arg15: memref<8x1024xf32, #tpu.memory_space<vmem>>) attributes {dimension_semantics = [#tpu.dimension_semantics<arbitrary>], iteration_bounds = array<i64: 2>, scalar_prefetch = 0 : i64, scratch_operands = 1 : i64, tpu.core_type = #tpu.core_type<tc>, window_params = [{transform_indices = @transform_0, window_bounds = array<i64: 8, 2560>}, {transform_indices = @transform_1, window_bounds = array<i64: 2560, 1024>}, {pipeline_mode = #tpu.pipeline_mode<synchronous>, transform_indices = @transform_2, window_bounds = array<i64: 1, 1024>}, {pipeline_mode = #tpu.pipeline_mode<synchronous>, transform_indices = @transform_3, window_bounds = array<i64: 1024, 512>}, {pipeline_mode = #tpu.pipeline_mode<synchronous>, transform_indices = @transform_4, window_bounds = array<i64: 1, 512>}, {pipeline_mode = #tpu.pipeline_mode<synchronous>, transform_indices = @transform_5, window_bounds = array<i64: 512, 256>}, {pipeline_mode = #tpu.pipeline_mode<synchronous>, transform_indices = @transform_6, window_bounds = array<i64: 1, 256>}, {pipeline_mode = #tpu.pipeline_mode<synchronous>, transform_indices = @transform_7, window_bounds = array<i64: 256, 128>}, {pipeline_mode = #tpu.pipeline_mode<synchronous>, transform_indices = @transform_8, window_bounds = array<i64: 1, 128>}, {pipeline_mode = #tpu.pipeline_mode<synchronous>, transform_indices = @transform_9, window_bounds = array<i64: 128, 64>}, {pipeline_mode = #tpu.pipeline_mode<synchronous>, transform_indices = @transform_10, window_bounds = array<i64: 1, 64>}, {pipeline_mode = #tpu.pipeline_mode<synchronous>, transform_indices = @transform_11, window_bounds = array<i64: 64, 5>}, {pipeline_mode = #tpu.pipeline_mode<synchronous>, transform_indices = @transform_12, window_bounds = array<i64: 1, 5>}, {pipeline_mode = #tpu.pipeline_mode<synchronous>, transform_indices = @transform_13, window_bounds = array<i64: 8, 5>}]} {
    %c0_i32 = arith.constant 0 : i32
    %0 = arith.cmpi eq, %arg0, %c0_i32 : i32
    %1 = arith.extui %0 : i1 to i32
    %c0_i32_0 = arith.constant 0 : i32
    %2 = arith.cmpi ne, %1, %c0_i32_0 : i32
    scf.if %2 {
      %cst_9 = arith.constant 0.000000e+00 : f32
      %12 = vector.broadcast %cst_9 : f32 to vector<8x1024xf32>
      %c0_10 = arith.constant 0 : index
      %c0_11 = arith.constant 0 : index
      %13 = vector.load %arg15[%c0_10, %c0_11] : memref<8x1024xf32, #tpu.memory_space<vmem>>, vector<8x1024xf32>
      tpu.vector_store %arg15[%c0_10, %c0_11], %12 {strides = array<i32>} : memref<8x1024xf32, #tpu.memory_space<vmem>>, vector<8x1024xf32>,
    } else {
    }
    %c0 = arith.constant 0 : index
    %c0_1 = arith.constant 0 : index
    %3 = vector.load %arg15[%c0, %c0_1] : memref<8x1024xf32, #tpu.memory_space<vmem>>, vector<8x1024xf32>
    %c0_2 = arith.constant 0 : index
    %c0_3 = arith.constant 0 : index
    %4 = vector.load %arg1[%c0_2, %c0_3] : memref<8x2560xbf16, #tpu.memory_space<vmem>>, vector<8x2560xbf16>
    %c0_4 = arith.constant 0 : index
    %c0_5 = arith.constant 0 : index
    %5 = vector.load %arg2[%c0_4, %c0_5] : memref<2560x1024xbf16, #tpu.memory_space<vmem>>, vector<2560x1024xbf16>
    %cst = arith.constant dense<0.000000e+00> : vector<8x1024xf32>
    %6 = tpu.matmul %4, %5, %cst {dimension_numbers = #tpu.dot_dimension_numbers<[1], [0], [0], [1], [0, 0, 1, 1], [], []>} : vector<8x2560xbf16>, vector<2560x1024xbf16>, vector<8x1024xf32> -> vector<8x1024xf32>
    %7 = arith.addf %3, %6 : vector<8x1024xf32>
    %c0_6 = arith.constant 0 : index
    %c0_7 = arith.constant 0 : index
    %8 = vector.load %arg15[%c0_6, %c0_7] : memref<8x1024xf32, #tpu.memory_space<vmem>>, vector<8x1024xf32>
    tpu.vector_store %arg15[%c0_6, %c0_7], %7 {strides = array<i32>} : memref<8x1024xf32, #tpu.memory_space<vmem>>, vector<8x1024xf32>,
    %c1_i32 = arith.constant 1 : i32
    %9 = arith.cmpi eq, %arg0, %c1_i32 : i32
    %10 = arith.extui %9 : i1 to i32
    %c0_i32_8 = arith.constant 0 : i32
    %11 = arith.cmpi ne, %10, %c0_i32_8 : i32
    scf.if %11 {
      %c0_9 = arith.constant 0 : index
      %c0_10 = arith.constant 0 : index
      %12 = vector.load %arg15[%c0_9, %c0_10] : memref<8x1024xf32, #tpu.memory_space<vmem>>, vector<8x1024xf32>
      %c0_11 = arith.constant 0 : index
      %c0_12 = arith.constant 0 : index
      %13 = vector.load %arg3[%c0_11, %c0_12] : memref<1x1024xf32, #tpu.memory_space<vmem>>, vector<1x1024xf32>
      %14 = vector.broadcast %13 : vector<1x1024xf32> to vector<8x1024xf32>
      %15 = arith.addf %12, %14 : vector<8x1024xf32>
      %16 = arith.truncf %15 : vector<8x1024xf32> to vector<8x1024xbf16>
      %c0_13 = arith.constant 0 : index
      %c0_14 = arith.constant 0 : index
      %17 = vector.load %arg4[%c0_13, %c0_14] : memref<1024x512xbf16, #tpu.memory_space<vmem>>, vector<1024x512xbf16>
      %cst_15 = arith.constant dense<0.000000e+00> : vector<8x512xf32>
      %18 = tpu.matmul %16, %17, %cst_15 {dimension_numbers = #tpu.dot_dimension_numbers<[1], [0], [0], [1], [0, 0, 1, 1], [], []>} : vector<8x1024xbf16>, vector<1024x512xbf16>, vector<8x512xf32> -> vector<8x512xf32>
      %c0_16 = arith.constant 0 : index
      %c0_17 = arith.constant 0 : index
      %19 = vector.load %arg5[%c0_16, %c0_17] : memref<1x512xf32, #tpu.memory_space<vmem>>, vector<1x512xf32>
      %20 = vector.broadcast %19 : vector<1x512xf32> to vector<8x512xf32>
      %21 = arith.addf %18, %20 : vector<8x512xf32>
      %22 = arith.truncf %21 : vector<8x512xf32> to vector<8x512xbf16>
      %c0_18 = arith.constant 0 : index
      %c0_19 = arith.constant 0 : index
      %23 = vector.load %arg6[%c0_18, %c0_19] : memref<512x256xbf16, #tpu.memory_space<vmem>>, vector<512x256xbf16>
      %cst_20 = arith.constant dense<0.000000e+00> : vector<8x256xf32>
      %24 = tpu.matmul %22, %23, %cst_20 {dimension_numbers = #tpu.dot_dimension_numbers<[1], [0], [0], [1], [0, 0, 1, 1], [], []>} : vector<8x512xbf16>, vector<512x256xbf16>, vector<8x256xf32> -> vector<8x256xf32>
      %c0_21 = arith.constant 0 : index
      %c0_22 = arith.constant 0 : index
      %25 = vector.load %arg7[%c0_21, %c0_22] : memref<1x256xf32, #tpu.memory_space<vmem>>, vector<1x256xf32>
      %26 = vector.broadcast %25 : vector<1x256xf32> to vector<8x256xf32>
      %27 = arith.addf %24, %26 : vector<8x256xf32>
      %28 = arith.truncf %27 : vector<8x256xf32> to vector<8x256xbf16>
      %c0_23 = arith.constant 0 : index
      %c0_24 = arith.constant 0 : index
      %29 = vector.load %arg8[%c0_23, %c0_24] : memref<256x128xbf16, #tpu.memory_space<vmem>>, vector<256x128xbf16>
      %cst_25 = arith.constant dense<0.000000e+00> : vector<8x128xf32>
      %30 = tpu.matmul %28, %29, %cst_25 {dimension_numbers = #tpu.dot_dimension_numbers<[1], [0], [0], [1], [0, 0, 1, 1], [], []>} : vector<8x256xbf16>, vector<256x128xbf16>, vector<8x128xf32> -> vector<8x128xf32>
      %c0_26 = arith.constant 0 : index
      %c0_27 = arith.constant 0 : index
      %31 = vector.load %arg9[%c0_26, %c0_27] : memref<1x128xf32, #tpu.memory_space<vmem>>, vector<1x128xf32>
      %32 = vector.broadcast %31 : vector<1x128xf32> to vector<8x128xf32>
      %33 = arith.addf %30, %32 : vector<8x128xf32>
      %34 = arith.truncf %33 : vector<8x128xf32> to vector<8x128xbf16>
      %c0_28 = arith.constant 0 : index
      %c0_29 = arith.constant 0 : index
      %35 = vector.load %arg10[%c0_28, %c0_29] : memref<128x64xbf16, #tpu.memory_space<vmem>>, vector<128x64xbf16>
      %cst_30 = arith.constant dense<0.000000e+00> : vector<8x64xf32>
      %36 = tpu.matmul %34, %35, %cst_30 {dimension_numbers = #tpu.dot_dimension_numbers<[1], [0], [0], [1], [0, 0, 1, 1], [], []>} : vector<8x128xbf16>, vector<128x64xbf16>, vector<8x64xf32> -> vector<8x64xf32>
      %c0_31 = arith.constant 0 : index
      %c0_32 = arith.constant 0 : index
      %37 = vector.load %arg11[%c0_31, %c0_32] : memref<1x64xf32, #tpu.memory_space<vmem>>, vector<1x64xf32>
      %38 = vector.broadcast %37 : vector<1x64xf32> to vector<8x64xf32>
      %39 = arith.addf %36, %38 : vector<8x64xf32>
      %40 = arith.truncf %39 : vector<8x64xf32> to vector<8x64xbf16>
      %c0_33 = arith.constant 0 : index
      %c0_34 = arith.constant 0 : index
      %41 = vector.load %arg12[%c0_33, %c0_34] : memref<64x5xbf16, #tpu.memory_space<vmem>>, vector<64x5xbf16>
      %cst_35 = arith.constant dense<0.000000e+00> : vector<8x5xf32>
      %42 = tpu.matmul %40, %41, %cst_35 {dimension_numbers = #tpu.dot_dimension_numbers<[1], [0], [0], [1], [0, 0, 1, 1], [], []>} : vector<8x64xbf16>, vector<64x5xbf16>, vector<8x5xf32> -> vector<8x5xf32>
      %c0_36 = arith.constant 0 : index
      %c0_37 = arith.constant 0 : index
      %43 = vector.load %arg13[%c0_36, %c0_37] : memref<1x5xf32, #tpu.memory_space<vmem>>, vector<1x5xf32>
      %44 = vector.broadcast %43 : vector<1x5xf32> to vector<8x5xf32>
      %45 = arith.addf %42, %44 : vector<8x5xf32>
      %c0_38 = arith.constant 0 : index
      %c0_39 = arith.constant 0 : index
      %46 = vector.load %arg14[%c0_38, %c0_39] : memref<8x5xf32, #tpu.memory_space<vmem>>, vector<8x5xf32>
      tpu.vector_store %arg14[%c0_38, %c0_39], %45 {strides = array<i32>} : memref<8x5xf32, #tpu.memory_space<vmem>>, vector<8x5xf32>,
    } else {
    }
    return
  }
  func.func @transform_0(%arg0: i32) -> (i32, i32) {
    %c0_i32 = arith.constant 0 : i32
    %c0_i32_0 = arith.constant 0 : i32
    return %c0_i32, %arg0 : i32, i32
  }
  func.func @transform_1(%arg0: i32) -> (i32, i32) {
    %c0_i32 = arith.constant 0 : i32
    %c0_i32_0 = arith.constant 0 : i32
    return %arg0, %c0_i32 : i32, i32
  }
  func.func @transform_2(%arg0: i32) -> (i32, i32) {
    %c0_i32 = arith.constant 0 : i32
    %c0_i32_0 = arith.constant 0 : i32
    %c0_i32_1 = arith.constant 0 : i32
    return %c0_i32, %c0_i32_0 : i32, i32
  }
  func.func @transform_3(%arg0: i32) -> (i32, i32) {
    %c0_i32 = arith.constant 0 : i32
    %c0_i32_0 = arith.constant 0 : i32
    %c0_i32_1 = arith.constant 0 : i32
    return %c0_i32, %c0_i32_0 : i32, i32
  }
  func.func @transform_4(%arg0: i32) -> (i32, i32) {
    %c0_i32 = arith.constant 0 : i32
    %c0_i32_0 = arith.constant 0 : i32
    %c0_i32_1 = arith.constant 0 : i32
    return %c0_i32, %c0_i32_0 : i32, i32
  }
  func.func @transform_5(%arg0: i32) -> (i32, i32) {
    %c0_i32 = arith.constant 0 : i32
    %c0_i32_0 = arith.constant 0 : i32
    %c0_i32_1 = arith.constant 0 : i32
    return %c0_i32, %c0_i32_0 : i32, i32
  }
  func.func @transform_6(%arg0: i32) -> (i32, i32) {
    %c0_i32 = arith.constant 0 : i32
    %c0_i32_0 = arith.constant 0 : i32
    %c0_i32_1 = arith.constant 0 : i32
    return %c0_i32, %c0_i32_0 : i32, i32
  }
  func.func @transform_7(%arg0: i32) -> (i32, i32) {
    %c0_i32 = arith.constant 0 : i32
    %c0_i32_0 = arith.constant 0 : i32
    %c0_i32_1 = arith.constant 0 : i32
    return %c0_i32, %c0_i32_0 : i32, i32
  }
  func.func @transform_8(%arg0: i32) -> (i32, i32) {
    %c0_i32 = arith.constant 0 : i32
    %c0_i32_0 = arith.constant 0 : i32
    %c0_i32_1 = arith.constant 0 : i32
    return %c0_i32, %c0_i32_0 : i32, i32
  }
  func.func @transform_9(%arg0: i32) -> (i32, i32) {
    %c0_i32 = arith.constant 0 : i32
    %c0_i32_0 = arith.constant 0 : i32
    %c0_i32_1 = arith.constant 0 : i32
    return %c0_i32, %c0_i32_0 : i32, i32
  }
  func.func @transform_10(%arg0: i32) -> (i32, i32) {
    %c0_i32 = arith.constant 0 : i32
    %c0_i32_0 = arith.constant 0 : i32
    %c0_i32_1 = arith.constant 0 : i32
    return %c0_i32, %c0_i32_0 : i32, i32
  }
  func.func @transform_11(%arg0: i32) -> (i32, i32) {
    %c0_i32 = arith.constant 0 : i32
    %c0_i32_0 = arith.constant 0 : i32
    %c0_i32_1 = arith.constant 0 : i32
    return %c0_i32, %c0_i32_0 : i32, i32
  }
  func.func @transform_12(%arg0: i32) -> (i32, i32) {
    %c0_i32 = arith.constant 0 : i32
    %c0_i32_0 = arith.constant 0 : i32
    %c0_i32_1 = arith.constant 0 : i32
    return %c0_i32, %c0_i32_0 : i32, i32
  }
  func.func @transform_13(%arg0: i32) -> (i32, i32) {
    %c0_i32 = arith.constant 0 : i32
    %c0_i32_0 = arith.constant 0 : i32
    %c0_i32_1 = arith.constant 0 : i32
    return %c0_i32, %c0_i32_0 : i32, i32
  }
}

</mosaic_0001>

<llo_original>
// kernel: _mydnn_forward_impl.1
$region0: #{_mydnn_forward_impl.1}
  #allocation0 [shape = 'u32[]', space=smem, size = 0x4, offset = 0x4, fixed_abs, tag = 'smem constant byte address 0x4 - core index']
  #allocation1 [shape = 'u32[144,128]{1,0:T(1,128)}', space=vmem, size = 0x12000, scoped, tag = 'internal scratch']
  #allocation2 [shape = 'f32[8,1024]{1,0:T(8,128)}', space=vmem, size = 0x8000, scoped, tag = 'scratch operand']
  %s0 = inlined_call_operand.vmem [shape: bf16[8,5120], index: 0, kind: input, shape index: {}]
  %s1 = inlined_call_operand.hbm [shape: bf16[5120,1024], index: 1, kind: input, shape index: {}]
  %s2 = inlined_call_operand.hbm [shape: f32[1,1024], index: 2, kind: input, shape index: {}]
  %s3 = inlined_call_operand.hbm [shape: bf16[1024,512], index: 3, kind: input, shape index: {}]
  %s4 = inlined_call_operand.hbm [shape: f32[1,512], index: 4, kind: input, shape index: {}]
  %s5 = inlined_call_operand.hbm [shape: bf16[512,256], index: 5, kind: input, shape index: {}]
  %s6 = inlined_call_operand.hbm [shape: f32[1,256], index: 6, kind: input, shape index: {}]
  %s7 = inlined_call_operand.hbm [shape: bf16[256,128], index: 7, kind: input, shape index: {}]
  %s8 = inlined_call_operand.hbm [shape: f32[1,128], index: 8, kind: input, shape index: {}]
  %s9 = inlined_call_operand.vmem [shape: bf16[128,64], index: 9, kind: input, shape index: {}]
  %s10 = inlined_call_operand.hbm [shape: f32[1,64], index: 10, kind: input, shape index: {}]
  %s11 = inlined_call_operand.vmem [shape: bf16[64,5], index: 11, kind: input, shape index: {}]
  %s12 = inlined_call_operand.hbm [shape: f32[1,5], index: 12, kind: input, shape index: {}]
  %s13 = inlined_call_operand.hbm [shape: f32[8,5], index: 13, kind: output, shape index: {}]
  %s14 = sld [smem:[#allocation0]]
  $region133: #{_mydnn_forward_impl.1} parent=0
    _
  %s16 = ssub.s32 1, %s14
  %s17 = scalar_select 0, %s16, %s14
  $region1: #{_mydnn_forward_impl.1} parent=0
    #allocation3 [shape = 'u8[10485760]{0}', space=vmem, size = 0xa00000, scoped, tag = 'input window, operand 1']
    #allocation4 [shape = 's32[2]{0}', space=sflag, size = 0x8, scoped, tag = 'scoped memory for _mydnn_forward_impl.1']
    #allocation5 [shape = 's32[2]{0}', space=sflag, size = 0x8, scoped, tag = 'scoped memory for _mydnn_forward_impl.1']
    #allocation6 [shape = 'u8[4096]{0}', space=vmem, size = 0x1000, scoped, tag = 'input window, operand 2, single buffered']
    #allocation7 [shape = 's32[1]{0}', space=sflag, size = 0x4, scoped, tag = 'scoped memory for _mydnn_forward_impl.1']
    #allocation8 [shape = 'u8[1048576]{0}', space=vmem, size = 0x100000, scoped, tag = 'input window, operand 3, single buffered']
    #allocation9 [shape = 'u8[2048]{0}', space=vmem, size = 0x800, scoped, tag = 'input window, operand 4, single buffered']
    #allocation10 [shape = 's32[1]{0}', space=sflag, size = 0x4, scoped, tag = 'scoped memory for _mydnn_forward_impl.1']
    #allocation11 [shape = 'u8[262144]{0}', space=vmem, size = 0x40000, scoped, tag = 'input window, operand 5, single buffered']
    #allocation12 [shape = 'u8[1024]{0}', space=vmem, size = 0x400, scoped, tag = 'input window, operand 6, single buffered']
    #allocation13 [shape = 's32[1]{0}', space=sflag, size = 0x4, scoped, tag = 'scoped memory for _mydnn_forward_impl.1']
    #allocation14 [shape = 'u8[65536]{0}', space=vmem, size = 0x10000, scoped, tag = 'input window, operand 7, single buffered']
    #allocation15 [shape = 'u8[512]{0}', space=vmem, size = 0x400, scoped, tag = 'input window, operand 8, single buffered']
    #allocation16 [shape = 's32[1]{0}', space=sflag, size = 0x4, scoped, tag = 'scoped memory for _mydnn_forward_impl.1']
    #allocation17 [shape = 'u8[512]{0}', space=vmem, size = 0x400, scoped, tag = 'input window, operand 10, single buffered']
    #allocation18 [shape = 'u8[512]{0}', space=vmem, size = 0x400, scoped, tag = 'input window, operand 12, single buffered']
    #allocation19 [shape = 's32[1]{0}', space=sflag, size = 0x4, scoped, tag = 'scoped memory for _mydnn_forward_impl.1']
    #allocation20 [shape = 'u8[4096]{0}', space=vmem, size = 0x1000, scoped, tag = 'output window, operand 0, single buffered']
    %18 = vsyncpa [#allocation4], 0
    %s19 = scalar_lea.sflag [#allocation4], 1
    %20 = vsyncpa %s19, 0
    %21 = vsyncpa [#allocation7], 0
    %22 = vsyncpa [#allocation10], 0
    %23 = vsyncpa [#allocation13], 0
    %24 = vsyncpa [#allocation16], 0
    %25 = vsyncpa [#allocation19], 0
    %26 = vsyncpa [#allocation5], 0
    loop: start=0, step=1, limit=4
    $region2: #{_mydnn_forward_impl.1} parent=1 // loop_pre_header
      _
    $region3: #{_mydnn_forward_impl.1} parent=1 // loop_header
      %s28 = sphi 0, %s32
      %p29 = scmp.ge.s32.totalorder %s28, 4
      %s38 = sphi 0, %s40
      %s41 = sphi 0, %s38
      %s42 = sphi 0, %s41
      %s58 = sphi 0, %s42
      %s64 = sphi 0, %s66
      %s67 = sphi 0, %s64
      %s68 = sphi 0, %s67
      %s84 = sphi 0, %s68
      %s88 = sphi 0, %s88
      %s90 = sphi 0, %s88
      %s91 = sphi 0, %s90
      %s105 = sphi 0, %s91
      %s109 = sphi 0, %s109
      %s111 = sphi 0, %s109
      %s112 = sphi 0, %s111
      %s126 = sphi 0, %s112
      %s130 = sphi 0, %s130
      %s132 = sphi 0, %s130
      %s133 = sphi 0, %s132
      %s147 = sphi 0, %s133
      %s151 = sphi 0, %s151
      %s153 = sphi 0, %s151
      %s154 = sphi 0, %s153
      %s168 = sphi 0, %s154
      %s172 = sphi 0, %s172
      %s174 = sphi 0, %s172
      %s175 = sphi 0, %s174
      %s189 = sphi 0, %s175
      %s193 = sphi 0, %s193
      %s195 = sphi 0, %s193
      %s196 = sphi 0, %s195
      %s210 = sphi 0, %s196
      %s214 = sphi 0, %s214
      %s216 = sphi 0, %s214
      %s217 = sphi 0, %s216
      %s231 = sphi 0, %s217
      %s235 = sphi 0, %s235
      %s237 = sphi 0, %s235
      %s238 = sphi 0, %s237
      %s252 = sphi 0, %s238
      %s256 = sphi 0, %s256
      %s258 = sphi 0, %s256
      %s259 = sphi 0, %s258
      %s273 = sphi 0, %s259
      %s277 = sphi 0, %s277
      %s279 = sphi 0, %s277
      %s280 = sphi 0, %s279
      %s294 = sphi 0, %s280
      %s298 = sphi 0, %s298
      %s300 = sphi 0, %s298
      %s301 = sphi 0, %s300
      %s315 = sphi 0, %s301
      %s319 = sphi 0, %s319
      %s321 = sphi 0, %s319
      %s322 = sphi 0, %s321
      %s336 = sphi 0, %s322
    $region4: #{_mydnn_forward_impl.1} parent=1 // loop_header_branch
      %31 = sbr.rel (%p29) target = $region8
    $region5: #{_mydnn_forward_impl.1} parent=1 // loop_body
      %s33 = ssub.s32 %s28, 1
      %s34 = ssub.s32 %s28, 2
      %s35 = sadd.s32 %s28, 1
      %s36 = ssub.s32 %s28, %s35
      %p37 = scmp.eq.s32.totalorder %s36, 0
      %s39 = sadd.s32 %s38, 1
      %s40 = scalar_select %p37, %s38, %s39
      %p43 = pneg %p37
      %p44 = scmp.eq.s32.totalorder %s28, 1
      %p45 = por %p43, %p44
      %p46 = scmp.ne.s32.totalorder %s38, %s41
      %p47 = scmp.eq.s32.totalorder %s28, 0
      %p48 = por %p46, %p47
      %p49 = scmp.ne.s32.totalorder %s38, %s41
      %p50 = scmp.eq.s32.totalorder %s33, 1
      %p51 = por %p49, %p50
      %p52 = scmp.ne.s32.totalorder %s41, %s42
      %p53 = scmp.eq.s32.totalorder %s33, 0
      %p54 = por %p52, %p53
      %p55 = scmp.ne.s32.totalorder %s41, %s42
      %p56 = scmp.eq.s32.totalorder %s34, 1
      %p57 = por %p55, %p56
      %p59 = scmp.ne.s32.totalorder %s42, %s58
      %p60 = scmp.eq.s32.totalorder %s34, 0
      %p61 = por %p59, %p60
      %s62 = ssub.s32 %s28, %s35
      %p63 = scmp.eq.s32.totalorder %s62, 0
      %s65 = sadd.s32 %s64, 1
      %s66 = scalar_select %p63, %s64, %s65
      %p69 = pneg %p63
      %p70 = scmp.eq.s32.totalorder %s28, 1
      %p71 = por %p69, %p70
      %p72 = scmp.ne.s32.totalorder %s64, %s67
      %p73 = scmp.eq.s32.totalorder %s28, 0
      %p74 = por %p72, %p73
      %p75 = scmp.ne.s32.totalorder %s64, %s67
      %p76 = scmp.eq.s32.totalorder %s33, 1
      %p77 = por %p75, %p76
      %p78 = scmp.ne.s32.totalorder %s67, %s68
      %p79 = scmp.eq.s32.totalorder %s33, 0
      %p80 = por %p78, %p79
      %p81 = scmp.ne.s32.totalorder %s67, %s68
      %p82 = scmp.eq.s32.totalorder %s34, 1
      %p83 = por %p81, %p82
      %p85 = scmp.ne.s32.totalorder %s68, %s84
      %p86 = scmp.eq.s32.totalorder %s34, 0
      %p87 = por %p85, %p86
      %s89 = sadd.s32 %s88, 1
      %p92 = scmp.eq.s32.totalorder %s28, 1
      %p93 = scmp.ne.s32.totalorder %s88, %s90
      %p94 = scmp.eq.s32.totalorder %s28, 0
      %p95 = por %p93, %p94
      %p96 = scmp.ne.s32.totalorder %s88, %s90
      %p97 = scmp.eq.s32.totalorder %s33, 1
      %p98 = por %p96, %p97
      %p99 = scmp.ne.s32.totalorder %s90, %s91
      %p100 = scmp.eq.s32.totalorder %s33, 0
      %p101 = por %p99, %p100
      %p102 = scmp.ne.s32.totalorder %s90, %s91
      %p103 = scmp.eq.s32.totalorder %s34, 1
      %p104 = por %p102, %p103
      %p106 = scmp.ne.s32.totalorder %s91, %s105
      %p107 = scmp.eq.s32.totalorder %s34, 0
      %p108 = por %p106, %p107
      %s110 = sadd.s32 %s109, 1
      %p113 = scmp.eq.s32.totalorder %s28, 1
      %p114 = scmp.ne.s32.totalorder %s109, %s111
      %p115 = scmp.eq.s32.totalorder %s28, 0
      %p116 = por %p114, %p115
      %p117 = scmp.ne.s32.totalorder %s109, %s111
      %p118 = scmp.eq.s32.totalorder %s33, 1
      %p119 = por %p117, %p118
      %p120 = scmp.ne.s32.totalorder %s111, %s112
      %p121 = scmp.eq.s32.totalorder %s33, 0
      %p122 = por %p120, %p121
      %p123 = scmp.ne.s32.totalorder %s111, %s112
      %p124 = scmp.eq.s32.totalorder %s34, 1
      %p125 = por %p123, %p124
      %p127 = scmp.ne.s32.totalorder %s112, %s126
      %p128 = scmp.eq.s32.totalorder %s34, 0
      %p129 = por %p127, %p128
      %s131 = sadd.s32 %s130, 1
      %p134 = scmp.eq.s32.totalorder %s28, 1
      %p135 = scmp.ne.s32.totalorder %s130, %s132
      %p136 = scmp.eq.s32.totalorder %s28, 0
      %p137 = por %p135, %p136
      %p138 = scmp.ne.s32.totalorder %s130, %s132
      %p139 = scmp.eq.s32.totalorder %s33, 1
      %p140 = por %p138, %p139
      %p141 = scmp.ne.s32.totalorder %s132, %s133
      %p142 = scmp.eq.s32.totalorder %s33, 0
      %p143 = por %p141, %p142
      %p144 = scmp.ne.s32.totalorder %s132, %s133
      %p145 = scmp.eq.s32.totalorder %s34, 1
      %p146 = por %p144, %p145
      %p148 = scmp.ne.s32.totalorder %s133, %s147
      %p149 = scmp.eq.s32.totalorder %s34, 0
      %p150 = por %p148, %p149
      %s152 = sadd.s32 %s151, 1
      %p155 = scmp.eq.s32.totalorder %s28, 1
      %p156 = scmp.ne.s32.totalorder %s151, %s153
      %p157 = scmp.eq.s32.totalorder %s28, 0
      %p158 = por %p156, %p157
      %p159 = scmp.ne.s32.totalorder %s151, %s153
      %p160 = scmp.eq.s32.totalorder %s33, 1
      %p161 = por %p159, %p160
      %p162 = scmp.ne.s32.totalorder %s153, %s154
      %p163 = scmp.eq.s32.totalorder %s33, 0
      %p164 = por %p162, %p163
      %p165 = scmp.ne.s32.totalorder %s153, %s154
      %p166 = scmp.eq.s32.totalorder %s34, 1
      %p167 = por %p165, %p166
      %p169 = scmp.ne.s32.totalorder %s154, %s168
      %p170 = scmp.eq.s32.totalorder %s34, 0
      %p171 = por %p169, %p170
      %s173 = sadd.s32 %s172, 1
      %p176 = scmp.eq.s32.totalorder %s28, 1
      %p177 = scmp.ne.s32.totalorder %s172, %s174
      %p178 = scmp.eq.s32.totalorder %s28, 0
      %p179 = por %p177, %p178
      %p180 = scmp.ne.s32.totalorder %s172, %s174
      %p181 = scmp.eq.s32.totalorder %s33, 1
      %p182 = por %p180, %p181
      %p183 = scmp.ne.s32.totalorder %s174, %s175
      %p184 = scmp.eq.s32.totalorder %s33, 0
      %p185 = por %p183, %p184
      %p186 = scmp.ne.s32.totalorder %s174, %s175
      %p187 = scmp.eq.s32.totalorder %s34, 1
      %p188 = por %p186, %p187
      %p190 = scmp.ne.s32.totalorder %s175, %s189
      %p191 = scmp.eq.s32.totalorder %s34, 0
      %p192 = por %p190, %p191
      %s194 = sadd.s32 %s193, 1
      %p197 = scmp.eq.s32.totalorder %s28, 1
      %p198 = scmp.ne.s32.totalorder %s193, %s195
      %p199 = scmp.eq.s32.totalorder %s28, 0
      %p200 = por %p198, %p199
      %p201 = scmp.ne.s32.totalorder %s193, %s195
      %p202 = scmp.eq.s32.totalorder %s33, 1
      %p203 = por %p201, %p202
      %p204 = scmp.ne.s32.totalorder %s195, %s196
      %p205 = scmp.eq.s32.totalorder %s33, 0
      %p206 = por %p204, %p205
      %p207 = scmp.ne.s32.totalorder %s195, %s196
      %p208 = scmp.eq.s32.totalorder %s34, 1
      %p209 = por %p207, %p208
      %p211 = scmp.ne.s32.totalorder %s196, %s210
      %p212 = scmp.eq.s32.totalorder %s34, 0
      %p213 = por %p211, %p212
      %s215 = sadd.s32 %s214, 1
      %p218 = scmp.eq.s32.totalorder %s28, 1
      %p219 = scmp.ne.s32.totalorder %s214, %s216
      %p220 = scmp.eq.s32.totalorder %s28, 0
      %p221 = por %p219, %p220
      %p222 = scmp.ne.s32.totalorder %s214, %s216
      %p223 = scmp.eq.s32.totalorder %s33, 1
      %p224 = por %p222, %p223
      %p225 = scmp.ne.s32.totalorder %s216, %s217
      %p226 = scmp.eq.s32.totalorder %s33, 0
      %p227 = por %p225, %p226
      %p228 = scmp.ne.s32.totalorder %s216, %s217
      %p229 = scmp.eq.s32.totalorder %s34, 1
      %p230 = por %p228, %p229
      %p232 = scmp.ne.s32.totalorder %s217, %s231
      %p233 = scmp.eq.s32.totalorder %s34, 0
      %p234 = por %p232, %p233
      %s236 = sadd.s32 %s235, 1
      %p239 = scmp.eq.s32.totalorder %s28, 1
      %p240 = scmp.ne.s32.totalorder %s235, %s237
      %p241 = scmp.eq.s32.totalorder %s28, 0
      %p242 = por %p240, %p241
      %p243 = scmp.ne.s32.totalorder %s235, %s237
      %p244 = scmp.eq.s32.totalorder %s33, 1
      %p245 = por %p243, %p244
      %p246 = scmp.ne.s32.totalorder %s237, %s238
      %p247 = scmp.eq.s32.totalorder %s33, 0
      %p248 = por %p246, %p247
      %p249 = scmp.ne.s32.totalorder %s237, %s238
      %p250 = scmp.eq.s32.totalorder %s34, 1
      %p251 = por %p249, %p250
      %p253 = scmp.ne.s32.totalorder %s238, %s252
      %p254 = scmp.eq.s32.totalorder %s34, 0
      %p255 = por %p253, %p254
      %s257 = sadd.s32 %s256, 1
      %p260 = scmp.eq.s32.totalorder %s28, 1
      %p261 = scmp.ne.s32.totalorder %s256, %s258
      %p262 = scmp.eq.s32.totalorder %s28, 0
      %p263 = por %p261, %p262
      %p264 = scmp.ne.s32.totalorder %s256, %s258
      %p265 = scmp.eq.s32.totalorder %s33, 1
      %p266 = por %p264, %p265
      %p267 = scmp.ne.s32.totalorder %s258, %s259
      %p268 = scmp.eq.s32.totalorder %s33, 0
      %p269 = por %p267, %p268
      %p270 = scmp.ne.s32.totalorder %s258, %s259
      %p271 = scmp.eq.s32.totalorder %s34, 1
      %p272 = por %p270, %p271
      %p274 = scmp.ne.s32.totalorder %s259, %s273
      %p275 = scmp.eq.s32.totalorder %s34, 0
      %p276 = por %p274, %p275
      %s278 = sadd.s32 %s277, 1
      %p281 = scmp.eq.s32.totalorder %s28, 1
      %p282 = scmp.ne.s32.totalorder %s277, %s279
      %p283 = scmp.eq.s32.totalorder %s28, 0
      %p284 = por %p282, %p283
      %p285 = scmp.ne.s32.totalorder %s277, %s279
      %p286 = scmp.eq.s32.totalorder %s33, 1
      %p287 = por %p285, %p286
      %p288 = scmp.ne.s32.totalorder %s279, %s280
      %p289 = scmp.eq.s32.totalorder %s33, 0
      %p290 = por %p288, %p289
      %p291 = scmp.ne.s32.totalorder %s279, %s280
      %p292 = scmp.eq.s32.totalorder %s34, 1
      %p293 = por %p291, %p292
      %p295 = scmp.ne.s32.totalorder %s280, %s294
      %p296 = scmp.eq.s32.totalorder %s34, 0
      %p297 = por %p295, %p296
      %s299 = sadd.s32 %s298, 1
      %p302 = scmp.eq.s32.totalorder %s28, 1
      %p303 = scmp.ne.s32.totalorder %s298, %s300
      %p304 = scmp.eq.s32.totalorder %s28, 0
      %p305 = por %p303, %p304
      %p306 = scmp.ne.s32.totalorder %s298, %s300
      %p307 = scmp.eq.s32.totalorder %s33, 1
      %p308 = por %p306, %p307
      %p309 = scmp.ne.s32.totalorder %s300, %s301
      %p310 = scmp.eq.s32.totalorder %s33, 0
      %p311 = por %p309, %p310
      %p312 = scmp.ne.s32.totalorder %s300, %s301
      %p313 = scmp.eq.s32.totalorder %s34, 1
      %p314 = por %p312, %p313
      %p316 = scmp.ne.s32.totalorder %s301, %s315
      %p317 = scmp.eq.s32.totalorder %s34, 0
      %p318 = por %p316, %p317
      %s320 = sadd.s32 %s319, 1
      %p323 = scmp.eq.s32.totalorder %s28, 1
      %p324 = scmp.ne.s32.totalorder %s319, %s321
      %p325 = scmp.eq.s32.totalorder %s28, 0
      %p326 = por %p324, %p325
      %p327 = scmp.ne.s32.totalorder %s319, %s321
      %p328 = scmp.eq.s32.totalorder %s33, 1
      %p329 = por %p327, %p328
      %p330 = scmp.ne.s32.totalorder %s321, %s322
      %p331 = scmp.eq.s32.totalorder %s33, 0
      %p332 = por %p330, %p331
      %p333 = scmp.ne.s32.totalorder %s321, %s322
      %p334 = scmp.eq.s32.totalorder %s34, 1
      %p335 = por %p333, %p334
      %p337 = scmp.ne.s32.totalorder %s322, %s336
      %p338 = scmp.eq.s32.totalorder %s34, 0
      %p339 = por %p337, %p338
      %p340 = scmp.le.s32.totalorder 1, %s28
      %p341 = scmp.lt.s32.totalorder %s28, 3
      %p342 = pnand %p340, %p341
      %p343 = pneg %p342
      // Predicated region
      $region9: #{_mydnn_forward_impl.1} parent=5 // pred_check
        _
      $region10: #{_mydnn_forward_impl.1} parent=5 // pred_check_branch
        %345 = sbr.rel (%p342) target = $region12
      $region11: #{_mydnn_forward_impl.1} parent=5 // pred_region
        %s346 = ssub.s32 %s28, 1
        // Predicated region
        $region13: #{_mydnn_forward_impl.1} parent=11 // pred_check
          %p347 = pneg %p101
        $region14: #{_mydnn_forward_impl.1} parent=11 // pred_check_branch
          %349 = sbr.rel (%p347) target = $region16
        $region15: #{_mydnn_forward_impl.1} parent=11 // pred_region
          %s351 = ssub.s32 128, 128
          %352 = vsyncadd [#allocation7], %s351
          %s354 = sshll.u32 [#allocation6], 4
          %s355 = int_to_ptr.vmem [resolvable:$true] %s354
          %357 = dma.hbm_to_vmem [thread:$0]  %s2, 128, %s355, [#allocation7]
        $region16: #{_mydnn_forward_impl.1} parent=11 // pred_fallthru
          _
        // Predicated region
        $region17: #{_mydnn_forward_impl.1} parent=11 // pred_check
          %p358 = pneg %p122
        $region18: #{_mydnn_forward_impl.1} parent=11 // pred_check_branch
          %360 = sbr.rel (%p358) target = $region20
        $region19: #{_mydnn_forward_impl.1} parent=11 // pred_region
          %s362 = ssub.s32 32768, 32768
          %363 = vsyncadd [#allocation7], %s362
          %s364 = sshll.u32 [#allocation8], 4
          %s365 = int_to_ptr.vmem [resolvable:$true] %s364
          %370 = dma.hbm_to_vmem [thread:$0]  %s3, 32768, %s365, [#allocation7], 256, 256, 16
        $region20: #{_mydnn_forward_impl.1} parent=11 // pred_fallthru
          _
        // Predicated region
        $region21: #{_mydnn_forward_impl.1} parent=11 // pred_check
          %p371 = pneg %p143
        $region22: #{_mydnn_forward_impl.1} parent=11 // pred_check_branch
          %373 = sbr.rel (%p371) target = $region24
        $region23: #{_mydnn_forward_impl.1} parent=11 // pred_region
          %s375 = ssub.s32 64, 64
          %376 = vsyncadd [#allocation10], %s375
          %s378 = sshll.u32 [#allocation9], 4
          %s379 = int_to_ptr.vmem [resolvable:$true] %s378
          %381 = dma.hbm_to_vmem [thread:$0]  %s4, 64, %s379, [#allocation10]
        $region24: #{_mydnn_forward_impl.1} parent=11 // pred_fallthru
          _
        // Predicated region
        $region25: #{_mydnn_forward_impl.1} parent=11 // pred_check
          %p382 = pneg %p164
        $region26: #{_mydnn_forward_impl.1} parent=11 // pred_check_branch
          %384 = sbr.rel (%p382) target = $region28
        $region27: #{_mydnn_forward_impl.1} parent=11 // pred_region
          %s386 = ssub.s32 8192, 8192
          %387 = vsyncadd [#allocation10], %s386
          %s388 = sshll.u32 [#allocation11], 4
          %s389 = int_to_ptr.vmem [resolvable:$true] %s388
          %394 = dma.hbm_to_vmem [thread:$0]  %s5, 8192, %s389, [#allocation10], 128, 128, 8
        $region28: #{_mydnn_forward_impl.1} parent=11 // pred_fallthru
          _
        // Predicated region
        $region29: #{_mydnn_forward_impl.1} parent=11 // pred_check
          %p395 = pneg %p185
        $region30: #{_mydnn_forward_impl.1} parent=11 // pred_check_branch
          %397 = sbr.rel (%p395) target = $region32
        $region31: #{_mydnn_forward_impl.1} parent=11 // pred_region
          %s399 = ssub.s32 32, 32
          %400 = vsyncadd [#allocation13], %s399
          %s402 = sshll.u32 [#allocation12], 4
          %s403 = int_to_ptr.vmem [resolvable:$true] %s402
          %405 = dma.hbm_to_vmem [thread:$0]  %s6, 32, %s403, [#allocation13]
        $region32: #{_mydnn_forward_impl.1} parent=11 // pred_fallthru
          _
        // Predicated region
        $region33: #{_mydnn_forward_impl.1} parent=11 // pred_check
          %p406 = pneg %p206
        $region34: #{_mydnn_forward_impl.1} parent=11 // pred_check_branch
          %408 = sbr.rel (%p406) target = $region36
        $region35: #{_mydnn_forward_impl.1} parent=11 // pred_region
          %s410 = ssub.s32 2048, 2048
          %411 = vsyncadd [#allocation13], %s410
          %s412 = sshll.u32 [#allocation14], 4
          %s413 = int_to_ptr.vmem [resolvable:$true] %s412
          %418 = dma.hbm_to_vmem [thread:$0]  %s7, 2048, %s413, [#allocation13], 64, 64, 4
        $region36: #{_mydnn_forward_impl.1} parent=11 // pred_fallthru
          _
        // Predicated region
        $region37: #{_mydnn_forward_impl.1} parent=11 // pred_check
          %p419 = pneg %p227
        $region38: #{_mydnn_forward_impl.1} parent=11 // pred_check_branch
          %421 = sbr.rel (%p419) target = $region40
        $region39: #{_mydnn_forward_impl.1} parent=11 // pred_region
          %s423 = ssub.s32 16, 16
          %424 = vsyncadd [#allocation16], %s423
          %s426 = sshll.u32 [#allocation15], 4
          %s427 = int_to_ptr.vmem [resolvable:$true] %s426
          %429 = dma.hbm_to_vmem [thread:$0]  %s8, 16, %s427, [#allocation16]
        $region40: #{_mydnn_forward_impl.1} parent=11 // pred_fallthru
          _
        // Predicated region
        $region41: #{_mydnn_forward_impl.1} parent=11 // pred_check
          %p430 = pneg %p248
        $region42: #{_mydnn_forward_impl.1} parent=11 // pred_check_branch
          %432 = sbr.rel (%p430) target = $region44
        $region43: #{_mydnn_forward_impl.1} parent=11 // pred_region
          _
        $region44: #{_mydnn_forward_impl.1} parent=11 // pred_fallthru
          _
        // Predicated region
        $region45: #{_mydnn_forward_impl.1} parent=11 // pred_check
          %p433 = pneg %p269
        $region46: #{_mydnn_forward_impl.1} parent=11 // pred_check_branch
          %435 = sbr.rel (%p433) target = $region48
        $region47: #{_mydnn_forward_impl.1} parent=11 // pred_region
          %s437 = ssub.s32 16, 16
          %438 = vsyncadd [#allocation16], %s437
          %s440 = sshll.u32 [#allocation17], 4
          %s441 = int_to_ptr.vmem [resolvable:$true] %s440
          %443 = dma.hbm_to_vmem [thread:$0]  %s10, 16, %s441, [#allocation16]
        $region48: #{_mydnn_forward_impl.1} parent=11 // pred_fallthru
          _
        // Predicated region
        $region49: #{_mydnn_forward_impl.1} parent=11 // pred_check
          %p444 = pneg %p290
        $region50: #{_mydnn_forward_impl.1} parent=11 // pred_check_branch
          %446 = sbr.rel (%p444) target = $region52
        $region51: #{_mydnn_forward_impl.1} parent=11 // pred_region
          _
        $region52: #{_mydnn_forward_impl.1} parent=11 // pred_fallthru
          _
        // Predicated region
        $region53: #{_mydnn_forward_impl.1} parent=11 // pred_check
          %p447 = pneg %p311
        $region54: #{_mydnn_forward_impl.1} parent=11 // pred_check_branch
          %449 = sbr.rel (%p447) target = $region56
        $region55: #{_mydnn_forward_impl.1} parent=11 // pred_region
          %s451 = ssub.s32 16, 16
          %452 = vsyncadd [#allocation19], %s451
          %s454 = sshll.u32 [#allocation18], 4
          %s455 = int_to_ptr.vmem [resolvable:$true] %s454
          %457 = dma.hbm_to_vmem [thread:$0]  %s12, 16, %s455, [#allocation19]
        $region56: #{_mydnn_forward_impl.1} parent=11 // pred_fallthru
          _
      $region12: #{_mydnn_forward_impl.1} parent=5 // pred_fallthru
        _
      %p458 = scmp.lt.s32.totalorder %s28, 2
      // Predicated region
      $region57: #{_mydnn_forward_impl.1} parent=5 // pred_check
        %p459 = pneg %p458
      $region58: #{_mydnn_forward_impl.1} parent=5 // pred_check_branch
        %461 = sbr.rel (%p459) target = $region60
      $region59: #{_mydnn_forward_impl.1} parent=5 // pred_region
        // Predicated region
        $region61: #{_mydnn_forward_impl.1} parent=59 // pred_check
          %p462 = pneg %p48
        $region62: #{_mydnn_forward_impl.1} parent=59 // pred_check_branch
          %464 = sbr.rel (%p462) target = $region64
        $region63: #{_mydnn_forward_impl.1} parent=59 // pred_region
          %s465 = smul.u32 20, %s28
          %p466 = scmp.lt.s32.totalorder %s465, 39
          %s467 = scalar_select %p466, %s465, 39
          %s468 = smul.addr %s467, 4
          %s469 = scalar_lea.vmem %s0, %s468
          %s470 = smul.u32 20, %s28
        $region64: #{_mydnn_forward_impl.1} parent=59 // pred_fallthru
          _
        // Predicated region
        $region65: #{_mydnn_forward_impl.1} parent=59 // pred_check
          %p471 = pneg %p74
        $region66: #{_mydnn_forward_impl.1} parent=59 // pred_check_branch
          %473 = sbr.rel (%p471) target = $region68
        $region67: #{_mydnn_forward_impl.1} parent=59 // pred_region
          %s474 = sand.u32 %s64, 1
          %s475 = scalar_lea.sflag [#allocation4], %s474
          %s476 = sand.u32 %s64, 1
          %s477 = smul.addr %s476, 10240
          %s478 = scalar_lea.vmem [#allocation3], %s477
          %s479 = smul.u32 320, %s28
          %s481 = ssub.s32 163840, 163840
          %482 = vsyncadd %s475, %s481
          %s483 = smul.addr %s479, 8
          %s484 = smul.addr %s483, 64
          %s485 = scalar_lea.hbm %s1, %s484
          %s486 = sshll.u32 %s478, 4
          %s487 = int_to_ptr.vmem [resolvable:$true] %s486
          %492 = dma.hbm_to_vmem [thread:$0]  %s485, 163840, %s487, %s475, 512, 512, 32
        $region68: #{_mydnn_forward_impl.1} parent=59 // pred_fallthru
          _
      $region60: #{_mydnn_forward_impl.1} parent=5 // pred_fallthru
        _
      %p493 = scmp.le.s32.totalorder 1, %s28
      %p494 = scmp.lt.s32.totalorder %s28, 3
      %p495 = pnand %p493, %p494
      %p496 = pneg %p495
      // Predicated region
      $region69: #{_mydnn_forward_impl.1} parent=5 // pred_check
        _
      $region70: #{_mydnn_forward_impl.1} parent=5 // pred_check_branch
        %498 = sbr.rel (%p495) target = $region72
      $region71: #{_mydnn_forward_impl.1} parent=5 // pred_region
        %s499 = ssub.s32 %s28, 1
        %s500 = sand.u32 %s67, 1
        %s501 = scalar_lea.sflag [#allocation4], %s500
        %s502 = sand.u32 %s67, 1
        %s503 = smul.addr %s502, 10240
        %s504 = scalar_lea.vmem [#allocation3], %s503
        // Predicated region
        $region73: #{_mydnn_forward_impl.1} parent=71 // pred_check
          %p505 = pneg %p80
        $region74: #{_mydnn_forward_impl.1} parent=71 // pred_check_branch
          %507 = sbr.rel (%p505) target = $region76
        $region75: #{_mydnn_forward_impl.1} parent=71 // pred_region
          %508 = dma.done %s501, 163840
        $region76: #{_mydnn_forward_impl.1} parent=71 // pred_fallthru
          _
        // Predicated region
        $region77: #{_mydnn_forward_impl.1} parent=71 // pred_check
          %p509 = pneg %p101
        $region78: #{_mydnn_forward_impl.1} parent=71 // pred_check_branch
          %511 = sbr.rel (%p509) target = $region80
        $region79: #{_mydnn_forward_impl.1} parent=71 // pred_region
          %512 = dma.done [#allocation7], 128
        $region80: #{_mydnn_forward_impl.1} parent=71 // pred_fallthru
          _
        // Predicated region
        $region81: #{_mydnn_forward_impl.1} parent=71 // pred_check
          %p513 = pneg %p122
        $region82: #{_mydnn_forward_impl.1} parent=71 // pred_check_branch
          %515 = sbr.rel (%p513) target = $region84
        $region83: #{_mydnn_forward_impl.1} parent=71 // pred_region
          %516 = dma.done [#allocation7], 32768
        $region84: #{_mydnn_forward_impl.1} parent=71 // pred_fallthru
          _
        // Predicated region
        $region85: #{_mydnn_forward_impl.1} parent=71 // pred_check
          %p517 = pneg %p143
        $region86: #{_mydnn_forward_impl.1} parent=71 // pred_check_branch
          %519 = sbr.rel (%p517) target = $region88
        $region87: #{_mydnn_forward_impl.1} parent=71 // pred_region
          %520 = dma.done [#allocation10], 64
        $region88: #{_mydnn_forward_impl.1} parent=71 // pred_fallthru
          _
        // Predicated region
        $region89: #{_mydnn_forward_impl.1} parent=71 // pred_check
          %p521 = pneg %p164
        $region90: #{_mydnn_forward_impl.1} parent=71 // pred_check_branch
          %523 = sbr.rel (%p521) target = $region92
        $region91: #{_mydnn_forward_impl.1} parent=71 // pred_region
          %524 = dma.done [#allocation10], 8192
        $region92: #{_mydnn_forward_impl.1} parent=71 // pred_fallthru
          _
        // Predicated region
        $region93: #{_mydnn_forward_impl.1} parent=71 // pred_check
          %p525 = pneg %p185
        $region94: #{_mydnn_forward_impl.1} parent=71 // pred_check_branch
          %527 = sbr.rel (%p525) target = $region96
        $region95: #{_mydnn_forward_impl.1} parent=71 // pred_region
          %528 = dma.done [#allocation13], 32
        $region96: #{_mydnn_forward_impl.1} parent=71 // pred_fallthru
          _
        // Predicated region
        $region97: #{_mydnn_forward_impl.1} parent=71 // pred_check
          %p529 = pneg %p206
        $region98: #{_mydnn_forward_impl.1} parent=71 // pred_check_branch
          %531 = sbr.rel (%p529) target = $region100
        $region99: #{_mydnn_forward_impl.1} parent=71 // pred_region
          %532 = dma.done [#allocation13], 2048
        $region100: #{_mydnn_forward_impl.1} parent=71 // pred_fallthru
          _
        // Predicated region
        $region101: #{_mydnn_forward_impl.1} parent=71 // pred_check
          %p533 = pneg %p227
        $region102: #{_mydnn_forward_impl.1} parent=71 // pred_check_branch
          %535 = sbr.rel (%p533) target = $region104
        $region103: #{_mydnn_forward_impl.1} parent=71 // pred_region
          %536 = dma.done [#allocation16], 16
        $region104: #{_mydnn_forward_impl.1} parent=71 // pred_fallthru
          _
        // Predicated region
        $region105: #{_mydnn_forward_impl.1} parent=71 // pred_check
          %p537 = pneg %p269
        $region106: #{_mydnn_forward_impl.1} parent=71 // pred_check_branch
          %539 = sbr.rel (%p537) target = $region108
        $region107: #{_mydnn_forward_impl.1} parent=71 // pred_region
          %540 = dma.done [#allocation16], 16
        $region108: #{_mydnn_forward_impl.1} parent=71 // pred_fallthru
          _
        // Predicated region
        $region109: #{_mydnn_forward_impl.1} parent=71 // pred_check
          %p541 = pneg %p311
        $region110: #{_mydnn_forward_impl.1} parent=71 // pred_check_branch
          %543 = sbr.rel (%p541) target = $region112
        $region111: #{_mydnn_forward_impl.1} parent=71 // pred_region
          %544 = dma.done [#allocation19], 16
        $region112: #{_mydnn_forward_impl.1} parent=71 // pred_fallthru
          _
        %s545 = smul.u32 20, %s33
        %p546 = scmp.lt.s32.totalorder %s545, 39
        %s547 = scalar_select %p546, %s545, 39
        %s548 = smul.addr %s547, 4
        %s549 = scalar_lea.vmem %s0, %s548
        %p550 = pneg %p54
        %p551 = pneg %p51
        %s552 = sand.u32 %s67, 1
        %s553 = scalar_lea.sflag [#allocation4], %s552
        %s554 = sand.u32 %s67, 1
        %s555 = smul.addr %s554, 10240
        %s556 = scalar_lea.vmem [#allocation3], %s555
        %p557 = pneg %p80
        %p558 = pneg %p77
        %p559 = pneg %p101
        %p560 = pneg %p98
        %p561 = pneg %p122
        %p562 = pneg %p119
        %p563 = pneg %p143
        %p564 = pneg %p140
        %p565 = pneg %p164
        %p566 = pneg %p161
        %p567 = pneg %p185
        %p568 = pneg %p182
        %p569 = pneg %p206
        %p570 = pneg %p203
        %p571 = pneg %p227
        %p572 = pneg %p224
        %p573 = pneg %p248
        %p574 = pneg %p245
        %p575 = pneg %p269
        %p576 = pneg %p266
        %p577 = pneg %p290
        %p578 = pneg %p287
        %p579 = pneg %p311
        %p580 = pneg %p308
        %p581 = pneg %p332
        %p582 = pneg %p329
        %s583 = smul.u32 20, %s33
        %p584 = scmp.lt.s32.totalorder %s583, 39
        %s585 = scalar_select %p584, %s583, 39
        %s586 = smul.addr %s585, 4
        %s587 = scalar_lea.vmem %s0, %s586
        %s588 = smul.u32 20, %s33
        %s589 = smul.u32 320, %s33
        %p591 = scmp.eq.s32.totalorder %s33, 0
        // Predicated region
        $region113: #{_mydnn_forward_impl.1} parent=71 // pred_check
          %p592 = pneg %p591
        $region114: #{_mydnn_forward_impl.1} parent=71 // pred_check_branch
          %594 = sbr.rel (%p592) target = $region116
        $region115: #{_mydnn_forward_impl.1} parent=71 // pred_region
          %595 = vst [vmem:[#allocation2] sm:$0xff] 0.0
          %596 = vst [vmem:[#allocation2 + $0x8] sm:$0xff] 0.0
          %597 = vst [vmem:[#allocation2 + $0x10] sm:$0xff] 0.0
          %598 = vst [vmem:[#allocation2 + $0x18] sm:$0xff] 0.0
          %599 = vst [vmem:[#allocation2 + $0x20] sm:$0xff] 0.0
          %600 = vst [vmem:[#allocation2 + $0x28] sm:$0xff] 0.0
          %601 = vst [vmem:[#allocation2 + $0x30] sm:$0xff] 0.0
          %602 = vst [vmem:[#allocation2 + $0x38] sm:$0xff] 0.0
        $region116: #{_mydnn_forward_impl.1} parent=71 // pred_fallthru
          _
        %v603 = vld [vmem:[#allocation2] sm:$0xff]
        %v604 = vld [vmem:[#allocation2 + $0x8] sm:$0xff]
        %v605 = vld [vmem:[#allocation2 + $0x10] sm:$0xff]
        %v606 = vld [vmem:[#allocation2 + $0x18] sm:$0xff]
        %v607 = vld [vmem:[#allocation2 + $0x20] sm:$0xff]
        %v608 = vld [vmem:[#allocation2 + $0x28] sm:$0xff]
        %v609 = vld [vmem:[#allocation2 + $0x30] sm:$0xff]
        %v610 = vld [vmem:[#allocation2 + $0x38] sm:$0xff]
        %v611 = vld [vmem:[%s587] sm:$0xff]
        %v612 = vld [vmem:[%s587 + $0x8] sm:$0xff]
        %v613 = vld [vmem:[%s587 + $0x10] sm:$0xff]
        %v614 = vld [vmem:[%s587 + $0x18] sm:$0xff]
        %v615 = vld [vmem:[%s587 + $0x20] sm:$0xff]
        %v616 = vld [vmem:[%s587 + $0x28] sm:$0xff]
        %v617 = vld [vmem:[%s587 + $0x30] sm:$0xff]
        %v618 = vld [vmem:[%s587 + $0x38] sm:$0xff]
        %v619 = vld [vmem:[%s587 + $0x40] sm:$0xff]
        %v620 = vld [vmem:[%s587 + $0x48] sm:$0xff]
        %v621 = vld [vmem:[%s504] sm:$0xff]
        %v622 = vld [vmem:[%s504 + $0x8] sm:$0xff]
        %v623 = vld [vmem:[%s504 + $0x10] sm:$0xff]
        %v624 = vld [vmem:[%s504 + $0x18] sm:$0xff]
        %v625 = vld [vmem:[%s504 + $0x20] sm:$0xff]
        %v626 = vld [vmem:[%s504 + $0x28] sm:$0xff]
        %v627 = vld [vmem:[%s504 + $0x30] sm:$0xff]
        %v628 = vld [vmem:[%s504 + $0x38] sm:$0xff]
        %v629 = vld [vmem:[%s504 + $0x40] sm:$0xff]
        %v630 = vld [vmem:[%s504 + $0x48] sm:$0xff]
        %v631 = vld [vmem:[%s504 + $0x50] sm:$0xff]
        %v632 = vld [vmem:[%s504 + $0x58] sm:$0xff]
        %v633 = vld [vmem:[%s504 + $0x60] sm:$0xff]
        %v634 = vld [vmem:[%s504 + $0x68] sm:$0xff]
        %v635 = vld [vmem:[%s504 + $0x70] sm:$0xff]
        %v636 = vld [vmem:[%s504 + $0x78] sm:$0xff]
        %v637 = vld [vmem:[%s504 + $0x80] sm:$0xff]
        %v638 = vld [vmem:[%s504 + $0x88] sm:$0xff]
        %v639 = vld [vmem:[%s504 + $0x90] sm:$0xff]
        %v640 = vld [vmem:[%s504 + $0x98] sm:$0xff]
        %v641 = vld [vmem:[%s504 + $0xa0] sm:$0xff]
        %v642 = vld [vmem:[%s504 + $0xa8] sm:$0xff]
        %v643 = vld [vmem:[%s504 + $0xb0] sm:$0xff]
        %v644 = vld [vmem:[%s504 + $0xb8] sm:$0xff]
        %v645 = vld [vmem:[%s504 + $0xc0] sm:$0xff]
        %v646 = vld [vmem:[%s504 + $0xc8] sm:$0xff]
        %v647 = vld [vmem:[%s504 + $0xd0] sm:$0xff]
        %v648 = vld [vmem:[%s504 + $0xd8] sm:$0xff]
        %v649 = vld [vmem:[%s504 + $0xe0] sm:$0xff]
        %v650 = vld [vmem:[%s504 + $0xe8] sm:$0xff]
        %v651 = vld [vmem:[%s504 + $0xf0] sm:$0xff]
        %v652 = vld [vmem:[%s504 + $0xf8] sm:$0xff]
        %v653 = vld [vmem:[%s504 + $0x100] sm:$0xff]
        %v654 = vld [vmem:[%s504 + $0x108] sm:$0xff]
        %v655 = vld [vmem:[%s504 + $0x110] sm:$0xff]
        %v656 = vld [vmem:[%s504 + $0x118] sm:$0xff]
        %v657 = vld [vmem:[%s504 + $0x120] sm:$0xff]
        %v658 = vld [vmem:[%s504 + $0x128] sm:$0xff]
        %v659 = vld [vmem:[%s504 + $0x130] sm:$0xff]
        %v660 = vld [vmem:[%s504 + $0x138] sm:$0xff]
        %v661 = vld [vmem:[%s504 + $0x140] sm:$0xff]
        %v662 = vld [vmem:[%s504 + $0x148] sm:$0xff]
        %v663 = vld [vmem:[%s504 + $0x150] sm:$0xff]
        %v664 = vld [vmem:[%s504 + $0x158] sm:$0xff]
        %v665 = vld [vmem:[%s504 + $0x160] sm:$0xff]
        %v666 = vld [vmem:[%s504 + $0x168] sm:$0xff]
        %v667 = vld [vmem:[%s504 + $0x170] sm:$0xff]
        %v668 = vld [vmem:[%s504 + $0x178] sm:$0xff]
        %v669 = vld [vmem:[%s504 + $0x180] sm:$0xff]
        %v670 = vld [vmem:[%s504 + $0x188] sm:$0xff]
        %v671 = vld [vmem:[%s504 + $0x190] sm:$0xff]
        %v672 = vld [vmem:[%s504 + $0x198] sm:$0xff]
        %v673 = vld [vmem:[%s504 + $0x1a0] sm:$0xff]
        %v674 = vld [vmem:[%s504 + $0x1a8] sm:$0xff]
        %v675 = vld [vmem:[%s504 + $0x1b0] sm:$0xff]
        %v676 = vld [vmem:[%s504 + $0x1b8] sm:$0xff]
        %v677 = vld [vmem:[%s504 + $0x1c0] sm:$0xff]
        %v678 = vld [vmem:[%s504 + $0x1c8] sm:$0xff]
        %v679 = vld [vmem:[%s504 + $0x1d0] sm:$0xff]
        %v680 = vld [vmem:[%s504 + $0x1d8] sm:$0xff]
        %v681 = vld [vmem:[%s504 + $0x1e0] sm:$0xff]
        %v682 = vld [vmem:[%s504 + $0x1e8] sm:$0xff]
        %v683 = vld [vmem:[%s504 + $0x1f0] sm:$0xff]
        %v684 = vld [vmem:[%s504 + $0x1f8] sm:$0xff]
        %v685 = vld [vmem:[%s504 + $0x200] sm:$0xff]
        %v686 = vld [vmem:[%s504 + $0x208] sm:$0xff]
        %v687 = vld [vmem:[%s504 + $0x210] sm:$0xff]
        %v688 = vld [vmem:[%s504 + $0x218] sm:$0xff]
        %v689 = vld [vmem:[%s504 + $0x220] sm:$0xff]
        %v690 = vld [vmem:[%s504 + $0x228] sm:$0xff]
        %v691 = vld [vmem:[%s504 + $0x230] sm:$0xff]
        %v692 = vld [vmem:[%s504 + $0x238] sm:$0xff]
        %v693 = vld [vmem:[%s504 + $0x240] sm:$0xff]
        %v694 = vld [vmem:[%s504 + $0x248] sm:$0xff]
        %v695 = vld [vmem:[%s504 + $0x250] sm:$0xff]
        %v696 = vld [vmem:[%s504 + $0x258] sm:$0xff]
        %v697 = vld [vmem:[%s504 + $0x260] sm:$0xff]
        %v698 = vld [vmem:[%s504 + $0x268] sm:$0xff]
        %v699 = vld [vmem:[%s504 + $0x270] sm:$0xff]
        %v700 = vld [vmem:[%s504 + $0x278] sm:$0xff]
        %v701 = vld [vmem:[%s504 + $0x280] sm:$0xff]
        %v702 = vld [vmem:[%s504 + $0x288] sm:$0xff]
        %v703 = vld [vmem:[%s504 + $0x290] sm:$0xff]
        %v704 = vld [vmem:[%s504 + $0x298] sm:$0xff]
        %v705 = vld [vmem:[%s504 + $0x2a0] sm:$0xff]
        %v706 = vld [vmem:[%s504 + $0x2a8] sm:$0xff]
        %v707 = vld [vmem:[%s504 + $0x2b0] sm:$0xff]
        %v708 = vld [vmem:[%s504 + $0x2b8] sm:$0xff]
        %v709 = vld [vmem:[%s504 + $0x2c0] sm:$0xff]
        %v710 = vld [vmem:[%s504 + $0x2c8] sm:$0xff]
        %v711 = vld [vmem:[%s504 + $0x2d0] sm:$0xff]
        %v712 = vld [vmem:[%s504 + $0x2d8] sm:$0xff]
        %v713 = vld [vmem:[%s504 + $0x2e0] sm:$0xff]
        %v714 = vld [vmem:[%s504 + $0x2e8] sm:$0xff]
        %v715 = vld [vmem:[%s504 + $0x2f0] sm:$0xff]
        %v716 = vld [vmem:[%s504 + $0x2f8] sm:$0xff]
        %v717 = vld [vmem:[%s504 + $0x300] sm:$0xff]
        %v718 = vld [vmem:[%s504 + $0x308] sm:$0xff]
        %v719 = vld [vmem:[%s504 + $0x310] sm:$0xff]
        %v720 = vld [vmem:[%s504 + $0x318] sm:$0xff]
        %v721 = vld [vmem:[%s504 + $0x320] sm:$0xff]
        %v722 = vld [vmem:[%s504 + $0x328] sm:$0xff]
        %v723 = vld [vmem:[%s504 + $0x330] sm:$0xff]
        %v724 = vld [vmem:[%s504 + $0x338] sm:$0xff]
        %v725 = vld [vmem:[%s504 + $0x340] sm:$0xff]
        %v726 = vld [vmem:[%s504 + $0x348] sm:$0xff]
        %v727 = vld [vmem:[%s504 + $0x350] sm:$0xff]
        %v728 = vld [vmem:[%s504 + $0x358] sm:$0xff]
        %v729 = vld [vmem:[%s504 + $0x360] sm:$0xff]
        %v730 = vld [vmem:[%s504 + $0x368] sm:$0xff]
        %v731 = vld [vmem:[%s504 + $0x370] sm:$0xff]
        %v732 = vld [vmem:[%s504 + $0x378] sm:$0xff]
        %v733 = vld [vmem:[%s504 + $0x380] sm:$0xff]
        %v734 = vld [vmem:[%s504 + $0x388] sm:$0xff]
        %v735 = vld [vmem:[%s504 + $0x390] sm:$0xff]
        %v736 = vld [vmem:[%s504 + $0x398] sm:$0xff]
        %v737 = vld [vmem:[%s504 + $0x3a0] sm:$0xff]
        %v738 = vld [vmem:[%s504 + $0x3a8] sm:$0xff]
        %v739 = vld [vmem:[%s504 + $0x3b0] sm:$0xff]
        %v740 = vld [vmem:[%s504 + $0x3b8] sm:$0xff]
        %v741 = vld [vmem:[%s504 + $0x3c0] sm:$0xff]
        %v742 = vld [vmem:[%s504 + $0x3c8] sm:$0xff]
        %v743 = vld [vmem:[%s504 + $0x3d0] sm:$0xff]
        %v744 = vld [vmem:[%s504 + $0x3d8] sm:$0xff]
        %v745 = vld [vmem:[%s504 + $0x3e0] sm:$0xff]
        %v746 = vld [vmem:[%s504 + $0x3e8] sm:$0xff]
        %v747 = vld [vmem:[%s504 + $0x3f0] sm:$0xff]
        %v748 = vld [vmem:[%s504 + $0x3f8] sm:$0xff]
        %v749 = vld [vmem:[%s504 + $0x400] sm:$0xff]
        %v750 = vld [vmem:[%s504 + $0x408] sm:$0xff]
        %v751 = vld [vmem:[%s504 + $0x410] sm:$0xff]
        %v752 = vld [vmem:[%s504 + $0x418] sm:$0xff]
        %v753 = vld [vmem:[%s504 + $0x420] sm:$0xff]
        %v754 = vld [vmem:[%s504 + $0x428] sm:$0xff]
        %v755 = vld [vmem:[%s504 + $0x430] sm:$0xff]
        %v756 = vld [vmem:[%s504 + $0x438] sm:$0xff]
        %v757 = vld [vmem:[%s504 + $0x440] sm:$0xff]
        %v758 = vld [vmem:[%s504 + $0x448] sm:$0xff]
        %v759 = vld [vmem:[%s504 + $0x450] sm:$0xff]
        %v760 = vld [vmem:[%s504 + $0x458] sm:$0xff]
        %v761 = vld [vmem:[%s504 + $0x460] sm:$0xff]
        %v762 = vld [vmem:[%s504 + $0x468] sm:$0xff]
        %v763 = vld [vmem:[%s504 + $0x470] sm:$0xff]
        %v764 = vld [vmem:[%s504 + $0x478] sm:$0xff]
        %v765 = vld [vmem:[%s504 + $0x480] sm:$0xff]
        %v766 = vld [vmem:[%s504 + $0x488] sm:$0xff]
        %v767 = vld [vmem:[%s504 + $0x490] sm:$0xff]
        %v768 = vld [vmem:[%s504 + $0x498] sm:$0xff]
        %v769 = vld [vmem:[%s504 + $0x4a0] sm:$0xff]
        %v770 = vld [vmem:[%s504 + $0x4a8] sm:$0xff]
        %v771 = vld [vmem:[%s504 + $0x4b0] sm:$0xff]
        %v772 = vld [vmem:[%s504 + $0x4b8] sm:$0xff]
        %v773 = vld [vmem:[%s504 + $0x4c0] sm:$0xff]
        %v774 = vld [vmem:[%s504 + $0x4c8] sm:$0xff]
        %v775 = vld [vmem:[%s504 + $0x4d0] sm:$0xff]
        %v776 = vld [vmem:[%s504 + $0x4d8] sm:$0xff]
        %v777 = vld [vmem:[%s504 + $0x4e0] sm:$0xff]
        %v778 = vld [vmem:[%s504 + $0x4e8] sm:$0xff]
        %v779 = vld [vmem:[%s504 + $0x4f0] sm:$0xff]
        %v780 = vld [vmem:[%s504 + $0x4f8] sm:$0xff]
        %v781 = vld [vmem:[%s504 + $0x500] sm:$0xff]
        %v782 = vld [vmem:[%s504 + $0x508] sm:$0xff]
        %v783 = vld [vmem:[%s504 + $0x510] sm:$0xff]
        %v784 = vld [vmem:[%s504 + $0x518] sm:$0xff]
        %v785 = vld [vmem:[%s504 + $0x520] sm:$0xff]
        %v786 = vld [vmem:[%s504 + $0x528] sm:$0xff]
        %v787 = vld [vmem:[%s504 + $0x530] sm:$0xff]
        %v788 = vld [vmem:[%s504 + $0x538] sm:$0xff]
        %v789 = vld [vmem:[%s504 + $0x540] sm:$0xff]
        %v790 = vld [vmem:[%s504 + $0x548] sm:$0xff]
        %v791 = vld [vmem:[%s504 + $0x550] sm:$0xff]
        %v792 = vld [vmem:[%s504 + $0x558] sm:$0xff]
        %v793 = vld [vmem:[%s504 + $0x560] sm:$0xff]
        %v794 = vld [vmem:[%s504 + $0x568] sm:$0xff]
        %v795 = vld [vmem:[%s504 + $0x570] sm:$0xff]
        %v796 = vld [vmem:[%s504 + $0x578] sm:$0xff]
        %v797 = vld [vmem:[%s504 + $0x580] sm:$0xff]
        %v798 = vld [vmem:[%s504 + $0x588] sm:$0xff]
        %v799 = vld [vmem:[%s504 + $0x590] sm:$0xff]
        %v800 = vld [vmem:[%s504 + $0x598] sm:$0xff]
        %v801 = vld [vmem:[%s504 + $0x5a0] sm:$0xff]
        %v802 = vld [vmem:[%s504 + $0x5a8] sm:$0xff]
        %v803 = vld [vmem:[%s504 + $0x5b0] sm:$0xff]
        %v804 = vld [vmem:[%s504 + $0x5b8] sm:$0xff]
        %v805 = vld [vmem:[%s504 + $0x5c0] sm:$0xff]
        %v806 = vld [vmem:[%s504 + $0x5c8] sm:$0xff]
        %v807 = vld [vmem:[%s504 + $0x5d0] sm:$0xff]
        %v808 = vld [vmem:[%s504 + $0x5d8] sm:$0xff]
        %v809 = vld [vmem:[%s504 + $0x5e0] sm:$0xff]
        %v810 = vld [vmem:[%s504 + $0x5e8] sm:$0xff]
        %v811 = vld [vmem:[%s504 + $0x5f0] sm:$0xff]
        %v812 = vld [vmem:[%s504 + $0x5f8] sm:$0xff]
        %v813 = vld [vmem:[%s504 + $0x600] sm:$0xff]
        %v814 = vld [vmem:[%s504 + $0x608] sm:$0xff]
        %v815 = vld [vmem:[%s504 + $0x610] sm:$0xff]
        %v816 = vld [vmem:[%s504 + $0x618] sm:$0xff]
        %v817 = vld [vmem:[%s504 + $0x620] sm:$0xff]
        %v818 = vld [vmem:[%s504 + $0x628] sm:$0xff]
        %v819 = vld [vmem:[%s504 + $0x630] sm:$0xff]
        %v820 = vld [vmem:[%s504 + $0x638] sm:$0xff]
        %v821 = vld [vmem:[%s504 + $0x640] sm:$0xff]
        %v822 = vld [vmem:[%s504 + $0x648] sm:$0xff]
        %v823 = vld [vmem:[%s504 + $0x650] sm:$0xff]
        %v824 = vld [vmem:[%s504 + $0x658] sm:$0xff]
        %v825 = vld [vmem:[%s504 + $0x660] sm:$0xff]
        %v826 = vld [vmem:[%s504 + $0x668] sm:$0xff]
        %v827 = vld [vmem:[%s504 + $0x670] sm:$0xff]
        %v828 = vld [vmem:[%s504 + $0x678] sm:$0xff]
        %v829 = vld [vmem:[%s504 + $0x680] sm:$0xff]
        %v830 = vld [vmem:[%s504 + $0x688] sm:$0xff]
        %v831 = vld [vmem:[%s504 + $0x690] sm:$0xff]
        %v832 = vld [vmem:[%s504 + $0x698] sm:$0xff]
        %v833 = vld [vmem:[%s504 + $0x6a0] sm:$0xff]
        %v834 = vld [vmem:[%s504 + $0x6a8] sm:$0xff]
        %v835 = vld [vmem:[%s504 + $0x6b0] sm:$0xff]
        %v836 = vld [vmem:[%s504 + $0x6b8] sm:$0xff]
        %v837 = vld [vmem:[%s504 + $0x6c0] sm:$0xff]
        %v838 = vld [vmem:[%s504 + $0x6c8] sm:$0xff]
        %v839 = vld [vmem:[%s504 + $0x6d0] sm:$0xff]
        %v840 = vld [vmem:[%s504 + $0x6d8] sm:$0xff]
        %v841 = vld [vmem:[%s504 + $0x6e0] sm:$0xff]
        %v842 = vld [vmem:[%s504 + $0x6e8] sm:$0xff]
        %v843 = vld [vmem:[%s504 + $0x6f0] sm:$0xff]
        %v844 = vld [vmem:[%s504 + $0x6f8] sm:$0xff]
        %v845 = vld [vmem:[%s504 + $0x700] sm:$0xff]
        %v846 = vld [vmem:[%s504 + $0x708] sm:$0xff]
        %v847 = vld [vmem:[%s504 + $0x710] sm:$0xff]
        %v848 = vld [vmem:[%s504 + $0x718] sm:$0xff]
        %v849 = vld [vmem:[%s504 + $0x720] sm:$0xff]
        %v850 = vld [vmem:[%s504 + $0x728] sm:$0xff]
        %v851 = vld [vmem:[%s504 + $0x730] sm:$0xff]
        %v852 = vld [vmem:[%s504 + $0x738] sm:$0xff]
        %v853 = vld [vmem:[%s504 + $0x740] sm:$0xff]
        %v854 = vld [vmem:[%s504 + $0x748] sm:$0xff]
        %v855 = vld [vmem:[%s504 + $0x750] sm:$0xff]
        %v856 = vld [vmem:[%s504 + $0x758] sm:$0xff]
        %v857 = vld [vmem:[%s504 + $0x760] sm:$0xff]
        %v858 = vld [vmem:[%s504 + $0x768] sm:$0xff]
        %v859 = vld [vmem:[%s504 + $0x770] sm:$0xff]
        %v860 = vld [vmem:[%s504 + $0x778] sm:$0xff]
        %v861 = vld [vmem:[%s504 + $0x780] sm:$0xff]
        %v862 = vld [vmem:[%s504 + $0x788] sm:$0xff]
        %v863 = vld [vmem:[%s504 + $0x790] sm:$0xff]
        %v864 = vld [vmem:[%s504 + $0x798] sm:$0xff]
        %v865 = vld [vmem:[%s504 + $0x7a0] sm:$0xff]
        %v866 = vld [vmem:[%s504 + $0x7a8] sm:$0xff]
        %v867 = vld [vmem:[%s504 + $0x7b0] sm:$0xff]
        %v868 = vld [vmem:[%s504 + $0x7b8] sm:$0xff]
        %v869 = vld [vmem:[%s504 + $0x7c0] sm:$0xff]
        %v870 = vld [vmem:[%s504 + $0x7c8] sm:$0xff]
        %v871 = vld [vmem:[%s504 + $0x7d0] sm:$0xff]
        %v872 = vld [vmem:[%s504 + $0x7d8] sm:$0xff]
        %v873 = vld [vmem:[%s504 + $0x7e0] sm:$0xff]
        %v874 = vld [vmem:[%s504 + $0x7e8] sm:$0xff]
        %v875 = vld [vmem:[%s504 + $0x7f0] sm:$0xff]
        %v876 = vld [vmem:[%s504 + $0x7f8] sm:$0xff]
        %v877 = vld [vmem:[%s504 + $0x800] sm:$0xff]
        %v878 = vld [vmem:[%s504 + $0x808] sm:$0xff]
        %v879 = vld [vmem:[%s504 + $0x810] sm:$0xff]
        %v880 = vld [vmem:[%s504 + $0x818] sm:$0xff]
        %v881 = vld [vmem:[%s504 + $0x820] sm:$0xff]
        %v882 = vld [vmem:[%s504 + $0x828] sm:$0xff]
        %v883 = vld [vmem:[%s504 + $0x830] sm:$0xff]
        %v884 = vld [vmem:[%s504 + $0x838] sm:$0xff]
        %v885 = vld [vmem:[%s504 + $0x840] sm:$0xff]
        %v886 = vld [vmem:[%s504 + $0x848] sm:$0xff]
        %v887 = vld [vmem:[%s504 + $0x850] sm:$0xff]
        %v888 = vld [vmem:[%s504 + $0x858] sm:$0xff]
        %v889 = vld [vmem:[%s504 + $0x860] sm:$0xff]
        %v890 = vld [vmem:[%s504 + $0x868] sm:$0xff]
        %v891 = vld [vmem:[%s504 + $0x870] sm:$0xff]
        %v892 = vld [vmem:[%s504 + $0x878] sm:$0xff]
        %v893 = vld [vmem:[%s504 + $0x880] sm:$0xff]
        %v894 = vld [vmem:[%s504 + $0x888] sm:$0xff]
        %v895 = vld [vmem:[%s504 + $0x890] sm:$0xff]
        %v896 = vld [vmem:[%s504 + $0x898] sm:$0xff]
        %v897 = vld [vmem:[%s504 + $0x8a0] sm:$0xff]
        %v898 = vld [vmem:[%s504 + $0x8a8] sm:$0xff]
        %v899 = vld [vmem:[%s504 + $0x8b0] sm:$0xff]
        %v900 = vld [vmem:[%s504 + $0x8b8] sm:$0xff]
        %v901 = vld [vmem:[%s504 + $0x8c0] sm:$0xff]
        %v902 = vld [vmem:[%s504 + $0x8c8] sm:$0xff]
        %v903 = vld [vmem:[%s504 + $0x8d0] sm:$0xff]
        %v904 = vld [vmem:[%s504 + $0x8d8] sm:$0xff]
        %v905 = vld [vmem:[%s504 + $0x8e0] sm:$0xff]
        %v906 = vld [vmem:[%s504 + $0x8e8] sm:$0xff]
        %v907 = vld [vmem:[%s504 + $0x8f0] sm:$0xff]
        %v908 = vld [vmem:[%s504 + $0x8f8] sm:$0xff]
        %v909 = vld [vmem:[%s504 + $0x900] sm:$0xff]
        %v910 = vld [vmem:[%s504 + $0x908] sm:$0xff]
        %v911 = vld [vmem:[%s504 + $0x910] sm:$0xff]
        %v912 = vld [vmem:[%s504 + $0x918] sm:$0xff]
        %v913 = vld [vmem:[%s504 + $0x920] sm:$0xff]
        %v914 = vld [vmem:[%s504 + $0x928] sm:$0xff]
        %v915 = vld [vmem:[%s504 + $0x930] sm:$0xff]
        %v916 = vld [vmem:[%s504 + $0x938] sm:$0xff]
        %v917 = vld [vmem:[%s504 + $0x940] sm:$0xff]
        %v918 = vld [vmem:[%s504 + $0x948] sm:$0xff]
        %v919 = vld [vmem:[%s504 + $0x950] sm:$0xff]
        %v920 = vld [vmem:[%s504 + $0x958] sm:$0xff]
        %v921 = vld [vmem:[%s504 + $0x960] sm:$0xff]
        %v922 = vld [vmem:[%s504 + $0x968] sm:$0xff]
        %v923 = vld [vmem:[%s504 + $0x970] sm:$0xff]
        %v924 = vld [vmem:[%s504 + $0x978] sm:$0xff]
        %v925 = vld [vmem:[%s504 + $0x980] sm:$0xff]
        %v926 = vld [vmem:[%s504 + $0x988] sm:$0xff]
        %v927 = vld [vmem:[%s504 + $0x990] sm:$0xff]
        %v928 = vld [vmem:[%s504 + $0x998] sm:$0xff]
        %v929 = vld [vmem:[%s504 + $0x9a0] sm:$0xff]
        %v930 = vld [vmem:[%s504 + $0x9a8] sm:$0xff]
        %v931 = vld [vmem:[%s504 + $0x9b0] sm:$0xff]
        %v932 = vld [vmem:[%s504 + $0x9b8] sm:$0xff]
        %v933 = vld [vmem:[%s504 + $0x9c0] sm:$0xff]
        %v934 = vld [vmem:[%s504 + $0x9c8] sm:$0xff]
        %v935 = vld [vmem:[%s504 + $0x9d0] sm:$0xff]
        %v936 = vld [vmem:[%s504 + $0x9d8] sm:$0xff]
        %v937 = vld [vmem:[%s504 + $0x9e0] sm:$0xff]
        %v938 = vld [vmem:[%s504 + $0x9e8] sm:$0xff]
        %v939 = vld [vmem:[%s504 + $0x9f0] sm:$0xff]
        %v940 = vld [vmem:[%s504 + $0x9f8] sm:$0xff]
        %v941 = vld [vmem:[%s504 + $0xa00] sm:$0xff]
        %v942 = vld [vmem:[%s504 + $0xa08] sm:$0xff]
        %v943 = vld [vmem:[%s504 + $0xa10] sm:$0xff]
        %v944 = vld [vmem:[%s504 + $0xa18] sm:$0xff]
        %v945 = vld [vmem:[%s504 + $0xa20] sm:$0xff]
        %v946 = vld [vmem:[%s504 + $0xa28] sm:$0xff]
        %v947 = vld [vmem:[%s504 + $0xa30] sm:$0xff]
        %v948 = vld [vmem:[%s504 + $0xa38] sm:$0xff]
        %v949 = vld [vmem:[%s504 + $0xa40] sm:$0xff]
        %v950 = vld [vmem:[%s504 + $0xa48] sm:$0xff]
        %v951 = vld [vmem:[%s504 + $0xa50] sm:$0xff]
        %v952 = vld [vmem:[%s504 + $0xa58] sm:$0xff]
        %v953 = vld [vmem:[%s504 + $0xa60] sm:$0xff]
        %v954 = vld [vmem:[%s504 + $0xa68] sm:$0xff]
        %v955 = vld [vmem:[%s504 + $0xa70] sm:$0xff]
        %v956 = vld [vmem:[%s504 + $0xa78] sm:$0xff]
        %v957 = vld [vmem:[%s504 + $0xa80] sm:$0xff]
        %v958 = vld [vmem:[%s504 + $0xa88] sm:$0xff]
        %v959 = vld [vmem:[%s504 + $0xa90] sm:$0xff]
        %v960 = vld [vmem:[%s504 + $0xa98] sm:$0xff]
        %v961 = vld [vmem:[%s504 + $0xaa0] sm:$0xff]
        %v962 = vld [vmem:[%s504 + $0xaa8] sm:$0xff]
        %v963 = vld [vmem:[%s504 + $0xab0] sm:$0xff]
        %v964 = vld [vmem:[%s504 + $0xab8] sm:$0xff]
        %v965 = vld [vmem:[%s504 + $0xac0] sm:$0xff]
        %v966 = vld [vmem:[%s504 + $0xac8] sm:$0xff]
        %v967 = vld [vmem:[%s504 + $0xad0] sm:$0xff]
        %v968 = vld [vmem:[%s504 + $0xad8] sm:$0xff]
        %v969 = vld [vmem:[%s504 + $0xae0] sm:$0xff]
        %v970 = vld [vmem:[%s504 + $0xae8] sm:$0xff]
        %v971 = vld [vmem:[%s504 + $0xaf0] sm:$0xff]
        %v972 = vld [vmem:[%s504 + $0xaf8] sm:$0xff]
        %v973 = vld [vmem:[%s504 + $0xb00] sm:$0xff]
        %v974 = vld [vmem:[%s504 + $0xb08] sm:$0xff]
        %v975 = vld [vmem:[%s504 + $0xb10] sm:$0xff]
        %v976 = vld [vmem:[%s504 + $0xb18] sm:$0xff]
        %v977 = vld [vmem:[%s504 + $0xb20] sm:$0xff]
        %v978 = vld [vmem:[%s504 + $0xb28] sm:$0xff]
        %v979 = vld [vmem:[%s504 + $0xb30] sm:$0xff]
        %v980 = vld [vmem:[%s504 + $0xb38] sm:$0xff]
        %v981 = vld [vmem:[%s504 + $0xb40] sm:$0xff]
        %v982 = vld [vmem:[%s504 + $0xb48] sm:$0xff]
        %v983 = vld [vmem:[%s504 + $0xb50] sm:$0xff]
        %v984 = vld [vmem:[%s504 + $0xb58] sm:$0xff]
        %v985 = vld [vmem:[%s504 + $0xb60] sm:$0xff]
        %v986 = vld [vmem:[%s504 + $0xb68] sm:$0xff]
        %v987 = vld [vmem:[%s504 + $0xb70] sm:$0xff]
        %v988 = vld [vmem:[%s504 + $0xb78] sm:$0xff]
        %v989 = vld [vmem:[%s504 + $0xb80] sm:$0xff]
        %v990 = vld [vmem:[%s504 + $0xb88] sm:$0xff]
        %v991 = vld [vmem:[%s504 + $0xb90] sm:$0xff]
        %v992 = vld [vmem:[%s504 + $0xb98] sm:$0xff]
        %v993 = vld [vmem:[%s504 + $0xba0] sm:$0xff]
        %v994 = vld [vmem:[%s504 + $0xba8] sm:$0xff]
        %v995 = vld [vmem:[%s504 + $0xbb0] sm:$0xff]
        %v996 = vld [vmem:[%s504 + $0xbb8] sm:$0xff]
        %v997 = vld [vmem:[%s504 + $0xbc0] sm:$0xff]
        %v998 = vld [vmem:[%s504 + $0xbc8] sm:$0xff]
        %v999 = vld [vmem:[%s504 + $0xbd0] sm:$0xff]
        %v1000 = vld [vmem:[%s504 + $0xbd8] sm:$0xff]
        %v1001 = vld [vmem:[%s504 + $0xbe0] sm:$0xff]
        %v1002 = vld [vmem:[%s504 + $0xbe8] sm:$0xff]
        %v1003 = vld [vmem:[%s504 + $0xbf0] sm:$0xff]
        %v1004 = vld [vmem:[%s504 + $0xbf8] sm:$0xff]
        %v1005 = vld [vmem:[%s504 + $0xc00] sm:$0xff]
        %v1006 = vld [vmem:[%s504 + $0xc08] sm:$0xff]
        %v1007 = vld [vmem:[%s504 + $0xc10] sm:$0xff]
        %v1008 = vld [vmem:[%s504 + $0xc18] sm:$0xff]
        %v1009 = vld [vmem:[%s504 + $0xc20] sm:$0xff]
        %v1010 = vld [vmem:[%s504 + $0xc28] sm:$0xff]
        %v1011 = vld [vmem:[%s504 + $0xc30] sm:$0xff]
        %v1012 = vld [vmem:[%s504 + $0xc38] sm:$0xff]
        %v1013 = vld [vmem:[%s504 + $0xc40] sm:$0xff]
        %v1014 = vld [vmem:[%s504 + $0xc48] sm:$0xff]
        %v1015 = vld [vmem:[%s504 + $0xc50] sm:$0xff]
        %v1016 = vld [vmem:[%s504 + $0xc58] sm:$0xff]
        %v1017 = vld [vmem:[%s504 + $0xc60] sm:$0xff]
        %v1018 = vld [vmem:[%s504 + $0xc68] sm:$0xff]
        %v1019 = vld [vmem:[%s504 + $0xc70] sm:$0xff]
        %v1020 = vld [vmem:[%s504 + $0xc78] sm:$0xff]
        %v1021 = vld [vmem:[%s504 + $0xc80] sm:$0xff]
        %v1022 = vld [vmem:[%s504 + $0xc88] sm:$0xff]
        %v1023 = vld [vmem:[%s504 + $0xc90] sm:$0xff]
        %v1024 = vld [vmem:[%s504 + $0xc98] sm:$0xff]
        %v1025 = vld [vmem:[%s504 + $0xca0] sm:$0xff]
        %v1026 = vld [vmem:[%s504 + $0xca8] sm:$0xff]
        %v1027 = vld [vmem:[%s504 + $0xcb0] sm:$0xff]
        %v1028 = vld [vmem:[%s504 + $0xcb8] sm:$0xff]
        %v1029 = vld [vmem:[%s504 + $0xcc0] sm:$0xff]
        %v1030 = vld [vmem:[%s504 + $0xcc8] sm:$0xff]
        %v1031 = vld [vmem:[%s504 + $0xcd0] sm:$0xff]
        %v1032 = vld [vmem:[%s504 + $0xcd8] sm:$0xff]
        %v1033 = vld [vmem:[%s504 + $0xce0] sm:$0xff]
        %v1034 = vld [vmem:[%s504 + $0xce8] sm:$0xff]
        %v1035 = vld [vmem:[%s504 + $0xcf0] sm:$0xff]
        %v1036 = vld [vmem:[%s504 + $0xcf8] sm:$0xff]
        %v1037 = vld [vmem:[%s504 + $0xd00] sm:$0xff]
        %v1038 = vld [vmem:[%s504 + $0xd08] sm:$0xff]
        %v1039 = vld [vmem:[%s504 + $0xd10] sm:$0xff]
        %v1040 = vld [vmem:[%s504 + $0xd18] sm:$0xff]
        %v1041 = vld [vmem:[%s504 + $0xd20] sm:$0xff]
        %v1042 = vld [vmem:[%s504 + $0xd28] sm:$0xff]
        %v1043 = vld [vmem:[%s504 + $0xd30] sm:$0xff]
        %v1044 = vld [vmem:[%s504 + $0xd38] sm:$0xff]
        %v1045 = vld [vmem:[%s504 + $0xd40] sm:$0xff]
        %v1046 = vld [vmem:[%s504 + $0xd48] sm:$0xff]
        %v1047 = vld [vmem:[%s504 + $0xd50] sm:$0xff]
        %v1048 = vld [vmem:[%s504 + $0xd58] sm:$0xff]
        %v1049 = vld [vmem:[%s504 + $0xd60] sm:$0xff]
        %v1050 = vld [vmem:[%s504 + $0xd68] sm:$0xff]
        %v1051 = vld [vmem:[%s504 + $0xd70] sm:$0xff]
        %v1052 = vld [vmem:[%s504 + $0xd78] sm:$0xff]
        %v1053 = vld [vmem:[%s504 + $0xd80] sm:$0xff]
        %v1054 = vld [vmem:[%s504 + $0xd88] sm:$0xff]
        %v1055 = vld [vmem:[%s504 + $0xd90] sm:$0xff]
        %v1056 = vld [vmem:[%s504 + $0xd98] sm:$0xff]
        %v1057 = vld [vmem:[%s504 + $0xda0] sm:$0xff]
        %v1058 = vld [vmem:[%s504 + $0xda8] sm:$0xff]
        %v1059 = vld [vmem:[%s504 + $0xdb0] sm:$0xff]
        %v1060 = vld [vmem:[%s504 + $0xdb8] sm:$0xff]
        %v1061 = vld [vmem:[%s504 + $0xdc0] sm:$0xff]
        %v1062 = vld [vmem:[%s504 + $0xdc8] sm:$0xff]
        %v1063 = vld [vmem:[%s504 + $0xdd0] sm:$0xff]
        %v1064 = vld [vmem:[%s504 + $0xdd8] sm:$0xff]
        %v1065 = vld [vmem:[%s504 + $0xde0] sm:$0xff]
        %v1066 = vld [vmem:[%s504 + $0xde8] sm:$0xff]
        %v1067 = vld [vmem:[%s504 + $0xdf0] sm:$0xff]
        %v1068 = vld [vmem:[%s504 + $0xdf8] sm:$0xff]
        %v1069 = vld [vmem:[%s504 + $0xe00] sm:$0xff]
        %v1070 = vld [vmem:[%s504 + $0xe08] sm:$0xff]
        %v1071 = vld [vmem:[%s504 + $0xe10] sm:$0xff]
        %v1072 = vld [vmem:[%s504 + $0xe18] sm:$0xff]
        %v1073 = vld [vmem:[%s504 + $0xe20] sm:$0xff]
        %v1074 = vld [vmem:[%s504 + $0xe28] sm:$0xff]
        %v1075 = vld [vmem:[%s504 + $0xe30] sm:$0xff]
        %v1076 = vld [vmem:[%s504 + $0xe38] sm:$0xff]
        %v1077 = vld [vmem:[%s504 + $0xe40] sm:$0xff]
        %v1078 = vld [vmem:[%s504 + $0xe48] sm:$0xff]
        %v1079 = vld [vmem:[%s504 + $0xe50] sm:$0xff]
        %v1080 = vld [vmem:[%s504 + $0xe58] sm:$0xff]
        %v1081 = vld [vmem:[%s504 + $0xe60] sm:$0xff]
        %v1082 = vld [vmem:[%s504 + $0xe68] sm:$0xff]
        %v1083 = vld [vmem:[%s504 + $0xe70] sm:$0xff]
        %v1084 = vld [vmem:[%s504 + $0xe78] sm:$0xff]
        %v1085 = vld [vmem:[%s504 + $0xe80] sm:$0xff]
        %v1086 = vld [vmem:[%s504 + $0xe88] sm:$0xff]
        %v1087 = vld [vmem:[%s504 + $0xe90] sm:$0xff]
        %v1088 = vld [vmem:[%s504 + $0xe98] sm:$0xff]
        %v1089 = vld [vmem:[%s504 + $0xea0] sm:$0xff]
        %v1090 = vld [vmem:[%s504 + $0xea8] sm:$0xff]
        %v1091 = vld [vmem:[%s504 + $0xeb0] sm:$0xff]
        %v1092 = vld [vmem:[%s504 + $0xeb8] sm:$0xff]
        %v1093 = vld [vmem:[%s504 + $0xec0] sm:$0xff]
        %v1094 = vld [vmem:[%s504 + $0xec8] sm:$0xff]
        %v1095 = vld [vmem:[%s504 + $0xed0] sm:$0xff]
        %v1096 = vld [vmem:[%s504 + $0xed8] sm:$0xff]
        %v1097 = vld [vmem:[%s504 + $0xee0] sm:$0xff]
        %v1098 = vld [vmem:[%s504 + $0xee8] sm:$0xff]
        %v1099 = vld [vmem:[%s504 + $0xef0] sm:$0xff]
        %v1100 = vld [vmem:[%s504 + $0xef8] sm:$0xff]
        %v1101 = vld [vmem:[%s504 + $0xf00] sm:$0xff]
        %v1102 = vld [vmem:[%s504 + $0xf08] sm:$0xff]
        %v1103 = vld [vmem:[%s504 + $0xf10] sm:$0xff]
        %v1104 = vld [vmem:[%s504 + $0xf18] sm:$0xff]
        %v1105 = vld [vmem:[%s504 + $0xf20] sm:$0xff]
        %v1106 = vld [vmem:[%s504 + $0xf28] sm:$0xff]
        %v1107 = vld [vmem:[%s504 + $0xf30] sm:$0xff]
        %v1108 = vld [vmem:[%s504 + $0xf38] sm:$0xff]
        %v1109 = vld [vmem:[%s504 + $0xf40] sm:$0xff]
        %v1110 = vld [vmem:[%s504 + $0xf48] sm:$0xff]
        %v1111 = vld [vmem:[%s504 + $0xf50] sm:$0xff]
        %v1112 = vld [vmem:[%s504 + $0xf58] sm:$0xff]
        %v1113 = vld [vmem:[%s504 + $0xf60] sm:$0xff]
        %v1114 = vld [vmem:[%s504 + $0xf68] sm:$0xff]
        %v1115 = vld [vmem:[%s504 + $0xf70] sm:$0xff]
        %v1116 = vld [vmem:[%s504 + $0xf78] sm:$0xff]
        %v1117 = vld [vmem:[%s504 + $0xf80] sm:$0xff]
        %v1118 = vld [vmem:[%s504 + $0xf88] sm:$0xff]
        %v1119 = vld [vmem:[%s504 + $0xf90] sm:$0xff]
        %v1120 = vld [vmem:[%s504 + $0xf98] sm:$0xff]
        %v1121 = vld [vmem:[%s504 + $0xfa0] sm:$0xff]
        %v1122 = vld [vmem:[%s504 + $0xfa8] sm:$0xff]
        %v1123 = vld [vmem:[%s504 + $0xfb0] sm:$0xff]
        %v1124 = vld [vmem:[%s504 + $0xfb8] sm:$0xff]
        %v1125 = vld [vmem:[%s504 + $0xfc0] sm:$0xff]
        %v1126 = vld [vmem:[%s504 + $0xfc8] sm:$0xff]
        %v1127 = vld [vmem:[%s504 + $0xfd0] sm:$0xff]
        %v1128 = vld [vmem:[%s504 + $0xfd8] sm:$0xff]
        %v1129 = vld [vmem:[%s504 + $0xfe0] sm:$0xff]
        %v1130 = vld [vmem:[%s504 + $0xfe8] sm:$0xff]
        %v1131 = vld [vmem:[%s504 + $0xff0] sm:$0xff]
        %v1132 = vld [vmem:[%s504 + $0xff8] sm:$0xff]
        %v1133 = vld [vmem:[%s504 + $0x1000] sm:$0xff]
        %v1134 = vld [vmem:[%s504 + $0x1008] sm:$0xff]
        %v1135 = vld [vmem:[%s504 + $0x1010] sm:$0xff]
        %v1136 = vld [vmem:[%s504 + $0x1018] sm:$0xff]
        %v1137 = vld [vmem:[%s504 + $0x1020] sm:$0xff]
        %v1138 = vld [vmem:[%s504 + $0x1028] sm:$0xff]
        %v1139 = vld [vmem:[%s504 + $0x1030] sm:$0xff]
        %v1140 = vld [vmem:[%s504 + $0x1038] sm:$0xff]
        %v1141 = vld [vmem:[%s504 + $0x1040] sm:$0xff]
        %v1142 = vld [vmem:[%s504 + $0x1048] sm:$0xff]
        %v1143 = vld [vmem:[%s504 + $0x1050] sm:$0xff]
        %v1144 = vld [vmem:[%s504 + $0x1058] sm:$0xff]
        %v1145 = vld [vmem:[%s504 + $0x1060] sm:$0xff]
        %v1146 = vld [vmem:[%s504 + $0x1068] sm:$0xff]
        %v1147 = vld [vmem:[%s504 + $0x1070] sm:$0xff]
        %v1148 = vld [vmem:[%s504 + $0x1078] sm:$0xff]
        %v1149 = vld [vmem:[%s504 + $0x1080] sm:$0xff]
        %v1150 = vld [vmem:[%s504 + $0x1088] sm:$0xff]
        %v1151 = vld [vmem:[%s504 + $0x1090] sm:$0xff]
        %v1152 = vld [vmem:[%s504 + $0x1098] sm:$0xff]
        %v1153 = vld [vmem:[%s504 + $0x10a0] sm:$0xff]
        %v1154 = vld [vmem:[%s504 + $0x10a8] sm:$0xff]
        %v1155 = vld [vmem:[%s504 + $0x10b0] sm:$0xff]
        %v1156 = vld [vmem:[%s504 + $0x10b8] sm:$0xff]
        %v1157 = vld [vmem:[%s504 + $0x10c0] sm:$0xff]
        %v1158 = vld [vmem:[%s504 + $0x10c8] sm:$0xff]
        %v1159 = vld [vmem:[%s504 + $0x10d0] sm:$0xff]
        %v1160 = vld [vmem:[%s504 + $0x10d8] sm:$0xff]
        %v1161 = vld [vmem:[%s504 + $0x10e0] sm:$0xff]
        %v1162 = vld [vmem:[%s504 + $0x10e8] sm:$0xff]
        %v1163 = vld [vmem:[%s504 + $0x10f0] sm:$0xff]
        %v1164 = vld [vmem:[%s504 + $0x10f8] sm:$0xff]
        %v1165 = vld [vmem:[%s504 + $0x1100] sm:$0xff]
        %v1166 = vld [vmem:[%s504 + $0x1108] sm:$0xff]
        %v1167 = vld [vmem:[%s504 + $0x1110] sm:$0xff]
        %v1168 = vld [vmem:[%s504 + $0x1118] sm:$0xff]
        %v1169 = vld [vmem:[%s504 + $0x1120] sm:$0xff]
        %v1170 = vld [vmem:[%s504 + $0x1128] sm:$0xff]
        %v1171 = vld [vmem:[%s504 + $0x1130] sm:$0xff]
        %v1172 = vld [vmem:[%s504 + $0x1138] sm:$0xff]
        %v1173 = vld [vmem:[%s504 + $0x1140] sm:$0xff]
        %v1174 = vld [vmem:[%s504 + $0x1148] sm:$0xff]
        %v1175 = vld [vmem:[%s504 + $0x1150] sm:$0xff]
        %v1176 = vld [vmem:[%s504 + $0x1158] sm:$0xff]
        %v1177 = vld [vmem:[%s504 + $0x1160] sm:$0xff]
        %v1178 = vld [vmem:[%s504 + $0x1168] sm:$0xff]
        %v1179 = vld [vmem:[%s504 + $0x1170] sm:$0xff]
        %v1180 = vld [vmem:[%s504 + $0x1178] sm:$0xff]
        %v1181 = vld [vmem:[%s504 + $0x1180] sm:$0xff]
        %v1182 = vld [vmem:[%s504 + $0x1188] sm:$0xff]
        %v1183 = vld [vmem:[%s504 + $0x1190] sm:$0xff]
        %v1184 = vld [vmem:[%s504 + $0x1198] sm:$0xff]
        %v1185 = vld [vmem:[%s504 + $0x11a0] sm:$0xff]
        %v1186 = vld [vmem:[%s504 + $0x11a8] sm:$0xff]
        %v1187 = vld [vmem:[%s504 + $0x11b0] sm:$0xff]
        %v1188 = vld [vmem:[%s504 + $0x11b8] sm:$0xff]
        %v1189 = vld [vmem:[%s504 + $0x11c0] sm:$0xff]
        %v1190 = vld [vmem:[%s504 + $0x11c8] sm:$0xff]
        %v1191 = vld [vmem:[%s504 + $0x11d0] sm:$0xff]
        %v1192 = vld [vmem:[%s504 + $0x11d8] sm:$0xff]
        %v1193 = vld [vmem:[%s504 + $0x11e0] sm:$0xff]
        %v1194 = vld [vmem:[%s504 + $0x11e8] sm:$0xff]
        %v1195 = vld [vmem:[%s504 + $0x11f0] sm:$0xff]
        %v1196 = vld [vmem:[%s504 + $0x11f8] sm:$0xff]
        %v1197 = vld [vmem:[%s504 + $0x1200] sm:$0xff]
        %v1198 = vld [vmem:[%s504 + $0x1208] sm:$0xff]
        %v1199 = vld [vmem:[%s504 + $0x1210] sm:$0xff]
        %v1200 = vld [vmem:[%s504 + $0x1218] sm:$0xff]
        %v1201 = vld [vmem:[%s504 + $0x1220] sm:$0xff]
        %v1202 = vld [vmem:[%s504 + $0x1228] sm:$0xff]
        %v1203 = vld [vmem:[%s504 + $0x1230] sm:$0xff]
        %v1204 = vld [vmem:[%s504 + $0x1238] sm:$0xff]
        %v1205 = vld [vmem:[%s504 + $0x1240] sm:$0xff]
        %v1206 = vld [vmem:[%s504 + $0x1248] sm:$0xff]
        %v1207 = vld [vmem:[%s504 + $0x1250] sm:$0xff]
        %v1208 = vld [vmem:[%s504 + $0x1258] sm:$0xff]
        %v1209 = vld [vmem:[%s504 + $0x1260] sm:$0xff]
        %v1210 = vld [vmem:[%s504 + $0x1268] sm:$0xff]
        %v1211 = vld [vmem:[%s504 + $0x1270] sm:$0xff]
        %v1212 = vld [vmem:[%s504 + $0x1278] sm:$0xff]
        %v1213 = vld [vmem:[%s504 + $0x1280] sm:$0xff]
        %v1214 = vld [vmem:[%s504 + $0x1288] sm:$0xff]
        %v1215 = vld [vmem:[%s504 + $0x1290] sm:$0xff]
        %v1216 = vld [vmem:[%s504 + $0x1298] sm:$0xff]
        %v1217 = vld [vmem:[%s504 + $0x12a0] sm:$0xff]
        %v1218 = vld [vmem:[%s504 + $0x12a8] sm:$0xff]
        %v1219 = vld [vmem:[%s504 + $0x12b0] sm:$0xff]
        %v1220 = vld [vmem:[%s504 + $0x12b8] sm:$0xff]
        %v1221 = vld [vmem:[%s504 + $0x12c0] sm:$0xff]
        %v1222 = vld [vmem:[%s504 + $0x12c8] sm:$0xff]
        %v1223 = vld [vmem:[%s504 + $0x12d0] sm:$0xff]
        %v1224 = vld [vmem:[%s504 + $0x12d8] sm:$0xff]
        %v1225 = vld [vmem:[%s504 + $0x12e0] sm:$0xff]
        %v1226 = vld [vmem:[%s504 + $0x12e8] sm:$0xff]
        %v1227 = vld [vmem:[%s504 + $0x12f0] sm:$0xff]
        %v1228 = vld [vmem:[%s504 + $0x12f8] sm:$0xff]
        %v1229 = vld [vmem:[%s504 + $0x1300] sm:$0xff]
        %v1230 = vld [vmem:[%s504 + $0x1308] sm:$0xff]
        %v1231 = vld [vmem:[%s504 + $0x1310] sm:$0xff]
        %v1232 = vld [vmem:[%s504 + $0x1318] sm:$0xff]
        %v1233 = vld [vmem:[%s504 + $0x1320] sm:$0xff]
        %v1234 = vld [vmem:[%s504 + $0x1328] sm:$0xff]
        %v1235 = vld [vmem:[%s504 + $0x1330] sm:$0xff]
        %v1236 = vld [vmem:[%s504 + $0x1338] sm:$0xff]
        %v1237 = vld [vmem:[%s504 + $0x1340] sm:$0xff]
        %v1238 = vld [vmem:[%s504 + $0x1348] sm:$0xff]
        %v1239 = vld [vmem:[%s504 + $0x1350] sm:$0xff]
        %v1240 = vld [vmem:[%s504 + $0x1358] sm:$0xff]
        %v1241 = vld [vmem:[%s504 + $0x1360] sm:$0xff]
        %v1242 = vld [vmem:[%s504 + $0x1368] sm:$0xff]
        %v1243 = vld [vmem:[%s504 + $0x1370] sm:$0xff]
        %v1244 = vld [vmem:[%s504 + $0x1378] sm:$0xff]
        %v1245 = vld [vmem:[%s504 + $0x1380] sm:$0xff]
        %v1246 = vld [vmem:[%s504 + $0x1388] sm:$0xff]
        %v1247 = vld [vmem:[%s504 + $0x1390] sm:$0xff]
        %v1248 = vld [vmem:[%s504 + $0x1398] sm:$0xff]
        %v1249 = vld [vmem:[%s504 + $0x13a0] sm:$0xff]
        %v1250 = vld [vmem:[%s504 + $0x13a8] sm:$0xff]
        %v1251 = vld [vmem:[%s504 + $0x13b0] sm:$0xff]
        %v1252 = vld [vmem:[%s504 + $0x13b8] sm:$0xff]
        %v1253 = vld [vmem:[%s504 + $0x13c0] sm:$0xff]
        %v1254 = vld [vmem:[%s504 + $0x13c8] sm:$0xff]
        %v1255 = vld [vmem:[%s504 + $0x13d0] sm:$0xff]
        %v1256 = vld [vmem:[%s504 + $0x13d8] sm:$0xff]
        %v1257 = vld [vmem:[%s504 + $0x13e0] sm:$0xff]
        %v1258 = vld [vmem:[%s504 + $0x13e8] sm:$0xff]
        %v1259 = vld [vmem:[%s504 + $0x13f0] sm:$0xff]
        %v1260 = vld [vmem:[%s504 + $0x13f8] sm:$0xff]
        %v1261 = vld [vmem:[%s504 + $0x1400] sm:$0xff]
        %v1262 = vld [vmem:[%s504 + $0x1408] sm:$0xff]
        %v1263 = vld [vmem:[%s504 + $0x1410] sm:$0xff]
        %v1264 = vld [vmem:[%s504 + $0x1418] sm:$0xff]
        %v1265 = vld [vmem:[%s504 + $0x1420] sm:$0xff]
        %v1266 = vld [vmem:[%s504 + $0x1428] sm:$0xff]
        %v1267 = vld [vmem:[%s504 + $0x1430] sm:$0xff]
        %v1268 = vld [vmem:[%s504 + $0x1438] sm:$0xff]
        %v1269 = vld [vmem:[%s504 + $0x1440] sm:$0xff]
        %v1270 = vld [vmem:[%s504 + $0x1448] sm:$0xff]
        %v1271 = vld [vmem:[%s504 + $0x1450] sm:$0xff]
        %v1272 = vld [vmem:[%s504 + $0x1458] sm:$0xff]
        %v1273 = vld [vmem:[%s504 + $0x1460] sm:$0xff]
        %v1274 = vld [vmem:[%s504 + $0x1468] sm:$0xff]
        %v1275 = vld [vmem:[%s504 + $0x1470] sm:$0xff]
        %v1276 = vld [vmem:[%s504 + $0x1478] sm:$0xff]
        %v1277 = vld [vmem:[%s504 + $0x1480] sm:$0xff]
        %v1278 = vld [vmem:[%s504 + $0x1488] sm:$0xff]
        %v1279 = vld [vmem:[%s504 + $0x1490] sm:$0xff]
        %v1280 = vld [vmem:[%s504 + $0x1498] sm:$0xff]
        %v1281 = vld [vmem:[%s504 + $0x14a0] sm:$0xff]
        %v1282 = vld [vmem:[%s504 + $0x14a8] sm:$0xff]
        %v1283 = vld [vmem:[%s504 + $0x14b0] sm:$0xff]
        %v1284 = vld [vmem:[%s504 + $0x14b8] sm:$0xff]
        %v1285 = vld [vmem:[%s504 + $0x14c0] sm:$0xff]
        %v1286 = vld [vmem:[%s504 + $0x14c8] sm:$0xff]
        %v1287 = vld [vmem:[%s504 + $0x14d0] sm:$0xff]
        %v1288 = vld [vmem:[%s504 + $0x14d8] sm:$0xff]
        %v1289 = vld [vmem:[%s504 + $0x14e0] sm:$0xff]
        %v1290 = vld [vmem:[%s504 + $0x14e8] sm:$0xff]
        %v1291 = vld [vmem:[%s504 + $0x14f0] sm:$0xff]
        %v1292 = vld [vmem:[%s504 + $0x14f8] sm:$0xff]
        %v1293 = vld [vmem:[%s504 + $0x1500] sm:$0xff]
        %v1294 = vld [vmem:[%s504 + $0x1508] sm:$0xff]
        %v1295 = vld [vmem:[%s504 + $0x1510] sm:$0xff]
        %v1296 = vld [vmem:[%s504 + $0x1518] sm:$0xff]
        %v1297 = vld [vmem:[%s504 + $0x1520] sm:$0xff]
        %v1298 = vld [vmem:[%s504 + $0x1528] sm:$0xff]
        %v1299 = vld [vmem:[%s504 + $0x1530] sm:$0xff]
        %v1300 = vld [vmem:[%s504 + $0x1538] sm:$0xff]
        %v1301 = vld [vmem:[%s504 + $0x1540] sm:$0xff]
        %v1302 = vld [vmem:[%s504 + $0x1548] sm:$0xff]
        %v1303 = vld [vmem:[%s504 + $0x1550] sm:$0xff]
        %v1304 = vld [vmem:[%s504 + $0x1558] sm:$0xff]
        %v1305 = vld [vmem:[%s504 + $0x1560] sm:$0xff]
        %v1306 = vld [vmem:[%s504 + $0x1568] sm:$0xff]
        %v1307 = vld [vmem:[%s504 + $0x1570] sm:$0xff]
        %v1308 = vld [vmem:[%s504 + $0x1578] sm:$0xff]
        %v1309 = vld [vmem:[%s504 + $0x1580] sm:$0xff]
        %v1310 = vld [vmem:[%s504 + $0x1588] sm:$0xff]
        %v1311 = vld [vmem:[%s504 + $0x1590] sm:$0xff]
        %v1312 = vld [vmem:[%s504 + $0x1598] sm:$0xff]
        %v1313 = vld [vmem:[%s504 + $0x15a0] sm:$0xff]
        %v1314 = vld [vmem:[%s504 + $0x15a8] sm:$0xff]
        %v1315 = vld [vmem:[%s504 + $0x15b0] sm:$0xff]
        %v1316 = vld [vmem:[%s504 + $0x15b8] sm:$0xff]
        %v1317 = vld [vmem:[%s504 + $0x15c0] sm:$0xff]
        %v1318 = vld [vmem:[%s504 + $0x15c8] sm:$0xff]
        %v1319 = vld [vmem:[%s504 + $0x15d0] sm:$0xff]
        %v1320 = vld [vmem:[%s504 + $0x15d8] sm:$0xff]
        %v1321 = vld [vmem:[%s504 + $0x15e0] sm:$0xff]
        %v1322 = vld [vmem:[%s504 + $0x15e8] sm:$0xff]
        %v1323 = vld [vmem:[%s504 + $0x15f0] sm:$0xff]
        %v1324 = vld [vmem:[%s504 + $0x15f8] sm:$0xff]
        %v1325 = vld [vmem:[%s504 + $0x1600] sm:$0xff]
        %v1326 = vld [vmem:[%s504 + $0x1608] sm:$0xff]
        %v1327 = vld [vmem:[%s504 + $0x1610] sm:$0xff]
        %v1328 = vld [vmem:[%s504 + $0x1618] sm:$0xff]
        %v1329 = vld [vmem:[%s504 + $0x1620] sm:$0xff]
        %v1330 = vld [vmem:[%s504 + $0x1628] sm:$0xff]
        %v1331 = vld [vmem:[%s504 + $0x1630] sm:$0xff]
        %v1332 = vld [vmem:[%s504 + $0x1638] sm:$0xff]
        %v1333 = vld [vmem:[%s504 + $0x1640] sm:$0xff]
        %v1334 = vld [vmem:[%s504 + $0x1648] sm:$0xff]
        %v1335 = vld [vmem:[%s504 + $0x1650] sm:$0xff]
        %v1336 = vld [vmem:[%s504 + $0x1658] sm:$0xff]
        %v1337 = vld [vmem:[%s504 + $0x1660] sm:$0xff]
        %v1338 = vld [vmem:[%s504 + $0x1668] sm:$0xff]
        %v1339 = vld [vmem:[%s504 + $0x1670] sm:$0xff]
        %v1340 = vld [vmem:[%s504 + $0x1678] sm:$0xff]
        %v1341 = vld [vmem:[%s504 + $0x1680] sm:$0xff]
        %v1342 = vld [vmem:[%s504 + $0x1688] sm:$0xff]
        %v1343 = vld [vmem:[%s504 + $0x1690] sm:$0xff]
        %v1344 = vld [vmem:[%s504 + $0x1698] sm:$0xff]
        %v1345 = vld [vmem:[%s504 + $0x16a0] sm:$0xff]
        %v1346 = vld [vmem:[%s504 + $0x16a8] sm:$0xff]
        %v1347 = vld [vmem:[%s504 + $0x16b0] sm:$0xff]
        %v1348 = vld [vmem:[%s504 + $0x16b8] sm:$0xff]
        %v1349 = vld [vmem:[%s504 + $0x16c0] sm:$0xff]
        %v1350 = vld [vmem:[%s504 + $0x16c8] sm:$0xff]
        %v1351 = vld [vmem:[%s504 + $0x16d0] sm:$0xff]
        %v1352 = vld [vmem:[%s504 + $0x16d8] sm:$0xff]
        %v1353 = vld [vmem:[%s504 + $0x16e0] sm:$0xff]
        %v1354 = vld [vmem:[%s504 + $0x16e8] sm:$0xff]
        %v1355 = vld [vmem:[%s504 + $0x16f0] sm:$0xff]
        %v1356 = vld [vmem:[%s504 + $0x16f8] sm:$0xff]
        %v1357 = vld [vmem:[%s504 + $0x1700] sm:$0xff]
        %v1358 = vld [vmem:[%s504 + $0x1708] sm:$0xff]
        %v1359 = vld [vmem:[%s504 + $0x1710] sm:$0xff]
        %v1360 = vld [vmem:[%s504 + $0x1718] sm:$0xff]
        %v1361 = vld [vmem:[%s504 + $0x1720] sm:$0xff]
        %v1362 = vld [vmem:[%s504 + $0x1728] sm:$0xff]
        %v1363 = vld [vmem:[%s504 + $0x1730] sm:$0xff]
        %v1364 = vld [vmem:[%s504 + $0x1738] sm:$0xff]
        %v1365 = vld [vmem:[%s504 + $0x1740] sm:$0xff]
        %v1366 = vld [vmem:[%s504 + $0x1748] sm:$0xff]
        %v1367 = vld [vmem:[%s504 + $0x1750] sm:$0xff]
        %v1368 = vld [vmem:[%s504 + $0x1758] sm:$0xff]
        %v1369 = vld [vmem:[%s504 + $0x1760] sm:$0xff]
        %v1370 = vld [vmem:[%s504 + $0x1768] sm:$0xff]
        %v1371 = vld [vmem:[%s504 + $0x1770] sm:$0xff]
        %v1372 = vld [vmem:[%s504 + $0x1778] sm:$0xff]
        %v1373 = vld [vmem:[%s504 + $0x1780] sm:$0xff]
        %v1374 = vld [vmem:[%s504 + $0x1788] sm:$0xff]
        %v1375 = vld [vmem:[%s504 + $0x1790] sm:$0xff]
        %v1376 = vld [vmem:[%s504 + $0x1798] sm:$0xff]
        %v1377 = vld [vmem:[%s504 + $0x17a0] sm:$0xff]
        %v1378 = vld [vmem:[%s504 + $0x17a8] sm:$0xff]
        %v1379 = vld [vmem:[%s504 + $0x17b0] sm:$0xff]
        %v1380 = vld [vmem:[%s504 + $0x17b8] sm:$0xff]
        %v1381 = vld [vmem:[%s504 + $0x17c0] sm:$0xff]
        %v1382 = vld [vmem:[%s504 + $0x17c8] sm:$0xff]
        %v1383 = vld [vmem:[%s504 + $0x17d0] sm:$0xff]
        %v1384 = vld [vmem:[%s504 + $0x17d8] sm:$0xff]
        %v1385 = vld [vmem:[%s504 + $0x17e0] sm:$0xff]
        %v1386 = vld [vmem:[%s504 + $0x17e8] sm:$0xff]
        %v1387 = vld [vmem:[%s504 + $0x17f0] sm:$0xff]
        %v1388 = vld [vmem:[%s504 + $0x17f8] sm:$0xff]
        %v1389 = vld [vmem:[%s504 + $0x1800] sm:$0xff]
        %v1390 = vld [vmem:[%s504 + $0x1808] sm:$0xff]
        %v1391 = vld [vmem:[%s504 + $0x1810] sm:$0xff]
        %v1392 = vld [vmem:[%s504 + $0x1818] sm:$0xff]
        %v1393 = vld [vmem:[%s504 + $0x1820] sm:$0xff]
        %v1394 = vld [vmem:[%s504 + $0x1828] sm:$0xff]
        %v1395 = vld [vmem:[%s504 + $0x1830] sm:$0xff]
        %v1396 = vld [vmem:[%s504 + $0x1838] sm:$0xff]
        %v1397 = vld [vmem:[%s504 + $0x1840] sm:$0xff]
        %v1398 = vld [vmem:[%s504 + $0x1848] sm:$0xff]
        %v1399 = vld [vmem:[%s504 + $0x1850] sm:$0xff]
        %v1400 = vld [vmem:[%s504 + $0x1858] sm:$0xff]
        %v1401 = vld [vmem:[%s504 + $0x1860] sm:$0xff]
        %v1402 = vld [vmem:[%s504 + $0x1868] sm:$0xff]
        %v1403 = vld [vmem:[%s504 + $0x1870] sm:$0xff]
        %v1404 = vld [vmem:[%s504 + $0x1878] sm:$0xff]
        %v1405 = vld [vmem:[%s504 + $0x1880] sm:$0xff]
        %v1406 = vld [vmem:[%s504 + $0x1888] sm:$0xff]
        %v1407 = vld [vmem:[%s504 + $0x1890] sm:$0xff]
        %v1408 = vld [vmem:[%s504 + $0x1898] sm:$0xff]
        %v1409 = vld [vmem:[%s504 + $0x18a0] sm:$0xff]
        %v1410 = vld [vmem:[%s504 + $0x18a8] sm:$0xff]
        %v1411 = vld [vmem:[%s504 + $0x18b0] sm:$0xff]
        %v1412 = vld [vmem:[%s504 + $0x18b8] sm:$0xff]
        %v1413 = vld [vmem:[%s504 + $0x18c0] sm:$0xff]
        %v1414 = vld [vmem:[%s504 + $0x18c8] sm:$0xff]
        %v1415 = vld [vmem:[%s504 + $0x18d0] sm:$0xff]
        %v1416 = vld [vmem:[%s504 + $0x18d8] sm:$0xff]
        %v1417 = vld [vmem:[%s504 + $0x18e0] sm:$0xff]
        %v1418 = vld [vmem:[%s504 + $0x18e8] sm:$0xff]
        %v1419 = vld [vmem:[%s504 + $0x18f0] sm:$0xff]
        %v1420 = vld [vmem:[%s504 + $0x18f8] sm:$0xff]
        %v1421 = vld [vmem:[%s504 + $0x1900] sm:$0xff]
        %v1422 = vld [vmem:[%s504 + $0x1908] sm:$0xff]
        %v1423 = vld [vmem:[%s504 + $0x1910] sm:$0xff]
        %v1424 = vld [vmem:[%s504 + $0x1918] sm:$0xff]
        %v1425 = vld [vmem:[%s504 + $0x1920] sm:$0xff]
        %v1426 = vld [vmem:[%s504 + $0x1928] sm:$0xff]
        %v1427 = vld [vmem:[%s504 + $0x1930] sm:$0xff]
        %v1428 = vld [vmem:[%s504 + $0x1938] sm:$0xff]
        %v1429 = vld [vmem:[%s504 + $0x1940] sm:$0xff]
        %v1430 = vld [vmem:[%s504 + $0x1948] sm:$0xff]
        %v1431 = vld [vmem:[%s504 + $0x1950] sm:$0xff]
        %v1432 = vld [vmem:[%s504 + $0x1958] sm:$0xff]
        %v1433 = vld [vmem:[%s504 + $0x1960] sm:$0xff]
        %v1434 = vld [vmem:[%s504 + $0x1968] sm:$0xff]
        %v1435 = vld [vmem:[%s504 + $0x1970] sm:$0xff]
        %v1436 = vld [vmem:[%s504 + $0x1978] sm:$0xff]
        %v1437 = vld [vmem:[%s504 + $0x1980] sm:$0xff]
        %v1438 = vld [vmem:[%s504 + $0x1988] sm:$0xff]
        %v1439 = vld [vmem:[%s504 + $0x1990] sm:$0xff]
        %v1440 = vld [vmem:[%s504 + $0x1998] sm:$0xff]
        %v1441 = vld [vmem:[%s504 + $0x19a0] sm:$0xff]
        %v1442 = vld [vmem:[%s504 + $0x19a8] sm:$0xff]
        %v1443 = vld [vmem:[%s504 + $0x19b0] sm:$0xff]
        %v1444 = vld [vmem:[%s504 + $0x19b8] sm:$0xff]
        %v1445 = vld [vmem:[%s504 + $0x19c0] sm:$0xff]
        %v1446 = vld [vmem:[%s504 + $0x19c8] sm:$0xff]
        %v1447 = vld [vmem:[%s504 + $0x19d0] sm:$0xff]
        %v1448 = vld [vmem:[%s504 + $0x19d8] sm:$0xff]
        %v1449 = vld [vmem:[%s504 + $0x19e0] sm:$0xff]
        %v1450 = vld [vmem:[%s504 + $0x19e8] sm:$0xff]
        %v1451 = vld [vmem:[%s504 + $0x19f0] sm:$0xff]
        %v1452 = vld [vmem:[%s504 + $0x19f8] sm:$0xff]
        %v1453 = vld [vmem:[%s504 + $0x1a00] sm:$0xff]
        %v1454 = vld [vmem:[%s504 + $0x1a08] sm:$0xff]
        %v1455 = vld [vmem:[%s504 + $0x1a10] sm:$0xff]
        %v1456 = vld [vmem:[%s504 + $0x1a18] sm:$0xff]
        %v1457 = vld [vmem:[%s504 + $0x1a20] sm:$0xff]
        %v1458 = vld [vmem:[%s504 + $0x1a28] sm:$0xff]
        %v1459 = vld [vmem:[%s504 + $0x1a30] sm:$0xff]
        %v1460 = vld [vmem:[%s504 + $0x1a38] sm:$0xff]
        %v1461 = vld [vmem:[%s504 + $0x1a40] sm:$0xff]
        %v1462 = vld [vmem:[%s504 + $0x1a48] sm:$0xff]
        %v1463 = vld [vmem:[%s504 + $0x1a50] sm:$0xff]
        %v1464 = vld [vmem:[%s504 + $0x1a58] sm:$0xff]
        %v1465 = vld [vmem:[%s504 + $0x1a60] sm:$0xff]
        %v1466 = vld [vmem:[%s504 + $0x1a68] sm:$0xff]
        %v1467 = vld [vmem:[%s504 + $0x1a70] sm:$0xff]
        %v1468 = vld [vmem:[%s504 + $0x1a78] sm:$0xff]
        %v1469 = vld [vmem:[%s504 + $0x1a80] sm:$0xff]
        %v1470 = vld [vmem:[%s504 + $0x1a88] sm:$0xff]
        %v1471 = vld [vmem:[%s504 + $0x1a90] sm:$0xff]
        %v1472 = vld [vmem:[%s504 + $0x1a98] sm:$0xff]
        %v1473 = vld [vmem:[%s504 + $0x1aa0] sm:$0xff]
        %v1474 = vld [vmem:[%s504 + $0x1aa8] sm:$0xff]
        %v1475 = vld [vmem:[%s504 + $0x1ab0] sm:$0xff]
        %v1476 = vld [vmem:[%s504 + $0x1ab8] sm:$0xff]
        %v1477 = vld [vmem:[%s504 + $0x1ac0] sm:$0xff]
        %v1478 = vld [vmem:[%s504 + $0x1ac8] sm:$0xff]
        %v1479 = vld [vmem:[%s504 + $0x1ad0] sm:$0xff]
        %v1480 = vld [vmem:[%s504 + $0x1ad8] sm:$0xff]
        %v1481 = vld [vmem:[%s504 + $0x1ae0] sm:$0xff]
        %v1482 = vld [vmem:[%s504 + $0x1ae8] sm:$0xff]
        %v1483 = vld [vmem:[%s504 + $0x1af0] sm:$0xff]
        %v1484 = vld [vmem:[%s504 + $0x1af8] sm:$0xff]
        %v1485 = vld [vmem:[%s504 + $0x1b00] sm:$0xff]
        %v1486 = vld [vmem:[%s504 + $0x1b08] sm:$0xff]
        %v1487 = vld [vmem:[%s504 + $0x1b10] sm:$0xff]
        %v1488 = vld [vmem:[%s504 + $0x1b18] sm:$0xff]
        %v1489 = vld [vmem:[%s504 + $0x1b20] sm:$0xff]
        %v1490 = vld [vmem:[%s504 + $0x1b28] sm:$0xff]
        %v1491 = vld [vmem:[%s504 + $0x1b30] sm:$0xff]
        %v1492 = vld [vmem:[%s504 + $0x1b38] sm:$0xff]
        %v1493 = vld [vmem:[%s504 + $0x1b40] sm:$0xff]
        %v1494 = vld [vmem:[%s504 + $0x1b48] sm:$0xff]
        %v1495 = vld [vmem:[%s504 + $0x1b50] sm:$0xff]
        %v1496 = vld [vmem:[%s504 + $0x1b58] sm:$0xff]
        %v1497 = vld [vmem:[%s504 + $0x1b60] sm:$0xff]
        %v1498 = vld [vmem:[%s504 + $0x1b68] sm:$0xff]
        %v1499 = vld [vmem:[%s504 + $0x1b70] sm:$0xff]
        %v1500 = vld [vmem:[%s504 + $0x1b78] sm:$0xff]
        %v1501 = vld [vmem:[%s504 + $0x1b80] sm:$0xff]
        %v1502 = vld [vmem:[%s504 + $0x1b88] sm:$0xff]
        %v1503 = vld [vmem:[%s504 + $0x1b90] sm:$0xff]
        %v1504 = vld [vmem:[%s504 + $0x1b98] sm:$0xff]
        %v1505 = vld [vmem:[%s504 + $0x1ba0] sm:$0xff]
        %v1506 = vld [vmem:[%s504 + $0x1ba8] sm:$0xff]
        %v1507 = vld [vmem:[%s504 + $0x1bb0] sm:$0xff]
        %v1508 = vld [vmem:[%s504 + $0x1bb8] sm:$0xff]
        %v1509 = vld [vmem:[%s504 + $0x1bc0] sm:$0xff]
        %v1510 = vld [vmem:[%s504 + $0x1bc8] sm:$0xff]
        %v1511 = vld [vmem:[%s504 + $0x1bd0] sm:$0xff]
        %v1512 = vld [vmem:[%s504 + $0x1bd8] sm:$0xff]
        %v1513 = vld [vmem:[%s504 + $0x1be0] sm:$0xff]
        %v1514 = vld [vmem:[%s504 + $0x1be8] sm:$0xff]
        %v1515 = vld [vmem:[%s504 + $0x1bf0] sm:$0xff]
        %v1516 = vld [vmem:[%s504 + $0x1bf8] sm:$0xff]
        %v1517 = vld [vmem:[%s504 + $0x1c00] sm:$0xff]
        %v1518 = vld [vmem:[%s504 + $0x1c08] sm:$0xff]
        %v1519 = vld [vmem:[%s504 + $0x1c10] sm:$0xff]
        %v1520 = vld [vmem:[%s504 + $0x1c18] sm:$0xff]
        %v1521 = vld [vmem:[%s504 + $0x1c20] sm:$0xff]
        %v1522 = vld [vmem:[%s504 + $0x1c28] sm:$0xff]
        %v1523 = vld [vmem:[%s504 + $0x1c30] sm:$0xff]
        %v1524 = vld [vmem:[%s504 + $0x1c38] sm:$0xff]
        %v1525 = vld [vmem:[%s504 + $0x1c40] sm:$0xff]
        %v1526 = vld [vmem:[%s504 + $0x1c48] sm:$0xff]
        %v1527 = vld [vmem:[%s504 + $0x1c50] sm:$0xff]
        %v1528 = vld [vmem:[%s504 + $0x1c58] sm:$0xff]
        %v1529 = vld [vmem:[%s504 + $0x1c60] sm:$0xff]
        %v1530 = vld [vmem:[%s504 + $0x1c68] sm:$0xff]
        %v1531 = vld [vmem:[%s504 + $0x1c70] sm:$0xff]
        %v1532 = vld [vmem:[%s504 + $0x1c78] sm:$0xff]
        %v1533 = vld [vmem:[%s504 + $0x1c80] sm:$0xff]
        %v1534 = vld [vmem:[%s504 + $0x1c88] sm:$0xff]
        %v1535 = vld [vmem:[%s504 + $0x1c90] sm:$0xff]
        %v1536 = vld [vmem:[%s504 + $0x1c98] sm:$0xff]
        %v1537 = vld [vmem:[%s504 + $0x1ca0] sm:$0xff]
        %v1538 = vld [vmem:[%s504 + $0x1ca8] sm:$0xff]
        %v1539 = vld [vmem:[%s504 + $0x1cb0] sm:$0xff]
        %v1540 = vld [vmem:[%s504 + $0x1cb8] sm:$0xff]
        %v1541 = vld [vmem:[%s504 + $0x1cc0] sm:$0xff]
        %v1542 = vld [vmem:[%s504 + $0x1cc8] sm:$0xff]
        %v1543 = vld [vmem:[%s504 + $0x1cd0] sm:$0xff]
        %v1544 = vld [vmem:[%s504 + $0x1cd8] sm:$0xff]
        %v1545 = vld [vmem:[%s504 + $0x1ce0] sm:$0xff]
        %v1546 = vld [vmem:[%s504 + $0x1ce8] sm:$0xff]
        %v1547 = vld [vmem:[%s504 + $0x1cf0] sm:$0xff]
        %v1548 = vld [vmem:[%s504 + $0x1cf8] sm:$0xff]
        %v1549 = vld [vmem:[%s504 + $0x1d00] sm:$0xff]
        %v1550 = vld [vmem:[%s504 + $0x1d08] sm:$0xff]
        %v1551 = vld [vmem:[%s504 + $0x1d10] sm:$0xff]
        %v1552 = vld [vmem:[%s504 + $0x1d18] sm:$0xff]
        %v1553 = vld [vmem:[%s504 + $0x1d20] sm:$0xff]
        %v1554 = vld [vmem:[%s504 + $0x1d28] sm:$0xff]
        %v1555 = vld [vmem:[%s504 + $0x1d30] sm:$0xff]
        %v1556 = vld [vmem:[%s504 + $0x1d38] sm:$0xff]
        %v1557 = vld [vmem:[%s504 + $0x1d40] sm:$0xff]
        %v1558 = vld [vmem:[%s504 + $0x1d48] sm:$0xff]
        %v1559 = vld [vmem:[%s504 + $0x1d50] sm:$0xff]
        %v1560 = vld [vmem:[%s504 + $0x1d58] sm:$0xff]
        %v1561 = vld [vmem:[%s504 + $0x1d60] sm:$0xff]
        %v1562 = vld [vmem:[%s504 + $0x1d68] sm:$0xff]
        %v1563 = vld [vmem:[%s504 + $0x1d70] sm:$0xff]
        %v1564 = vld [vmem:[%s504 + $0x1d78] sm:$0xff]
        %v1565 = vld [vmem:[%s504 + $0x1d80] sm:$0xff]
        %v1566 = vld [vmem:[%s504 + $0x1d88] sm:$0xff]
        %v1567 = vld [vmem:[%s504 + $0x1d90] sm:$0xff]
        %v1568 = vld [vmem:[%s504 + $0x1d98] sm:$0xff]
        %v1569 = vld [vmem:[%s504 + $0x1da0] sm:$0xff]
        %v1570 = vld [vmem:[%s504 + $0x1da8] sm:$0xff]
        %v1571 = vld [vmem:[%s504 + $0x1db0] sm:$0xff]
        %v1572 = vld [vmem:[%s504 + $0x1db8] sm:$0xff]
        %v1573 = vld [vmem:[%s504 + $0x1dc0] sm:$0xff]
        %v1574 = vld [vmem:[%s504 + $0x1dc8] sm:$0xff]
        %v1575 = vld [vmem:[%s504 + $0x1dd0] sm:$0xff]
        %v1576 = vld [vmem:[%s504 + $0x1dd8] sm:$0xff]
        %v1577 = vld [vmem:[%s504 + $0x1de0] sm:$0xff]
        %v1578 = vld [vmem:[%s504 + $0x1de8] sm:$0xff]
        %v1579 = vld [vmem:[%s504 + $0x1df0] sm:$0xff]
        %v1580 = vld [vmem:[%s504 + $0x1df8] sm:$0xff]
        %v1581 = vld [vmem:[%s504 + $0x1e00] sm:$0xff]
        %v1582 = vld [vmem:[%s504 + $0x1e08] sm:$0xff]
        %v1583 = vld [vmem:[%s504 + $0x1e10] sm:$0xff]
        %v1584 = vld [vmem:[%s504 + $0x1e18] sm:$0xff]
        %v1585 = vld [vmem:[%s504 + $0x1e20] sm:$0xff]
        %v1586 = vld [vmem:[%s504 + $0x1e28] sm:$0xff]
        %v1587 = vld [vmem:[%s504 + $0x1e30] sm:$0xff]
        %v1588 = vld [vmem:[%s504 + $0x1e38] sm:$0xff]
        %v1589 = vld [vmem:[%s504 + $0x1e40] sm:$0xff]
        %v1590 = vld [vmem:[%s504 + $0x1e48] sm:$0xff]
        %v1591 = vld [vmem:[%s504 + $0x1e50] sm:$0xff]
        %v1592 = vld [vmem:[%s504 + $0x1e58] sm:$0xff]
        %v1593 = vld [vmem:[%s504 + $0x1e60] sm:$0xff]
        %v1594 = vld [vmem:[%s504 + $0x1e68] sm:$0xff]
        %v1595 = vld [vmem:[%s504 + $0x1e70] sm:$0xff]
        %v1596 = vld [vmem:[%s504 + $0x1e78] sm:$0xff]
        %v1597 = vld [vmem:[%s504 + $0x1e80] sm:$0xff]
        %v1598 = vld [vmem:[%s504 + $0x1e88] sm:$0xff]
        %v1599 = vld [vmem:[%s504 + $0x1e90] sm:$0xff]
        %v1600 = vld [vmem:[%s504 + $0x1e98] sm:$0xff]
        %v1601 = vld [vmem:[%s504 + $0x1ea0] sm:$0xff]
        %v1602 = vld [vmem:[%s504 + $0x1ea8] sm:$0xff]
        %v1603 = vld [vmem:[%s504 + $0x1eb0] sm:$0xff]
        %v1604 = vld [vmem:[%s504 + $0x1eb8] sm:$0xff]
        %v1605 = vld [vmem:[%s504 + $0x1ec0] sm:$0xff]
        %v1606 = vld [vmem:[%s504 + $0x1ec8] sm:$0xff]
        %v1607 = vld [vmem:[%s504 + $0x1ed0] sm:$0xff]
        %v1608 = vld [vmem:[%s504 + $0x1ed8] sm:$0xff]
        %v1609 = vld [vmem:[%s504 + $0x1ee0] sm:$0xff]
        %v1610 = vld [vmem:[%s504 + $0x1ee8] sm:$0xff]
        %v1611 = vld [vmem:[%s504 + $0x1ef0] sm:$0xff]
        %v1612 = vld [vmem:[%s504 + $0x1ef8] sm:$0xff]
        %v1613 = vld [vmem:[%s504 + $0x1f00] sm:$0xff]
        %v1614 = vld [vmem:[%s504 + $0x1f08] sm:$0xff]
        %v1615 = vld [vmem:[%s504 + $0x1f10] sm:$0xff]
        %v1616 = vld [vmem:[%s504 + $0x1f18] sm:$0xff]
        %v1617 = vld [vmem:[%s504 + $0x1f20] sm:$0xff]
        %v1618 = vld [vmem:[%s504 + $0x1f28] sm:$0xff]
        %v1619 = vld [vmem:[%s504 + $0x1f30] sm:$0xff]
        %v1620 = vld [vmem:[%s504 + $0x1f38] sm:$0xff]
        %v1621 = vld [vmem:[%s504 + $0x1f40] sm:$0xff]
        %v1622 = vld [vmem:[%s504 + $0x1f48] sm:$0xff]
        %v1623 = vld [vmem:[%s504 + $0x1f50] sm:$0xff]
        %v1624 = vld [vmem:[%s504 + $0x1f58] sm:$0xff]
        %v1625 = vld [vmem:[%s504 + $0x1f60] sm:$0xff]
        %v1626 = vld [vmem:[%s504 + $0x1f68] sm:$0xff]
        %v1627 = vld [vmem:[%s504 + $0x1f70] sm:$0xff]
        %v1628 = vld [vmem:[%s504 + $0x1f78] sm:$0xff]
        %v1629 = vld [vmem:[%s504 + $0x1f80] sm:$0xff]
        %v1630 = vld [vmem:[%s504 + $0x1f88] sm:$0xff]
        %v1631 = vld [vmem:[%s504 + $0x1f90] sm:$0xff]
        %v1632 = vld [vmem:[%s504 + $0x1f98] sm:$0xff]
        %v1633 = vld [vmem:[%s504 + $0x1fa0] sm:$0xff]
        %v1634 = vld [vmem:[%s504 + $0x1fa8] sm:$0xff]
        %v1635 = vld [vmem:[%s504 + $0x1fb0] sm:$0xff]
        %v1636 = vld [vmem:[%s504 + $0x1fb8] sm:$0xff]
        %v1637 = vld [vmem:[%s504 + $0x1fc0] sm:$0xff]
        %v1638 = vld [vmem:[%s504 + $0x1fc8] sm:$0xff]
        %v1639 = vld [vmem:[%s504 + $0x1fd0] sm:$0xff]
        %v1640 = vld [vmem:[%s504 + $0x1fd8] sm:$0xff]
        %v1641 = vld [vmem:[%s504 + $0x1fe0] sm:$0xff]
        %v1642 = vld [vmem:[%s504 + $0x1fe8] sm:$0xff]
        %v1643 = vld [vmem:[%s504 + $0x1ff0] sm:$0xff]
        %v1644 = vld [vmem:[%s504 + $0x1ff8] sm:$0xff]
        %v1645 = vld [vmem:[%s504 + $0x2000] sm:$0xff]
        %v1646 = vld [vmem:[%s504 + $0x2008] sm:$0xff]
        %v1647 = vld [vmem:[%s504 + $0x2010] sm:$0xff]
        %v1648 = vld [vmem:[%s504 + $0x2018] sm:$0xff]
        %v1649 = vld [vmem:[%s504 + $0x2020] sm:$0xff]
        %v1650 = vld [vmem:[%s504 + $0x2028] sm:$0xff]
        %v1651 = vld [vmem:[%s504 + $0x2030] sm:$0xff]
        %v1652 = vld [vmem:[%s504 + $0x2038] sm:$0xff]
        %v1653 = vld [vmem:[%s504 + $0x2040] sm:$0xff]
        %v1654 = vld [vmem:[%s504 + $0x2048] sm:$0xff]
        %v1655 = vld [vmem:[%s504 + $0x2050] sm:$0xff]
        %v1656 = vld [vmem:[%s504 + $0x2058] sm:$0xff]
        %v1657 = vld [vmem:[%s504 + $0x2060] sm:$0xff]
        %v1658 = vld [vmem:[%s504 + $0x2068] sm:$0xff]
        %v1659 = vld [vmem:[%s504 + $0x2070] sm:$0xff]
        %v1660 = vld [vmem:[%s504 + $0x2078] sm:$0xff]
        %v1661 = vld [vmem:[%s504 + $0x2080] sm:$0xff]
        %v1662 = vld [vmem:[%s504 + $0x2088] sm:$0xff]
        %v1663 = vld [vmem:[%s504 + $0x2090] sm:$0xff]
        %v1664 = vld [vmem:[%s504 + $0x2098] sm:$0xff]
        %v1665 = vld [vmem:[%s504 + $0x20a0] sm:$0xff]
        %v1666 = vld [vmem:[%s504 + $0x20a8] sm:$0xff]
        %v1667 = vld [vmem:[%s504 + $0x20b0] sm:$0xff]
        %v1668 = vld [vmem:[%s504 + $0x20b8] sm:$0xff]
        %v1669 = vld [vmem:[%s504 + $0x20c0] sm:$0xff]
        %v1670 = vld [vmem:[%s504 + $0x20c8] sm:$0xff]
        %v1671 = vld [vmem:[%s504 + $0x20d0] sm:$0xff]
        %v1672 = vld [vmem:[%s504 + $0x20d8] sm:$0xff]
        %v1673 = vld [vmem:[%s504 + $0x20e0] sm:$0xff]
        %v1674 = vld [vmem:[%s504 + $0x20e8] sm:$0xff]
        %v1675 = vld [vmem:[%s504 + $0x20f0] sm:$0xff]
        %v1676 = vld [vmem:[%s504 + $0x20f8] sm:$0xff]
        %v1677 = vld [vmem:[%s504 + $0x2100] sm:$0xff]
        %v1678 = vld [vmem:[%s504 + $0x2108] sm:$0xff]
        %v1679 = vld [vmem:[%s504 + $0x2110] sm:$0xff]
        %v1680 = vld [vmem:[%s504 + $0x2118] sm:$0xff]
        %v1681 = vld [vmem:[%s504 + $0x2120] sm:$0xff]
        %v1682 = vld [vmem:[%s504 + $0x2128] sm:$0xff]
        %v1683 = vld [vmem:[%s504 + $0x2130] sm:$0xff]
        %v1684 = vld [vmem:[%s504 + $0x2138] sm:$0xff]
        %v1685 = vld [vmem:[%s504 + $0x2140] sm:$0xff]
        %v1686 = vld [vmem:[%s504 + $0x2148] sm:$0xff]
        %v1687 = vld [vmem:[%s504 + $0x2150] sm:$0xff]
        %v1688 = vld [vmem:[%s504 + $0x2158] sm:$0xff]
        %v1689 = vld [vmem:[%s504 + $0x2160] sm:$0xff]
        %v1690 = vld [vmem:[%s504 + $0x2168] sm:$0xff]
        %v1691 = vld [vmem:[%s504 + $0x2170] sm:$0xff]
        %v1692 = vld [vmem:[%s504 + $0x2178] sm:$0xff]
        %v1693 = vld [vmem:[%s504 + $0x2180] sm:$0xff]
        %v1694 = vld [vmem:[%s504 + $0x2188] sm:$0xff]
        %v1695 = vld [vmem:[%s504 + $0x2190] sm:$0xff]
        %v1696 = vld [vmem:[%s504 + $0x2198] sm:$0xff]
        %v1697 = vld [vmem:[%s504 + $0x21a0] sm:$0xff]
        %v1698 = vld [vmem:[%s504 + $0x21a8] sm:$0xff]
        %v1699 = vld [vmem:[%s504 + $0x21b0] sm:$0xff]
        %v1700 = vld [vmem:[%s504 + $0x21b8] sm:$0xff]
        %v1701 = vld [vmem:[%s504 + $0x21c0] sm:$0xff]
        %v1702 = vld [vmem:[%s504 + $0x21c8] sm:$0xff]
        %v1703 = vld [vmem:[%s504 + $0x21d0] sm:$0xff]
        %v1704 = vld [vmem:[%s504 + $0x21d8] sm:$0xff]
        %v1705 = vld [vmem:[%s504 + $0x21e0] sm:$0xff]
        %v1706 = vld [vmem:[%s504 + $0x21e8] sm:$0xff]
        %v1707 = vld [vmem:[%s504 + $0x21f0] sm:$0xff]
        %v1708 = vld [vmem:[%s504 + $0x21f8] sm:$0xff]
        %v1709 = vld [vmem:[%s504 + $0x2200] sm:$0xff]
        %v1710 = vld [vmem:[%s504 + $0x2208] sm:$0xff]
        %v1711 = vld [vmem:[%s504 + $0x2210] sm:$0xff]
        %v1712 = vld [vmem:[%s504 + $0x2218] sm:$0xff]
        %v1713 = vld [vmem:[%s504 + $0x2220] sm:$0xff]
        %v1714 = vld [vmem:[%s504 + $0x2228] sm:$0xff]
        %v1715 = vld [vmem:[%s504 + $0x2230] sm:$0xff]
        %v1716 = vld [vmem:[%s504 + $0x2238] sm:$0xff]
        %v1717 = vld [vmem:[%s504 + $0x2240] sm:$0xff]
        %v1718 = vld [vmem:[%s504 + $0x2248] sm:$0xff]
        %v1719 = vld [vmem:[%s504 + $0x2250] sm:$0xff]
        %v1720 = vld [vmem:[%s504 + $0x2258] sm:$0xff]
        %v1721 = vld [vmem:[%s504 + $0x2260] sm:$0xff]
        %v1722 = vld [vmem:[%s504 + $0x2268] sm:$0xff]
        %v1723 = vld [vmem:[%s504 + $0x2270] sm:$0xff]
        %v1724 = vld [vmem:[%s504 + $0x2278] sm:$0xff]
        %v1725 = vld [vmem:[%s504 + $0x2280] sm:$0xff]
        %v1726 = vld [vmem:[%s504 + $0x2288] sm:$0xff]
        %v1727 = vld [vmem:[%s504 + $0x2290] sm:$0xff]
        %v1728 = vld [vmem:[%s504 + $0x2298] sm:$0xff]
        %v1729 = vld [vmem:[%s504 + $0x22a0] sm:$0xff]
        %v1730 = vld [vmem:[%s504 + $0x22a8] sm:$0xff]
        %v1731 = vld [vmem:[%s504 + $0x22b0] sm:$0xff]
        %v1732 = vld [vmem:[%s504 + $0x22b8] sm:$0xff]
        %v1733 = vld [vmem:[%s504 + $0x22c0] sm:$0xff]
        %v1734 = vld [vmem:[%s504 + $0x22c8] sm:$0xff]
        %v1735 = vld [vmem:[%s504 + $0x22d0] sm:$0xff]
        %v1736 = vld [vmem:[%s504 + $0x22d8] sm:$0xff]
        %v1737 = vld [vmem:[%s504 + $0x22e0] sm:$0xff]
        %v1738 = vld [vmem:[%s504 + $0x22e8] sm:$0xff]
        %v1739 = vld [vmem:[%s504 + $0x22f0] sm:$0xff]
        %v1740 = vld [vmem:[%s504 + $0x22f8] sm:$0xff]
        %v1741 = vld [vmem:[%s504 + $0x2300] sm:$0xff]
        %v1742 = vld [vmem:[%s504 + $0x2308] sm:$0xff]
        %v1743 = vld [vmem:[%s504 + $0x2310] sm:$0xff]
        %v1744 = vld [vmem:[%s504 + $0x2318] sm:$0xff]
        %v1745 = vld [vmem:[%s504 + $0x2320] sm:$0xff]
        %v1746 = vld [vmem:[%s504 + $0x2328] sm:$0xff]
        %v1747 = vld [vmem:[%s504 + $0x2330] sm:$0xff]
        %v1748 = vld [vmem:[%s504 + $0x2338] sm:$0xff]
        %v1749 = vld [vmem:[%s504 + $0x2340] sm:$0xff]
        %v1750 = vld [vmem:[%s504 + $0x2348] sm:$0xff]
        %v1751 = vld [vmem:[%s504 + $0x2350] sm:$0xff]
        %v1752 = vld [vmem:[%s504 + $0x2358] sm:$0xff]
        %v1753 = vld [vmem:[%s504 + $0x2360] sm:$0xff]
        %v1754 = vld [vmem:[%s504 + $0x2368] sm:$0xff]
        %v1755 = vld [vmem:[%s504 + $0x2370] sm:$0xff]
        %v1756 = vld [vmem:[%s504 + $0x2378] sm:$0xff]
        %v1757 = vld [vmem:[%s504 + $0x2380] sm:$0xff]
        %v1758 = vld [vmem:[%s504 + $0x2388] sm:$0xff]
        %v1759 = vld [vmem:[%s504 + $0x2390] sm:$0xff]
        %v1760 = vld [vmem:[%s504 + $0x2398] sm:$0xff]
        %v1761 = vld [vmem:[%s504 + $0x23a0] sm:$0xff]
        %v1762 = vld [vmem:[%s504 + $0x23a8] sm:$0xff]
        %v1763 = vld [vmem:[%s504 + $0x23b0] sm:$0xff]
        %v1764 = vld [vmem:[%s504 + $0x23b8] sm:$0xff]
        %v1765 = vld [vmem:[%s504 + $0x23c0] sm:$0xff]
        %v1766 = vld [vmem:[%s504 + $0x23c8] sm:$0xff]
        %v1767 = vld [vmem:[%s504 + $0x23d0] sm:$0xff]
        %v1768 = vld [vmem:[%s504 + $0x23d8] sm:$0xff]
        %v1769 = vld [vmem:[%s504 + $0x23e0] sm:$0xff]
        %v1770 = vld [vmem:[%s504 + $0x23e8] sm:$0xff]
        %v1771 = vld [vmem:[%s504 + $0x23f0] sm:$0xff]
        %v1772 = vld [vmem:[%s504 + $0x23f8] sm:$0xff]
        %v1773 = vld [vmem:[%s504 + $0x2400] sm:$0xff]
        %v1774 = vld [vmem:[%s504 + $0x2408] sm:$0xff]
        %v1775 = vld [vmem:[%s504 + $0x2410] sm:$0xff]
        %v1776 = vld [vmem:[%s504 + $0x2418] sm:$0xff]
        %v1777 = vld [vmem:[%s504 + $0x2420] sm:$0xff]
        %v1778 = vld [vmem:[%s504 + $0x2428] sm:$0xff]
        %v1779 = vld [vmem:[%s504 + $0x2430] sm:$0xff]
        %v1780 = vld [vmem:[%s504 + $0x2438] sm:$0xff]
        %v1781 = vld [vmem:[%s504 + $0x2440] sm:$0xff]
        %v1782 = vld [vmem:[%s504 + $0x2448] sm:$0xff]
        %v1783 = vld [vmem:[%s504 + $0x2450] sm:$0xff]
        %v1784 = vld [vmem:[%s504 + $0x2458] sm:$0xff]
        %v1785 = vld [vmem:[%s504 + $0x2460] sm:$0xff]
        %v1786 = vld [vmem:[%s504 + $0x2468] sm:$0xff]
        %v1787 = vld [vmem:[%s504 + $0x2470] sm:$0xff]
        %v1788 = vld [vmem:[%s504 + $0x2478] sm:$0xff]
        %v1789 = vld [vmem:[%s504 + $0x2480] sm:$0xff]
        %v1790 = vld [vmem:[%s504 + $0x2488] sm:$0xff]
        %v1791 = vld [vmem:[%s504 + $0x2490] sm:$0xff]
        %v1792 = vld [vmem:[%s504 + $0x2498] sm:$0xff]
        %v1793 = vld [vmem:[%s504 + $0x24a0] sm:$0xff]
        %v1794 = vld [vmem:[%s504 + $0x24a8] sm:$0xff]
        %v1795 = vld [vmem:[%s504 + $0x24b0] sm:$0xff]
        %v1796 = vld [vmem:[%s504 + $0x24b8] sm:$0xff]
        %v1797 = vld [vmem:[%s504 + $0x24c0] sm:$0xff]
        %v1798 = vld [vmem:[%s504 + $0x24c8] sm:$0xff]
        %v1799 = vld [vmem:[%s504 + $0x24d0] sm:$0xff]
        %v1800 = vld [vmem:[%s504 + $0x24d8] sm:$0xff]
        %v1801 = vld [vmem:[%s504 + $0x24e0] sm:$0xff]
        %v1802 = vld [vmem:[%s504 + $0x24e8] sm:$0xff]
        %v1803 = vld [vmem:[%s504 + $0x24f0] sm:$0xff]
        %v1804 = vld [vmem:[%s504 + $0x24f8] sm:$0xff]
        %v1805 = vld [vmem:[%s504 + $0x2500] sm:$0xff]
        %v1806 = vld [vmem:[%s504 + $0x2508] sm:$0xff]
        %v1807 = vld [vmem:[%s504 + $0x2510] sm:$0xff]
        %v1808 = vld [vmem:[%s504 + $0x2518] sm:$0xff]
        %v1809 = vld [vmem:[%s504 + $0x2520] sm:$0xff]
        %v1810 = vld [vmem:[%s504 + $0x2528] sm:$0xff]
        %v1811 = vld [vmem:[%s504 + $0x2530] sm:$0xff]
        %v1812 = vld [vmem:[%s504 + $0x2538] sm:$0xff]
        %v1813 = vld [vmem:[%s504 + $0x2540] sm:$0xff]
        %v1814 = vld [vmem:[%s504 + $0x2548] sm:$0xff]
        %v1815 = vld [vmem:[%s504 + $0x2550] sm:$0xff]
        %v1816 = vld [vmem:[%s504 + $0x2558] sm:$0xff]
        %v1817 = vld [vmem:[%s504 + $0x2560] sm:$0xff]
        %v1818 = vld [vmem:[%s504 + $0x2568] sm:$0xff]
        %v1819 = vld [vmem:[%s504 + $0x2570] sm:$0xff]
        %v1820 = vld [vmem:[%s504 + $0x2578] sm:$0xff]
        %v1821 = vld [vmem:[%s504 + $0x2580] sm:$0xff]
        %v1822 = vld [vmem:[%s504 + $0x2588] sm:$0xff]
        %v1823 = vld [vmem:[%s504 + $0x2590] sm:$0xff]
        %v1824 = vld [vmem:[%s504 + $0x2598] sm:$0xff]
        %v1825 = vld [vmem:[%s504 + $0x25a0] sm:$0xff]
        %v1826 = vld [vmem:[%s504 + $0x25a8] sm:$0xff]
        %v1827 = vld [vmem:[%s504 + $0x25b0] sm:$0xff]
        %v1828 = vld [vmem:[%s504 + $0x25b8] sm:$0xff]
        %v1829 = vld [vmem:[%s504 + $0x25c0] sm:$0xff]
        %v1830 = vld [vmem:[%s504 + $0x25c8] sm:$0xff]
        %v1831 = vld [vmem:[%s504 + $0x25d0] sm:$0xff]
        %v1832 = vld [vmem:[%s504 + $0x25d8] sm:$0xff]
        %v1833 = vld [vmem:[%s504 + $0x25e0] sm:$0xff]
        %v1834 = vld [vmem:[%s504 + $0x25e8] sm:$0xff]
        %v1835 = vld [vmem:[%s504 + $0x25f0] sm:$0xff]
        %v1836 = vld [vmem:[%s504 + $0x25f8] sm:$0xff]
        %v1837 = vld [vmem:[%s504 + $0x2600] sm:$0xff]
        %v1838 = vld [vmem:[%s504 + $0x2608] sm:$0xff]
        %v1839 = vld [vmem:[%s504 + $0x2610] sm:$0xff]
        %v1840 = vld [vmem:[%s504 + $0x2618] sm:$0xff]
        %v1841 = vld [vmem:[%s504 + $0x2620] sm:$0xff]
        %v1842 = vld [vmem:[%s504 + $0x2628] sm:$0xff]
        %v1843 = vld [vmem:[%s504 + $0x2630] sm:$0xff]
        %v1844 = vld [vmem:[%s504 + $0x2638] sm:$0xff]
        %v1845 = vld [vmem:[%s504 + $0x2640] sm:$0xff]
        %v1846 = vld [vmem:[%s504 + $0x2648] sm:$0xff]
        %v1847 = vld [vmem:[%s504 + $0x2650] sm:$0xff]
        %v1848 = vld [vmem:[%s504 + $0x2658] sm:$0xff]
        %v1849 = vld [vmem:[%s504 + $0x2660] sm:$0xff]
        %v1850 = vld [vmem:[%s504 + $0x2668] sm:$0xff]
        %v1851 = vld [vmem:[%s504 + $0x2670] sm:$0xff]
        %v1852 = vld [vmem:[%s504 + $0x2678] sm:$0xff]
        %v1853 = vld [vmem:[%s504 + $0x2680] sm:$0xff]
        %v1854 = vld [vmem:[%s504 + $0x2688] sm:$0xff]
        %v1855 = vld [vmem:[%s504 + $0x2690] sm:$0xff]
        %v1856 = vld [vmem:[%s504 + $0x2698] sm:$0xff]
        %v1857 = vld [vmem:[%s504 + $0x26a0] sm:$0xff]
        %v1858 = vld [vmem:[%s504 + $0x26a8] sm:$0xff]
        %v1859 = vld [vmem:[%s504 + $0x26b0] sm:$0xff]
        %v1860 = vld [vmem:[%s504 + $0x26b8] sm:$0xff]
        %v1861 = vld [vmem:[%s504 + $0x26c0] sm:$0xff]
        %v1862 = vld [vmem:[%s504 + $0x26c8] sm:$0xff]
        %v1863 = vld [vmem:[%s504 + $0x26d0] sm:$0xff]
        %v1864 = vld [vmem:[%s504 + $0x26d8] sm:$0xff]
        %v1865 = vld [vmem:[%s504 + $0x26e0] sm:$0xff]
        %v1866 = vld [vmem:[%s504 + $0x26e8] sm:$0xff]
        %v1867 = vld [vmem:[%s504 + $0x26f0] sm:$0xff]
        %v1868 = vld [vmem:[%s504 + $0x26f8] sm:$0xff]
        %v1869 = vld [vmem:[%s504 + $0x2700] sm:$0xff]
        %v1870 = vld [vmem:[%s504 + $0x2708] sm:$0xff]
        %v1871 = vld [vmem:[%s504 + $0x2710] sm:$0xff]
        %v1872 = vld [vmem:[%s504 + $0x2718] sm:$0xff]
        %v1873 = vld [vmem:[%s504 + $0x2720] sm:$0xff]
        %v1874 = vld [vmem:[%s504 + $0x2728] sm:$0xff]
        %v1875 = vld [vmem:[%s504 + $0x2730] sm:$0xff]
        %v1876 = vld [vmem:[%s504 + $0x2738] sm:$0xff]
        %v1877 = vld [vmem:[%s504 + $0x2740] sm:$0xff]
        %v1878 = vld [vmem:[%s504 + $0x2748] sm:$0xff]
        %v1879 = vld [vmem:[%s504 + $0x2750] sm:$0xff]
        %v1880 = vld [vmem:[%s504 + $0x2758] sm:$0xff]
        %v1881 = vld [vmem:[%s504 + $0x2760] sm:$0xff]
        %v1882 = vld [vmem:[%s504 + $0x2768] sm:$0xff]
        %v1883 = vld [vmem:[%s504 + $0x2770] sm:$0xff]
        %v1884 = vld [vmem:[%s504 + $0x2778] sm:$0xff]
        %v1885 = vld [vmem:[%s504 + $0x2780] sm:$0xff]
        %v1886 = vld [vmem:[%s504 + $0x2788] sm:$0xff]
        %v1887 = vld [vmem:[%s504 + $0x2790] sm:$0xff]
        %v1888 = vld [vmem:[%s504 + $0x2798] sm:$0xff]
        %v1889 = vld [vmem:[%s504 + $0x27a0] sm:$0xff]
        %v1890 = vld [vmem:[%s504 + $0x27a8] sm:$0xff]
        %v1891 = vld [vmem:[%s504 + $0x27b0] sm:$0xff]
        %v1892 = vld [vmem:[%s504 + $0x27b8] sm:$0xff]
        %v1893 = vld [vmem:[%s504 + $0x27c0] sm:$0xff]
        %v1894 = vld [vmem:[%s504 + $0x27c8] sm:$0xff]
        %v1895 = vld [vmem:[%s504 + $0x27d0] sm:$0xff]
        %v1896 = vld [vmem:[%s504 + $0x27d8] sm:$0xff]
        %v1897 = vld [vmem:[%s504 + $0x27e0] sm:$0xff]
        %v1898 = vld [vmem:[%s504 + $0x27e8] sm:$0xff]
        %v1899 = vld [vmem:[%s504 + $0x27f0] sm:$0xff]
        %v1900 = vld [vmem:[%s504 + $0x27f8] sm:$0xff]
        %v1911 = vunpack.c.l.b16 %v611
        %v1912 = vunpack.c.h.b16 %v611
        %v1913 = vunpack.c.l.b16 %v612
        %v1914 = vunpack.c.h.b16 %v612
        %v1915 = vunpack.c.l.b16 %v613
        %v1916 = vunpack.c.h.b16 %v613
        %v1917 = vunpack.c.l.b16 %v614
        %v1918 = vunpack.c.h.b16 %v614
        %v1919 = vunpack.c.l.b16 %v615
        %v1920 = vunpack.c.h.b16 %v615
        %v1921 = vunpack.c.l.b16 %v616
        %v1922 = vunpack.c.h.b16 %v616
        %v1923 = vunpack.c.l.b16 %v617
        %v1924 = vunpack.c.h.b16 %v617
        %v1925 = vunpack.c.l.b16 %v618
        %v1926 = vunpack.c.h.b16 %v618
        %v1927 = vunpack.c.l.b16 %v619
        %v1928 = vunpack.c.h.b16 %v619
        %v1929 = vunpack.c.l.b16 %v620
        %v1930 = vunpack.c.h.b16 %v620
        %v1931 = vpack.c.b16 %v1911, %v1911
        %v1932 = vpack.c.b16 %v1912, %v1912
        %v1933 = vpack.c.b16 %v1913, %v1913
        %v1934 = vpack.c.b16 %v1914, %v1914
        %v1935 = vpack.c.b16 %v1915, %v1915
        %v1936 = vpack.c.b16 %v1916, %v1916
        %v1937 = vpack.c.b16 %v1917, %v1917
        %v1938 = vpack.c.b16 %v1918, %v1918
        %v1939 = vpack.c.b16 %v1919, %v1919
        %v1940 = vpack.c.b16 %v1920, %v1920
        %v1941 = vpack.c.b16 %v1921, %v1921
        %v1942 = vpack.c.b16 %v1922, %v1922
        %v1943 = vpack.c.b16 %v1923, %v1923
        %v1944 = vpack.c.b16 %v1924, %v1924
        %v1945 = vpack.c.b16 %v1925, %v1925
        %v1946 = vpack.c.b16 %v1926, %v1926
        %v1947 = vpack.c.b16 %v1927, %v1927
        %v1948 = vpack.c.b16 %v1928, %v1928
        %v1949 = vpack.c.b16 %v1929, %v1929
        %v1950 = vpack.c.b16 %v1930, %v1930
        %v3251 = vunpack.c.l.b16 %v621
        %v3252 = vunpack.c.h.b16 %v621
        %v3253 = vunpack.c.l.b16 %v622
        %v3254 = vunpack.c.h.b16 %v622
        %v3255 = vunpack.c.l.b16 %v623
        %v3256 = vunpack.c.h.b16 %v623
        %v3257 = vunpack.c.l.b16 %v624
        %v3258 = vunpack.c.h.b16 %v624
        %v3259 = vunpack.c.l.b16 %v625
        %v3260 = vunpack.c.h.b16 %v625
        %v3261 = vunpack.c.l.b16 %v626
        %v3262 = vunpack.c.h.b16 %v626
        %v3263 = vunpack.c.l.b16 %v627
        %v3264 = vunpack.c.h.b16 %v627
        %v3265 = vunpack.c.l.b16 %v628
        %v3266 = vunpack.c.h.b16 %v628
        %v3267 = vunpack.c.l.b16 %v629
        %v3268 = vunpack.c.h.b16 %v629
        %v3269 = vunpack.c.l.b16 %v630
        %v3270 = vunpack.c.h.b16 %v630
        %v3271 = vunpack.c.l.b16 %v631
        %v3272 = vunpack.c.h.b16 %v631
        %v3273 = vunpack.c.l.b16 %v632
        %v3274 = vunpack.c.h.b16 %v632
        %v3275 = vunpack.c.l.b16 %v633
        %v3276 = vunpack.c.h.b16 %v633
        %v3277 = vunpack.c.l.b16 %v634
        %v3278 = vunpack.c.h.b16 %v634
        %v3279 = vunpack.c.l.b16 %v635
        %v3280 = vunpack.c.h.b16 %v635
        %v3281 = vunpack.c.l.b16 %v636
        %v3282 = vunpack.c.h.b16 %v636
        %v3283 = vunpack.c.l.b16 %v637
        %v3284 = vunpack.c.h.b16 %v637
        %v3285 = vunpack.c.l.b16 %v638
        %v3286 = vunpack.c.h.b16 %v638
        %v3287 = vunpack.c.l.b16 %v639
        %v3288 = vunpack.c.h.b16 %v639
        %v3289 = vunpack.c.l.b16 %v640
        %v3290 = vunpack.c.h.b16 %v640
        %v3291 = vunpack.c.l.b16 %v641
        %v3292 = vunpack.c.h.b16 %v641
        %v3293 = vunpack.c.l.b16 %v642
        %v3294 = vunpack.c.h.b16 %v642
        %v3295 = vunpack.c.l.b16 %v643
        %v3296 = vunpack.c.h.b16 %v643
        %v3297 = vunpack.c.l.b16 %v644
        %v3298 = vunpack.c.h.b16 %v644
        %v3299 = vunpack.c.l.b16 %v645
        %v3300 = vunpack.c.h.b16 %v645
        %v3301 = vunpack.c.l.b16 %v646
        %v3302 = vunpack.c.h.b16 %v646
        %v3303 = vunpack.c.l.b16 %v647
        %v3304 = vunpack.c.h.b16 %v647
        %v3305 = vunpack.c.l.b16 %v648
        %v3306 = vunpack.c.h.b16 %v648
        %v3307 = vunpack.c.l.b16 %v649
        %v3308 = vunpack.c.h.b16 %v649
        %v3309 = vunpack.c.l.b16 %v650
        %v3310 = vunpack.c.h.b16 %v650
        %v3311 = vunpack.c.l.b16 %v651
        %v3312 = vunpack.c.h.b16 %v651
        %v3313 = vunpack.c.l.b16 %v652
        %v3314 = vunpack.c.h.b16 %v652
        %v3315 = vunpack.c.l.b16 %v653
        %v3316 = vunpack.c.h.b16 %v653
        %v3317 = vunpack.c.l.b16 %v654
        %v3318 = vunpack.c.h.b16 %v654
        %v3319 = vunpack.c.l.b16 %v655
        %v3320 = vunpack.c.h.b16 %v655
        %v3321 = vunpack.c.l.b16 %v656
        %v3322 = vunpack.c.h.b16 %v656
        %v3323 = vunpack.c.l.b16 %v657
        %v3324 = vunpack.c.h.b16 %v657
        %v3325 = vunpack.c.l.b16 %v658
        %v3326 = vunpack.c.h.b16 %v658
        %v3327 = vunpack.c.l.b16 %v659
        %v3328 = vunpack.c.h.b16 %v659
        %v3329 = vunpack.c.l.b16 %v660
        %v3330 = vunpack.c.h.b16 %v660
        %v3331 = vunpack.c.l.b16 %v661
        %v3332 = vunpack.c.h.b16 %v661
        %v3333 = vunpack.c.l.b16 %v662
        %v3334 = vunpack.c.h.b16 %v662
        %v3335 = vunpack.c.l.b16 %v663
        %v3336 = vunpack.c.h.b16 %v663
        %v3337 = vunpack.c.l.b16 %v664
        %v3338 = vunpack.c.h.b16 %v664
        %v3339 = vunpack.c.l.b16 %v665
        %v3340 = vunpack.c.h.b16 %v665
        %v3341 = vunpack.c.l.b16 %v666
        %v3342 = vunpack.c.h.b16 %v666
        %v3343 = vunpack.c.l.b16 %v667
        %v3344 = vunpack.c.h.b16 %v667
        %v3345 = vunpack.c.l.b16 %v668
        %v3346 = vunpack.c.h.b16 %v668
        %v3347 = vunpack.c.l.b16 %v669
        %v3348 = vunpack.c.h.b16 %v669
        %v3349 = vunpack.c.l.b16 %v670
        %v3350 = vunpack.c.h.b16 %v670
        %v3351 = vunpack.c.l.b16 %v671
        %v3352 = vunpack.c.h.b16 %v671
        %v3353 = vunpack.c.l.b16 %v672
        %v3354 = vunpack.c.h.b16 %v672
        %v3355 = vunpack.c.l.b16 %v673
        %v3356 = vunpack.c.h.b16 %v673
        %v3357 = vunpack.c.l.b16 %v674
        %v3358 = vunpack.c.h.b16 %v674
        %v3359 = vunpack.c.l.b16 %v675
        %v3360 = vunpack.c.h.b16 %v675
        %v3361 = vunpack.c.l.b16 %v676
        %v3362 = vunpack.c.h.b16 %v676
        %v3363 = vunpack.c.l.b16 %v677
        %v3364 = vunpack.c.h.b16 %v677
        %v3365 = vunpack.c.l.b16 %v678
        %v3366 = vunpack.c.h.b16 %v678
        %v3367 = vunpack.c.l.b16 %v679
        %v3368 = vunpack.c.h.b16 %v679
        %v3369 = vunpack.c.l.b16 %v680
        %v3370 = vunpack.c.h.b16 %v680
        %v3371 = vunpack.c.l.b16 %v681
        %v3372 = vunpack.c.h.b16 %v681
        %v3373 = vunpack.c.l.b16 %v682
        %v3374 = vunpack.c.h.b16 %v682
        %v3375 = vunpack.c.l.b16 %v683
        %v3376 = vunpack.c.h.b16 %v683
        %v3377 = vunpack.c.l.b16 %v684
        %v3378 = vunpack.c.h.b16 %v684
        %v3379 = vunpack.c.l.b16 %v685
        %v3380 = vunpack.c.h.b16 %v685
        %v3381 = vunpack.c.l.b16 %v686
        %v3382 = vunpack.c.h.b16 %v686
        %v3383 = vunpack.c.l.b16 %v687
        %v3384 = vunpack.c.h.b16 %v687
        %v3385 = vunpack.c.l.b16 %v688
        %v3386 = vunpack.c.h.b16 %v688
        %v3387 = vunpack.c.l.b16 %v689
        %v3388 = vunpack.c.h.b16 %v689
        %v3389 = vunpack.c.l.b16 %v690
        %v3390 = vunpack.c.h.b16 %v690
        %v3391 = vunpack.c.l.b16 %v691
        %v3392 = vunpack.c.h.b16 %v691
        %v3393 = vunpack.c.l.b16 %v692
        %v3394 = vunpack.c.h.b16 %v692
        %v3395 = vunpack.c.l.b16 %v693
        %v3396 = vunpack.c.h.b16 %v693
        %v3397 = vunpack.c.l.b16 %v694
        %v3398 = vunpack.c.h.b16 %v694
        %v3399 = vunpack.c.l.b16 %v695
        %v3400 = vunpack.c.h.b16 %v695
        %v3401 = vunpack.c.l.b16 %v696
        %v3402 = vunpack.c.h.b16 %v696
        %v3403 = vunpack.c.l.b16 %v697
        %v3404 = vunpack.c.h.b16 %v697
        %v3405 = vunpack.c.l.b16 %v698
        %v3406 = vunpack.c.h.b16 %v698
        %v3407 = vunpack.c.l.b16 %v699
        %v3408 = vunpack.c.h.b16 %v699
        %v3409 = vunpack.c.l.b16 %v700
        %v3410 = vunpack.c.h.b16 %v700
        %v3411 = vunpack.c.l.b16 %v701
        %v3412 = vunpack.c.h.b16 %v701
        %v3413 = vunpack.c.l.b16 %v702
        %v3414 = vunpack.c.h.b16 %v702
        %v3415 = vunpack.c.l.b16 %v703
        %v3416 = vunpack.c.h.b16 %v703
        %v3417 = vunpack.c.l.b16 %v704
        %v3418 = vunpack.c.h.b16 %v704
        %v3419 = vunpack.c.l.b16 %v705
        %v3420 = vunpack.c.h.b16 %v705
        %v3421 = vunpack.c.l.b16 %v706
        %v3422 = vunpack.c.h.b16 %v706
        %v3423 = vunpack.c.l.b16 %v707
        %v3424 = vunpack.c.h.b16 %v707
        %v3425 = vunpack.c.l.b16 %v708
        %v3426 = vunpack.c.h.b16 %v708
        %v3427 = vunpack.c.l.b16 %v709
        %v3428 = vunpack.c.h.b16 %v709
        %v3429 = vunpack.c.l.b16 %v710
        %v3430 = vunpack.c.h.b16 %v710
        %v3431 = vunpack.c.l.b16 %v711
        %v3432 = vunpack.c.h.b16 %v711
        %v3433 = vunpack.c.l.b16 %v712
        %v3434 = vunpack.c.h.b16 %v712
        %v3435 = vunpack.c.l.b16 %v713
        %v3436 = vunpack.c.h.b16 %v713
        %v3437 = vunpack.c.l.b16 %v714
        %v3438 = vunpack.c.h.b16 %v714
        %v3439 = vunpack.c.l.b16 %v715
        %v3440 = vunpack.c.h.b16 %v715
        %v3441 = vunpack.c.l.b16 %v716
        %v3442 = vunpack.c.h.b16 %v716
        %v3443 = vunpack.c.l.b16 %v717
        %v3444 = vunpack.c.h.b16 %v717
        %v3445 = vunpack.c.l.b16 %v718
        %v3446 = vunpack.c.h.b16 %v718
        %v3447 = vunpack.c.l.b16 %v719
        %v3448 = vunpack.c.h.b16 %v719
        %v3449 = vunpack.c.l.b16 %v720
        %v3450 = vunpack.c.h.b16 %v720
        %v3451 = vunpack.c.l.b16 %v721
        %v3452 = vunpack.c.h.b16 %v721
        %v3453 = vunpack.c.l.b16 %v722
        %v3454 = vunpack.c.h.b16 %v722
        %v3455 = vunpack.c.l.b16 %v723
        %v3456 = vunpack.c.h.b16 %v723
        %v3457 = vunpack.c.l.b16 %v724
        %v3458 = vunpack.c.h.b16 %v724
        %v3459 = vunpack.c.l.b16 %v725
        %v3460 = vunpack.c.h.b16 %v725
        %v3461 = vunpack.c.l.b16 %v726
        %v3462 = vunpack.c.h.b16 %v726
        %v3463 = vunpack.c.l.b16 %v727
        %v3464 = vunpack.c.h.b16 %v727
        %v3465 = vunpack.c.l.b16 %v728
        %v3466 = vunpack.c.h.b16 %v728
        %v3467 = vunpack.c.l.b16 %v729
        %v3468 = vunpack.c.h.b16 %v729
        %v3469 = vunpack.c.l.b16 %v730
        %v3470 = vunpack.c.h.b16 %v730
        %v3471 = vunpack.c.l.b16 %v731
        %v3472 = vunpack.c.h.b16 %v731
        %v3473 = vunpack.c.l.b16 %v732
        %v3474 = vunpack.c.h.b16 %v732
        %v3475 = vunpack.c.l.b16 %v733
        %v3476 = vunpack.c.h.b16 %v733
        %v3477 = vunpack.c.l.b16 %v734
        %v3478 = vunpack.c.h.b16 %v734
        %v3479 = vunpack.c.l.b16 %v735
        %v3480 = vunpack.c.h.b16 %v735
        %v3481 = vunpack.c.l.b16 %v736
        %v3482 = vunpack.c.h.b16 %v736
        %v3483 = vunpack.c.l.b16 %v737
        %v3484 = vunpack.c.h.b16 %v737
        %v3485 = vunpack.c.l.b16 %v738
        %v3486 = vunpack.c.h.b16 %v738
        %v3487 = vunpack.c.l.b16 %v739
        %v3488 = vunpack.c.h.b16 %v739
        %v3489 = vunpack.c.l.b16 %v740
        %v3490 = vunpack.c.h.b16 %v740
        %v3491 = vunpack.c.l.b16 %v741
        %v3492 = vunpack.c.h.b16 %v741
        %v3493 = vunpack.c.l.b16 %v742
        %v3494 = vunpack.c.h.b16 %v742
        %v3495 = vunpack.c.l.b16 %v743
        %v3496 = vunpack.c.h.b16 %v743
        %v3497 = vunpack.c.l.b16 %v744
        %v3498 = vunpack.c.h.b16 %v744
        %v3499 = vunpack.c.l.b16 %v745
        %v3500 = vunpack.c.h.b16 %v745
        %v3501 = vunpack.c.l.b16 %v746
        %v3502 = vunpack.c.h.b16 %v746
        %v3503 = vunpack.c.l.b16 %v747
        %v3504 = vunpack.c.h.b16 %v747
        %v3505 = vunpack.c.l.b16 %v748
        %v3506 = vunpack.c.h.b16 %v748
        %v3507 = vunpack.c.l.b16 %v749
        %v3508 = vunpack.c.h.b16 %v749
        %v3509 = vunpack.c.l.b16 %v750
        %v3510 = vunpack.c.h.b16 %v750
        %v3511 = vunpack.c.l.b16 %v751
        %v3512 = vunpack.c.h.b16 %v751
        %v3513 = vunpack.c.l.b16 %v752
        %v3514 = vunpack.c.h.b16 %v752
        %v3515 = vunpack.c.l.b16 %v753
        %v3516 = vunpack.c.h.b16 %v753
        %v3517 = vunpack.c.l.b16 %v754
        %v3518 = vunpack.c.h.b16 %v754
        %v3519 = vunpack.c.l.b16 %v755
        %v3520 = vunpack.c.h.b16 %v755
        %v3521 = vunpack.c.l.b16 %v756
        %v3522 = vunpack.c.h.b16 %v756
        %v3523 = vunpack.c.l.b16 %v757
        %v3524 = vunpack.c.h.b16 %v757
        %v3525 = vunpack.c.l.b16 %v758
        %v3526 = vunpack.c.h.b16 %v758
        %v3527 = vunpack.c.l.b16 %v759
        %v3528 = vunpack.c.h.b16 %v759
        %v3529 = vunpack.c.l.b16 %v760
        %v3530 = vunpack.c.h.b16 %v760
        %v3531 = vunpack.c.l.b16 %v761
        %v3532 = vunpack.c.h.b16 %v761
        %v3533 = vunpack.c.l.b16 %v762
        %v3534 = vunpack.c.h.b16 %v762
        %v3535 = vunpack.c.l.b16 %v763
        %v3536 = vunpack.c.h.b16 %v763
        %v3537 = vunpack.c.l.b16 %v764
        %v3538 = vunpack.c.h.b16 %v764
        %v3539 = vunpack.c.l.b16 %v765
        %v3540 = vunpack.c.h.b16 %v765
        %v3541 = vunpack.c.l.b16 %v766
        %v3542 = vunpack.c.h.b16 %v766
        %v3543 = vunpack.c.l.b16 %v767
        %v3544 = vunpack.c.h.b16 %v767
        %v3545 = vunpack.c.l.b16 %v768
        %v3546 = vunpack.c.h.b16 %v768
        %v3547 = vunpack.c.l.b16 %v769
        %v3548 = vunpack.c.h.b16 %v769
        %v3549 = vunpack.c.l.b16 %v770
        %v3550 = vunpack.c.h.b16 %v770
        %v3551 = vunpack.c.l.b16 %v771
        %v3552 = vunpack.c.h.b16 %v771
        %v3553 = vunpack.c.l.b16 %v772
        %v3554 = vunpack.c.h.b16 %v772
        %v3555 = vunpack.c.l.b16 %v773
        %v3556 = vunpack.c.h.b16 %v773
        %v3557 = vunpack.c.l.b16 %v774
        %v3558 = vunpack.c.h.b16 %v774
        %v3559 = vunpack.c.l.b16 %v775
        %v3560 = vunpack.c.h.b16 %v775
        %v3561 = vunpack.c.l.b16 %v776
        %v3562 = vunpack.c.h.b16 %v776
        %v3563 = vunpack.c.l.b16 %v777
        %v3564 = vunpack.c.h.b16 %v777
        %v3565 = vunpack.c.l.b16 %v778
        %v3566 = vunpack.c.h.b16 %v778
        %v3567 = vunpack.c.l.b16 %v779
        %v3568 = vunpack.c.h.b16 %v779
        %v3569 = vunpack.c.l.b16 %v780
        %v3570 = vunpack.c.h.b16 %v780
        %v3571 = vunpack.c.l.b16 %v781
        %v3572 = vunpack.c.h.b16 %v781
        %v3573 = vunpack.c.l.b16 %v782
        %v3574 = vunpack.c.h.b16 %v782
        %v3575 = vunpack.c.l.b16 %v783
        %v3576 = vunpack.c.h.b16 %v783
        %v3577 = vunpack.c.l.b16 %v784
        %v3578 = vunpack.c.h.b16 %v784
        %v3579 = vunpack.c.l.b16 %v785
        %v3580 = vunpack.c.h.b16 %v785
        %v3581 = vunpack.c.l.b16 %v786
        %v3582 = vunpack.c.h.b16 %v786
        %v3583 = vunpack.c.l.b16 %v787
        %v3584 = vunpack.c.h.b16 %v787
        %v3585 = vunpack.c.l.b16 %v788
        %v3586 = vunpack.c.h.b16 %v788
        %v3587 = vunpack.c.l.b16 %v789
        %v3588 = vunpack.c.h.b16 %v789
        %v3589 = vunpack.c.l.b16 %v790
        %v3590 = vunpack.c.h.b16 %v790
        %v3591 = vunpack.c.l.b16 %v791
        %v3592 = vunpack.c.h.b16 %v791
        %v3593 = vunpack.c.l.b16 %v792
        %v3594 = vunpack.c.h.b16 %v792
        %v3595 = vunpack.c.l.b16 %v793
        %v3596 = vunpack.c.h.b16 %v793
        %v3597 = vunpack.c.l.b16 %v794
        %v3598 = vunpack.c.h.b16 %v794
        %v3599 = vunpack.c.l.b16 %v795
        %v3600 = vunpack.c.h.b16 %v795
        %v3601 = vunpack.c.l.b16 %v796
        %v3602 = vunpack.c.h.b16 %v796
        %v3603 = vunpack.c.l.b16 %v797
        %v3604 = vunpack.c.h.b16 %v797
        %v3605 = vunpack.c.l.b16 %v798
        %v3606 = vunpack.c.h.b16 %v798
        %v3607 = vunpack.c.l.b16 %v799
        %v3608 = vunpack.c.h.b16 %v799
        %v3609 = vunpack.c.l.b16 %v800
        %v3610 = vunpack.c.h.b16 %v800
        %v3611 = vunpack.c.l.b16 %v801
        %v3612 = vunpack.c.h.b16 %v801
        %v3613 = vunpack.c.l.b16 %v802
        %v3614 = vunpack.c.h.b16 %v802
        %v3615 = vunpack.c.l.b16 %v803
        %v3616 = vunpack.c.h.b16 %v803
        %v3617 = vunpack.c.l.b16 %v804
        %v3618 = vunpack.c.h.b16 %v804
        %v3619 = vunpack.c.l.b16 %v805
        %v3620 = vunpack.c.h.b16 %v805
        %v3621 = vunpack.c.l.b16 %v806
        %v3622 = vunpack.c.h.b16 %v806
        %v3623 = vunpack.c.l.b16 %v807
        %v3624 = vunpack.c.h.b16 %v807
        %v3625 = vunpack.c.l.b16 %v808
        %v3626 = vunpack.c.h.b16 %v808
        %v3627 = vunpack.c.l.b16 %v809
        %v3628 = vunpack.c.h.b16 %v809
        %v3629 = vunpack.c.l.b16 %v810
        %v3630 = vunpack.c.h.b16 %v810
        %v3631 = vunpack.c.l.b16 %v811
        %v3632 = vunpack.c.h.b16 %v811
        %v3633 = vunpack.c.l.b16 %v812
        %v3634 = vunpack.c.h.b16 %v812
        %v3635 = vunpack.c.l.b16 %v813
        %v3636 = vunpack.c.h.b16 %v813
        %v3637 = vunpack.c.l.b16 %v814
        %v3638 = vunpack.c.h.b16 %v814
        %v3639 = vunpack.c.l.b16 %v815
        %v3640 = vunpack.c.h.b16 %v815
        %v3641 = vunpack.c.l.b16 %v816
        %v3642 = vunpack.c.h.b16 %v816
        %v3643 = vunpack.c.l.b16 %v817
        %v3644 = vunpack.c.h.b16 %v817
        %v3645 = vunpack.c.l.b16 %v818
        %v3646 = vunpack.c.h.b16 %v818
        %v3647 = vunpack.c.l.b16 %v819
        %v3648 = vunpack.c.h.b16 %v819
        %v3649 = vunpack.c.l.b16 %v820
        %v3650 = vunpack.c.h.b16 %v820
        %v3651 = vunpack.c.l.b16 %v821
        %v3652 = vunpack.c.h.b16 %v821
        %v3653 = vunpack.c.l.b16 %v822
        %v3654 = vunpack.c.h.b16 %v822
        %v3655 = vunpack.c.l.b16 %v823
        %v3656 = vunpack.c.h.b16 %v823
        %v3657 = vunpack.c.l.b16 %v824
        %v3658 = vunpack.c.h.b16 %v824
        %v3659 = vunpack.c.l.b16 %v825
        %v3660 = vunpack.c.h.b16 %v825
        %v3661 = vunpack.c.l.b16 %v826
        %v3662 = vunpack.c.h.b16 %v826
        %v3663 = vunpack.c.l.b16 %v827
        %v3664 = vunpack.c.h.b16 %v827
        %v3665 = vunpack.c.l.b16 %v828
        %v3666 = vunpack.c.h.b16 %v828
        %v3667 = vunpack.c.l.b16 %v829
        %v3668 = vunpack.c.h.b16 %v829
        %v3669 = vunpack.c.l.b16 %v830
        %v3670 = vunpack.c.h.b16 %v830
        %v3671 = vunpack.c.l.b16 %v831
        %v3672 = vunpack.c.h.b16 %v831
        %v3673 = vunpack.c.l.b16 %v832
        %v3674 = vunpack.c.h.b16 %v832
        %v3675 = vunpack.c.l.b16 %v833
        %v3676 = vunpack.c.h.b16 %v833
        %v3677 = vunpack.c.l.b16 %v834
        %v3678 = vunpack.c.h.b16 %v834
        %v3679 = vunpack.c.l.b16 %v835
        %v3680 = vunpack.c.h.b16 %v835
        %v3681 = vunpack.c.l.b16 %v836
        %v3682 = vunpack.c.h.b16 %v836
        %v3683 = vunpack.c.l.b16 %v837
        %v3684 = vunpack.c.h.b16 %v837
        %v3685 = vunpack.c.l.b16 %v838
        %v3686 = vunpack.c.h.b16 %v838
        %v3687 = vunpack.c.l.b16 %v839
        %v3688 = vunpack.c.h.b16 %v839
        %v3689 = vunpack.c.l.b16 %v840
        %v3690 = vunpack.c.h.b16 %v840
        %v3691 = vunpack.c.l.b16 %v841
        %v3692 = vunpack.c.h.b16 %v841
        %v3693 = vunpack.c.l.b16 %v842
        %v3694 = vunpack.c.h.b16 %v842
        %v3695 = vunpack.c.l.b16 %v843
        %v3696 = vunpack.c.h.b16 %v843
        %v3697 = vunpack.c.l.b16 %v844
        %v3698 = vunpack.c.h.b16 %v844
        %v3699 = vunpack.c.l.b16 %v845
        %v3700 = vunpack.c.h.b16 %v845
        %v3701 = vunpack.c.l.b16 %v846
        %v3702 = vunpack.c.h.b16 %v846
        %v3703 = vunpack.c.l.b16 %v847
        %v3704 = vunpack.c.h.b16 %v847
        %v3705 = vunpack.c.l.b16 %v848
        %v3706 = vunpack.c.h.b16 %v848
        %v3707 = vunpack.c.l.b16 %v849
        %v3708 = vunpack.c.h.b16 %v849
        %v3709 = vunpack.c.l.b16 %v850
        %v3710 = vunpack.c.h.b16 %v850
        %v3711 = vunpack.c.l.b16 %v851
        %v3712 = vunpack.c.h.b16 %v851
        %v3713 = vunpack.c.l.b16 %v852
        %v3714 = vunpack.c.h.b16 %v852
        %v3715 = vunpack.c.l.b16 %v853
        %v3716 = vunpack.c.h.b16 %v853
        %v3717 = vunpack.c.l.b16 %v854
        %v3718 = vunpack.c.h.b16 %v854
        %v3719 = vunpack.c.l.b16 %v855
        %v3720 = vunpack.c.h.b16 %v855
        %v3721 = vunpack.c.l.b16 %v856
        %v3722 = vunpack.c.h.b16 %v856
        %v3723 = vunpack.c.l.b16 %v857
        %v3724 = vunpack.c.h.b16 %v857
        %v3725 = vunpack.c.l.b16 %v858
        %v3726 = vunpack.c.h.b16 %v858
        %v3727 = vunpack.c.l.b16 %v859
        %v3728 = vunpack.c.h.b16 %v859
        %v3729 = vunpack.c.l.b16 %v860
        %v3730 = vunpack.c.h.b16 %v860
        %v3731 = vunpack.c.l.b16 %v861
        %v3732 = vunpack.c.h.b16 %v861
        %v3733 = vunpack.c.l.b16 %v862
        %v3734 = vunpack.c.h.b16 %v862
        %v3735 = vunpack.c.l.b16 %v863
        %v3736 = vunpack.c.h.b16 %v863
        %v3737 = vunpack.c.l.b16 %v864
        %v3738 = vunpack.c.h.b16 %v864
        %v3739 = vunpack.c.l.b16 %v865
        %v3740 = vunpack.c.h.b16 %v865
        %v3741 = vunpack.c.l.b16 %v866
        %v3742 = vunpack.c.h.b16 %v866
        %v3743 = vunpack.c.l.b16 %v867
        %v3744 = vunpack.c.h.b16 %v867
        %v3745 = vunpack.c.l.b16 %v868
        %v3746 = vunpack.c.h.b16 %v868
        %v3747 = vunpack.c.l.b16 %v869
        %v3748 = vunpack.c.h.b16 %v869
        %v3749 = vunpack.c.l.b16 %v870
        %v3750 = vunpack.c.h.b16 %v870
        %v3751 = vunpack.c.l.b16 %v871
        %v3752 = vunpack.c.h.b16 %v871
        %v3753 = vunpack.c.l.b16 %v872
        %v3754 = vunpack.c.h.b16 %v872
        %v3755 = vunpack.c.l.b16 %v873
        %v3756 = vunpack.c.h.b16 %v873
        %v3757 = vunpack.c.l.b16 %v874
        %v3758 = vunpack.c.h.b16 %v874
        %v3759 = vunpack.c.l.b16 %v875
        %v3760 = vunpack.c.h.b16 %v875
        %v3761 = vunpack.c.l.b16 %v876
        %v3762 = vunpack.c.h.b16 %v876
        %v3763 = vunpack.c.l.b16 %v877
        %v3764 = vunpack.c.h.b16 %v877
        %v3765 = vunpack.c.l.b16 %v878
        %v3766 = vunpack.c.h.b16 %v878
        %v3767 = vunpack.c.l.b16 %v879
        %v3768 = vunpack.c.h.b16 %v879
        %v3769 = vunpack.c.l.b16 %v880
        %v3770 = vunpack.c.h.b16 %v880
        %v3771 = vunpack.c.l.b16 %v881
        %v3772 = vunpack.c.h.b16 %v881
        %v3773 = vunpack.c.l.b16 %v882
        %v3774 = vunpack.c.h.b16 %v882
        %v3775 = vunpack.c.l.b16 %v883
        %v3776 = vunpack.c.h.b16 %v883
        %v3777 = vunpack.c.l.b16 %v884
        %v3778 = vunpack.c.h.b16 %v884
        %v3779 = vunpack.c.l.b16 %v885
        %v3780 = vunpack.c.h.b16 %v885
        %v3781 = vunpack.c.l.b16 %v886
        %v3782 = vunpack.c.h.b16 %v886
        %v3783 = vunpack.c.l.b16 %v887
        %v3784 = vunpack.c.h.b16 %v887
        %v3785 = vunpack.c.l.b16 %v888
        %v3786 = vunpack.c.h.b16 %v888
        %v3787 = vunpack.c.l.b16 %v889
        %v3788 = vunpack.c.h.b16 %v889
        %v3789 = vunpack.c.l.b16 %v890
        %v3790 = vunpack.c.h.b16 %v890
        %v3791 = vunpack.c.l.b16 %v891
        %v3792 = vunpack.c.h.b16 %v891
        %v3793 = vunpack.c.l.b16 %v892
        %v3794 = vunpack.c.h.b16 %v892
        %v3795 = vunpack.c.l.b16 %v893
        %v3796 = vunpack.c.h.b16 %v893
        %v3797 = vunpack.c.l.b16 %v894
        %v3798 = vunpack.c.h.b16 %v894
        %v3799 = vunpack.c.l.b16 %v895
        %v3800 = vunpack.c.h.b16 %v895
        %v3801 = vunpack.c.l.b16 %v896
        %v3802 = vunpack.c.h.b16 %v896
        %v3803 = vunpack.c.l.b16 %v897
        %v3804 = vunpack.c.h.b16 %v897
        %v3805 = vunpack.c.l.b16 %v898
        %v3806 = vunpack.c.h.b16 %v898
        %v3807 = vunpack.c.l.b16 %v899
        %v3808 = vunpack.c.h.b16 %v899
        %v3809 = vunpack.c.l.b16 %v900
        %v3810 = vunpack.c.h.b16 %v900
        %v3811 = vunpack.c.l.b16 %v901
        %v3812 = vunpack.c.h.b16 %v901
        %v3813 = vunpack.c.l.b16 %v902
        %v3814 = vunpack.c.h.b16 %v902
        %v3815 = vunpack.c.l.b16 %v903
        %v3816 = vunpack.c.h.b16 %v903
        %v3817 = vunpack.c.l.b16 %v904
        %v3818 = vunpack.c.h.b16 %v904
        %v3819 = vunpack.c.l.b16 %v905
        %v3820 = vunpack.c.h.b16 %v905
        %v3821 = vunpack.c.l.b16 %v906
        %v3822 = vunpack.c.h.b16 %v906
        %v3823 = vunpack.c.l.b16 %v907
        %v3824 = vunpack.c.h.b16 %v907
        %v3825 = vunpack.c.l.b16 %v908
        %v3826 = vunpack.c.h.b16 %v908
        %v3827 = vunpack.c.l.b16 %v909
        %v3828 = vunpack.c.h.b16 %v909
        %v3829 = vunpack.c.l.b16 %v910
        %v3830 = vunpack.c.h.b16 %v910
        %v3831 = vunpack.c.l.b16 %v911
        %v3832 = vunpack.c.h.b16 %v911
        %v3833 = vunpack.c.l.b16 %v912
        %v3834 = vunpack.c.h.b16 %v912
        %v3835 = vunpack.c.l.b16 %v913
        %v3836 = vunpack.c.h.b16 %v913
        %v3837 = vunpack.c.l.b16 %v914
        %v3838 = vunpack.c.h.b16 %v914
        %v3839 = vunpack.c.l.b16 %v915
        %v3840 = vunpack.c.h.b16 %v915
        %v3841 = vunpack.c.l.b16 %v916
        %v3842 = vunpack.c.h.b16 %v916
        %v3843 = vunpack.c.l.b16 %v917
        %v3844 = vunpack.c.h.b16 %v917
        %v3845 = vunpack.c.l.b16 %v918
        %v3846 = vunpack.c.h.b16 %v918
        %v3847 = vunpack.c.l.b16 %v919
        %v3848 = vunpack.c.h.b16 %v919
        %v3849 = vunpack.c.l.b16 %v920
        %v3850 = vunpack.c.h.b16 %v920
        %v3851 = vunpack.c.l.b16 %v921
        %v3852 = vunpack.c.h.b16 %v921
        %v3853 = vunpack.c.l.b16 %v922
        %v3854 = vunpack.c.h.b16 %v922
        %v3855 = vunpack.c.l.b16 %v923
        %v3856 = vunpack.c.h.b16 %v923
        %v3857 = vunpack.c.l.b16 %v924
        %v3858 = vunpack.c.h.b16 %v924
        %v3859 = vunpack.c.l.b16 %v925
        %v3860 = vunpack.c.h.b16 %v925
        %v3861 = vunpack.c.l.b16 %v926
        %v3862 = vunpack.c.h.b16 %v926
        %v3863 = vunpack.c.l.b16 %v927
        %v3864 = vunpack.c.h.b16 %v927
        %v3865 = vunpack.c.l.b16 %v928
        %v3866 = vunpack.c.h.b16 %v928
        %v3867 = vunpack.c.l.b16 %v929
        %v3868 = vunpack.c.h.b16 %v929
        %v3869 = vunpack.c.l.b16 %v930
        %v3870 = vunpack.c.h.b16 %v930
        %v3871 = vunpack.c.l.b16 %v931
        %v3872 = vunpack.c.h.b16 %v931
        %v3873 = vunpack.c.l.b16 %v932
        %v3874 = vunpack.c.h.b16 %v932
        %v3875 = vunpack.c.l.b16 %v933
        %v3876 = vunpack.c.h.b16 %v933
        %v3877 = vunpack.c.l.b16 %v934
        %v3878 = vunpack.c.h.b16 %v934
        %v3879 = vunpack.c.l.b16 %v935
        %v3880 = vunpack.c.h.b16 %v935
        %v3881 = vunpack.c.l.b16 %v936
        %v3882 = vunpack.c.h.b16 %v936
        %v3883 = vunpack.c.l.b16 %v937
        %v3884 = vunpack.c.h.b16 %v937
        %v3885 = vunpack.c.l.b16 %v938
        %v3886 = vunpack.c.h.b16 %v938
        %v3887 = vunpack.c.l.b16 %v939
        %v3888 = vunpack.c.h.b16 %v939
        %v3889 = vunpack.c.l.b16 %v940
        %v3890 = vunpack.c.h.b16 %v940
        %v3891 = vunpack.c.l.b16 %v941
        %v3892 = vunpack.c.h.b16 %v941
        %v3893 = vunpack.c.l.b16 %v942
        %v3894 = vunpack.c.h.b16 %v942
        %v3895 = vunpack.c.l.b16 %v943
        %v3896 = vunpack.c.h.b16 %v943
        %v3897 = vunpack.c.l.b16 %v944
        %v3898 = vunpack.c.h.b16 %v944
        %v3899 = vunpack.c.l.b16 %v945
        %v3900 = vunpack.c.h.b16 %v945
        %v3901 = vunpack.c.l.b16 %v946
        %v3902 = vunpack.c.h.b16 %v946
        %v3903 = vunpack.c.l.b16 %v947
        %v3904 = vunpack.c.h.b16 %v947
        %v3905 = vunpack.c.l.b16 %v948
        %v3906 = vunpack.c.h.b16 %v948
        %v3907 = vunpack.c.l.b16 %v949
        %v3908 = vunpack.c.h.b16 %v949
        %v3909 = vunpack.c.l.b16 %v950
        %v3910 = vunpack.c.h.b16 %v950
        %v3911 = vunpack.c.l.b16 %v951
        %v3912 = vunpack.c.h.b16 %v951
        %v3913 = vunpack.c.l.b16 %v952
        %v3914 = vunpack.c.h.b16 %v952
        %v3915 = vunpack.c.l.b16 %v953
        %v3916 = vunpack.c.h.b16 %v953
        %v3917 = vunpack.c.l.b16 %v954
        %v3918 = vunpack.c.h.b16 %v954
        %v3919 = vunpack.c.l.b16 %v955
        %v3920 = vunpack.c.h.b16 %v955
        %v3921 = vunpack.c.l.b16 %v956
        %v3922 = vunpack.c.h.b16 %v956
        %v3923 = vunpack.c.l.b16 %v957
        %v3924 = vunpack.c.h.b16 %v957
        %v3925 = vunpack.c.l.b16 %v958
        %v3926 = vunpack.c.h.b16 %v958
        %v3927 = vunpack.c.l.b16 %v959
        %v3928 = vunpack.c.h.b16 %v959
        %v3929 = vunpack.c.l.b16 %v960
        %v3930 = vunpack.c.h.b16 %v960
        %v3931 = vunpack.c.l.b16 %v961
        %v3932 = vunpack.c.h.b16 %v961
        %v3933 = vunpack.c.l.b16 %v962
        %v3934 = vunpack.c.h.b16 %v962
        %v3935 = vunpack.c.l.b16 %v963
        %v3936 = vunpack.c.h.b16 %v963
        %v3937 = vunpack.c.l.b16 %v964
        %v3938 = vunpack.c.h.b16 %v964
        %v3939 = vunpack.c.l.b16 %v965
        %v3940 = vunpack.c.h.b16 %v965
        %v3941 = vunpack.c.l.b16 %v966
        %v3942 = vunpack.c.h.b16 %v966
        %v3943 = vunpack.c.l.b16 %v967
        %v3944 = vunpack.c.h.b16 %v967
        %v3945 = vunpack.c.l.b16 %v968
        %v3946 = vunpack.c.h.b16 %v968
        %v3947 = vunpack.c.l.b16 %v969
        %v3948 = vunpack.c.h.b16 %v969
        %v3949 = vunpack.c.l.b16 %v970
        %v3950 = vunpack.c.h.b16 %v970
        %v3951 = vunpack.c.l.b16 %v971
        %v3952 = vunpack.c.h.b16 %v971
        %v3953 = vunpack.c.l.b16 %v972
        %v3954 = vunpack.c.h.b16 %v972
        %v3955 = vunpack.c.l.b16 %v973
        %v3956 = vunpack.c.h.b16 %v973
        %v3957 = vunpack.c.l.b16 %v974
        %v3958 = vunpack.c.h.b16 %v974
        %v3959 = vunpack.c.l.b16 %v975
        %v3960 = vunpack.c.h.b16 %v975
        %v3961 = vunpack.c.l.b16 %v976
        %v3962 = vunpack.c.h.b16 %v976
        %v3963 = vunpack.c.l.b16 %v977
        %v3964 = vunpack.c.h.b16 %v977
        %v3965 = vunpack.c.l.b16 %v978
        %v3966 = vunpack.c.h.b16 %v978
        %v3967 = vunpack.c.l.b16 %v979
        %v3968 = vunpack.c.h.b16 %v979
        %v3969 = vunpack.c.l.b16 %v980
        %v3970 = vunpack.c.h.b16 %v980
        %v3971 = vunpack.c.l.b16 %v981
        %v3972 = vunpack.c.h.b16 %v981
        %v3973 = vunpack.c.l.b16 %v982
        %v3974 = vunpack.c.h.b16 %v982
        %v3975 = vunpack.c.l.b16 %v983
        %v3976 = vunpack.c.h.b16 %v983
        %v3977 = vunpack.c.l.b16 %v984
        %v3978 = vunpack.c.h.b16 %v984
        %v3979 = vunpack.c.l.b16 %v985
        %v3980 = vunpack.c.h.b16 %v985
        %v3981 = vunpack.c.l.b16 %v986
        %v3982 = vunpack.c.h.b16 %v986
        %v3983 = vunpack.c.l.b16 %v987
        %v3984 = vunpack.c.h.b16 %v987
        %v3985 = vunpack.c.l.b16 %v988
        %v3986 = vunpack.c.h.b16 %v988
        %v3987 = vunpack.c.l.b16 %v989
        %v3988 = vunpack.c.h.b16 %v989
        %v3989 = vunpack.c.l.b16 %v990
        %v3990 = vunpack.c.h.b16 %v990
        %v3991 = vunpack.c.l.b16 %v991
        %v3992 = vunpack.c.h.b16 %v991
        %v3993 = vunpack.c.l.b16 %v992
        %v3994 = vunpack.c.h.b16 %v992
        %v3995 = vunpack.c.l.b16 %v993
        %v3996 = vunpack.c.h.b16 %v993
        %v3997 = vunpack.c.l.b16 %v994
        %v3998 = vunpack.c.h.b16 %v994
        %v3999 = vunpack.c.l.b16 %v995
        %v4000 = vunpack.c.h.b16 %v995
        %v4001 = vunpack.c.l.b16 %v996
        %v4002 = vunpack.c.h.b16 %v996
        %v4003 = vunpack.c.l.b16 %v997
        %v4004 = vunpack.c.h.b16 %v997
        %v4005 = vunpack.c.l.b16 %v998
        %v4006 = vunpack.c.h.b16 %v998
        %v4007 = vunpack.c.l.b16 %v999
        %v4008 = vunpack.c.h.b16 %v999
        %v4009 = vunpack.c.l.b16 %v1000
        %v4010 = vunpack.c.h.b16 %v1000
        %v4011 = vunpack.c.l.b16 %v1001
        %v4012 = vunpack.c.h.b16 %v1001
        %v4013 = vunpack.c.l.b16 %v1002
        %v4014 = vunpack.c.h.b16 %v1002
        %v4015 = vunpack.c.l.b16 %v1003
        %v4016 = vunpack.c.h.b16 %v1003
        %v4017 = vunpack.c.l.b16 %v1004
        %v4018 = vunpack.c.h.b16 %v1004
        %v4019 = vunpack.c.l.b16 %v1005
        %v4020 = vunpack.c.h.b16 %v1005
        %v4021 = vunpack.c.l.b16 %v1006
        %v4022 = vunpack.c.h.b16 %v1006
        %v4023 = vunpack.c.l.b16 %v1007
        %v4024 = vunpack.c.h.b16 %v1007
        %v4025 = vunpack.c.l.b16 %v1008
        %v4026 = vunpack.c.h.b16 %v1008
        %v4027 = vunpack.c.l.b16 %v1009
        %v4028 = vunpack.c.h.b16 %v1009
        %v4029 = vunpack.c.l.b16 %v1010
        %v4030 = vunpack.c.h.b16 %v1010
        %v4031 = vunpack.c.l.b16 %v1011
        %v4032 = vunpack.c.h.b16 %v1011
        %v4033 = vunpack.c.l.b16 %v1012
        %v4034 = vunpack.c.h.b16 %v1012
        %v4035 = vunpack.c.l.b16 %v1013
        %v4036 = vunpack.c.h.b16 %v1013
        %v4037 = vunpack.c.l.b16 %v1014
        %v4038 = vunpack.c.h.b16 %v1014
        %v4039 = vunpack.c.l.b16 %v1015
        %v4040 = vunpack.c.h.b16 %v1015
        %v4041 = vunpack.c.l.b16 %v1016
        %v4042 = vunpack.c.h.b16 %v1016
        %v4043 = vunpack.c.l.b16 %v1017
        %v4044 = vunpack.c.h.b16 %v1017
        %v4045 = vunpack.c.l.b16 %v1018
        %v4046 = vunpack.c.h.b16 %v1018
        %v4047 = vunpack.c.l.b16 %v1019
        %v4048 = vunpack.c.h.b16 %v1019
        %v4049 = vunpack.c.l.b16 %v1020
        %v4050 = vunpack.c.h.b16 %v1020
        %v4051 = vunpack.c.l.b16 %v1021
        %v4052 = vunpack.c.h.b16 %v1021
        %v4053 = vunpack.c.l.b16 %v1022
        %v4054 = vunpack.c.h.b16 %v1022
        %v4055 = vunpack.c.l.b16 %v1023
        %v4056 = vunpack.c.h.b16 %v1023
        %v4057 = vunpack.c.l.b16 %v1024
        %v4058 = vunpack.c.h.b16 %v1024
        %v4059 = vunpack.c.l.b16 %v1025
        %v4060 = vunpack.c.h.b16 %v1025
        %v4061 = vunpack.c.l.b16 %v1026
        %v4062 = vunpack.c.h.b16 %v1026
        %v4063 = vunpack.c.l.b16 %v1027
        %v4064 = vunpack.c.h.b16 %v1027
        %v4065 = vunpack.c.l.b16 %v1028
        %v4066 = vunpack.c.h.b16 %v1028
        %v4067 = vunpack.c.l.b16 %v1029
        %v4068 = vunpack.c.h.b16 %v1029
        %v4069 = vunpack.c.l.b16 %v1030
        %v4070 = vunpack.c.h.b16 %v1030
        %v4071 = vunpack.c.l.b16 %v1031
        %v4072 = vunpack.c.h.b16 %v1031
        %v4073 = vunpack.c.l.b16 %v1032
        %v4074 = vunpack.c.h.b16 %v1032
        %v4075 = vunpack.c.l.b16 %v1033
        %v4076 = vunpack.c.h.b16 %v1033
        %v4077 = vunpack.c.l.b16 %v1034
        %v4078 = vunpack.c.h.b16 %v1034
        %v4079 = vunpack.c.l.b16 %v1035
        %v4080 = vunpack.c.h.b16 %v1035
        %v4081 = vunpack.c.l.b16 %v1036
        %v4082 = vunpack.c.h.b16 %v1036
        %v4083 = vunpack.c.l.b16 %v1037
        %v4084 = vunpack.c.h.b16 %v1037
        %v4085 = vunpack.c.l.b16 %v1038
        %v4086 = vunpack.c.h.b16 %v1038
        %v4087 = vunpack.c.l.b16 %v1039
        %v4088 = vunpack.c.h.b16 %v1039
        %v4089 = vunpack.c.l.b16 %v1040
        %v4090 = vunpack.c.h.b16 %v1040
        %v4091 = vunpack.c.l.b16 %v1041
        %v4092 = vunpack.c.h.b16 %v1041
        %v4093 = vunpack.c.l.b16 %v1042
        %v4094 = vunpack.c.h.b16 %v1042
        %v4095 = vunpack.c.l.b16 %v1043
        %v4096 = vunpack.c.h.b16 %v1043
        %v4097 = vunpack.c.l.b16 %v1044
        %v4098 = vunpack.c.h.b16 %v1044
        %v4099 = vunpack.c.l.b16 %v1045
        %v4100 = vunpack.c.h.b16 %v1045
        %v4101 = vunpack.c.l.b16 %v1046
        %v4102 = vunpack.c.h.b16 %v1046
        %v4103 = vunpack.c.l.b16 %v1047
        %v4104 = vunpack.c.h.b16 %v1047
        %v4105 = vunpack.c.l.b16 %v1048
        %v4106 = vunpack.c.h.b16 %v1048
        %v4107 = vunpack.c.l.b16 %v1049
        %v4108 = vunpack.c.h.b16 %v1049
        %v4109 = vunpack.c.l.b16 %v1050
        %v4110 = vunpack.c.h.b16 %v1050
        %v4111 = vunpack.c.l.b16 %v1051
        %v4112 = vunpack.c.h.b16 %v1051
        %v4113 = vunpack.c.l.b16 %v1052
        %v4114 = vunpack.c.h.b16 %v1052
        %v4115 = vunpack.c.l.b16 %v1053
        %v4116 = vunpack.c.h.b16 %v1053
        %v4117 = vunpack.c.l.b16 %v1054
        %v4118 = vunpack.c.h.b16 %v1054
        %v4119 = vunpack.c.l.b16 %v1055
        %v4120 = vunpack.c.h.b16 %v1055
        %v4121 = vunpack.c.l.b16 %v1056
        %v4122 = vunpack.c.h.b16 %v1056
        %v4123 = vunpack.c.l.b16 %v1057
        %v4124 = vunpack.c.h.b16 %v1057
        %v4125 = vunpack.c.l.b16 %v1058
        %v4126 = vunpack.c.h.b16 %v1058
        %v4127 = vunpack.c.l.b16 %v1059
        %v4128 = vunpack.c.h.b16 %v1059
        %v4129 = vunpack.c.l.b16 %v1060
        %v4130 = vunpack.c.h.b16 %v1060
        %v4131 = vunpack.c.l.b16 %v1061
        %v4132 = vunpack.c.h.b16 %v1061
        %v4133 = vunpack.c.l.b16 %v1062
        %v4134 = vunpack.c.h.b16 %v1062
        %v4135 = vunpack.c.l.b16 %v1063
        %v4136 = vunpack.c.h.b16 %v1063
        %v4137 = vunpack.c.l.b16 %v1064
        %v4138 = vunpack.c.h.b16 %v1064
        %v4139 = vunpack.c.l.b16 %v1065
        %v4140 = vunpack.c.h.b16 %v1065
        %v4141 = vunpack.c.l.b16 %v1066
        %v4142 = vunpack.c.h.b16 %v1066
        %v4143 = vunpack.c.l.b16 %v1067
        %v4144 = vunpack.c.h.b16 %v1067
        %v4145 = vunpack.c.l.b16 %v1068
        %v4146 = vunpack.c.h.b16 %v1068
        %v4147 = vunpack.c.l.b16 %v1069
        %v4148 = vunpack.c.h.b16 %v1069
        %v4149 = vunpack.c.l.b16 %v1070
        %v4150 = vunpack.c.h.b16 %v1070
        %v4151 = vunpack.c.l.b16 %v1071
        %v4152 = vunpack.c.h.b16 %v1071
        %v4153 = vunpack.c.l.b16 %v1072
        %v4154 = vunpack.c.h.b16 %v1072
        %v4155 = vunpack.c.l.b16 %v1073
        %v4156 = vunpack.c.h.b16 %v1073
        %v4157 = vunpack.c.l.b16 %v1074
        %v4158 = vunpack.c.h.b16 %v1074
        %v4159 = vunpack.c.l.b16 %v1075
        %v4160 = vunpack.c.h.b16 %v1075
        %v4161 = vunpack.c.l.b16 %v1076
        %v4162 = vunpack.c.h.b16 %v1076
        %v4163 = vunpack.c.l.b16 %v1077
        %v4164 = vunpack.c.h.b16 %v1077
        %v4165 = vunpack.c.l.b16 %v1078
        %v4166 = vunpack.c.h.b16 %v1078
        %v4167 = vunpack.c.l.b16 %v1079
        %v4168 = vunpack.c.h.b16 %v1079
        %v4169 = vunpack.c.l.b16 %v1080
        %v4170 = vunpack.c.h.b16 %v1080
        %v4171 = vunpack.c.l.b16 %v1081
        %v4172 = vunpack.c.h.b16 %v1081
        %v4173 = vunpack.c.l.b16 %v1082
        %v4174 = vunpack.c.h.b16 %v1082
        %v4175 = vunpack.c.l.b16 %v1083
        %v4176 = vunpack.c.h.b16 %v1083
        %v4177 = vunpack.c.l.b16 %v1084
        %v4178 = vunpack.c.h.b16 %v1084
        %v4179 = vunpack.c.l.b16 %v1085
        %v4180 = vunpack.c.h.b16 %v1085
        %v4181 = vunpack.c.l.b16 %v1086
        %v4182 = vunpack.c.h.b16 %v1086
        %v4183 = vunpack.c.l.b16 %v1087
        %v4184 = vunpack.c.h.b16 %v1087
        %v4185 = vunpack.c.l.b16 %v1088
        %v4186 = vunpack.c.h.b16 %v1088
        %v4187 = vunpack.c.l.b16 %v1089
        %v4188 = vunpack.c.h.b16 %v1089
        %v4189 = vunpack.c.l.b16 %v1090
        %v4190 = vunpack.c.h.b16 %v1090
        %v4191 = vunpack.c.l.b16 %v1091
        %v4192 = vunpack.c.h.b16 %v1091
        %v4193 = vunpack.c.l.b16 %v1092
        %v4194 = vunpack.c.h.b16 %v1092
        %v4195 = vunpack.c.l.b16 %v1093
        %v4196 = vunpack.c.h.b16 %v1093
        %v4197 = vunpack.c.l.b16 %v1094
        %v4198 = vunpack.c.h.b16 %v1094
        %v4199 = vunpack.c.l.b16 %v1095
        %v4200 = vunpack.c.h.b16 %v1095
        %v4201 = vunpack.c.l.b16 %v1096
        %v4202 = vunpack.c.h.b16 %v1096
        %v4203 = vunpack.c.l.b16 %v1097
        %v4204 = vunpack.c.h.b16 %v1097
        %v4205 = vunpack.c.l.b16 %v1098
        %v4206 = vunpack.c.h.b16 %v1098
        %v4207 = vunpack.c.l.b16 %v1099
        %v4208 = vunpack.c.h.b16 %v1099
        %v4209 = vunpack.c.l.b16 %v1100
        %v4210 = vunpack.c.h.b16 %v1100
        %v4211 = vunpack.c.l.b16 %v1101
        %v4212 = vunpack.c.h.b16 %v1101
        %v4213 = vunpack.c.l.b16 %v1102
        %v4214 = vunpack.c.h.b16 %v1102
        %v4215 = vunpack.c.l.b16 %v1103
        %v4216 = vunpack.c.h.b16 %v1103
        %v4217 = vunpack.c.l.b16 %v1104
        %v4218 = vunpack.c.h.b16 %v1104
        %v4219 = vunpack.c.l.b16 %v1105
        %v4220 = vunpack.c.h.b16 %v1105
        %v4221 = vunpack.c.l.b16 %v1106
        %v4222 = vunpack.c.h.b16 %v1106
        %v4223 = vunpack.c.l.b16 %v1107
        %v4224 = vunpack.c.h.b16 %v1107
        %v4225 = vunpack.c.l.b16 %v1108
        %v4226 = vunpack.c.h.b16 %v1108
        %v4227 = vunpack.c.l.b16 %v1109
        %v4228 = vunpack.c.h.b16 %v1109
        %v4229 = vunpack.c.l.b16 %v1110
        %v4230 = vunpack.c.h.b16 %v1110
        %v4231 = vunpack.c.l.b16 %v1111
        %v4232 = vunpack.c.h.b16 %v1111
        %v4233 = vunpack.c.l.b16 %v1112
        %v4234 = vunpack.c.h.b16 %v1112
        %v4235 = vunpack.c.l.b16 %v1113
        %v4236 = vunpack.c.h.b16 %v1113
        %v4237 = vunpack.c.l.b16 %v1114
        %v4238 = vunpack.c.h.b16 %v1114
        %v4239 = vunpack.c.l.b16 %v1115
        %v4240 = vunpack.c.h.b16 %v1115
        %v4241 = vunpack.c.l.b16 %v1116
        %v4242 = vunpack.c.h.b16 %v1116
        %v4243 = vunpack.c.l.b16 %v1117
        %v4244 = vunpack.c.h.b16 %v1117
        %v4245 = vunpack.c.l.b16 %v1118
        %v4246 = vunpack.c.h.b16 %v1118
        %v4247 = vunpack.c.l.b16 %v1119
        %v4248 = vunpack.c.h.b16 %v1119
        %v4249 = vunpack.c.l.b16 %v1120
        %v4250 = vunpack.c.h.b16 %v1120
        %v4251 = vunpack.c.l.b16 %v1121
        %v4252 = vunpack.c.h.b16 %v1121
        %v4253 = vunpack.c.l.b16 %v1122
        %v4254 = vunpack.c.h.b16 %v1122
        %v4255 = vunpack.c.l.b16 %v1123
        %v4256 = vunpack.c.h.b16 %v1123
        %v4257 = vunpack.c.l.b16 %v1124
        %v4258 = vunpack.c.h.b16 %v1124
        %v4259 = vunpack.c.l.b16 %v1125
        %v4260 = vunpack.c.h.b16 %v1125
        %v4261 = vunpack.c.l.b16 %v1126
        %v4262 = vunpack.c.h.b16 %v1126
        %v4263 = vunpack.c.l.b16 %v1127
        %v4264 = vunpack.c.h.b16 %v1127
        %v4265 = vunpack.c.l.b16 %v1128
        %v4266 = vunpack.c.h.b16 %v1128
        %v4267 = vunpack.c.l.b16 %v1129
        %v4268 = vunpack.c.h.b16 %v1129
        %v4269 = vunpack.c.l.b16 %v1130
        %v4270 = vunpack.c.h.b16 %v1130
        %v4271 = vunpack.c.l.b16 %v1131
        %v4272 = vunpack.c.h.b16 %v1131
        %v4273 = vunpack.c.l.b16 %v1132
        %v4274 = vunpack.c.h.b16 %v1132
        %v4275 = vunpack.c.l.b16 %v1133
        %v4276 = vunpack.c.h.b16 %v1133
        %v4277 = vunpack.c.l.b16 %v1134
        %v4278 = vunpack.c.h.b16 %v1134
        %v4279 = vunpack.c.l.b16 %v1135
        %v4280 = vunpack.c.h.b16 %v1135
        %v4281 = vunpack.c.l.b16 %v1136
        %v4282 = vunpack.c.h.b16 %v1136
        %v4283 = vunpack.c.l.b16 %v1137
        %v4284 = vunpack.c.h.b16 %v1137
        %v4285 = vunpack.c.l.b16 %v1138
        %v4286 = vunpack.c.h.b16 %v1138
        %v4287 = vunpack.c.l.b16 %v1139
        %v4288 = vunpack.c.h.b16 %v1139
        %v4289 = vunpack.c.l.b16 %v1140
        %v4290 = vunpack.c.h.b16 %v1140
        %v4291 = vunpack.c.l.b16 %v1141
        %v4292 = vunpack.c.h.b16 %v1141
        %v4293 = vunpack.c.l.b16 %v1142
        %v4294 = vunpack.c.h.b16 %v1142
        %v4295 = vunpack.c.l.b16 %v1143
        %v4296 = vunpack.c.h.b16 %v1143
        %v4297 = vunpack.c.l.b16 %v1144
        %v4298 = vunpack.c.h.b16 %v1144
        %v4299 = vunpack.c.l.b16 %v1145
        %v4300 = vunpack.c.h.b16 %v1145
        %v4301 = vunpack.c.l.b16 %v1146
        %v4302 = vunpack.c.h.b16 %v1146
        %v4303 = vunpack.c.l.b16 %v1147
        %v4304 = vunpack.c.h.b16 %v1147
        %v4305 = vunpack.c.l.b16 %v1148
        %v4306 = vunpack.c.h.b16 %v1148
        %v4307 = vunpack.c.l.b16 %v1149
        %v4308 = vunpack.c.h.b16 %v1149
        %v4309 = vunpack.c.l.b16 %v1150
        %v4310 = vunpack.c.h.b16 %v1150
        %v4311 = vunpack.c.l.b16 %v1151
        %v4312 = vunpack.c.h.b16 %v1151
        %v4313 = vunpack.c.l.b16 %v1152
        %v4314 = vunpack.c.h.b16 %v1152
        %v4315 = vunpack.c.l.b16 %v1153
        %v4316 = vunpack.c.h.b16 %v1153
        %v4317 = vunpack.c.l.b16 %v1154
        %v4318 = vunpack.c.h.b16 %v1154
        %v4319 = vunpack.c.l.b16 %v1155
        %v4320 = vunpack.c.h.b16 %v1155
        %v4321 = vunpack.c.l.b16 %v1156
        %v4322 = vunpack.c.h.b16 %v1156
        %v4323 = vunpack.c.l.b16 %v1157
        %v4324 = vunpack.c.h.b16 %v1157
        %v4325 = vunpack.c.l.b16 %v1158
        %v4326 = vunpack.c.h.b16 %v1158
        %v4327 = vunpack.c.l.b16 %v1159
        %v4328 = vunpack.c.h.b16 %v1159
        %v4329 = vunpack.c.l.b16 %v1160
        %v4330 = vunpack.c.h.b16 %v1160
        %v4331 = vunpack.c.l.b16 %v1161
        %v4332 = vunpack.c.h.b16 %v1161
        %v4333 = vunpack.c.l.b16 %v1162
        %v4334 = vunpack.c.h.b16 %v1162
        %v4335 = vunpack.c.l.b16 %v1163
        %v4336 = vunpack.c.h.b16 %v1163
        %v4337 = vunpack.c.l.b16 %v1164
        %v4338 = vunpack.c.h.b16 %v1164
        %v4339 = vunpack.c.l.b16 %v1165
        %v4340 = vunpack.c.h.b16 %v1165
        %v4341 = vunpack.c.l.b16 %v1166
        %v4342 = vunpack.c.h.b16 %v1166
        %v4343 = vunpack.c.l.b16 %v1167
        %v4344 = vunpack.c.h.b16 %v1167
        %v4345 = vunpack.c.l.b16 %v1168
        %v4346 = vunpack.c.h.b16 %v1168
        %v4347 = vunpack.c.l.b16 %v1169
        %v4348 = vunpack.c.h.b16 %v1169
        %v4349 = vunpack.c.l.b16 %v1170
        %v4350 = vunpack.c.h.b16 %v1170
        %v4351 = vunpack.c.l.b16 %v1171
        %v4352 = vunpack.c.h.b16 %v1171
        %v4353 = vunpack.c.l.b16 %v1172
        %v4354 = vunpack.c.h.b16 %v1172
        %v4355 = vunpack.c.l.b16 %v1173
        %v4356 = vunpack.c.h.b16 %v1173
        %v4357 = vunpack.c.l.b16 %v1174
        %v4358 = vunpack.c.h.b16 %v1174
        %v4359 = vunpack.c.l.b16 %v1175
        %v4360 = vunpack.c.h.b16 %v1175
        %v4361 = vunpack.c.l.b16 %v1176
        %v4362 = vunpack.c.h.b16 %v1176
        %v4363 = vunpack.c.l.b16 %v1177
        %v4364 = vunpack.c.h.b16 %v1177
        %v4365 = vunpack.c.l.b16 %v1178
        %v4366 = vunpack.c.h.b16 %v1178
        %v4367 = vunpack.c.l.b16 %v1179
        %v4368 = vunpack.c.h.b16 %v1179
        %v4369 = vunpack.c.l.b16 %v1180
        %v4370 = vunpack.c.h.b16 %v1180
        %v4371 = vunpack.c.l.b16 %v1181
        %v4372 = vunpack.c.h.b16 %v1181
        %v4373 = vunpack.c.l.b16 %v1182
        %v4374 = vunpack.c.h.b16 %v1182
        %v4375 = vunpack.c.l.b16 %v1183
        %v4376 = vunpack.c.h.b16 %v1183
        %v4377 = vunpack.c.l.b16 %v1184
        %v4378 = vunpack.c.h.b16 %v1184
        %v4379 = vunpack.c.l.b16 %v1185
        %v4380 = vunpack.c.h.b16 %v1185
        %v4381 = vunpack.c.l.b16 %v1186
        %v4382 = vunpack.c.h.b16 %v1186
        %v4383 = vunpack.c.l.b16 %v1187
        %v4384 = vunpack.c.h.b16 %v1187
        %v4385 = vunpack.c.l.b16 %v1188
        %v4386 = vunpack.c.h.b16 %v1188
        %v4387 = vunpack.c.l.b16 %v1189
        %v4388 = vunpack.c.h.b16 %v1189
        %v4389 = vunpack.c.l.b16 %v1190
        %v4390 = vunpack.c.h.b16 %v1190
        %v4391 = vunpack.c.l.b16 %v1191
        %v4392 = vunpack.c.h.b16 %v1191
        %v4393 = vunpack.c.l.b16 %v1192
        %v4394 = vunpack.c.h.b16 %v1192
        %v4395 = vunpack.c.l.b16 %v1193
        %v4396 = vunpack.c.h.b16 %v1193
        %v4397 = vunpack.c.l.b16 %v1194
        %v4398 = vunpack.c.h.b16 %v1194
        %v4399 = vunpack.c.l.b16 %v1195
        %v4400 = vunpack.c.h.b16 %v1195
        %v4401 = vunpack.c.l.b16 %v1196
        %v4402 = vunpack.c.h.b16 %v1196
        %v4403 = vunpack.c.l.b16 %v1197
        %v4404 = vunpack.c.h.b16 %v1197
        %v4405 = vunpack.c.l.b16 %v1198
        %v4406 = vunpack.c.h.b16 %v1198
        %v4407 = vunpack.c.l.b16 %v1199
        %v4408 = vunpack.c.h.b16 %v1199
        %v4409 = vunpack.c.l.b16 %v1200
        %v4410 = vunpack.c.h.b16 %v1200
        %v4411 = vunpack.c.l.b16 %v1201
        %v4412 = vunpack.c.h.b16 %v1201
        %v4413 = vunpack.c.l.b16 %v1202
        %v4414 = vunpack.c.h.b16 %v1202
        %v4415 = vunpack.c.l.b16 %v1203
        %v4416 = vunpack.c.h.b16 %v1203
        %v4417 = vunpack.c.l.b16 %v1204
        %v4418 = vunpack.c.h.b16 %v1204
        %v4419 = vunpack.c.l.b16 %v1205
        %v4420 = vunpack.c.h.b16 %v1205
        %v4421 = vunpack.c.l.b16 %v1206
        %v4422 = vunpack.c.h.b16 %v1206
        %v4423 = vunpack.c.l.b16 %v1207
        %v4424 = vunpack.c.h.b16 %v1207
        %v4425 = vunpack.c.l.b16 %v1208
        %v4426 = vunpack.c.h.b16 %v1208
        %v4427 = vunpack.c.l.b16 %v1209
        %v4428 = vunpack.c.h.b16 %v1209
        %v4429 = vunpack.c.l.b16 %v1210
        %v4430 = vunpack.c.h.b16 %v1210
        %v4431 = vunpack.c.l.b16 %v1211
        %v4432 = vunpack.c.h.b16 %v1211
        %v4433 = vunpack.c.l.b16 %v1212
        %v4434 = vunpack.c.h.b16 %v1212
        %v4435 = vunpack.c.l.b16 %v1213
        %v4436 = vunpack.c.h.b16 %v1213
        %v4437 = vunpack.c.l.b16 %v1214
        %v4438 = vunpack.c.h.b16 %v1214
        %v4439 = vunpack.c.l.b16 %v1215
        %v4440 = vunpack.c.h.b16 %v1215
        %v4441 = vunpack.c.l.b16 %v1216
        %v4442 = vunpack.c.h.b16 %v1216
        %v4443 = vunpack.c.l.b16 %v1217
        %v4444 = vunpack.c.h.b16 %v1217
        %v4445 = vunpack.c.l.b16 %v1218
        %v4446 = vunpack.c.h.b16 %v1218
        %v4447 = vunpack.c.l.b16 %v1219
        %v4448 = vunpack.c.h.b16 %v1219
        %v4449 = vunpack.c.l.b16 %v1220
        %v4450 = vunpack.c.h.b16 %v1220
        %v4451 = vunpack.c.l.b16 %v1221
        %v4452 = vunpack.c.h.b16 %v1221
        %v4453 = vunpack.c.l.b16 %v1222
        %v4454 = vunpack.c.h.b16 %v1222
        %v4455 = vunpack.c.l.b16 %v1223
        %v4456 = vunpack.c.h.b16 %v1223
        %v4457 = vunpack.c.l.b16 %v1224
        %v4458 = vunpack.c.h.b16 %v1224
        %v4459 = vunpack.c.l.b16 %v1225
        %v4460 = vunpack.c.h.b16 %v1225
        %v4461 = vunpack.c.l.b16 %v1226
        %v4462 = vunpack.c.h.b16 %v1226
        %v4463 = vunpack.c.l.b16 %v1227
        %v4464 = vunpack.c.h.b16 %v1227
        %v4465 = vunpack.c.l.b16 %v1228
        %v4466 = vunpack.c.h.b16 %v1228
        %v4467 = vunpack.c.l.b16 %v1229
        %v4468 = vunpack.c.h.b16 %v1229
        %v4469 = vunpack.c.l.b16 %v1230
        %v4470 = vunpack.c.h.b16 %v1230
        %v4471 = vunpack.c.l.b16 %v1231
        %v4472 = vunpack.c.h.b16 %v1231
        %v4473 = vunpack.c.l.b16 %v1232
        %v4474 = vunpack.c.h.b16 %v1232
        %v4475 = vunpack.c.l.b16 %v1233
        %v4476 = vunpack.c.h.b16 %v1233
        %v4477 = vunpack.c.l.b16 %v1234
        %v4478 = vunpack.c.h.b16 %v1234
        %v4479 = vunpack.c.l.b16 %v1235
        %v4480 = vunpack.c.h.b16 %v1235
        %v4481 = vunpack.c.l.b16 %v1236
        %v4482 = vunpack.c.h.b16 %v1236
        %v4483 = vunpack.c.l.b16 %v1237
        %v4484 = vunpack.c.h.b16 %v1237
        %v4485 = vunpack.c.l.b16 %v1238
        %v4486 = vunpack.c.h.b16 %v1238
        %v4487 = vunpack.c.l.b16 %v1239
        %v4488 = vunpack.c.h.b16 %v1239
        %v4489 = vunpack.c.l.b16 %v1240
        %v4490 = vunpack.c.h.b16 %v1240
        %v4491 = vunpack.c.l.b16 %v1241
        %v4492 = vunpack.c.h.b16 %v1241
        %v4493 = vunpack.c.l.b16 %v1242
        %v4494 = vunpack.c.h.b16 %v1242
        %v4495 = vunpack.c.l.b16 %v1243
        %v4496 = vunpack.c.h.b16 %v1243
        %v4497 = vunpack.c.l.b16 %v1244
        %v4498 = vunpack.c.h.b16 %v1244
        %v4499 = vunpack.c.l.b16 %v1245
        %v4500 = vunpack.c.h.b16 %v1245
        %v4501 = vunpack.c.l.b16 %v1246
        %v4502 = vunpack.c.h.b16 %v1246
        %v4503 = vunpack.c.l.b16 %v1247
        %v4504 = vunpack.c.h.b16 %v1247
        %v4505 = vunpack.c.l.b16 %v1248
        %v4506 = vunpack.c.h.b16 %v1248
        %v4507 = vunpack.c.l.b16 %v1249
        %v4508 = vunpack.c.h.b16 %v1249
        %v4509 = vunpack.c.l.b16 %v1250
        %v4510 = vunpack.c.h.b16 %v1250
        %v4511 = vunpack.c.l.b16 %v1251
        %v4512 = vunpack.c.h.b16 %v1251
        %v4513 = vunpack.c.l.b16 %v1252
        %v4514 = vunpack.c.h.b16 %v1252
        %v4515 = vunpack.c.l.b16 %v1253
        %v4516 = vunpack.c.h.b16 %v1253
        %v4517 = vunpack.c.l.b16 %v1254
        %v4518 = vunpack.c.h.b16 %v1254
        %v4519 = vunpack.c.l.b16 %v1255
        %v4520 = vunpack.c.h.b16 %v1255
        %v4521 = vunpack.c.l.b16 %v1256
        %v4522 = vunpack.c.h.b16 %v1256
        %v4523 = vunpack.c.l.b16 %v1257
        %v4524 = vunpack.c.h.b16 %v1257
        %v4525 = vunpack.c.l.b16 %v1258
        %v4526 = vunpack.c.h.b16 %v1258
        %v4527 = vunpack.c.l.b16 %v1259
        %v4528 = vunpack.c.h.b16 %v1259
        %v4529 = vunpack.c.l.b16 %v1260
        %v4530 = vunpack.c.h.b16 %v1260
        %v4531 = vunpack.c.l.b16 %v1261
        %v4532 = vunpack.c.h.b16 %v1261
        %v4533 = vunpack.c.l.b16 %v1262
        %v4534 = vunpack.c.h.b16 %v1262
        %v4535 = vunpack.c.l.b16 %v1263
        %v4536 = vunpack.c.h.b16 %v1263
        %v4537 = vunpack.c.l.b16 %v1264
        %v4538 = vunpack.c.h.b16 %v1264
        %v4539 = vunpack.c.l.b16 %v1265
        %v4540 = vunpack.c.h.b16 %v1265
        %v4541 = vunpack.c.l.b16 %v1266
        %v4542 = vunpack.c.h.b16 %v1266
        %v4543 = vunpack.c.l.b16 %v1267
        %v4544 = vunpack.c.h.b16 %v1267
        %v4545 = vunpack.c.l.b16 %v1268
        %v4546 = vunpack.c.h.b16 %v1268
        %v4547 = vunpack.c.l.b16 %v1269
        %v4548 = vunpack.c.h.b16 %v1269
        %v4549 = vunpack.c.l.b16 %v1270
        %v4550 = vunpack.c.h.b16 %v1270
        %v4551 = vunpack.c.l.b16 %v1271
        %v4552 = vunpack.c.h.b16 %v1271
        %v4553 = vunpack.c.l.b16 %v1272
        %v4554 = vunpack.c.h.b16 %v1272
        %v4555 = vunpack.c.l.b16 %v1273
        %v4556 = vunpack.c.h.b16 %v1273
        %v4557 = vunpack.c.l.b16 %v1274
        %v4558 = vunpack.c.h.b16 %v1274
        %v4559 = vunpack.c.l.b16 %v1275
        %v4560 = vunpack.c.h.b16 %v1275
        %v4561 = vunpack.c.l.b16 %v1276
        %v4562 = vunpack.c.h.b16 %v1276
        %v4563 = vunpack.c.l.b16 %v1277
        %v4564 = vunpack.c.h.b16 %v1277
        %v4565 = vunpack.c.l.b16 %v1278
        %v4566 = vunpack.c.h.b16 %v1278
        %v4567 = vunpack.c.l.b16 %v1279
        %v4568 = vunpack.c.h.b16 %v1279
        %v4569 = vunpack.c.l.b16 %v1280
        %v4570 = vunpack.c.h.b16 %v1280
        %v4571 = vunpack.c.l.b16 %v1281
        %v4572 = vunpack.c.h.b16 %v1281
        %v4573 = vunpack.c.l.b16 %v1282
        %v4574 = vunpack.c.h.b16 %v1282
        %v4575 = vunpack.c.l.b16 %v1283
        %v4576 = vunpack.c.h.b16 %v1283
        %v4577 = vunpack.c.l.b16 %v1284
        %v4578 = vunpack.c.h.b16 %v1284
        %v4579 = vunpack.c.l.b16 %v1285
        %v4580 = vunpack.c.h.b16 %v1285
        %v4581 = vunpack.c.l.b16 %v1286
        %v4582 = vunpack.c.h.b16 %v1286
        %v4583 = vunpack.c.l.b16 %v1287
        %v4584 = vunpack.c.h.b16 %v1287
        %v4585 = vunpack.c.l.b16 %v1288
        %v4586 = vunpack.c.h.b16 %v1288
        %v4587 = vunpack.c.l.b16 %v1289
        %v4588 = vunpack.c.h.b16 %v1289
        %v4589 = vunpack.c.l.b16 %v1290
        %v4590 = vunpack.c.h.b16 %v1290
        %v4591 = vunpack.c.l.b16 %v1291
        %v4592 = vunpack.c.h.b16 %v1291
        %v4593 = vunpack.c.l.b16 %v1292
        %v4594 = vunpack.c.h.b16 %v1292
        %v4595 = vunpack.c.l.b16 %v1293
        %v4596 = vunpack.c.h.b16 %v1293
        %v4597 = vunpack.c.l.b16 %v1294
        %v4598 = vunpack.c.h.b16 %v1294
        %v4599 = vunpack.c.l.b16 %v1295
        %v4600 = vunpack.c.h.b16 %v1295
        %v4601 = vunpack.c.l.b16 %v1296
        %v4602 = vunpack.c.h.b16 %v1296
        %v4603 = vunpack.c.l.b16 %v1297
        %v4604 = vunpack.c.h.b16 %v1297
        %v4605 = vunpack.c.l.b16 %v1298
        %v4606 = vunpack.c.h.b16 %v1298
        %v4607 = vunpack.c.l.b16 %v1299
        %v4608 = vunpack.c.h.b16 %v1299
        %v4609 = vunpack.c.l.b16 %v1300
        %v4610 = vunpack.c.h.b16 %v1300
        %v4611 = vunpack.c.l.b16 %v1301
        %v4612 = vunpack.c.h.b16 %v1301
        %v4613 = vunpack.c.l.b16 %v1302
        %v4614 = vunpack.c.h.b16 %v1302
        %v4615 = vunpack.c.l.b16 %v1303
        %v4616 = vunpack.c.h.b16 %v1303
        %v4617 = vunpack.c.l.b16 %v1304
        %v4618 = vunpack.c.h.b16 %v1304
        %v4619 = vunpack.c.l.b16 %v1305
        %v4620 = vunpack.c.h.b16 %v1305
        %v4621 = vunpack.c.l.b16 %v1306
        %v4622 = vunpack.c.h.b16 %v1306
        %v4623 = vunpack.c.l.b16 %v1307
        %v4624 = vunpack.c.h.b16 %v1307
        %v4625 = vunpack.c.l.b16 %v1308
        %v4626 = vunpack.c.h.b16 %v1308
        %v4627 = vunpack.c.l.b16 %v1309
        %v4628 = vunpack.c.h.b16 %v1309
        %v4629 = vunpack.c.l.b16 %v1310
        %v4630 = vunpack.c.h.b16 %v1310
        %v4631 = vunpack.c.l.b16 %v1311
        %v4632 = vunpack.c.h.b16 %v1311
        %v4633 = vunpack.c.l.b16 %v1312
        %v4634 = vunpack.c.h.b16 %v1312
        %v4635 = vunpack.c.l.b16 %v1313
        %v4636 = vunpack.c.h.b16 %v1313
        %v4637 = vunpack.c.l.b16 %v1314
        %v4638 = vunpack.c.h.b16 %v1314
        %v4639 = vunpack.c.l.b16 %v1315
        %v4640 = vunpack.c.h.b16 %v1315
        %v4641 = vunpack.c.l.b16 %v1316
        %v4642 = vunpack.c.h.b16 %v1316
        %v4643 = vunpack.c.l.b16 %v1317
        %v4644 = vunpack.c.h.b16 %v1317
        %v4645 = vunpack.c.l.b16 %v1318
        %v4646 = vunpack.c.h.b16 %v1318
        %v4647 = vunpack.c.l.b16 %v1319
        %v4648 = vunpack.c.h.b16 %v1319
        %v4649 = vunpack.c.l.b16 %v1320
        %v4650 = vunpack.c.h.b16 %v1320
        %v4651 = vunpack.c.l.b16 %v1321
        %v4652 = vunpack.c.h.b16 %v1321
        %v4653 = vunpack.c.l.b16 %v1322
        %v4654 = vunpack.c.h.b16 %v1322
        %v4655 = vunpack.c.l.b16 %v1323
        %v4656 = vunpack.c.h.b16 %v1323
        %v4657 = vunpack.c.l.b16 %v1324
        %v4658 = vunpack.c.h.b16 %v1324
        %v4659 = vunpack.c.l.b16 %v1325
        %v4660 = vunpack.c.h.b16 %v1325
        %v4661 = vunpack.c.l.b16 %v1326
        %v4662 = vunpack.c.h.b16 %v1326
        %v4663 = vunpack.c.l.b16 %v1327
        %v4664 = vunpack.c.h.b16 %v1327
        %v4665 = vunpack.c.l.b16 %v1328
        %v4666 = vunpack.c.h.b16 %v1328
        %v4667 = vunpack.c.l.b16 %v1329
        %v4668 = vunpack.c.h.b16 %v1329
        %v4669 = vunpack.c.l.b16 %v1330
        %v4670 = vunpack.c.h.b16 %v1330
        %v4671 = vunpack.c.l.b16 %v1331
        %v4672 = vunpack.c.h.b16 %v1331
        %v4673 = vunpack.c.l.b16 %v1332
        %v4674 = vunpack.c.h.b16 %v1332
        %v4675 = vunpack.c.l.b16 %v1333
        %v4676 = vunpack.c.h.b16 %v1333
        %v4677 = vunpack.c.l.b16 %v1334
        %v4678 = vunpack.c.h.b16 %v1334
        %v4679 = vunpack.c.l.b16 %v1335
        %v4680 = vunpack.c.h.b16 %v1335
        %v4681 = vunpack.c.l.b16 %v1336
        %v4682 = vunpack.c.h.b16 %v1336
        %v4683 = vunpack.c.l.b16 %v1337
        %v4684 = vunpack.c.h.b16 %v1337
        %v4685 = vunpack.c.l.b16 %v1338
        %v4686 = vunpack.c.h.b16 %v1338
        %v4687 = vunpack.c.l.b16 %v1339
        %v4688 = vunpack.c.h.b16 %v1339
        %v4689 = vunpack.c.l.b16 %v1340
        %v4690 = vunpack.c.h.b16 %v1340
        %v4691 = vunpack.c.l.b16 %v1341
        %v4692 = vunpack.c.h.b16 %v1341
        %v4693 = vunpack.c.l.b16 %v1342
        %v4694 = vunpack.c.h.b16 %v1342
        %v4695 = vunpack.c.l.b16 %v1343
        %v4696 = vunpack.c.h.b16 %v1343
        %v4697 = vunpack.c.l.b16 %v1344
        %v4698 = vunpack.c.h.b16 %v1344
        %v4699 = vunpack.c.l.b16 %v1345
        %v4700 = vunpack.c.h.b16 %v1345
        %v4701 = vunpack.c.l.b16 %v1346
        %v4702 = vunpack.c.h.b16 %v1346
        %v4703 = vunpack.c.l.b16 %v1347
        %v4704 = vunpack.c.h.b16 %v1347
        %v4705 = vunpack.c.l.b16 %v1348
        %v4706 = vunpack.c.h.b16 %v1348
        %v4707 = vunpack.c.l.b16 %v1349
        %v4708 = vunpack.c.h.b16 %v1349
        %v4709 = vunpack.c.l.b16 %v1350
        %v4710 = vunpack.c.h.b16 %v1350
        %v4711 = vunpack.c.l.b16 %v1351
        %v4712 = vunpack.c.h.b16 %v1351
        %v4713 = vunpack.c.l.b16 %v1352
        %v4714 = vunpack.c.h.b16 %v1352
        %v4715 = vunpack.c.l.b16 %v1353
        %v4716 = vunpack.c.h.b16 %v1353
        %v4717 = vunpack.c.l.b16 %v1354
        %v4718 = vunpack.c.h.b16 %v1354
        %v4719 = vunpack.c.l.b16 %v1355
        %v4720 = vunpack.c.h.b16 %v1355
        %v4721 = vunpack.c.l.b16 %v1356
        %v4722 = vunpack.c.h.b16 %v1356
        %v4723 = vunpack.c.l.b16 %v1357
        %v4724 = vunpack.c.h.b16 %v1357
        %v4725 = vunpack.c.l.b16 %v1358
        %v4726 = vunpack.c.h.b16 %v1358
        %v4727 = vunpack.c.l.b16 %v1359
        %v4728 = vunpack.c.h.b16 %v1359
        %v4729 = vunpack.c.l.b16 %v1360
        %v4730 = vunpack.c.h.b16 %v1360
        %v4731 = vunpack.c.l.b16 %v1361
        %v4732 = vunpack.c.h.b16 %v1361
        %v4733 = vunpack.c.l.b16 %v1362
        %v4734 = vunpack.c.h.b16 %v1362
        %v4735 = vunpack.c.l.b16 %v1363
        %v4736 = vunpack.c.h.b16 %v1363
        %v4737 = vunpack.c.l.b16 %v1364
        %v4738 = vunpack.c.h.b16 %v1364
        %v4739 = vunpack.c.l.b16 %v1365
        %v4740 = vunpack.c.h.b16 %v1365
        %v4741 = vunpack.c.l.b16 %v1366
        %v4742 = vunpack.c.h.b16 %v1366
        %v4743 = vunpack.c.l.b16 %v1367
        %v4744 = vunpack.c.h.b16 %v1367
        %v4745 = vunpack.c.l.b16 %v1368
        %v4746 = vunpack.c.h.b16 %v1368
        %v4747 = vunpack.c.l.b16 %v1369
        %v4748 = vunpack.c.h.b16 %v1369
        %v4749 = vunpack.c.l.b16 %v1370
        %v4750 = vunpack.c.h.b16 %v1370
        %v4751 = vunpack.c.l.b16 %v1371
        %v4752 = vunpack.c.h.b16 %v1371
        %v4753 = vunpack.c.l.b16 %v1372
        %v4754 = vunpack.c.h.b16 %v1372
        %v4755 = vunpack.c.l.b16 %v1373
        %v4756 = vunpack.c.h.b16 %v1373
        %v4757 = vunpack.c.l.b16 %v1374
        %v4758 = vunpack.c.h.b16 %v1374
        %v4759 = vunpack.c.l.b16 %v1375
        %v4760 = vunpack.c.h.b16 %v1375
        %v4761 = vunpack.c.l.b16 %v1376
        %v4762 = vunpack.c.h.b16 %v1376
        %v4763 = vunpack.c.l.b16 %v1377
        %v4764 = vunpack.c.h.b16 %v1377
        %v4765 = vunpack.c.l.b16 %v1378
        %v4766 = vunpack.c.h.b16 %v1378
        %v4767 = vunpack.c.l.b16 %v1379
        %v4768 = vunpack.c.h.b16 %v1379
        %v4769 = vunpack.c.l.b16 %v1380
        %v4770 = vunpack.c.h.b16 %v1380
        %v4771 = vunpack.c.l.b16 %v1381
        %v4772 = vunpack.c.h.b16 %v1381
        %v4773 = vunpack.c.l.b16 %v1382
        %v4774 = vunpack.c.h.b16 %v1382
        %v4775 = vunpack.c.l.b16 %v1383
        %v4776 = vunpack.c.h.b16 %v1383
        %v4777 = vunpack.c.l.b16 %v1384
        %v4778 = vunpack.c.h.b16 %v1384
        %v4779 = vunpack.c.l.b16 %v1385
        %v4780 = vunpack.c.h.b16 %v1385
        %v4781 = vunpack.c.l.b16 %v1386
        %v4782 = vunpack.c.h.b16 %v1386
        %v4783 = vunpack.c.l.b16 %v1387
        %v4784 = vunpack.c.h.b16 %v1387
        %v4785 = vunpack.c.l.b16 %v1388
        %v4786 = vunpack.c.h.b16 %v1388
        %v4787 = vunpack.c.l.b16 %v1389
        %v4788 = vunpack.c.h.b16 %v1389
        %v4789 = vunpack.c.l.b16 %v1390
        %v4790 = vunpack.c.h.b16 %v1390
        %v4791 = vunpack.c.l.b16 %v1391
        %v4792 = vunpack.c.h.b16 %v1391
        %v4793 = vunpack.c.l.b16 %v1392
        %v4794 = vunpack.c.h.b16 %v1392
        %v4795 = vunpack.c.l.b16 %v1393
        %v4796 = vunpack.c.h.b16 %v1393
        %v4797 = vunpack.c.l.b16 %v1394
        %v4798 = vunpack.c.h.b16 %v1394
        %v4799 = vunpack.c.l.b16 %v1395
        %v4800 = vunpack.c.h.b16 %v1395
        %v4801 = vunpack.c.l.b16 %v1396
        %v4802 = vunpack.c.h.b16 %v1396
        %v4803 = vunpack.c.l.b16 %v1397
        %v4804 = vunpack.c.h.b16 %v1397
        %v4805 = vunpack.c.l.b16 %v1398
        %v4806 = vunpack.c.h.b16 %v1398
        %v4807 = vunpack.c.l.b16 %v1399
        %v4808 = vunpack.c.h.b16 %v1399
        %v4809 = vunpack.c.l.b16 %v1400
        %v4810 = vunpack.c.h.b16 %v1400
        %v4811 = vunpack.c.l.b16 %v1401
        %v4812 = vunpack.c.h.b16 %v1401
        %v4813 = vunpack.c.l.b16 %v1402
        %v4814 = vunpack.c.h.b16 %v1402
        %v4815 = vunpack.c.l.b16 %v1403
        %v4816 = vunpack.c.h.b16 %v1403
        %v4817 = vunpack.c.l.b16 %v1404
        %v4818 = vunpack.c.h.b16 %v1404
        %v4819 = vunpack.c.l.b16 %v1405
        %v4820 = vunpack.c.h.b16 %v1405
        %v4821 = vunpack.c.l.b16 %v1406
        %v4822 = vunpack.c.h.b16 %v1406
        %v4823 = vunpack.c.l.b16 %v1407
        %v4824 = vunpack.c.h.b16 %v1407
        %v4825 = vunpack.c.l.b16 %v1408
        %v4826 = vunpack.c.h.b16 %v1408
        %v4827 = vunpack.c.l.b16 %v1409
        %v4828 = vunpack.c.h.b16 %v1409
        %v4829 = vunpack.c.l.b16 %v1410
        %v4830 = vunpack.c.h.b16 %v1410
        %v4831 = vunpack.c.l.b16 %v1411
        %v4832 = vunpack.c.h.b16 %v1411
        %v4833 = vunpack.c.l.b16 %v1412
        %v4834 = vunpack.c.h.b16 %v1412
        %v4835 = vunpack.c.l.b16 %v1413
        %v4836 = vunpack.c.h.b16 %v1413
        %v4837 = vunpack.c.l.b16 %v1414
        %v4838 = vunpack.c.h.b16 %v1414
        %v4839 = vunpack.c.l.b16 %v1415
        %v4840 = vunpack.c.h.b16 %v1415
        %v4841 = vunpack.c.l.b16 %v1416
        %v4842 = vunpack.c.h.b16 %v1416
        %v4843 = vunpack.c.l.b16 %v1417
        %v4844 = vunpack.c.h.b16 %v1417
        %v4845 = vunpack.c.l.b16 %v1418
        %v4846 = vunpack.c.h.b16 %v1418
        %v4847 = vunpack.c.l.b16 %v1419
        %v4848 = vunpack.c.h.b16 %v1419
        %v4849 = vunpack.c.l.b16 %v1420
        %v4850 = vunpack.c.h.b16 %v1420
        %v4851 = vunpack.c.l.b16 %v1421
        %v4852 = vunpack.c.h.b16 %v1421
        %v4853 = vunpack.c.l.b16 %v1422
        %v4854 = vunpack.c.h.b16 %v1422
        %v4855 = vunpack.c.l.b16 %v1423
        %v4856 = vunpack.c.h.b16 %v1423
        %v4857 = vunpack.c.l.b16 %v1424
        %v4858 = vunpack.c.h.b16 %v1424
        %v4859 = vunpack.c.l.b16 %v1425
        %v4860 = vunpack.c.h.b16 %v1425
        %v4861 = vunpack.c.l.b16 %v1426
        %v4862 = vunpack.c.h.b16 %v1426
        %v4863 = vunpack.c.l.b16 %v1427
        %v4864 = vunpack.c.h.b16 %v1427
        %v4865 = vunpack.c.l.b16 %v1428
        %v4866 = vunpack.c.h.b16 %v1428
        %v4867 = vunpack.c.l.b16 %v1429
        %v4868 = vunpack.c.h.b16 %v1429
        %v4869 = vunpack.c.l.b16 %v1430
        %v4870 = vunpack.c.h.b16 %v1430
        %v4871 = vunpack.c.l.b16 %v1431
        %v4872 = vunpack.c.h.b16 %v1431
        %v4873 = vunpack.c.l.b16 %v1432
        %v4874 = vunpack.c.h.b16 %v1432
        %v4875 = vunpack.c.l.b16 %v1433
        %v4876 = vunpack.c.h.b16 %v1433
        %v4877 = vunpack.c.l.b16 %v1434
        %v4878 = vunpack.c.h.b16 %v1434
        %v4879 = vunpack.c.l.b16 %v1435
        %v4880 = vunpack.c.h.b16 %v1435
        %v4881 = vunpack.c.l.b16 %v1436
        %v4882 = vunpack.c.h.b16 %v1436
        %v4883 = vunpack.c.l.b16 %v1437
        %v4884 = vunpack.c.h.b16 %v1437
        %v4885 = vunpack.c.l.b16 %v1438
        %v4886 = vunpack.c.h.b16 %v1438
        %v4887 = vunpack.c.l.b16 %v1439
        %v4888 = vunpack.c.h.b16 %v1439
        %v4889 = vunpack.c.l.b16 %v1440
        %v4890 = vunpack.c.h.b16 %v1440
        %v4891 = vunpack.c.l.b16 %v1441
        %v4892 = vunpack.c.h.b16 %v1441
        %v4893 = vunpack.c.l.b16 %v1442
        %v4894 = vunpack.c.h.b16 %v1442
        %v4895 = vunpack.c.l.b16 %v1443
        %v4896 = vunpack.c.h.b16 %v1443
        %v4897 = vunpack.c.l.b16 %v1444
        %v4898 = vunpack.c.h.b16 %v1444
        %v4899 = vunpack.c.l.b16 %v1445
        %v4900 = vunpack.c.h.b16 %v1445
        %v4901 = vunpack.c.l.b16 %v1446
        %v4902 = vunpack.c.h.b16 %v1446
        %v4903 = vunpack.c.l.b16 %v1447
        %v4904 = vunpack.c.h.b16 %v1447
        %v4905 = vunpack.c.l.b16 %v1448
        %v4906 = vunpack.c.h.b16 %v1448
        %v4907 = vunpack.c.l.b16 %v1449
        %v4908 = vunpack.c.h.b16 %v1449
        %v4909 = vunpack.c.l.b16 %v1450
        %v4910 = vunpack.c.h.b16 %v1450
        %v4911 = vunpack.c.l.b16 %v1451
        %v4912 = vunpack.c.h.b16 %v1451
        %v4913 = vunpack.c.l.b16 %v1452
        %v4914 = vunpack.c.h.b16 %v1452
        %v4915 = vunpack.c.l.b16 %v1453
        %v4916 = vunpack.c.h.b16 %v1453
        %v4917 = vunpack.c.l.b16 %v1454
        %v4918 = vunpack.c.h.b16 %v1454
        %v4919 = vunpack.c.l.b16 %v1455
        %v4920 = vunpack.c.h.b16 %v1455
        %v4921 = vunpack.c.l.b16 %v1456
        %v4922 = vunpack.c.h.b16 %v1456
        %v4923 = vunpack.c.l.b16 %v1457
        %v4924 = vunpack.c.h.b16 %v1457
        %v4925 = vunpack.c.l.b16 %v1458
        %v4926 = vunpack.c.h.b16 %v1458
        %v4927 = vunpack.c.l.b16 %v1459
        %v4928 = vunpack.c.h.b16 %v1459
        %v4929 = vunpack.c.l.b16 %v1460
        %v4930 = vunpack.c.h.b16 %v1460
        %v4931 = vunpack.c.l.b16 %v1461
        %v4932 = vunpack.c.h.b16 %v1461
        %v4933 = vunpack.c.l.b16 %v1462
        %v4934 = vunpack.c.h.b16 %v1462
        %v4935 = vunpack.c.l.b16 %v1463
        %v4936 = vunpack.c.h.b16 %v1463
        %v4937 = vunpack.c.l.b16 %v1464
        %v4938 = vunpack.c.h.b16 %v1464
        %v4939 = vunpack.c.l.b16 %v1465
        %v4940 = vunpack.c.h.b16 %v1465
        %v4941 = vunpack.c.l.b16 %v1466
        %v4942 = vunpack.c.h.b16 %v1466
        %v4943 = vunpack.c.l.b16 %v1467
        %v4944 = vunpack.c.h.b16 %v1467
        %v4945 = vunpack.c.l.b16 %v1468
        %v4946 = vunpack.c.h.b16 %v1468
        %v4947 = vunpack.c.l.b16 %v1469
        %v4948 = vunpack.c.h.b16 %v1469
        %v4949 = vunpack.c.l.b16 %v1470
        %v4950 = vunpack.c.h.b16 %v1470
        %v4951 = vunpack.c.l.b16 %v1471
        %v4952 = vunpack.c.h.b16 %v1471
        %v4953 = vunpack.c.l.b16 %v1472
        %v4954 = vunpack.c.h.b16 %v1472
        %v4955 = vunpack.c.l.b16 %v1473
        %v4956 = vunpack.c.h.b16 %v1473
        %v4957 = vunpack.c.l.b16 %v1474
        %v4958 = vunpack.c.h.b16 %v1474
        %v4959 = vunpack.c.l.b16 %v1475
        %v4960 = vunpack.c.h.b16 %v1475
        %v4961 = vunpack.c.l.b16 %v1476
        %v4962 = vunpack.c.h.b16 %v1476
        %v4963 = vunpack.c.l.b16 %v1477
        %v4964 = vunpack.c.h.b16 %v1477
        %v4965 = vunpack.c.l.b16 %v1478
        %v4966 = vunpack.c.h.b16 %v1478
        %v4967 = vunpack.c.l.b16 %v1479
        %v4968 = vunpack.c.h.b16 %v1479
        %v4969 = vunpack.c.l.b16 %v1480
        %v4970 = vunpack.c.h.b16 %v1480
        %v4971 = vunpack.c.l.b16 %v1481
        %v4972 = vunpack.c.h.b16 %v1481
        %v4973 = vunpack.c.l.b16 %v1482
        %v4974 = vunpack.c.h.b16 %v1482
        %v4975 = vunpack.c.l.b16 %v1483
        %v4976 = vunpack.c.h.b16 %v1483
        %v4977 = vunpack.c.l.b16 %v1484
        %v4978 = vunpack.c.h.b16 %v1484
        %v4979 = vunpack.c.l.b16 %v1485
        %v4980 = vunpack.c.h.b16 %v1485
        %v4981 = vunpack.c.l.b16 %v1486
        %v4982 = vunpack.c.h.b16 %v1486
        %v4983 = vunpack.c.l.b16 %v1487
        %v4984 = vunpack.c.h.b16 %v1487
        %v4985 = vunpack.c.l.b16 %v1488
        %v4986 = vunpack.c.h.b16 %v1488
        %v4987 = vunpack.c.l.b16 %v1489
        %v4988 = vunpack.c.h.b16 %v1489
        %v4989 = vunpack.c.l.b16 %v1490
        %v4990 = vunpack.c.h.b16 %v1490
        %v4991 = vunpack.c.l.b16 %v1491
        %v4992 = vunpack.c.h.b16 %v1491
        %v4993 = vunpack.c.l.b16 %v1492
        %v4994 = vunpack.c.h.b16 %v1492
        %v4995 = vunpack.c.l.b16 %v1493
        %v4996 = vunpack.c.h.b16 %v1493
        %v4997 = vunpack.c.l.b16 %v1494
        %v4998 = vunpack.c.h.b16 %v1494
        %v4999 = vunpack.c.l.b16 %v1495
        %v5000 = vunpack.c.h.b16 %v1495
        %v5001 = vunpack.c.l.b16 %v1496
        %v5002 = vunpack.c.h.b16 %v1496
        %v5003 = vunpack.c.l.b16 %v1497
        %v5004 = vunpack.c.h.b16 %v1497
        %v5005 = vunpack.c.l.b16 %v1498
        %v5006 = vunpack.c.h.b16 %v1498
        %v5007 = vunpack.c.l.b16 %v1499
        %v5008 = vunpack.c.h.b16 %v1499
        %v5009 = vunpack.c.l.b16 %v1500
        %v5010 = vunpack.c.h.b16 %v1500
        %v5011 = vunpack.c.l.b16 %v1501
        %v5012 = vunpack.c.h.b16 %v1501
        %v5013 = vunpack.c.l.b16 %v1502
        %v5014 = vunpack.c.h.b16 %v1502
        %v5015 = vunpack.c.l.b16 %v1503
        %v5016 = vunpack.c.h.b16 %v1503
        %v5017 = vunpack.c.l.b16 %v1504
        %v5018 = vunpack.c.h.b16 %v1504
        %v5019 = vunpack.c.l.b16 %v1505
        %v5020 = vunpack.c.h.b16 %v1505
        %v5021 = vunpack.c.l.b16 %v1506
        %v5022 = vunpack.c.h.b16 %v1506
        %v5023 = vunpack.c.l.b16 %v1507
        %v5024 = vunpack.c.h.b16 %v1507
        %v5025 = vunpack.c.l.b16 %v1508
        %v5026 = vunpack.c.h.b16 %v1508
        %v5027 = vunpack.c.l.b16 %v1509
        %v5028 = vunpack.c.h.b16 %v1509
        %v5029 = vunpack.c.l.b16 %v1510
        %v5030 = vunpack.c.h.b16 %v1510
        %v5031 = vunpack.c.l.b16 %v1511
        %v5032 = vunpack.c.h.b16 %v1511
        %v5033 = vunpack.c.l.b16 %v1512
        %v5034 = vunpack.c.h.b16 %v1512
        %v5035 = vunpack.c.l.b16 %v1513
        %v5036 = vunpack.c.h.b16 %v1513
        %v5037 = vunpack.c.l.b16 %v1514
        %v5038 = vunpack.c.h.b16 %v1514
        %v5039 = vunpack.c.l.b16 %v1515
        %v5040 = vunpack.c.h.b16 %v1515
        %v5041 = vunpack.c.l.b16 %v1516
        %v5042 = vunpack.c.h.b16 %v1516
        %v5043 = vunpack.c.l.b16 %v1517
        %v5044 = vunpack.c.h.b16 %v1517
        %v5045 = vunpack.c.l.b16 %v1518
        %v5046 = vunpack.c.h.b16 %v1518
        %v5047 = vunpack.c.l.b16 %v1519
        %v5048 = vunpack.c.h.b16 %v1519
        %v5049 = vunpack.c.l.b16 %v1520
        %v5050 = vunpack.c.h.b16 %v1520
        %v5051 = vunpack.c.l.b16 %v1521
        %v5052 = vunpack.c.h.b16 %v1521
        %v5053 = vunpack.c.l.b16 %v1522
        %v5054 = vunpack.c.h.b16 %v1522
        %v5055 = vunpack.c.l.b16 %v1523
        %v5056 = vunpack.c.h.b16 %v1523
        %v5057 = vunpack.c.l.b16 %v1524
        %v5058 = vunpack.c.h.b16 %v1524
        %v5059 = vunpack.c.l.b16 %v1525
        %v5060 = vunpack.c.h.b16 %v1525
        %v5061 = vunpack.c.l.b16 %v1526
        %v5062 = vunpack.c.h.b16 %v1526
        %v5063 = vunpack.c.l.b16 %v1527
        %v5064 = vunpack.c.h.b16 %v1527
        %v5065 = vunpack.c.l.b16 %v1528
        %v5066 = vunpack.c.h.b16 %v1528
        %v5067 = vunpack.c.l.b16 %v1529
        %v5068 = vunpack.c.h.b16 %v1529
        %v5069 = vunpack.c.l.b16 %v1530
        %v5070 = vunpack.c.h.b16 %v1530
        %v5071 = vunpack.c.l.b16 %v1531
        %v5072 = vunpack.c.h.b16 %v1531
        %v5073 = vunpack.c.l.b16 %v1532
        %v5074 = vunpack.c.h.b16 %v1532
        %v5075 = vunpack.c.l.b16 %v1533
        %v5076 = vunpack.c.h.b16 %v1533
        %v5077 = vunpack.c.l.b16 %v1534
        %v5078 = vunpack.c.h.b16 %v1534
        %v5079 = vunpack.c.l.b16 %v1535
        %v5080 = vunpack.c.h.b16 %v1535
        %v5081 = vunpack.c.l.b16 %v1536
        %v5082 = vunpack.c.h.b16 %v1536
        %v5083 = vunpack.c.l.b16 %v1537
        %v5084 = vunpack.c.h.b16 %v1537
        %v5085 = vunpack.c.l.b16 %v1538
        %v5086 = vunpack.c.h.b16 %v1538
        %v5087 = vunpack.c.l.b16 %v1539
        %v5088 = vunpack.c.h.b16 %v1539
        %v5089 = vunpack.c.l.b16 %v1540
        %v5090 = vunpack.c.h.b16 %v1540
        %v5091 = vunpack.c.l.b16 %v1541
        %v5092 = vunpack.c.h.b16 %v1541
        %v5093 = vunpack.c.l.b16 %v1542
        %v5094 = vunpack.c.h.b16 %v1542
        %v5095 = vunpack.c.l.b16 %v1543
        %v5096 = vunpack.c.h.b16 %v1543
        %v5097 = vunpack.c.l.b16 %v1544
        %v5098 = vunpack.c.h.b16 %v1544
        %v5099 = vunpack.c.l.b16 %v1545
        %v5100 = vunpack.c.h.b16 %v1545
        %v5101 = vunpack.c.l.b16 %v1546
        %v5102 = vunpack.c.h.b16 %v1546
        %v5103 = vunpack.c.l.b16 %v1547
        %v5104 = vunpack.c.h.b16 %v1547
        %v5105 = vunpack.c.l.b16 %v1548
        %v5106 = vunpack.c.h.b16 %v1548
        %v5107 = vunpack.c.l.b16 %v1549
        %v5108 = vunpack.c.h.b16 %v1549
        %v5109 = vunpack.c.l.b16 %v1550
        %v5110 = vunpack.c.h.b16 %v1550
        %v5111 = vunpack.c.l.b16 %v1551
        %v5112 = vunpack.c.h.b16 %v1551
        %v5113 = vunpack.c.l.b16 %v1552
        %v5114 = vunpack.c.h.b16 %v1552
        %v5115 = vunpack.c.l.b16 %v1553
        %v5116 = vunpack.c.h.b16 %v1553
        %v5117 = vunpack.c.l.b16 %v1554
        %v5118 = vunpack.c.h.b16 %v1554
        %v5119 = vunpack.c.l.b16 %v1555
        %v5120 = vunpack.c.h.b16 %v1555
        %v5121 = vunpack.c.l.b16 %v1556
        %v5122 = vunpack.c.h.b16 %v1556
        %v5123 = vunpack.c.l.b16 %v1557
        %v5124 = vunpack.c.h.b16 %v1557
        %v5125 = vunpack.c.l.b16 %v1558
        %v5126 = vunpack.c.h.b16 %v1558
        %v5127 = vunpack.c.l.b16 %v1559
        %v5128 = vunpack.c.h.b16 %v1559
        %v5129 = vunpack.c.l.b16 %v1560
        %v5130 = vunpack.c.h.b16 %v1560
        %v5131 = vunpack.c.l.b16 %v1561
        %v5132 = vunpack.c.h.b16 %v1561
        %v5133 = vunpack.c.l.b16 %v1562
        %v5134 = vunpack.c.h.b16 %v1562
        %v5135 = vunpack.c.l.b16 %v1563
        %v5136 = vunpack.c.h.b16 %v1563
        %v5137 = vunpack.c.l.b16 %v1564
        %v5138 = vunpack.c.h.b16 %v1564
        %v5139 = vunpack.c.l.b16 %v1565
        %v5140 = vunpack.c.h.b16 %v1565
        %v5141 = vunpack.c.l.b16 %v1566
        %v5142 = vunpack.c.h.b16 %v1566
        %v5143 = vunpack.c.l.b16 %v1567
        %v5144 = vunpack.c.h.b16 %v1567
        %v5145 = vunpack.c.l.b16 %v1568
        %v5146 = vunpack.c.h.b16 %v1568
        %v5147 = vunpack.c.l.b16 %v1569
        %v5148 = vunpack.c.h.b16 %v1569
        %v5149 = vunpack.c.l.b16 %v1570
        %v5150 = vunpack.c.h.b16 %v1570
        %v5151 = vunpack.c.l.b16 %v1571
        %v5152 = vunpack.c.h.b16 %v1571
        %v5153 = vunpack.c.l.b16 %v1572
        %v5154 = vunpack.c.h.b16 %v1572
        %v5155 = vunpack.c.l.b16 %v1573
        %v5156 = vunpack.c.h.b16 %v1573
        %v5157 = vunpack.c.l.b16 %v1574
        %v5158 = vunpack.c.h.b16 %v1574
        %v5159 = vunpack.c.l.b16 %v1575
        %v5160 = vunpack.c.h.b16 %v1575
        %v5161 = vunpack.c.l.b16 %v1576
        %v5162 = vunpack.c.h.b16 %v1576
        %v5163 = vunpack.c.l.b16 %v1577
        %v5164 = vunpack.c.h.b16 %v1577
        %v5165 = vunpack.c.l.b16 %v1578
        %v5166 = vunpack.c.h.b16 %v1578
        %v5167 = vunpack.c.l.b16 %v1579
        %v5168 = vunpack.c.h.b16 %v1579
        %v5169 = vunpack.c.l.b16 %v1580
        %v5170 = vunpack.c.h.b16 %v1580
        %v5171 = vunpack.c.l.b16 %v1581
        %v5172 = vunpack.c.h.b16 %v1581
        %v5173 = vunpack.c.l.b16 %v1582
        %v5174 = vunpack.c.h.b16 %v1582
        %v5175 = vunpack.c.l.b16 %v1583
        %v5176 = vunpack.c.h.b16 %v1583
        %v5177 = vunpack.c.l.b16 %v1584
        %v5178 = vunpack.c.h.b16 %v1584
        %v5179 = vunpack.c.l.b16 %v1585
        %v5180 = vunpack.c.h.b16 %v1585
        %v5181 = vunpack.c.l.b16 %v1586
        %v5182 = vunpack.c.h.b16 %v1586
        %v5183 = vunpack.c.l.b16 %v1587
        %v5184 = vunpack.c.h.b16 %v1587
        %v5185 = vunpack.c.l.b16 %v1588
        %v5186 = vunpack.c.h.b16 %v1588
        %v5187 = vunpack.c.l.b16 %v1589
        %v5188 = vunpack.c.h.b16 %v1589
        %v5189 = vunpack.c.l.b16 %v1590
        %v5190 = vunpack.c.h.b16 %v1590
        %v5191 = vunpack.c.l.b16 %v1591
        %v5192 = vunpack.c.h.b16 %v1591
        %v5193 = vunpack.c.l.b16 %v1592
        %v5194 = vunpack.c.h.b16 %v1592
        %v5195 = vunpack.c.l.b16 %v1593
        %v5196 = vunpack.c.h.b16 %v1593
        %v5197 = vunpack.c.l.b16 %v1594
        %v5198 = vunpack.c.h.b16 %v1594
        %v5199 = vunpack.c.l.b16 %v1595
        %v5200 = vunpack.c.h.b16 %v1595
        %v5201 = vunpack.c.l.b16 %v1596
        %v5202 = vunpack.c.h.b16 %v1596
        %v5203 = vunpack.c.l.b16 %v1597
        %v5204 = vunpack.c.h.b16 %v1597
        %v5205 = vunpack.c.l.b16 %v1598
        %v5206 = vunpack.c.h.b16 %v1598
        %v5207 = vunpack.c.l.b16 %v1599
        %v5208 = vunpack.c.h.b16 %v1599
        %v5209 = vunpack.c.l.b16 %v1600
        %v5210 = vunpack.c.h.b16 %v1600
        %v5211 = vunpack.c.l.b16 %v1601
        %v5212 = vunpack.c.h.b16 %v1601
        %v5213 = vunpack.c.l.b16 %v1602
        %v5214 = vunpack.c.h.b16 %v1602
        %v5215 = vunpack.c.l.b16 %v1603
        %v5216 = vunpack.c.h.b16 %v1603
        %v5217 = vunpack.c.l.b16 %v1604
        %v5218 = vunpack.c.h.b16 %v1604
        %v5219 = vunpack.c.l.b16 %v1605
        %v5220 = vunpack.c.h.b16 %v1605
        %v5221 = vunpack.c.l.b16 %v1606
        %v5222 = vunpack.c.h.b16 %v1606
        %v5223 = vunpack.c.l.b16 %v1607
        %v5224 = vunpack.c.h.b16 %v1607
        %v5225 = vunpack.c.l.b16 %v1608
        %v5226 = vunpack.c.h.b16 %v1608
        %v5227 = vunpack.c.l.b16 %v1609
        %v5228 = vunpack.c.h.b16 %v1609
        %v5229 = vunpack.c.l.b16 %v1610
        %v5230 = vunpack.c.h.b16 %v1610
        %v5231 = vunpack.c.l.b16 %v1611
        %v5232 = vunpack.c.h.b16 %v1611
        %v5233 = vunpack.c.l.b16 %v1612
        %v5234 = vunpack.c.h.b16 %v1612
        %v5235 = vunpack.c.l.b16 %v1613
        %v5236 = vunpack.c.h.b16 %v1613
        %v5237 = vunpack.c.l.b16 %v1614
        %v5238 = vunpack.c.h.b16 %v1614
        %v5239 = vunpack.c.l.b16 %v1615
        %v5240 = vunpack.c.h.b16 %v1615
        %v5241 = vunpack.c.l.b16 %v1616
        %v5242 = vunpack.c.h.b16 %v1616
        %v5243 = vunpack.c.l.b16 %v1617
        %v5244 = vunpack.c.h.b16 %v1617
        %v5245 = vunpack.c.l.b16 %v1618
        %v5246 = vunpack.c.h.b16 %v1618
        %v5247 = vunpack.c.l.b16 %v1619
        %v5248 = vunpack.c.h.b16 %v1619
        %v5249 = vunpack.c.l.b16 %v1620
        %v5250 = vunpack.c.h.b16 %v1620
        %v5251 = vunpack.c.l.b16 %v1621
        %v5252 = vunpack.c.h.b16 %v1621
        %v5253 = vunpack.c.l.b16 %v1622
        %v5254 = vunpack.c.h.b16 %v1622
        %v5255 = vunpack.c.l.b16 %v1623
        %v5256 = vunpack.c.h.b16 %v1623
        %v5257 = vunpack.c.l.b16 %v1624
        %v5258 = vunpack.c.h.b16 %v1624
        %v5259 = vunpack.c.l.b16 %v1625
        %v5260 = vunpack.c.h.b16 %v1625
        %v5261 = vunpack.c.l.b16 %v1626
        %v5262 = vunpack.c.h.b16 %v1626
        %v5263 = vunpack.c.l.b16 %v1627
        %v5264 = vunpack.c.h.b16 %v1627
        %v5265 = vunpack.c.l.b16 %v1628
        %v5266 = vunpack.c.h.b16 %v1628
        %v5267 = vunpack.c.l.b16 %v1629
        %v5268 = vunpack.c.h.b16 %v1629
        %v5269 = vunpack.c.l.b16 %v1630
        %v5270 = vunpack.c.h.b16 %v1630
        %v5271 = vunpack.c.l.b16 %v1631
        %v5272 = vunpack.c.h.b16 %v1631
        %v5273 = vunpack.c.l.b16 %v1632
        %v5274 = vunpack.c.h.b16 %v1632
        %v5275 = vunpack.c.l.b16 %v1633
        %v5276 = vunpack.c.h.b16 %v1633
        %v5277 = vunpack.c.l.b16 %v1634
        %v5278 = vunpack.c.h.b16 %v1634
        %v5279 = vunpack.c.l.b16 %v1635
        %v5280 = vunpack.c.h.b16 %v1635
        %v5281 = vunpack.c.l.b16 %v1636
        %v5282 = vunpack.c.h.b16 %v1636
        %v5283 = vunpack.c.l.b16 %v1637
        %v5284 = vunpack.c.h.b16 %v1637
        %v5285 = vunpack.c.l.b16 %v1638
        %v5286 = vunpack.c.h.b16 %v1638
        %v5287 = vunpack.c.l.b16 %v1639
        %v5288 = vunpack.c.h.b16 %v1639
        %v5289 = vunpack.c.l.b16 %v1640
        %v5290 = vunpack.c.h.b16 %v1640
        %v5291 = vunpack.c.l.b16 %v1641
        %v5292 = vunpack.c.h.b16 %v1641
        %v5293 = vunpack.c.l.b16 %v1642
        %v5294 = vunpack.c.h.b16 %v1642
        %v5295 = vunpack.c.l.b16 %v1643
        %v5296 = vunpack.c.h.b16 %v1643
        %v5297 = vunpack.c.l.b16 %v1644
        %v5298 = vunpack.c.h.b16 %v1644
        %v5299 = vunpack.c.l.b16 %v1645
        %v5300 = vunpack.c.h.b16 %v1645
        %v5301 = vunpack.c.l.b16 %v1646
        %v5302 = vunpack.c.h.b16 %v1646
        %v5303 = vunpack.c.l.b16 %v1647
        %v5304 = vunpack.c.h.b16 %v1647
        %v5305 = vunpack.c.l.b16 %v1648
        %v5306 = vunpack.c.h.b16 %v1648
        %v5307 = vunpack.c.l.b16 %v1649
        %v5308 = vunpack.c.h.b16 %v1649
        %v5309 = vunpack.c.l.b16 %v1650
        %v5310 = vunpack.c.h.b16 %v1650
        %v5311 = vunpack.c.l.b16 %v1651
        %v5312 = vunpack.c.h.b16 %v1651
        %v5313 = vunpack.c.l.b16 %v1652
        %v5314 = vunpack.c.h.b16 %v1652
        %v5315 = vunpack.c.l.b16 %v1653
        %v5316 = vunpack.c.h.b16 %v1653
        %v5317 = vunpack.c.l.b16 %v1654
        %v5318 = vunpack.c.h.b16 %v1654
        %v5319 = vunpack.c.l.b16 %v1655
        %v5320 = vunpack.c.h.b16 %v1655
        %v5321 = vunpack.c.l.b16 %v1656
        %v5322 = vunpack.c.h.b16 %v1656
        %v5323 = vunpack.c.l.b16 %v1657
        %v5324 = vunpack.c.h.b16 %v1657
        %v5325 = vunpack.c.l.b16 %v1658
        %v5326 = vunpack.c.h.b16 %v1658
        %v5327 = vunpack.c.l.b16 %v1659
        %v5328 = vunpack.c.h.b16 %v1659
        %v5329 = vunpack.c.l.b16 %v1660
        %v5330 = vunpack.c.h.b16 %v1660
        %v5331 = vunpack.c.l.b16 %v1661
        %v5332 = vunpack.c.h.b16 %v1661
        %v5333 = vunpack.c.l.b16 %v1662
        %v5334 = vunpack.c.h.b16 %v1662
        %v5335 = vunpack.c.l.b16 %v1663
        %v5336 = vunpack.c.h.b16 %v1663
        %v5337 = vunpack.c.l.b16 %v1664
        %v5338 = vunpack.c.h.b16 %v1664
        %v5339 = vunpack.c.l.b16 %v1665
        %v5340 = vunpack.c.h.b16 %v1665
        %v5341 = vunpack.c.l.b16 %v1666
        %v5342 = vunpack.c.h.b16 %v1666
        %v5343 = vunpack.c.l.b16 %v1667
        %v5344 = vunpack.c.h.b16 %v1667
        %v5345 = vunpack.c.l.b16 %v1668
        %v5346 = vunpack.c.h.b16 %v1668
        %v5347 = vunpack.c.l.b16 %v1669
        %v5348 = vunpack.c.h.b16 %v1669
        %v5349 = vunpack.c.l.b16 %v1670
        %v5350 = vunpack.c.h.b16 %v1670
        %v5351 = vunpack.c.l.b16 %v1671
        %v5352 = vunpack.c.h.b16 %v1671
        %v5353 = vunpack.c.l.b16 %v1672
        %v5354 = vunpack.c.h.b16 %v1672
        %v5355 = vunpack.c.l.b16 %v1673
        %v5356 = vunpack.c.h.b16 %v1673
        %v5357 = vunpack.c.l.b16 %v1674
        %v5358 = vunpack.c.h.b16 %v1674
        %v5359 = vunpack.c.l.b16 %v1675
        %v5360 = vunpack.c.h.b16 %v1675
        %v5361 = vunpack.c.l.b16 %v1676
        %v5362 = vunpack.c.h.b16 %v1676
        %v5363 = vunpack.c.l.b16 %v1677
        %v5364 = vunpack.c.h.b16 %v1677
        %v5365 = vunpack.c.l.b16 %v1678
        %v5366 = vunpack.c.h.b16 %v1678
        %v5367 = vunpack.c.l.b16 %v1679
        %v5368 = vunpack.c.h.b16 %v1679
        %v5369 = vunpack.c.l.b16 %v1680
        %v5370 = vunpack.c.h.b16 %v1680
        %v5371 = vunpack.c.l.b16 %v1681
        %v5372 = vunpack.c.h.b16 %v1681
        %v5373 = vunpack.c.l.b16 %v1682
        %v5374 = vunpack.c.h.b16 %v1682
        %v5375 = vunpack.c.l.b16 %v1683
        %v5376 = vunpack.c.h.b16 %v1683
        %v5377 = vunpack.c.l.b16 %v1684
        %v5378 = vunpack.c.h.b16 %v1684
        %v5379 = vunpack.c.l.b16 %v1685
        %v5380 = vunpack.c.h.b16 %v1685
        %v5381 = vunpack.c.l.b16 %v1686
        %v5382 = vunpack.c.h.b16 %v1686
        %v5383 = vunpack.c.l.b16 %v1687
        %v5384 = vunpack.c.h.b16 %v1687
        %v5385 = vunpack.c.l.b16 %v1688
        %v5386 = vunpack.c.h.b16 %v1688
        %v5387 = vunpack.c.l.b16 %v1689
        %v5388 = vunpack.c.h.b16 %v1689
        %v5389 = vunpack.c.l.b16 %v1690
        %v5390 = vunpack.c.h.b16 %v1690
        %v5391 = vunpack.c.l.b16 %v1691
        %v5392 = vunpack.c.h.b16 %v1691
        %v5393 = vunpack.c.l.b16 %v1692
        %v5394 = vunpack.c.h.b16 %v1692
        %v5395 = vunpack.c.l.b16 %v1693
        %v5396 = vunpack.c.h.b16 %v1693
        %v5397 = vunpack.c.l.b16 %v1694
        %v5398 = vunpack.c.h.b16 %v1694
        %v5399 = vunpack.c.l.b16 %v1695
        %v5400 = vunpack.c.h.b16 %v1695
        %v5401 = vunpack.c.l.b16 %v1696
        %v5402 = vunpack.c.h.b16 %v1696
        %v5403 = vunpack.c.l.b16 %v1697
        %v5404 = vunpack.c.h.b16 %v1697
        %v5405 = vunpack.c.l.b16 %v1698
        %v5406 = vunpack.c.h.b16 %v1698
        %v5407 = vunpack.c.l.b16 %v1699
        %v5408 = vunpack.c.h.b16 %v1699
        %v5409 = vunpack.c.l.b16 %v1700
        %v5410 = vunpack.c.h.b16 %v1700
        %v5411 = vunpack.c.l.b16 %v1701
        %v5412 = vunpack.c.h.b16 %v1701
        %v5413 = vunpack.c.l.b16 %v1702
        %v5414 = vunpack.c.h.b16 %v1702
        %v5415 = vunpack.c.l.b16 %v1703
        %v5416 = vunpack.c.h.b16 %v1703
        %v5417 = vunpack.c.l.b16 %v1704
        %v5418 = vunpack.c.h.b16 %v1704
        %v5419 = vunpack.c.l.b16 %v1705
        %v5420 = vunpack.c.h.b16 %v1705
        %v5421 = vunpack.c.l.b16 %v1706
        %v5422 = vunpack.c.h.b16 %v1706
        %v5423 = vunpack.c.l.b16 %v1707
        %v5424 = vunpack.c.h.b16 %v1707
        %v5425 = vunpack.c.l.b16 %v1708
        %v5426 = vunpack.c.h.b16 %v1708
        %v5427 = vunpack.c.l.b16 %v1709
        %v5428 = vunpack.c.h.b16 %v1709
        %v5429 = vunpack.c.l.b16 %v1710
        %v5430 = vunpack.c.h.b16 %v1710
        %v5431 = vunpack.c.l.b16 %v1711
        %v5432 = vunpack.c.h.b16 %v1711
        %v5433 = vunpack.c.l.b16 %v1712
        %v5434 = vunpack.c.h.b16 %v1712
        %v5435 = vunpack.c.l.b16 %v1713
        %v5436 = vunpack.c.h.b16 %v1713
        %v5437 = vunpack.c.l.b16 %v1714
        %v5438 = vunpack.c.h.b16 %v1714
        %v5439 = vunpack.c.l.b16 %v1715
        %v5440 = vunpack.c.h.b16 %v1715
        %v5441 = vunpack.c.l.b16 %v1716
        %v5442 = vunpack.c.h.b16 %v1716
        %v5443 = vunpack.c.l.b16 %v1717
        %v5444 = vunpack.c.h.b16 %v1717
        %v5445 = vunpack.c.l.b16 %v1718
        %v5446 = vunpack.c.h.b16 %v1718
        %v5447 = vunpack.c.l.b16 %v1719
        %v5448 = vunpack.c.h.b16 %v1719
        %v5449 = vunpack.c.l.b16 %v1720
        %v5450 = vunpack.c.h.b16 %v1720
        %v5451 = vunpack.c.l.b16 %v1721
        %v5452 = vunpack.c.h.b16 %v1721
        %v5453 = vunpack.c.l.b16 %v1722
        %v5454 = vunpack.c.h.b16 %v1722
        %v5455 = vunpack.c.l.b16 %v1723
        %v5456 = vunpack.c.h.b16 %v1723
        %v5457 = vunpack.c.l.b16 %v1724
        %v5458 = vunpack.c.h.b16 %v1724
        %v5459 = vunpack.c.l.b16 %v1725
        %v5460 = vunpack.c.h.b16 %v1725
        %v5461 = vunpack.c.l.b16 %v1726
        %v5462 = vunpack.c.h.b16 %v1726
        %v5463 = vunpack.c.l.b16 %v1727
        %v5464 = vunpack.c.h.b16 %v1727
        %v5465 = vunpack.c.l.b16 %v1728
        %v5466 = vunpack.c.h.b16 %v1728
        %v5467 = vunpack.c.l.b16 %v1729
        %v5468 = vunpack.c.h.b16 %v1729
        %v5469 = vunpack.c.l.b16 %v1730
        %v5470 = vunpack.c.h.b16 %v1730
        %v5471 = vunpack.c.l.b16 %v1731
        %v5472 = vunpack.c.h.b16 %v1731
        %v5473 = vunpack.c.l.b16 %v1732
        %v5474 = vunpack.c.h.b16 %v1732
        %v5475 = vunpack.c.l.b16 %v1733
        %v5476 = vunpack.c.h.b16 %v1733
        %v5477 = vunpack.c.l.b16 %v1734
        %v5478 = vunpack.c.h.b16 %v1734
        %v5479 = vunpack.c.l.b16 %v1735
        %v5480 = vunpack.c.h.b16 %v1735
        %v5481 = vunpack.c.l.b16 %v1736
        %v5482 = vunpack.c.h.b16 %v1736
        %v5483 = vunpack.c.l.b16 %v1737
        %v5484 = vunpack.c.h.b16 %v1737
        %v5485 = vunpack.c.l.b16 %v1738
        %v5486 = vunpack.c.h.b16 %v1738
        %v5487 = vunpack.c.l.b16 %v1739
        %v5488 = vunpack.c.h.b16 %v1739
        %v5489 = vunpack.c.l.b16 %v1740
        %v5490 = vunpack.c.h.b16 %v1740
        %v5491 = vunpack.c.l.b16 %v1741
        %v5492 = vunpack.c.h.b16 %v1741
        %v5493 = vunpack.c.l.b16 %v1742
        %v5494 = vunpack.c.h.b16 %v1742
        %v5495 = vunpack.c.l.b16 %v1743
        %v5496 = vunpack.c.h.b16 %v1743
        %v5497 = vunpack.c.l.b16 %v1744
        %v5498 = vunpack.c.h.b16 %v1744
        %v5499 = vunpack.c.l.b16 %v1745
        %v5500 = vunpack.c.h.b16 %v1745
        %v5501 = vunpack.c.l.b16 %v1746
        %v5502 = vunpack.c.h.b16 %v1746
        %v5503 = vunpack.c.l.b16 %v1747
        %v5504 = vunpack.c.h.b16 %v1747
        %v5505 = vunpack.c.l.b16 %v1748
        %v5506 = vunpack.c.h.b16 %v1748
        %v5507 = vunpack.c.l.b16 %v1749
        %v5508 = vunpack.c.h.b16 %v1749
        %v5509 = vunpack.c.l.b16 %v1750
        %v5510 = vunpack.c.h.b16 %v1750
        %v5511 = vunpack.c.l.b16 %v1751
        %v5512 = vunpack.c.h.b16 %v1751
        %v5513 = vunpack.c.l.b16 %v1752
        %v5514 = vunpack.c.h.b16 %v1752
        %v5515 = vunpack.c.l.b16 %v1753
        %v5516 = vunpack.c.h.b16 %v1753
        %v5517 = vunpack.c.l.b16 %v1754
        %v5518 = vunpack.c.h.b16 %v1754
        %v5519 = vunpack.c.l.b16 %v1755
        %v5520 = vunpack.c.h.b16 %v1755
        %v5521 = vunpack.c.l.b16 %v1756
        %v5522 = vunpack.c.h.b16 %v1756
        %v5523 = vunpack.c.l.b16 %v1757
        %v5524 = vunpack.c.h.b16 %v1757
        %v5525 = vunpack.c.l.b16 %v1758
        %v5526 = vunpack.c.h.b16 %v1758
        %v5527 = vunpack.c.l.b16 %v1759
        %v5528 = vunpack.c.h.b16 %v1759
        %v5529 = vunpack.c.l.b16 %v1760
        %v5530 = vunpack.c.h.b16 %v1760
        %v5531 = vunpack.c.l.b16 %v1761
        %v5532 = vunpack.c.h.b16 %v1761
        %v5533 = vunpack.c.l.b16 %v1762
        %v5534 = vunpack.c.h.b16 %v1762
        %v5535 = vunpack.c.l.b16 %v1763
        %v5536 = vunpack.c.h.b16 %v1763
        %v5537 = vunpack.c.l.b16 %v1764
        %v5538 = vunpack.c.h.b16 %v1764
        %v5539 = vunpack.c.l.b16 %v1765
        %v5540 = vunpack.c.h.b16 %v1765
        %v5541 = vunpack.c.l.b16 %v1766
        %v5542 = vunpack.c.h.b16 %v1766
        %v5543 = vunpack.c.l.b16 %v1767
        %v5544 = vunpack.c.h.b16 %v1767
        %v5545 = vunpack.c.l.b16 %v1768
        %v5546 = vunpack.c.h.b16 %v1768
        %v5547 = vunpack.c.l.b16 %v1769
        %v5548 = vunpack.c.h.b16 %v1769
        %v5549 = vunpack.c.l.b16 %v1770
        %v5550 = vunpack.c.h.b16 %v1770
        %v5551 = vunpack.c.l.b16 %v1771
        %v5552 = vunpack.c.h.b16 %v1771
        %v5553 = vunpack.c.l.b16 %v1772
        %v5554 = vunpack.c.h.b16 %v1772
        %v5555 = vunpack.c.l.b16 %v1773
        %v5556 = vunpack.c.h.b16 %v1773
        %v5557 = vunpack.c.l.b16 %v1774
        %v5558 = vunpack.c.h.b16 %v1774
        %v5559 = vunpack.c.l.b16 %v1775
        %v5560 = vunpack.c.h.b16 %v1775
        %v5561 = vunpack.c.l.b16 %v1776
        %v5562 = vunpack.c.h.b16 %v1776
        %v5563 = vunpack.c.l.b16 %v1777
        %v5564 = vunpack.c.h.b16 %v1777
        %v5565 = vunpack.c.l.b16 %v1778
        %v5566 = vunpack.c.h.b16 %v1778
        %v5567 = vunpack.c.l.b16 %v1779
        %v5568 = vunpack.c.h.b16 %v1779
        %v5569 = vunpack.c.l.b16 %v1780
        %v5570 = vunpack.c.h.b16 %v1780
        %v5571 = vunpack.c.l.b16 %v1781
        %v5572 = vunpack.c.h.b16 %v1781
        %v5573 = vunpack.c.l.b16 %v1782
        %v5574 = vunpack.c.h.b16 %v1782
        %v5575 = vunpack.c.l.b16 %v1783
        %v5576 = vunpack.c.h.b16 %v1783
        %v5577 = vunpack.c.l.b16 %v1784
        %v5578 = vunpack.c.h.b16 %v1784
        %v5579 = vunpack.c.l.b16 %v1785
        %v5580 = vunpack.c.h.b16 %v1785
        %v5581 = vunpack.c.l.b16 %v1786
        %v5582 = vunpack.c.h.b16 %v1786
        %v5583 = vunpack.c.l.b16 %v1787
        %v5584 = vunpack.c.h.b16 %v1787
        %v5585 = vunpack.c.l.b16 %v1788
        %v5586 = vunpack.c.h.b16 %v1788
        %v5587 = vunpack.c.l.b16 %v1789
        %v5588 = vunpack.c.h.b16 %v1789
        %v5589 = vunpack.c.l.b16 %v1790
        %v5590 = vunpack.c.h.b16 %v1790
        %v5591 = vunpack.c.l.b16 %v1791
        %v5592 = vunpack.c.h.b16 %v1791
        %v5593 = vunpack.c.l.b16 %v1792
        %v5594 = vunpack.c.h.b16 %v1792
        %v5595 = vunpack.c.l.b16 %v1793
        %v5596 = vunpack.c.h.b16 %v1793
        %v5597 = vunpack.c.l.b16 %v1794
        %v5598 = vunpack.c.h.b16 %v1794
        %v5599 = vunpack.c.l.b16 %v1795
        %v5600 = vunpack.c.h.b16 %v1795
        %v5601 = vunpack.c.l.b16 %v1796
        %v5602 = vunpack.c.h.b16 %v1796
        %v5603 = vunpack.c.l.b16 %v1797
        %v5604 = vunpack.c.h.b16 %v1797
        %v5605 = vunpack.c.l.b16 %v1798
        %v5606 = vunpack.c.h.b16 %v1798
        %v5607 = vunpack.c.l.b16 %v1799
        %v5608 = vunpack.c.h.b16 %v1799
        %v5609 = vunpack.c.l.b16 %v1800
        %v5610 = vunpack.c.h.b16 %v1800
        %v5611 = vunpack.c.l.b16 %v1801
        %v5612 = vunpack.c.h.b16 %v1801
        %v5613 = vunpack.c.l.b16 %v1802
        %v5614 = vunpack.c.h.b16 %v1802
        %v5615 = vunpack.c.l.b16 %v1803
        %v5616 = vunpack.c.h.b16 %v1803
        %v5617 = vunpack.c.l.b16 %v1804
        %v5618 = vunpack.c.h.b16 %v1804
        %v5619 = vunpack.c.l.b16 %v1805
        %v5620 = vunpack.c.h.b16 %v1805
        %v5621 = vunpack.c.l.b16 %v1806
        %v5622 = vunpack.c.h.b16 %v1806
        %v5623 = vunpack.c.l.b16 %v1807
        %v5624 = vunpack.c.h.b16 %v1807
        %v5625 = vunpack.c.l.b16 %v1808
        %v5626 = vunpack.c.h.b16 %v1808
        %v5627 = vunpack.c.l.b16 %v1809
        %v5628 = vunpack.c.h.b16 %v1809
        %v5629 = vunpack.c.l.b16 %v1810
        %v5630 = vunpack.c.h.b16 %v1810
        %v5631 = vunpack.c.l.b16 %v1811
        %v5632 = vunpack.c.h.b16 %v1811
        %v5633 = vunpack.c.l.b16 %v1812
        %v5634 = vunpack.c.h.b16 %v1812
        %v5635 = vunpack.c.l.b16 %v1813
        %v5636 = vunpack.c.h.b16 %v1813
        %v5637 = vunpack.c.l.b16 %v1814
        %v5638 = vunpack.c.h.b16 %v1814
        %v5639 = vunpack.c.l.b16 %v1815
        %v5640 = vunpack.c.h.b16 %v1815
        %v5641 = vunpack.c.l.b16 %v1816
        %v5642 = vunpack.c.h.b16 %v1816
        %v5643 = vunpack.c.l.b16 %v1817
        %v5644 = vunpack.c.h.b16 %v1817
        %v5645 = vunpack.c.l.b16 %v1818
        %v5646 = vunpack.c.h.b16 %v1818
        %v5647 = vunpack.c.l.b16 %v1819
        %v5648 = vunpack.c.h.b16 %v1819
        %v5649 = vunpack.c.l.b16 %v1820
        %v5650 = vunpack.c.h.b16 %v1820
        %v5651 = vunpack.c.l.b16 %v1821
        %v5652 = vunpack.c.h.b16 %v1821
        %v5653 = vunpack.c.l.b16 %v1822
        %v5654 = vunpack.c.h.b16 %v1822
        %v5655 = vunpack.c.l.b16 %v1823
        %v5656 = vunpack.c.h.b16 %v1823
        %v5657 = vunpack.c.l.b16 %v1824
        %v5658 = vunpack.c.h.b16 %v1824
        %v5659 = vunpack.c.l.b16 %v1825
        %v5660 = vunpack.c.h.b16 %v1825
        %v5661 = vunpack.c.l.b16 %v1826
        %v5662 = vunpack.c.h.b16 %v1826
        %v5663 = vunpack.c.l.b16 %v1827
        %v5664 = vunpack.c.h.b16 %v1827
        %v5665 = vunpack.c.l.b16 %v1828
        %v5666 = vunpack.c.h.b16 %v1828
        %v5667 = vunpack.c.l.b16 %v1829
        %v5668 = vunpack.c.h.b16 %v1829
        %v5669 = vunpack.c.l.b16 %v1830
        %v5670 = vunpack.c.h.b16 %v1830
        %v5671 = vunpack.c.l.b16 %v1831
        %v5672 = vunpack.c.h.b16 %v1831
        %v5673 = vunpack.c.l.b16 %v1832
        %v5674 = vunpack.c.h.b16 %v1832
        %v5675 = vunpack.c.l.b16 %v1833
        %v5676 = vunpack.c.h.b16 %v1833
        %v5677 = vunpack.c.l.b16 %v1834
        %v5678 = vunpack.c.h.b16 %v1834
        %v5679 = vunpack.c.l.b16 %v1835
        %v5680 = vunpack.c.h.b16 %v1835
        %v5681 = vunpack.c.l.b16 %v1836
        %v5682 = vunpack.c.h.b16 %v1836
        %v5683 = vunpack.c.l.b16 %v1837
        %v5684 = vunpack.c.h.b16 %v1837
        %v5685 = vunpack.c.l.b16 %v1838
        %v5686 = vunpack.c.h.b16 %v1838
        %v5687 = vunpack.c.l.b16 %v1839
        %v5688 = vunpack.c.h.b16 %v1839
        %v5689 = vunpack.c.l.b16 %v1840
        %v5690 = vunpack.c.h.b16 %v1840
        %v5691 = vunpack.c.l.b16 %v1841
        %v5692 = vunpack.c.h.b16 %v1841
        %v5693 = vunpack.c.l.b16 %v1842
        %v5694 = vunpack.c.h.b16 %v1842
        %v5695 = vunpack.c.l.b16 %v1843
        %v5696 = vunpack.c.h.b16 %v1843
        %v5697 = vunpack.c.l.b16 %v1844
        %v5698 = vunpack.c.h.b16 %v1844
        %v5699 = vunpack.c.l.b16 %v1845
        %v5700 = vunpack.c.h.b16 %v1845
        %v5701 = vunpack.c.l.b16 %v1846
        %v5702 = vunpack.c.h.b16 %v1846
        %v5703 = vunpack.c.l.b16 %v1847
        %v5704 = vunpack.c.h.b16 %v1847
        %v5705 = vunpack.c.l.b16 %v1848
        %v5706 = vunpack.c.h.b16 %v1848
        %v5707 = vunpack.c.l.b16 %v1849
        %v5708 = vunpack.c.h.b16 %v1849
        %v5709 = vunpack.c.l.b16 %v1850
        %v5710 = vunpack.c.h.b16 %v1850
        %v5711 = vunpack.c.l.b16 %v1851
        %v5712 = vunpack.c.h.b16 %v1851
        %v5713 = vunpack.c.l.b16 %v1852
        %v5714 = vunpack.c.h.b16 %v1852
        %v5715 = vunpack.c.l.b16 %v1853
        %v5716 = vunpack.c.h.b16 %v1853
        %v5717 = vunpack.c.l.b16 %v1854
        %v5718 = vunpack.c.h.b16 %v1854
        %v5719 = vunpack.c.l.b16 %v1855
        %v5720 = vunpack.c.h.b16 %v1855
        %v5721 = vunpack.c.l.b16 %v1856
        %v5722 = vunpack.c.h.b16 %v1856
        %v5723 = vunpack.c.l.b16 %v1857
        %v5724 = vunpack.c.h.b16 %v1857
        %v5725 = vunpack.c.l.b16 %v1858
        %v5726 = vunpack.c.h.b16 %v1858
        %v5727 = vunpack.c.l.b16 %v1859
        %v5728 = vunpack.c.h.b16 %v1859
        %v5729 = vunpack.c.l.b16 %v1860
        %v5730 = vunpack.c.h.b16 %v1860
        %v5731 = vunpack.c.l.b16 %v1861
        %v5732 = vunpack.c.h.b16 %v1861
        %v5733 = vunpack.c.l.b16 %v1862
        %v5734 = vunpack.c.h.b16 %v1862
        %v5735 = vunpack.c.l.b16 %v1863
        %v5736 = vunpack.c.h.b16 %v1863
        %v5737 = vunpack.c.l.b16 %v1864
        %v5738 = vunpack.c.h.b16 %v1864
        %v5739 = vunpack.c.l.b16 %v1865
        %v5740 = vunpack.c.h.b16 %v1865
        %v5741 = vunpack.c.l.b16 %v1866
        %v5742 = vunpack.c.h.b16 %v1866
        %v5743 = vunpack.c.l.b16 %v1867
        %v5744 = vunpack.c.h.b16 %v1867
        %v5745 = vunpack.c.l.b16 %v1868
        %v5746 = vunpack.c.h.b16 %v1868
        %v5747 = vunpack.c.l.b16 %v1869
        %v5748 = vunpack.c.h.b16 %v1869
        %v5749 = vunpack.c.l.b16 %v1870
        %v5750 = vunpack.c.h.b16 %v1870
        %v5751 = vunpack.c.l.b16 %v1871
        %v5752 = vunpack.c.h.b16 %v1871
        %v5753 = vunpack.c.l.b16 %v1872
        %v5754 = vunpack.c.h.b16 %v1872
        %v5755 = vunpack.c.l.b16 %v1873
        %v5756 = vunpack.c.h.b16 %v1873
        %v5757 = vunpack.c.l.b16 %v1874
        %v5758 = vunpack.c.h.b16 %v1874
        %v5759 = vunpack.c.l.b16 %v1875
        %v5760 = vunpack.c.h.b16 %v1875
        %v5761 = vunpack.c.l.b16 %v1876
        %v5762 = vunpack.c.h.b16 %v1876
        %v5763 = vunpack.c.l.b16 %v1877
        %v5764 = vunpack.c.h.b16 %v1877
        %v5765 = vunpack.c.l.b16 %v1878
        %v5766 = vunpack.c.h.b16 %v1878
        %v5767 = vunpack.c.l.b16 %v1879
        %v5768 = vunpack.c.h.b16 %v1879
        %v5769 = vunpack.c.l.b16 %v1880
        %v5770 = vunpack.c.h.b16 %v1880
        %v5771 = vunpack.c.l.b16 %v1881
        %v5772 = vunpack.c.h.b16 %v1881
        %v5773 = vunpack.c.l.b16 %v1882
        %v5774 = vunpack.c.h.b16 %v1882
        %v5775 = vunpack.c.l.b16 %v1883
        %v5776 = vunpack.c.h.b16 %v1883
        %v5777 = vunpack.c.l.b16 %v1884
        %v5778 = vunpack.c.h.b16 %v1884
        %v5779 = vunpack.c.l.b16 %v1885
        %v5780 = vunpack.c.h.b16 %v1885
        %v5781 = vunpack.c.l.b16 %v1886
        %v5782 = vunpack.c.h.b16 %v1886
        %v5783 = vunpack.c.l.b16 %v1887
        %v5784 = vunpack.c.h.b16 %v1887
        %v5785 = vunpack.c.l.b16 %v1888
        %v5786 = vunpack.c.h.b16 %v1888
        %v5787 = vunpack.c.l.b16 %v1889
        %v5788 = vunpack.c.h.b16 %v1889
        %v5789 = vunpack.c.l.b16 %v1890
        %v5790 = vunpack.c.h.b16 %v1890
        %v5791 = vunpack.c.l.b16 %v1891
        %v5792 = vunpack.c.h.b16 %v1891
        %v5793 = vunpack.c.l.b16 %v1892
        %v5794 = vunpack.c.h.b16 %v1892
        %v5795 = vunpack.c.l.b16 %v1893
        %v5796 = vunpack.c.h.b16 %v1893
        %v5797 = vunpack.c.l.b16 %v1894
        %v5798 = vunpack.c.h.b16 %v1894
        %v5799 = vunpack.c.l.b16 %v1895
        %v5800 = vunpack.c.h.b16 %v1895
        %v5801 = vunpack.c.l.b16 %v1896
        %v5802 = vunpack.c.h.b16 %v1896
        %v5803 = vunpack.c.l.b16 %v1897
        %v5804 = vunpack.c.h.b16 %v1897
        %v5805 = vunpack.c.l.b16 %v1898
        %v5806 = vunpack.c.h.b16 %v1898
        %v5807 = vunpack.c.l.b16 %v1899
        %v5808 = vunpack.c.h.b16 %v1899
        %v5809 = vunpack.c.l.b16 %v1900
        %v5810 = vunpack.c.h.b16 %v1900
        %v5811 = vpack.c.b16 %v3259, %v3251
        %v5812 = vpack.c.b16 %v3260, %v3252
        %v5813 = vpack.c.b16 %v3261, %v3253
        %v5814 = vpack.c.b16 %v3262, %v3254
        %v5815 = vpack.c.b16 %v3263, %v3255
        %v5816 = vpack.c.b16 %v3264, %v3256
        %v5817 = vpack.c.b16 %v3265, %v3257
        %v5818 = vpack.c.b16 %v3266, %v3258
        %v5819 = vpack.c.b16 %v3275, %v3267
        %v5820 = vpack.c.b16 %v3276, %v3268
        %v5821 = vpack.c.b16 %v3277, %v3269
        %v5822 = vpack.c.b16 %v3278, %v3270
        %v5823 = vpack.c.b16 %v3279, %v3271
        %v5824 = vpack.c.b16 %v3280, %v3272
        %v5825 = vpack.c.b16 %v3281, %v3273
        %v5826 = vpack.c.b16 %v3282, %v3274
        %v5827 = vpack.c.b16 %v3291, %v3283
        %v5828 = vpack.c.b16 %v3292, %v3284
        %v5829 = vpack.c.b16 %v3293, %v3285
        %v5830 = vpack.c.b16 %v3294, %v3286
        %v5831 = vpack.c.b16 %v3295, %v3287
        %v5832 = vpack.c.b16 %v3296, %v3288
        %v5833 = vpack.c.b16 %v3297, %v3289
        %v5834 = vpack.c.b16 %v3298, %v3290
        %v5835 = vpack.c.b16 %v3307, %v3299
        %v5836 = vpack.c.b16 %v3308, %v3300
        %v5837 = vpack.c.b16 %v3309, %v3301
        %v5838 = vpack.c.b16 %v3310, %v3302
        %v5839 = vpack.c.b16 %v3311, %v3303
        %v5840 = vpack.c.b16 %v3312, %v3304
        %v5841 = vpack.c.b16 %v3313, %v3305
        %v5842 = vpack.c.b16 %v3314, %v3306
        %v5843 = vpack.c.b16 %v3323, %v3315
        %v5844 = vpack.c.b16 %v3324, %v3316
        %v5845 = vpack.c.b16 %v3325, %v3317
        %v5846 = vpack.c.b16 %v3326, %v3318
        %v5847 = vpack.c.b16 %v3327, %v3319
        %v5848 = vpack.c.b16 %v3328, %v3320
        %v5849 = vpack.c.b16 %v3329, %v3321
        %v5850 = vpack.c.b16 %v3330, %v3322
        %v5851 = vpack.c.b16 %v3339, %v3331
        %v5852 = vpack.c.b16 %v3340, %v3332
        %v5853 = vpack.c.b16 %v3341, %v3333
        %v5854 = vpack.c.b16 %v3342, %v3334
        %v5855 = vpack.c.b16 %v3343, %v3335
        %v5856 = vpack.c.b16 %v3344, %v3336
        %v5857 = vpack.c.b16 %v3345, %v3337
        %v5858 = vpack.c.b16 %v3346, %v3338
        %v5859 = vpack.c.b16 %v3355, %v3347
        %v5860 = vpack.c.b16 %v3356, %v3348
        %v5861 = vpack.c.b16 %v3357, %v3349
        %v5862 = vpack.c.b16 %v3358, %v3350
        %v5863 = vpack.c.b16 %v3359, %v3351
        %v5864 = vpack.c.b16 %v3360, %v3352
        %v5865 = vpack.c.b16 %v3361, %v3353
        %v5866 = vpack.c.b16 %v3362, %v3354
        %v5867 = vpack.c.b16 %v3371, %v3363
        %v5868 = vpack.c.b16 %v3372, %v3364
        %v5869 = vpack.c.b16 %v3373, %v3365
        %v5870 = vpack.c.b16 %v3374, %v3366
        %v5871 = vpack.c.b16 %v3375, %v3367
        %v5872 = vpack.c.b16 %v3376, %v3368
        %v5873 = vpack.c.b16 %v3377, %v3369
        %v5874 = vpack.c.b16 %v3378, %v3370
        %v5875 = vpack.c.b16 %v3387, %v3379
        %v5876 = vpack.c.b16 %v3388, %v3380
        %v5877 = vpack.c.b16 %v3389, %v3381
        %v5878 = vpack.c.b16 %v3390, %v3382
        %v5879 = vpack.c.b16 %v3391, %v3383
        %v5880 = vpack.c.b16 %v3392, %v3384
        %v5881 = vpack.c.b16 %v3393, %v3385
        %v5882 = vpack.c.b16 %v3394, %v3386
        %v5883 = vpack.c.b16 %v3403, %v3395
        %v5884 = vpack.c.b16 %v3404, %v3396
        %v5885 = vpack.c.b16 %v3405, %v3397
        %v5886 = vpack.c.b16 %v3406, %v3398
        %v5887 = vpack.c.b16 %v3407, %v3399
        %v5888 = vpack.c.b16 %v3408, %v3400
        %v5889 = vpack.c.b16 %v3409, %v3401
        %v5890 = vpack.c.b16 %v3410, %v3402
        %v5891 = vpack.c.b16 %v3419, %v3411
        %v5892 = vpack.c.b16 %v3420, %v3412
        %v5893 = vpack.c.b16 %v3421, %v3413
        %v5894 = vpack.c.b16 %v3422, %v3414
        %v5895 = vpack.c.b16 %v3423, %v3415
        %v5896 = vpack.c.b16 %v3424, %v3416
        %v5897 = vpack.c.b16 %v3425, %v3417
        %v5898 = vpack.c.b16 %v3426, %v3418
        %v5899 = vpack.c.b16 %v3435, %v3427
        %v5900 = vpack.c.b16 %v3436, %v3428
        %v5901 = vpack.c.b16 %v3437, %v3429
        %v5902 = vpack.c.b16 %v3438, %v3430
        %v5903 = vpack.c.b16 %v3439, %v3431
        %v5904 = vpack.c.b16 %v3440, %v3432
        %v5905 = vpack.c.b16 %v3441, %v3433
        %v5906 = vpack.c.b16 %v3442, %v3434
        %v5907 = vpack.c.b16 %v3451, %v3443
        %v5908 = vpack.c.b16 %v3452, %v3444
        %v5909 = vpack.c.b16 %v3453, %v3445
        %v5910 = vpack.c.b16 %v3454, %v3446
        %v5911 = vpack.c.b16 %v3455, %v3447
        %v5912 = vpack.c.b16 %v3456, %v3448
        %v5913 = vpack.c.b16 %v3457, %v3449
        %v5914 = vpack.c.b16 %v3458, %v3450
        %v5915 = vpack.c.b16 %v3467, %v3459
        %v5916 = vpack.c.b16 %v3468, %v3460
        %v5917 = vpack.c.b16 %v3469, %v3461
        %v5918 = vpack.c.b16 %v3470, %v3462
        %v5919 = vpack.c.b16 %v3471, %v3463
        %v5920 = vpack.c.b16 %v3472, %v3464
        %v5921 = vpack.c.b16 %v3473, %v3465
        %v5922 = vpack.c.b16 %v3474, %v3466
        %v5923 = vpack.c.b16 %v3483, %v3475
        %v5924 = vpack.c.b16 %v3484, %v3476
        %v5925 = vpack.c.b16 %v3485, %v3477
        %v5926 = vpack.c.b16 %v3486, %v3478
        %v5927 = vpack.c.b16 %v3487, %v3479
        %v5928 = vpack.c.b16 %v3488, %v3480
        %v5929 = vpack.c.b16 %v3489, %v3481
        %v5930 = vpack.c.b16 %v3490, %v3482
        %v5931 = vpack.c.b16 %v3499, %v3491
        %v5932 = vpack.c.b16 %v3500, %v3492
        %v5933 = vpack.c.b16 %v3501, %v3493
        %v5934 = vpack.c.b16 %v3502, %v3494
        %v5935 = vpack.c.b16 %v3503, %v3495
        %v5936 = vpack.c.b16 %v3504, %v3496
        %v5937 = vpack.c.b16 %v3505, %v3497
        %v5938 = vpack.c.b16 %v3506, %v3498
        %v5939 = vpack.c.b16 %v3515, %v3507
        %v5940 = vpack.c.b16 %v3516, %v3508
        %v5941 = vpack.c.b16 %v3517, %v3509
        %v5942 = vpack.c.b16 %v3518, %v3510
        %v5943 = vpack.c.b16 %v3519, %v3511
        %v5944 = vpack.c.b16 %v3520, %v3512
        %v5945 = vpack.c.b16 %v3521, %v3513
        %v5946 = vpack.c.b16 %v3522, %v3514
        %v5947 = vpack.c.b16 %v3531, %v3523
        %v5948 = vpack.c.b16 %v3532, %v3524
        %v5949 = vpack.c.b16 %v3533, %v3525
        %v5950 = vpack.c.b16 %v3534, %v3526
        %v5951 = vpack.c.b16 %v3535, %v3527
        %v5952 = vpack.c.b16 %v3536, %v3528
        %v5953 = vpack.c.b16 %v3537, %v3529
        %v5954 = vpack.c.b16 %v3538, %v3530
        %v5955 = vpack.c.b16 %v3547, %v3539
        %v5956 = vpack.c.b16 %v3548, %v3540
        %v5957 = vpack.c.b16 %v3549, %v3541
        %v5958 = vpack.c.b16 %v3550, %v3542
        %v5959 = vpack.c.b16 %v3551, %v3543
        %v5960 = vpack.c.b16 %v3552, %v3544
        %v5961 = vpack.c.b16 %v3553, %v3545
        %v5962 = vpack.c.b16 %v3554, %v3546
        %v5963 = vpack.c.b16 %v3563, %v3555
        %v5964 = vpack.c.b16 %v3564, %v3556
        %v5965 = vpack.c.b16 %v3565, %v3557
        %v5966 = vpack.c.b16 %v3566, %v3558
        %v5967 = vpack.c.b16 %v3567, %v3559
        %v5968 = vpack.c.b16 %v3568, %v3560
        %v5969 = vpack.c.b16 %v3569, %v3561
        %v5970 = vpack.c.b16 %v3570, %v3562
        %v5971 = vpack.c.b16 %v3579, %v3571
        %v5972 = vpack.c.b16 %v3580, %v3572
        %v5973 = vpack.c.b16 %v3581, %v3573
        %v5974 = vpack.c.b16 %v3582, %v3574
        %v5975 = vpack.c.b16 %v3583, %v3575
        %v5976 = vpack.c.b16 %v3584, %v3576
        %v5977 = vpack.c.b16 %v3585, %v3577
        %v5978 = vpack.c.b16 %v3586, %v3578
        %v5979 = vpack.c.b16 %v3595, %v3587
        %v5980 = vpack.c.b16 %v3596, %v3588
        %v5981 = vpack.c.b16 %v3597, %v3589
        %v5982 = vpack.c.b16 %v3598, %v3590
        %v5983 = vpack.c.b16 %v3599, %v3591
        %v5984 = vpack.c.b16 %v3600, %v3592
        %v5985 = vpack.c.b16 %v3601, %v3593
        %v5986 = vpack.c.b16 %v3602, %v3594
        %v5987 = vpack.c.b16 %v3611, %v3603
        %v5988 = vpack.c.b16 %v3612, %v3604
        %v5989 = vpack.c.b16 %v3613, %v3605
        %v5990 = vpack.c.b16 %v3614, %v3606
        %v5991 = vpack.c.b16 %v3615, %v3607
        %v5992 = vpack.c.b16 %v3616, %v3608
        %v5993 = vpack.c.b16 %v3617, %v3609
        %v5994 = vpack.c.b16 %v3618, %v3610
        %v5995 = vpack.c.b16 %v3627, %v3619
        %v5996 = vpack.c.b16 %v3628, %v3620
        %v5997 = vpack.c.b16 %v3629, %v3621
        %v5998 = vpack.c.b16 %v3630, %v3622
        %v5999 = vpack.c.b16 %v3631, %v3623
        %v6000 = vpack.c.b16 %v3632, %v3624
        %v6001 = vpack.c.b16 %v3633, %v3625
        %v6002 = vpack.c.b16 %v3634, %v3626
        %v6003 = vpack.c.b16 %v3643, %v3635
        %v6004 = vpack.c.b16 %v3644, %v3636
        %v6005 = vpack.c.b16 %v3645, %v3637
        %v6006 = vpack.c.b16 %v3646, %v3638
        %v6007 = vpack.c.b16 %v3647, %v3639
        %v6008 = vpack.c.b16 %v3648, %v3640
        %v6009 = vpack.c.b16 %v3649, %v3641
        %v6010 = vpack.c.b16 %v3650, %v3642
        %v6011 = vpack.c.b16 %v3659, %v3651
        %v6012 = vpack.c.b16 %v3660, %v3652
        %v6013 = vpack.c.b16 %v3661, %v3653
        %v6014 = vpack.c.b16 %v3662, %v3654
        %v6015 = vpack.c.b16 %v3663, %v3655
        %v6016 = vpack.c.b16 %v3664, %v3656
        %v6017 = vpack.c.b16 %v3665, %v3657
        %v6018 = vpack.c.b16 %v3666, %v3658
        %v6019 = vpack.c.b16 %v3675, %v3667
        %v6020 = vpack.c.b16 %v3676, %v3668
        %v6021 = vpack.c.b16 %v3677, %v3669
        %v6022 = vpack.c.b16 %v3678, %v3670
        %v6023 = vpack.c.b16 %v3679, %v3671
        %v6024 = vpack.c.b16 %v3680, %v3672
        %v6025 = vpack.c.b16 %v3681, %v3673
        %v6026 = vpack.c.b16 %v3682, %v3674
        %v6027 = vpack.c.b16 %v3691, %v3683
        %v6028 = vpack.c.b16 %v3692, %v3684
        %v6029 = vpack.c.b16 %v3693, %v3685
        %v6030 = vpack.c.b16 %v3694, %v3686
        %v6031 = vpack.c.b16 %v3695, %v3687
        %v6032 = vpack.c.b16 %v3696, %v3688
        %v6033 = vpack.c.b16 %v3697, %v3689
        %v6034 = vpack.c.b16 %v3698, %v3690
        %v6035 = vpack.c.b16 %v3707, %v3699
        %v6036 = vpack.c.b16 %v3708, %v3700
        %v6037 = vpack.c.b16 %v3709, %v3701
        %v6038 = vpack.c.b16 %v3710, %v3702
        %v6039 = vpack.c.b16 %v3711, %v3703
        %v6040 = vpack.c.b16 %v3712, %v3704
        %v6041 = vpack.c.b16 %v3713, %v3705
        %v6042 = vpack.c.b16 %v3714, %v3706
        %v6043 = vpack.c.b16 %v3723, %v3715
        %v6044 = vpack.c.b16 %v3724, %v3716
        %v6045 = vpack.c.b16 %v3725, %v3717
        %v6046 = vpack.c.b16 %v3726, %v3718
        %v6047 = vpack.c.b16 %v3727, %v3719
        %v6048 = vpack.c.b16 %v3728, %v3720
        %v6049 = vpack.c.b16 %v3729, %v3721
        %v6050 = vpack.c.b16 %v3730, %v3722
        %v6051 = vpack.c.b16 %v3739, %v3731
        %v6052 = vpack.c.b16 %v3740, %v3732
        %v6053 = vpack.c.b16 %v3741, %v3733
        %v6054 = vpack.c.b16 %v3742, %v3734
        %v6055 = vpack.c.b16 %v3743, %v3735
        %v6056 = vpack.c.b16 %v3744, %v3736
        %v6057 = vpack.c.b16 %v3745, %v3737
        %v6058 = vpack.c.b16 %v3746, %v3738
        %v6059 = vpack.c.b16 %v3755, %v3747
        %v6060 = vpack.c.b16 %v3756, %v3748
        %v6061 = vpack.c.b16 %v3757, %v3749
        %v6062 = vpack.c.b16 %v3758, %v3750
        %v6063 = vpack.c.b16 %v3759, %v3751
        %v6064 = vpack.c.b16 %v3760, %v3752
        %v6065 = vpack.c.b16 %v3761, %v3753
        %v6066 = vpack.c.b16 %v3762, %v3754
        %v6067 = vpack.c.b16 %v3771, %v3763
        %v6068 = vpack.c.b16 %v3772, %v3764
        %v6069 = vpack.c.b16 %v3773, %v3765
        %v6070 = vpack.c.b16 %v3774, %v3766
        %v6071 = vpack.c.b16 %v3775, %v3767
        %v6072 = vpack.c.b16 %v3776, %v3768
        %v6073 = vpack.c.b16 %v3777, %v3769
        %v6074 = vpack.c.b16 %v3778, %v3770
        %v6075 = vpack.c.b16 %v3787, %v3779
        %v6076 = vpack.c.b16 %v3788, %v3780
        %v6077 = vpack.c.b16 %v3789, %v3781
        %v6078 = vpack.c.b16 %v3790, %v3782
        %v6079 = vpack.c.b16 %v3791, %v3783
        %v6080 = vpack.c.b16 %v3792, %v3784
        %v6081 = vpack.c.b16 %v3793, %v3785
        %v6082 = vpack.c.b16 %v3794, %v3786
        %v6083 = vpack.c.b16 %v3803, %v3795
        %v6084 = vpack.c.b16 %v3804, %v3796
        %v6085 = vpack.c.b16 %v3805, %v3797
        %v6086 = vpack.c.b16 %v3806, %v3798
        %v6087 = vpack.c.b16 %v3807, %v3799
        %v6088 = vpack.c.b16 %v3808, %v3800
        %v6089 = vpack.c.b16 %v3809, %v3801
        %v6090 = vpack.c.b16 %v3810, %v3802
        %v6091 = vpack.c.b16 %v3819, %v3811
        %v6092 = vpack.c.b16 %v3820, %v3812
        %v6093 = vpack.c.b16 %v3821, %v3813
        %v6094 = vpack.c.b16 %v3822, %v3814
        %v6095 = vpack.c.b16 %v3823, %v3815
        %v6096 = vpack.c.b16 %v3824, %v3816
        %v6097 = vpack.c.b16 %v3825, %v3817
        %v6098 = vpack.c.b16 %v3826, %v3818
        %v6099 = vpack.c.b16 %v3835, %v3827
        %v6100 = vpack.c.b16 %v3836, %v3828
        %v6101 = vpack.c.b16 %v3837, %v3829
        %v6102 = vpack.c.b16 %v3838, %v3830
        %v6103 = vpack.c.b16 %v3839, %v3831
        %v6104 = vpack.c.b16 %v3840, %v3832
        %v6105 = vpack.c.b16 %v3841, %v3833
        %v6106 = vpack.c.b16 %v3842, %v3834
        %v6107 = vpack.c.b16 %v3851, %v3843
        %v6108 = vpack.c.b16 %v3852, %v3844
        %v6109 = vpack.c.b16 %v3853, %v3845
        %v6110 = vpack.c.b16 %v3854, %v3846
        %v6111 = vpack.c.b16 %v3855, %v3847
        %v6112 = vpack.c.b16 %v3856, %v3848
        %v6113 = vpack.c.b16 %v3857, %v3849
        %v6114 = vpack.c.b16 %v3858, %v3850
        %v6115 = vpack.c.b16 %v3867, %v3859
        %v6116 = vpack.c.b16 %v3868, %v3860
        %v6117 = vpack.c.b16 %v3869, %v3861
        %v6118 = vpack.c.b16 %v3870, %v3862
        %v6119 = vpack.c.b16 %v3871, %v3863
        %v6120 = vpack.c.b16 %v3872, %v3864
        %v6121 = vpack.c.b16 %v3873, %v3865
        %v6122 = vpack.c.b16 %v3874, %v3866
        %v6123 = vpack.c.b16 %v3883, %v3875
        %v6124 = vpack.c.b16 %v3884, %v3876
        %v6125 = vpack.c.b16 %v3885, %v3877
        %v6126 = vpack.c.b16 %v3886, %v3878
        %v6127 = vpack.c.b16 %v3887, %v3879
        %v6128 = vpack.c.b16 %v3888, %v3880
        %v6129 = vpack.c.b16 %v3889, %v3881
        %v6130 = vpack.c.b16 %v3890, %v3882
        %v6131 = vpack.c.b16 %v3899, %v3891
        %v6132 = vpack.c.b16 %v3900, %v3892
        %v6133 = vpack.c.b16 %v3901, %v3893
        %v6134 = vpack.c.b16 %v3902, %v3894
        %v6135 = vpack.c.b16 %v3903, %v3895
        %v6136 = vpack.c.b16 %v3904, %v3896
        %v6137 = vpack.c.b16 %v3905, %v3897
        %v6138 = vpack.c.b16 %v3906, %v3898
        %v6139 = vpack.c.b16 %v3915, %v3907
        %v6140 = vpack.c.b16 %v3916, %v3908
        %v6141 = vpack.c.b16 %v3917, %v3909
        %v6142 = vpack.c.b16 %v3918, %v3910
        %v6143 = vpack.c.b16 %v3919, %v3911
        %v6144 = vpack.c.b16 %v3920, %v3912
        %v6145 = vpack.c.b16 %v3921, %v3913
        %v6146 = vpack.c.b16 %v3922, %v3914
        %v6147 = vpack.c.b16 %v3931, %v3923
        %v6148 = vpack.c.b16 %v3932, %v3924
        %v6149 = vpack.c.b16 %v3933, %v3925
        %v6150 = vpack.c.b16 %v3934, %v3926
        %v6151 = vpack.c.b16 %v3935, %v3927
        %v6152 = vpack.c.b16 %v3936, %v3928
        %v6153 = vpack.c.b16 %v3937, %v3929
        %v6154 = vpack.c.b16 %v3938, %v3930
        %v6155 = vpack.c.b16 %v3947, %v3939
        %v6156 = vpack.c.b16 %v3948, %v3940
        %v6157 = vpack.c.b16 %v3949, %v3941
        %v6158 = vpack.c.b16 %v3950, %v3942
        %v6159 = vpack.c.b16 %v3951, %v3943
        %v6160 = vpack.c.b16 %v3952, %v3944
        %v6161 = vpack.c.b16 %v3953, %v3945
        %v6162 = vpack.c.b16 %v3954, %v3946
        %v6163 = vpack.c.b16 %v3963, %v3955
        %v6164 = vpack.c.b16 %v3964, %v3956
        %v6165 = vpack.c.b16 %v3965, %v3957
        %v6166 = vpack.c.b16 %v3966, %v3958
        %v6167 = vpack.c.b16 %v3967, %v3959
        %v6168 = vpack.c.b16 %v3968, %v3960
        %v6169 = vpack.c.b16 %v3969, %v3961
        %v6170 = vpack.c.b16 %v3970, %v3962
        %v6171 = vpack.c.b16 %v3979, %v3971
        %v6172 = vpack.c.b16 %v3980, %v3972
        %v6173 = vpack.c.b16 %v3981, %v3973
        %v6174 = vpack.c.b16 %v3982, %v3974
        %v6175 = vpack.c.b16 %v3983, %v3975
        %v6176 = vpack.c.b16 %v3984, %v3976
        %v6177 = vpack.c.b16 %v3985, %v3977
        %v6178 = vpack.c.b16 %v3986, %v3978
        %v6179 = vpack.c.b16 %v3995, %v3987
        %v6180 = vpack.c.b16 %v3996, %v3988
        %v6181 = vpack.c.b16 %v3997, %v3989
        %v6182 = vpack.c.b16 %v3998, %v3990
        %v6183 = vpack.c.b16 %v3999, %v3991
        %v6184 = vpack.c.b16 %v4000, %v3992
        %v6185 = vpack.c.b16 %v4001, %v3993
        %v6186 = vpack.c.b16 %v4002, %v3994
        %v6187 = vpack.c.b16 %v4011, %v4003
        %v6188 = vpack.c.b16 %v4012, %v4004
        %v6189 = vpack.c.b16 %v4013, %v4005
        %v6190 = vpack.c.b16 %v4014, %v4006
        %v6191 = vpack.c.b16 %v4015, %v4007
        %v6192 = vpack.c.b16 %v4016, %v4008
        %v6193 = vpack.c.b16 %v4017, %v4009
        %v6194 = vpack.c.b16 %v4018, %v4010
        %v6195 = vpack.c.b16 %v4027, %v4019
        %v6196 = vpack.c.b16 %v4028, %v4020
        %v6197 = vpack.c.b16 %v4029, %v4021
        %v6198 = vpack.c.b16 %v4030, %v4022
        %v6199 = vpack.c.b16 %v4031, %v4023
        %v6200 = vpack.c.b16 %v4032, %v4024
        %v6201 = vpack.c.b16 %v4033, %v4025
        %v6202 = vpack.c.b16 %v4034, %v4026
        %v6203 = vpack.c.b16 %v4043, %v4035
        %v6204 = vpack.c.b16 %v4044, %v4036
        %v6205 = vpack.c.b16 %v4045, %v4037
        %v6206 = vpack.c.b16 %v4046, %v4038
        %v6207 = vpack.c.b16 %v4047, %v4039
        %v6208 = vpack.c.b16 %v4048, %v4040
        %v6209 = vpack.c.b16 %v4049, %v4041
        %v6210 = vpack.c.b16 %v4050, %v4042
        %v6211 = vpack.c.b16 %v4059, %v4051
        %v6212 = vpack.c.b16 %v4060, %v4052
        %v6213 = vpack.c.b16 %v4061, %v4053
        %v6214 = vpack.c.b16 %v4062, %v4054
        %v6215 = vpack.c.b16 %v4063, %v4055
        %v6216 = vpack.c.b16 %v4064, %v4056
        %v6217 = vpack.c.b16 %v4065, %v4057
        %v6218 = vpack.c.b16 %v4066, %v4058
        %v6219 = vpack.c.b16 %v4075, %v4067
        %v6220 = vpack.c.b16 %v4076, %v4068
        %v6221 = vpack.c.b16 %v4077, %v4069
        %v6222 = vpack.c.b16 %v4078, %v4070
        %v6223 = vpack.c.b16 %v4079, %v4071
        %v6224 = vpack.c.b16 %v4080, %v4072
        %v6225 = vpack.c.b16 %v4081, %v4073
        %v6226 = vpack.c.b16 %v4082, %v4074
        %v6227 = vpack.c.b16 %v4091, %v4083
        %v6228 = vpack.c.b16 %v4092, %v4084
        %v6229 = vpack.c.b16 %v4093, %v4085
        %v6230 = vpack.c.b16 %v4094, %v4086
        %v6231 = vpack.c.b16 %v4095, %v4087
        %v6232 = vpack.c.b16 %v4096, %v4088
        %v6233 = vpack.c.b16 %v4097, %v4089
        %v6234 = vpack.c.b16 %v4098, %v4090
        %v6235 = vpack.c.b16 %v4107, %v4099
        %v6236 = vpack.c.b16 %v4108, %v4100
        %v6237 = vpack.c.b16 %v4109, %v4101
        %v6238 = vpack.c.b16 %v4110, %v4102
        %v6239 = vpack.c.b16 %v4111, %v4103
        %v6240 = vpack.c.b16 %v4112, %v4104
        %v6241 = vpack.c.b16 %v4113, %v4105
        %v6242 = vpack.c.b16 %v4114, %v4106
        %v6243 = vpack.c.b16 %v4123, %v4115
        %v6244 = vpack.c.b16 %v4124, %v4116
        %v6245 = vpack.c.b16 %v4125, %v4117
        %v6246 = vpack.c.b16 %v4126, %v4118
        %v6247 = vpack.c.b16 %v4127, %v4119
        %v6248 = vpack.c.b16 %v4128, %v4120
        %v6249 = vpack.c.b16 %v4129, %v4121
        %v6250 = vpack.c.b16 %v4130, %v4122
        %v6251 = vpack.c.b16 %v4139, %v4131
        %v6252 = vpack.c.b16 %v4140, %v4132
        %v6253 = vpack.c.b16 %v4141, %v4133
        %v6254 = vpack.c.b16 %v4142, %v4134
        %v6255 = vpack.c.b16 %v4143, %v4135
        %v6256 = vpack.c.b16 %v4144, %v4136
        %v6257 = vpack.c.b16 %v4145, %v4137
        %v6258 = vpack.c.b16 %v4146, %v4138
        %v6259 = vpack.c.b16 %v4155, %v4147
        %v6260 = vpack.c.b16 %v4156, %v4148
        %v6261 = vpack.c.b16 %v4157, %v4149
        %v6262 = vpack.c.b16 %v4158, %v4150
        %v6263 = vpack.c.b16 %v4159, %v4151
        %v6264 = vpack.c.b16 %v4160, %v4152
        %v6265 = vpack.c.b16 %v4161, %v4153
        %v6266 = vpack.c.b16 %v4162, %v4154
        %v6267 = vpack.c.b16 %v4171, %v4163
        %v6268 = vpack.c.b16 %v4172, %v4164
        %v6269 = vpack.c.b16 %v4173, %v4165
        %v6270 = vpack.c.b16 %v4174, %v4166
        %v6271 = vpack.c.b16 %v4175, %v4167
        %v6272 = vpack.c.b16 %v4176, %v4168
        %v6273 = vpack.c.b16 %v4177, %v4169
        %v6274 = vpack.c.b16 %v4178, %v4170
        %v6275 = vpack.c.b16 %v4187, %v4179
        %v6276 = vpack.c.b16 %v4188, %v4180
        %v6277 = vpack.c.b16 %v4189, %v4181
        %v6278 = vpack.c.b16 %v4190, %v4182
        %v6279 = vpack.c.b16 %v4191, %v4183
        %v6280 = vpack.c.b16 %v4192, %v4184
        %v6281 = vpack.c.b16 %v4193, %v4185
        %v6282 = vpack.c.b16 %v4194, %v4186
        %v6283 = vpack.c.b16 %v4203, %v4195
        %v6284 = vpack.c.b16 %v4204, %v4196
        %v6285 = vpack.c.b16 %v4205, %v4197
        %v6286 = vpack.c.b16 %v4206, %v4198
        %v6287 = vpack.c.b16 %v4207, %v4199
        %v6288 = vpack.c.b16 %v4208, %v4200
        %v6289 = vpack.c.b16 %v4209, %v4201
        %v6290 = vpack.c.b16 %v4210, %v4202
        %v6291 = vpack.c.b16 %v4219, %v4211
        %v6292 = vpack.c.b16 %v4220, %v4212
        %v6293 = vpack.c.b16 %v4221, %v4213
        %v6294 = vpack.c.b16 %v4222, %v4214
        %v6295 = vpack.c.b16 %v4223, %v4215
        %v6296 = vpack.c.b16 %v4224, %v4216
        %v6297 = vpack.c.b16 %v4225, %v4217
        %v6298 = vpack.c.b16 %v4226, %v4218
        %v6299 = vpack.c.b16 %v4235, %v4227
        %v6300 = vpack.c.b16 %v4236, %v4228
        %v6301 = vpack.c.b16 %v4237, %v4229
        %v6302 = vpack.c.b16 %v4238, %v4230
        %v6303 = vpack.c.b16 %v4239, %v4231
        %v6304 = vpack.c.b16 %v4240, %v4232
        %v6305 = vpack.c.b16 %v4241, %v4233
        %v6306 = vpack.c.b16 %v4242, %v4234
        %v6307 = vpack.c.b16 %v4251, %v4243
        %v6308 = vpack.c.b16 %v4252, %v4244
        %v6309 = vpack.c.b16 %v4253, %v4245
        %v6310 = vpack.c.b16 %v4254, %v4246
        %v6311 = vpack.c.b16 %v4255, %v4247
        %v6312 = vpack.c.b16 %v4256, %v4248
        %v6313 = vpack.c.b16 %v4257, %v4249
        %v6314 = vpack.c.b16 %v4258, %v4250
        %v6315 = vpack.c.b16 %v4267, %v4259
        %v6316 = vpack.c.b16 %v4268, %v4260
        %v6317 = vpack.c.b16 %v4269, %v4261
        %v6318 = vpack.c.b16 %v4270, %v4262
        %v6319 = vpack.c.b16 %v4271, %v4263
        %v6320 = vpack.c.b16 %v4272, %v4264
        %v6321 = vpack.c.b16 %v4273, %v4265
        %v6322 = vpack.c.b16 %v4274, %v4266
        %v6323 = vpack.c.b16 %v4283, %v4275
        %v6324 = vpack.c.b16 %v4284, %v4276
        %v6325 = vpack.c.b16 %v4285, %v4277
        %v6326 = vpack.c.b16 %v4286, %v4278
        %v6327 = vpack.c.b16 %v4287, %v4279
        %v6328 = vpack.c.b16 %v4288, %v4280
        %v6329 = vpack.c.b16 %v4289, %v4281
        %v6330 = vpack.c.b16 %v4290, %v4282
        %v6331 = vpack.c.b16 %v4299, %v4291
        %v6332 = vpack.c.b16 %v4300, %v4292
        %v6333 = vpack.c.b16 %v4301, %v4293
        %v6334 = vpack.c.b16 %v4302, %v4294
        %v6335 = vpack.c.b16 %v4303, %v4295
        %v6336 = vpack.c.b16 %v4304, %v4296
        %v6337 = vpack.c.b16 %v4305, %v4297
        %v6338 = vpack.c.b16 %v4306, %v4298
        %v6339 = vpack.c.b16 %v4315, %v4307
        %v6340 = vpack.c.b16 %v4316, %v4308
        %v6341 = vpack.c.b16 %v4317, %v4309
        %v6342 = vpack.c.b16 %v4318, %v4310
        %v6343 = vpack.c.b16 %v4319, %v4311
        %v6344 = vpack.c.b16 %v4320, %v4312
        %v6345 = vpack.c.b16 %v4321, %v4313
        %v6346 = vpack.c.b16 %v4322, %v4314
        %v6347 = vpack.c.b16 %v4331, %v4323
        %v6348 = vpack.c.b16 %v4332, %v4324
        %v6349 = vpack.c.b16 %v4333, %v4325
        %v6350 = vpack.c.b16 %v4334, %v4326
        %v6351 = vpack.c.b16 %v4335, %v4327
        %v6352 = vpack.c.b16 %v4336, %v4328
        %v6353 = vpack.c.b16 %v4337, %v4329
        %v6354 = vpack.c.b16 %v4338, %v4330
        %v6355 = vpack.c.b16 %v4347, %v4339
        %v6356 = vpack.c.b16 %v4348, %v4340
        %v6357 = vpack.c.b16 %v4349, %v4341
        %v6358 = vpack.c.b16 %v4350, %v4342
        %v6359 = vpack.c.b16 %v4351, %v4343
        %v6360 = vpack.c.b16 %v4352, %v4344
        %v6361 = vpack.c.b16 %v4353, %v4345
        %v6362 = vpack.c.b16 %v4354, %v4346
        %v6363 = vpack.c.b16 %v4363, %v4355
        %v6364 = vpack.c.b16 %v4364, %v4356
        %v6365 = vpack.c.b16 %v4365, %v4357
        %v6366 = vpack.c.b16 %v4366, %v4358
        %v6367 = vpack.c.b16 %v4367, %v4359
        %v6368 = vpack.c.b16 %v4368, %v4360
        %v6369 = vpack.c.b16 %v4369, %v4361
        %v6370 = vpack.c.b16 %v4370, %v4362
        %v6371 = vpack.c.b16 %v4379, %v4371
        %v6372 = vpack.c.b16 %v4380, %v4372
        %v6373 = vpack.c.b16 %v4381, %v4373
        %v6374 = vpack.c.b16 %v4382, %v4374
        %v6375 = vpack.c.b16 %v4383, %v4375
        %v6376 = vpack.c.b16 %v4384, %v4376
        %v6377 = vpack.c.b16 %v4385, %v4377
        %v6378 = vpack.c.b16 %v4386, %v4378
        %v6379 = vpack.c.b16 %v4395, %v4387
        %v6380 = vpack.c.b16 %v4396, %v4388
        %v6381 = vpack.c.b16 %v4397, %v4389
        %v6382 = vpack.c.b16 %v4398, %v4390
        %v6383 = vpack.c.b16 %v4399, %v4391
        %v6384 = vpack.c.b16 %v4400, %v4392
        %v6385 = vpack.c.b16 %v4401, %v4393
        %v6386 = vpack.c.b16 %v4402, %v4394
        %v6387 = vpack.c.b16 %v4411, %v4403
        %v6388 = vpack.c.b16 %v4412, %v4404
        %v6389 = vpack.c.b16 %v4413, %v4405
        %v6390 = vpack.c.b16 %v4414, %v4406
        %v6391 = vpack.c.b16 %v4415, %v4407
        %v6392 = vpack.c.b16 %v4416, %v4408
        %v6393 = vpack.c.b16 %v4417, %v4409
        %v6394 = vpack.c.b16 %v4418, %v4410
        %v6395 = vpack.c.b16 %v4427, %v4419
        %v6396 = vpack.c.b16 %v4428, %v4420
        %v6397 = vpack.c.b16 %v4429, %v4421
        %v6398 = vpack.c.b16 %v4430, %v4422
        %v6399 = vpack.c.b16 %v4431, %v4423
        %v6400 = vpack.c.b16 %v4432, %v4424
        %v6401 = vpack.c.b16 %v4433, %v4425
        %v6402 = vpack.c.b16 %v4434, %v4426
        %v6403 = vpack.c.b16 %v4443, %v4435
        %v6404 = vpack.c.b16 %v4444, %v4436
        %v6405 = vpack.c.b16 %v4445, %v4437
        %v6406 = vpack.c.b16 %v4446, %v4438
        %v6407 = vpack.c.b16 %v4447, %v4439
        %v6408 = vpack.c.b16 %v4448, %v4440
        %v6409 = vpack.c.b16 %v4449, %v4441
        %v6410 = vpack.c.b16 %v4450, %v4442
        %v6411 = vpack.c.b16 %v4459, %v4451
        %v6412 = vpack.c.b16 %v4460, %v4452
        %v6413 = vpack.c.b16 %v4461, %v4453
        %v6414 = vpack.c.b16 %v4462, %v4454
        %v6415 = vpack.c.b16 %v4463, %v4455
        %v6416 = vpack.c.b16 %v4464, %v4456
        %v6417 = vpack.c.b16 %v4465, %v4457
        %v6418 = vpack.c.b16 %v4466, %v4458
        %v6419 = vpack.c.b16 %v4475, %v4467
        %v6420 = vpack.c.b16 %v4476, %v4468
        %v6421 = vpack.c.b16 %v4477, %v4469
        %v6422 = vpack.c.b16 %v4478, %v4470
        %v6423 = vpack.c.b16 %v4479, %v4471
        %v6424 = vpack.c.b16 %v4480, %v4472
        %v6425 = vpack.c.b16 %v4481, %v4473
        %v6426 = vpack.c.b16 %v4482, %v4474
        %v6427 = vpack.c.b16 %v4491, %v4483
        %v6428 = vpack.c.b16 %v4492, %v4484
        %v6429 = vpack.c.b16 %v4493, %v4485
        %v6430 = vpack.c.b16 %v4494, %v4486
        %v6431 = vpack.c.b16 %v4495, %v4487
        %v6432 = vpack.c.b16 %v4496, %v4488
        %v6433 = vpack.c.b16 %v4497, %v4489
        %v6434 = vpack.c.b16 %v4498, %v4490
        %v6435 = vpack.c.b16 %v4507, %v4499
        %v6436 = vpack.c.b16 %v4508, %v4500
        %v6437 = vpack.c.b16 %v4509, %v4501
        %v6438 = vpack.c.b16 %v4510, %v4502
        %v6439 = vpack.c.b16 %v4511, %v4503
        %v6440 = vpack.c.b16 %v4512, %v4504
        %v6441 = vpack.c.b16 %v4513, %v4505
        %v6442 = vpack.c.b16 %v4514, %v4506
        %v6443 = vpack.c.b16 %v4523, %v4515
        %v6444 = vpack.c.b16 %v4524, %v4516
        %v6445 = vpack.c.b16 %v4525, %v4517
        %v6446 = vpack.c.b16 %v4526, %v4518
        %v6447 = vpack.c.b16 %v4527, %v4519
        %v6448 = vpack.c.b16 %v4528, %v4520
        %v6449 = vpack.c.b16 %v4529, %v4521
        %v6450 = vpack.c.b16 %v4530, %v4522
        %v6451 = vpack.c.b16 %v4539, %v4531
        %v6452 = vpack.c.b16 %v4540, %v4532
        %v6453 = vpack.c.b16 %v4541, %v4533
        %v6454 = vpack.c.b16 %v4542, %v4534
        %v6455 = vpack.c.b16 %v4543, %v4535
        %v6456 = vpack.c.b16 %v4544, %v4536
        %v6457 = vpack.c.b16 %v4545, %v4537
        %v6458 = vpack.c.b16 %v4546, %v4538
        %v6459 = vpack.c.b16 %v4555, %v4547
        %v6460 = vpack.c.b16 %v4556, %v4548
        %v6461 = vpack.c.b16 %v4557, %v4549
        %v6462 = vpack.c.b16 %v4558, %v4550
        %v6463 = vpack.c.b16 %v4559, %v4551
        %v6464 = vpack.c.b16 %v4560, %v4552
        %v6465 = vpack.c.b16 %v4561, %v4553
        %v6466 = vpack.c.b16 %v4562, %v4554
        %v6467 = vpack.c.b16 %v4571, %v4563
        %v6468 = vpack.c.b16 %v4572, %v4564
        %v6469 = vpack.c.b16 %v4573, %v4565
        %v6470 = vpack.c.b16 %v4574, %v4566
        %v6471 = vpack.c.b16 %v4575, %v4567
        %v6472 = vpack.c.b16 %v4576, %v4568
        %v6473 = vpack.c.b16 %v4577, %v4569
        %v6474 = vpack.c.b16 %v4578, %v4570
        %v6475 = vpack.c.b16 %v4587, %v4579
        %v6476 = vpack.c.b16 %v4588, %v4580
        %v6477 = vpack.c.b16 %v4589, %v4581
        %v6478 = vpack.c.b16 %v4590, %v4582
        %v6479 = vpack.c.b16 %v4591, %v4583
        %v6480 = vpack.c.b16 %v4592, %v4584
        %v6481 = vpack.c.b16 %v4593, %v4585
        %v6482 = vpack.c.b16 %v4594, %v4586
        %v6483 = vpack.c.b16 %v4603, %v4595
        %v6484 = vpack.c.b16 %v4604, %v4596
        %v6485 = vpack.c.b16 %v4605, %v4597
        %v6486 = vpack.c.b16 %v4606, %v4598
        %v6487 = vpack.c.b16 %v4607, %v4599
        %v6488 = vpack.c.b16 %v4608, %v4600
        %v6489 = vpack.c.b16 %v4609, %v4601
        %v6490 = vpack.c.b16 %v4610, %v4602
        %v6491 = vpack.c.b16 %v4619, %v4611
        %v6492 = vpack.c.b16 %v4620, %v4612
        %v6493 = vpack.c.b16 %v4621, %v4613
        %v6494 = vpack.c.b16 %v4622, %v4614
        %v6495 = vpack.c.b16 %v4623, %v4615
        %v6496 = vpack.c.b16 %v4624, %v4616
        %v6497 = vpack.c.b16 %v4625, %v4617
        %v6498 = vpack.c.b16 %v4626, %v4618
        %v6499 = vpack.c.b16 %v4635, %v4627
        %v6500 = vpack.c.b16 %v4636, %v4628
        %v6501 = vpack.c.b16 %v4637, %v4629
        %v6502 = vpack.c.b16 %v4638, %v4630
        %v6503 = vpack.c.b16 %v4639, %v4631
        %v6504 = vpack.c.b16 %v4640, %v4632
        %v6505 = vpack.c.b16 %v4641, %v4633
        %v6506 = vpack.c.b16 %v4642, %v4634
        %v6507 = vpack.c.b16 %v4651, %v4643
        %v6508 = vpack.c.b16 %v4652, %v4644
        %v6509 = vpack.c.b16 %v4653, %v4645
        %v6510 = vpack.c.b16 %v4654, %v4646
        %v6511 = vpack.c.b16 %v4655, %v4647
        %v6512 = vpack.c.b16 %v4656, %v4648
        %v6513 = vpack.c.b16 %v4657, %v4649
        %v6514 = vpack.c.b16 %v4658, %v4650
        %v6515 = vpack.c.b16 %v4667, %v4659
        %v6516 = vpack.c.b16 %v4668, %v4660
        %v6517 = vpack.c.b16 %v4669, %v4661
        %v6518 = vpack.c.b16 %v4670, %v4662
        %v6519 = vpack.c.b16 %v4671, %v4663
        %v6520 = vpack.c.b16 %v4672, %v4664
        %v6521 = vpack.c.b16 %v4673, %v4665
        %v6522 = vpack.c.b16 %v4674, %v4666
        %v6523 = vpack.c.b16 %v4683, %v4675
        %v6524 = vpack.c.b16 %v4684, %v4676
        %v6525 = vpack.c.b16 %v4685, %v4677
        %v6526 = vpack.c.b16 %v4686, %v4678
        %v6527 = vpack.c.b16 %v4687, %v4679
        %v6528 = vpack.c.b16 %v4688, %v4680
        %v6529 = vpack.c.b16 %v4689, %v4681
        %v6530 = vpack.c.b16 %v4690, %v4682
        %v6531 = vpack.c.b16 %v4699, %v4691
        %v6532 = vpack.c.b16 %v4700, %v4692
        %v6533 = vpack.c.b16 %v4701, %v4693
        %v6534 = vpack.c.b16 %v4702, %v4694
        %v6535 = vpack.c.b16 %v4703, %v4695
        %v6536 = vpack.c.b16 %v4704, %v4696
        %v6537 = vpack.c.b16 %v4705, %v4697
        %v6538 = vpack.c.b16 %v4706, %v4698
        %v6539 = vpack.c.b16 %v4715, %v4707
        %v6540 = vpack.c.b16 %v4716, %v4708
        %v6541 = vpack.c.b16 %v4717, %v4709
        %v6542 = vpack.c.b16 %v4718, %v4710
        %v6543 = vpack.c.b16 %v4719, %v4711
        %v6544 = vpack.c.b16 %v4720, %v4712
        %v6545 = vpack.c.b16 %v4721, %v4713
        %v6546 = vpack.c.b16 %v4722, %v4714
        %v6547 = vpack.c.b16 %v4731, %v4723
        %v6548 = vpack.c.b16 %v4732, %v4724
        %v6549 = vpack.c.b16 %v4733, %v4725
        %v6550 = vpack.c.b16 %v4734, %v4726
        %v6551 = vpack.c.b16 %v4735, %v4727
        %v6552 = vpack.c.b16 %v4736, %v4728
        %v6553 = vpack.c.b16 %v4737, %v4729
        %v6554 = vpack.c.b16 %v4738, %v4730
        %v6555 = vpack.c.b16 %v4747, %v4739
        %v6556 = vpack.c.b16 %v4748, %v4740
        %v6557 = vpack.c.b16 %v4749, %v4741
        %v6558 = vpack.c.b16 %v4750, %v4742
        %v6559 = vpack.c.b16 %v4751, %v4743
        %v6560 = vpack.c.b16 %v4752, %v4744
        %v6561 = vpack.c.b16 %v4753, %v4745
        %v6562 = vpack.c.b16 %v4754, %v4746
        %v6563 = vpack.c.b16 %v4763, %v4755
        %v6564 = vpack.c.b16 %v4764, %v4756
        %v6565 = vpack.c.b16 %v4765, %v4757
        %v6566 = vpack.c.b16 %v4766, %v4758
        %v6567 = vpack.c.b16 %v4767, %v4759
        %v6568 = vpack.c.b16 %v4768, %v4760
        %v6569 = vpack.c.b16 %v4769, %v4761
        %v6570 = vpack.c.b16 %v4770, %v4762
        %v6571 = vpack.c.b16 %v4779, %v4771
        %v6572 = vpack.c.b16 %v4780, %v4772
        %v6573 = vpack.c.b16 %v4781, %v4773
        %v6574 = vpack.c.b16 %v4782, %v4774
        %v6575 = vpack.c.b16 %v4783, %v4775
        %v6576 = vpack.c.b16 %v4784, %v4776
        %v6577 = vpack.c.b16 %v4785, %v4777
        %v6578 = vpack.c.b16 %v4786, %v4778
        %v6579 = vpack.c.b16 %v4795, %v4787
        %v6580 = vpack.c.b16 %v4796, %v4788
        %v6581 = vpack.c.b16 %v4797, %v4789
        %v6582 = vpack.c.b16 %v4798, %v4790
        %v6583 = vpack.c.b16 %v4799, %v4791
        %v6584 = vpack.c.b16 %v4800, %v4792
        %v6585 = vpack.c.b16 %v4801, %v4793
        %v6586 = vpack.c.b16 %v4802, %v4794
        %v6587 = vpack.c.b16 %v4811, %v4803
        %v6588 = vpack.c.b16 %v4812, %v4804
        %v6589 = vpack.c.b16 %v4813, %v4805
        %v6590 = vpack.c.b16 %v4814, %v4806
        %v6591 = vpack.c.b16 %v4815, %v4807
        %v6592 = vpack.c.b16 %v4816, %v4808
        %v6593 = vpack.c.b16 %v4817, %v4809
        %v6594 = vpack.c.b16 %v4818, %v4810
        %v6595 = vpack.c.b16 %v4827, %v4819
        %v6596 = vpack.c.b16 %v4828, %v4820
        %v6597 = vpack.c.b16 %v4829, %v4821
        %v6598 = vpack.c.b16 %v4830, %v4822
        %v6599 = vpack.c.b16 %v4831, %v4823
        %v6600 = vpack.c.b16 %v4832, %v4824
        %v6601 = vpack.c.b16 %v4833, %v4825
        %v6602 = vpack.c.b16 %v4834, %v4826
        %v6603 = vpack.c.b16 %v4843, %v4835
        %v6604 = vpack.c.b16 %v4844, %v4836
        %v6605 = vpack.c.b16 %v4845, %v4837
        %v6606 = vpack.c.b16 %v4846, %v4838
        %v6607 = vpack.c.b16 %v4847, %v4839
        %v6608 = vpack.c.b16 %v4848, %v4840
        %v6609 = vpack.c.b16 %v4849, %v4841
        %v6610 = vpack.c.b16 %v4850, %v4842
        %v6611 = vpack.c.b16 %v4859, %v4851
        %v6612 = vpack.c.b16 %v4860, %v4852
        %v6613 = vpack.c.b16 %v4861, %v4853
        %v6614 = vpack.c.b16 %v4862, %v4854
        %v6615 = vpack.c.b16 %v4863, %v4855
        %v6616 = vpack.c.b16 %v4864, %v4856
        %v6617 = vpack.c.b16 %v4865, %v4857
        %v6618 = vpack.c.b16 %v4866, %v4858
        %v6619 = vpack.c.b16 %v4875, %v4867
        %v6620 = vpack.c.b16 %v4876, %v4868
        %v6621 = vpack.c.b16 %v4877, %v4869
        %v6622 = vpack.c.b16 %v4878, %v4870
        %v6623 = vpack.c.b16 %v4879, %v4871
        %v6624 = vpack.c.b16 %v4880, %v4872
        %v6625 = vpack.c.b16 %v4881, %v4873
        %v6626 = vpack.c.b16 %v4882, %v4874
        %v6627 = vpack.c.b16 %v4891, %v4883
        %v6628 = vpack.c.b16 %v4892, %v4884
        %v6629 = vpack.c.b16 %v4893, %v4885
        %v6630 = vpack.c.b16 %v4894, %v4886
        %v6631 = vpack.c.b16 %v4895, %v4887
        %v6632 = vpack.c.b16 %v4896, %v4888
        %v6633 = vpack.c.b16 %v4897, %v4889
        %v6634 = vpack.c.b16 %v4898, %v4890
        %v6635 = vpack.c.b16 %v4907, %v4899
        %v6636 = vpack.c.b16 %v4908, %v4900
        %v6637 = vpack.c.b16 %v4909, %v4901
        %v6638 = vpack.c.b16 %v4910, %v4902
        %v6639 = vpack.c.b16 %v4911, %v4903
        %v6640 = vpack.c.b16 %v4912, %v4904
        %v6641 = vpack.c.b16 %v4913, %v4905
        %v6642 = vpack.c.b16 %v4914, %v4906
        %v6643 = vpack.c.b16 %v4923, %v4915
        %v6644 = vpack.c.b16 %v4924, %v4916
        %v6645 = vpack.c.b16 %v4925, %v4917
        %v6646 = vpack.c.b16 %v4926, %v4918
        %v6647 = vpack.c.b16 %v4927, %v4919
        %v6648 = vpack.c.b16 %v4928, %v4920
        %v6649 = vpack.c.b16 %v4929, %v4921
        %v6650 = vpack.c.b16 %v4930, %v4922
        %v6651 = vpack.c.b16 %v4939, %v4931
        %v6652 = vpack.c.b16 %v4940, %v4932
        %v6653 = vpack.c.b16 %v4941, %v4933
        %v6654 = vpack.c.b16 %v4942, %v4934
        %v6655 = vpack.c.b16 %v4943, %v4935
        %v6656 = vpack.c.b16 %v4944, %v4936
        %v6657 = vpack.c.b16 %v4945, %v4937
        %v6658 = vpack.c.b16 %v4946, %v4938
        %v6659 = vpack.c.b16 %v4955, %v4947
        %v6660 = vpack.c.b16 %v4956, %v4948
        %v6661 = vpack.c.b16 %v4957, %v4949
        %v6662 = vpack.c.b16 %v4958, %v4950
        %v6663 = vpack.c.b16 %v4959, %v4951
        %v6664 = vpack.c.b16 %v4960, %v4952
        %v6665 = vpack.c.b16 %v4961, %v4953
        %v6666 = vpack.c.b16 %v4962, %v4954
        %v6667 = vpack.c.b16 %v4971, %v4963
        %v6668 = vpack.c.b16 %v4972, %v4964
        %v6669 = vpack.c.b16 %v4973, %v4965
        %v6670 = vpack.c.b16 %v4974, %v4966
        %v6671 = vpack.c.b16 %v4975, %v4967
        %v6672 = vpack.c.b16 %v4976, %v4968
        %v6673 = vpack.c.b16 %v4977, %v4969
        %v6674 = vpack.c.b16 %v4978, %v4970
        %v6675 = vpack.c.b16 %v4987, %v4979
        %v6676 = vpack.c.b16 %v4988, %v4980
        %v6677 = vpack.c.b16 %v4989, %v4981
        %v6678 = vpack.c.b16 %v4990, %v4982
        %v6679 = vpack.c.b16 %v4991, %v4983
        %v6680 = vpack.c.b16 %v4992, %v4984
        %v6681 = vpack.c.b16 %v4993, %v4985
        %v6682 = vpack.c.b16 %v4994, %v4986
        %v6683 = vpack.c.b16 %v5003, %v4995
        %v6684 = vpack.c.b16 %v5004, %v4996
        %v6685 = vpack.c.b16 %v5005, %v4997
        %v6686 = vpack.c.b16 %v5006, %v4998
        %v6687 = vpack.c.b16 %v5007, %v4999
        %v6688 = vpack.c.b16 %v5008, %v5000
        %v6689 = vpack.c.b16 %v5009, %v5001
        %v6690 = vpack.c.b16 %v5010, %v5002
        %v6691 = vpack.c.b16 %v5019, %v5011
        %v6692 = vpack.c.b16 %v5020, %v5012
        %v6693 = vpack.c.b16 %v5021, %v5013
        %v6694 = vpack.c.b16 %v5022, %v5014
        %v6695 = vpack.c.b16 %v5023, %v5015
        %v6696 = vpack.c.b16 %v5024, %v5016
        %v6697 = vpack.c.b16 %v5025, %v5017
        %v6698 = vpack.c.b16 %v5026, %v5018
        %v6699 = vpack.c.b16 %v5035, %v5027
        %v6700 = vpack.c.b16 %v5036, %v5028
        %v6701 = vpack.c.b16 %v5037, %v5029
        %v6702 = vpack.c.b16 %v5038, %v5030
        %v6703 = vpack.c.b16 %v5039, %v5031
        %v6704 = vpack.c.b16 %v5040, %v5032
        %v6705 = vpack.c.b16 %v5041, %v5033
        %v6706 = vpack.c.b16 %v5042, %v5034
        %v6707 = vpack.c.b16 %v5051, %v5043
        %v6708 = vpack.c.b16 %v5052, %v5044
        %v6709 = vpack.c.b16 %v5053, %v5045
        %v6710 = vpack.c.b16 %v5054, %v5046
        %v6711 = vpack.c.b16 %v5055, %v5047
        %v6712 = vpack.c.b16 %v5056, %v5048
        %v6713 = vpack.c.b16 %v5057, %v5049
        %v6714 = vpack.c.b16 %v5058, %v5050
        %v6715 = vpack.c.b16 %v5067, %v5059
        %v6716 = vpack.c.b16 %v5068, %v5060
        %v6717 = vpack.c.b16 %v5069, %v5061
        %v6718 = vpack.c.b16 %v5070, %v5062
        %v6719 = vpack.c.b16 %v5071, %v5063
        %v6720 = vpack.c.b16 %v5072, %v5064
        %v6721 = vpack.c.b16 %v5073, %v5065
        %v6722 = vpack.c.b16 %v5074, %v5066
        %v6723 = vpack.c.b16 %v5083, %v5075
        %v6724 = vpack.c.b16 %v5084, %v5076
        %v6725 = vpack.c.b16 %v5085, %v5077
        %v6726 = vpack.c.b16 %v5086, %v5078
        %v6727 = vpack.c.b16 %v5087, %v5079
        %v6728 = vpack.c.b16 %v5088, %v5080
        %v6729 = vpack.c.b16 %v5089, %v5081
        %v6730 = vpack.c.b16 %v5090, %v5082
        %v6731 = vpack.c.b16 %v5099, %v5091
        %v6732 = vpack.c.b16 %v5100, %v5092
        %v6733 = vpack.c.b16 %v5101, %v5093
        %v6734 = vpack.c.b16 %v5102, %v5094
        %v6735 = vpack.c.b16 %v5103, %v5095
        %v6736 = vpack.c.b16 %v5104, %v5096
        %v6737 = vpack.c.b16 %v5105, %v5097
        %v6738 = vpack.c.b16 %v5106, %v5098
        %v6739 = vpack.c.b16 %v5115, %v5107
        %v6740 = vpack.c.b16 %v5116, %v5108
        %v6741 = vpack.c.b16 %v5117, %v5109
        %v6742 = vpack.c.b16 %v5118, %v5110
        %v6743 = vpack.c.b16 %v5119, %v5111
        %v6744 = vpack.c.b16 %v5120, %v5112
        %v6745 = vpack.c.b16 %v5121, %v5113
        %v6746 = vpack.c.b16 %v5122, %v5114
        %v6747 = vpack.c.b16 %v5131, %v5123
        %v6748 = vpack.c.b16 %v5132, %v5124
        %v6749 = vpack.c.b16 %v5133, %v5125
        %v6750 = vpack.c.b16 %v5134, %v5126
        %v6751 = vpack.c.b16 %v5135, %v5127
        %v6752 = vpack.c.b16 %v5136, %v5128
        %v6753 = vpack.c.b16 %v5137, %v5129
        %v6754 = vpack.c.b16 %v5138, %v5130
        %v6755 = vpack.c.b16 %v5147, %v5139
        %v6756 = vpack.c.b16 %v5148, %v5140
        %v6757 = vpack.c.b16 %v5149, %v5141
        %v6758 = vpack.c.b16 %v5150, %v5142
        %v6759 = vpack.c.b16 %v5151, %v5143
        %v6760 = vpack.c.b16 %v5152, %v5144
        %v6761 = vpack.c.b16 %v5153, %v5145
        %v6762 = vpack.c.b16 %v5154, %v5146
        %v6763 = vpack.c.b16 %v5163, %v5155
        %v6764 = vpack.c.b16 %v5164, %v5156
        %v6765 = vpack.c.b16 %v5165, %v5157
        %v6766 = vpack.c.b16 %v5166, %v5158
        %v6767 = vpack.c.b16 %v5167, %v5159
        %v6768 = vpack.c.b16 %v5168, %v5160
        %v6769 = vpack.c.b16 %v5169, %v5161
        %v6770 = vpack.c.b16 %v5170, %v5162
        %v6771 = vpack.c.b16 %v5179, %v5171
        %v6772 = vpack.c.b16 %v5180, %v5172
        %v6773 = vpack.c.b16 %v5181, %v5173
        %v6774 = vpack.c.b16 %v5182, %v5174
        %v6775 = vpack.c.b16 %v5183, %v5175
        %v6776 = vpack.c.b16 %v5184, %v5176
        %v6777 = vpack.c.b16 %v5185, %v5177
        %v6778 = vpack.c.b16 %v5186, %v5178
        %v6779 = vpack.c.b16 %v5195, %v5187
        %v6780 = vpack.c.b16 %v5196, %v5188
        %v6781 = vpack.c.b16 %v5197, %v5189
        %v6782 = vpack.c.b16 %v5198, %v5190
        %v6783 = vpack.c.b16 %v5199, %v5191
        %v6784 = vpack.c.b16 %v5200, %v5192
        %v6785 = vpack.c.b16 %v5201, %v5193
        %v6786 = vpack.c.b16 %v5202, %v5194
        %v6787 = vpack.c.b16 %v5211, %v5203
        %v6788 = vpack.c.b16 %v5212, %v5204
        %v6789 = vpack.c.b16 %v5213, %v5205
        %v6790 = vpack.c.b16 %v5214, %v5206
        %v6791 = vpack.c.b16 %v5215, %v5207
        %v6792 = vpack.c.b16 %v5216, %v5208
        %v6793 = vpack.c.b16 %v5217, %v5209
        %v6794 = vpack.c.b16 %v5218, %v5210
        %v6795 = vpack.c.b16 %v5227, %v5219
        %v6796 = vpack.c.b16 %v5228, %v5220
        %v6797 = vpack.c.b16 %v5229, %v5221
        %v6798 = vpack.c.b16 %v5230, %v5222
        %v6799 = vpack.c.b16 %v5231, %v5223
        %v6800 = vpack.c.b16 %v5232, %v5224
        %v6801 = vpack.c.b16 %v5233, %v5225
        %v6802 = vpack.c.b16 %v5234, %v5226
        %v6803 = vpack.c.b16 %v5243, %v5235
        %v6804 = vpack.c.b16 %v5244, %v5236
        %v6805 = vpack.c.b16 %v5245, %v5237
        %v6806 = vpack.c.b16 %v5246, %v5238
        %v6807 = vpack.c.b16 %v5247, %v5239
        %v6808 = vpack.c.b16 %v5248, %v5240
        %v6809 = vpack.c.b16 %v5249, %v5241
        %v6810 = vpack.c.b16 %v5250, %v5242
        %v6811 = vpack.c.b16 %v5259, %v5251
        %v6812 = vpack.c.b16 %v5260, %v5252
        %v6813 = vpack.c.b16 %v5261, %v5253
        %v6814 = vpack.c.b16 %v5262, %v5254
        %v6815 = vpack.c.b16 %v5263, %v5255
        %v6816 = vpack.c.b16 %v5264, %v5256
        %v6817 = vpack.c.b16 %v5265, %v5257
        %v6818 = vpack.c.b16 %v5266, %v5258
        %v6819 = vpack.c.b16 %v5275, %v5267
        %v6820 = vpack.c.b16 %v5276, %v5268
        %v6821 = vpack.c.b16 %v5277, %v5269
        %v6822 = vpack.c.b16 %v5278, %v5270
        %v6823 = vpack.c.b16 %v5279, %v5271
        %v6824 = vpack.c.b16 %v5280, %v5272
        %v6825 = vpack.c.b16 %v5281, %v5273
        %v6826 = vpack.c.b16 %v5282, %v5274
        %v6827 = vpack.c.b16 %v5291, %v5283
        %v6828 = vpack.c.b16 %v5292, %v5284
        %v6829 = vpack.c.b16 %v5293, %v5285
        %v6830 = vpack.c.b16 %v5294, %v5286
        %v6831 = vpack.c.b16 %v5295, %v5287
        %v6832 = vpack.c.b16 %v5296, %v5288
        %v6833 = vpack.c.b16 %v5297, %v5289
        %v6834 = vpack.c.b16 %v5298, %v5290
        %v6835 = vpack.c.b16 %v5307, %v5299
        %v6836 = vpack.c.b16 %v5308, %v5300
        %v6837 = vpack.c.b16 %v5309, %v5301
        %v6838 = vpack.c.b16 %v5310, %v5302
        %v6839 = vpack.c.b16 %v5311, %v5303
        %v6840 = vpack.c.b16 %v5312, %v5304
        %v6841 = vpack.c.b16 %v5313, %v5305
        %v6842 = vpack.c.b16 %v5314, %v5306
        %v6843 = vpack.c.b16 %v5323, %v5315
        %v6844 = vpack.c.b16 %v5324, %v5316
        %v6845 = vpack.c.b16 %v5325, %v5317
        %v6846 = vpack.c.b16 %v5326, %v5318
        %v6847 = vpack.c.b16 %v5327, %v5319
        %v6848 = vpack.c.b16 %v5328, %v5320
        %v6849 = vpack.c.b16 %v5329, %v5321
        %v6850 = vpack.c.b16 %v5330, %v5322
        %v6851 = vpack.c.b16 %v5339, %v5331
        %v6852 = vpack.c.b16 %v5340, %v5332
        %v6853 = vpack.c.b16 %v5341, %v5333
        %v6854 = vpack.c.b16 %v5342, %v5334
        %v6855 = vpack.c.b16 %v5343, %v5335
        %v6856 = vpack.c.b16 %v5344, %v5336
        %v6857 = vpack.c.b16 %v5345, %v5337
        %v6858 = vpack.c.b16 %v5346, %v5338
        %v6859 = vpack.c.b16 %v5355, %v5347
        %v6860 = vpack.c.b16 %v5356, %v5348
        %v6861 = vpack.c.b16 %v5357, %v5349
        %v6862 = vpack.c.b16 %v5358, %v5350
        %v6863 = vpack.c.b16 %v5359, %v5351
        %v6864 = vpack.c.b16 %v5360, %v5352
        %v6865 = vpack.c.b16 %v5361, %v5353
        %v6866 = vpack.c.b16 %v5362, %v5354
        %v6867 = vpack.c.b16 %v5371, %v5363
        %v6868 = vpack.c.b16 %v5372, %v5364
        %v6869 = vpack.c.b16 %v5373, %v5365
        %v6870 = vpack.c.b16 %v5374, %v5366
        %v6871 = vpack.c.b16 %v5375, %v5367
        %v6872 = vpack.c.b16 %v5376, %v5368
        %v6873 = vpack.c.b16 %v5377, %v5369
        %v6874 = vpack.c.b16 %v5378, %v5370
        %v6875 = vpack.c.b16 %v5387, %v5379
        %v6876 = vpack.c.b16 %v5388, %v5380
        %v6877 = vpack.c.b16 %v5389, %v5381
        %v6878 = vpack.c.b16 %v5390, %v5382
        %v6879 = vpack.c.b16 %v5391, %v5383
        %v6880 = vpack.c.b16 %v5392, %v5384
        %v6881 = vpack.c.b16 %v5393, %v5385
        %v6882 = vpack.c.b16 %v5394, %v5386
        %v6883 = vpack.c.b16 %v5403, %v5395
        %v6884 = vpack.c.b16 %v5404, %v5396
        %v6885 = vpack.c.b16 %v5405, %v5397
        %v6886 = vpack.c.b16 %v5406, %v5398
        %v6887 = vpack.c.b16 %v5407, %v5399
        %v6888 = vpack.c.b16 %v5408, %v5400
        %v6889 = vpack.c.b16 %v5409, %v5401
        %v6890 = vpack.c.b16 %v5410, %v5402
        %v6891 = vpack.c.b16 %v5419, %v5411
        %v6892 = vpack.c.b16 %v5420, %v5412
        %v6893 = vpack.c.b16 %v5421, %v5413
        %v6894 = vpack.c.b16 %v5422, %v5414
        %v6895 = vpack.c.b16 %v5423, %v5415
        %v6896 = vpack.c.b16 %v5424, %v5416
        %v6897 = vpack.c.b16 %v5425, %v5417
        %v6898 = vpack.c.b16 %v5426, %v5418
        %v6899 = vpack.c.b16 %v5435, %v5427
        %v6900 = vpack.c.b16 %v5436, %v5428
        %v6901 = vpack.c.b16 %v5437, %v5429
        %v6902 = vpack.c.b16 %v5438, %v5430
        %v6903 = vpack.c.b16 %v5439, %v5431
        %v6904 = vpack.c.b16 %v5440, %v5432
        %v6905 = vpack.c.b16 %v5441, %v5433
        %v6906 = vpack.c.b16 %v5442, %v5434
        %v6907 = vpack.c.b16 %v5451, %v5443
        %v6908 = vpack.c.b16 %v5452, %v5444
        %v6909 = vpack.c.b16 %v5453, %v5445
        %v6910 = vpack.c.b16 %v5454, %v5446
        %v6911 = vpack.c.b16 %v5455, %v5447
        %v6912 = vpack.c.b16 %v5456, %v5448
        %v6913 = vpack.c.b16 %v5457, %v5449
        %v6914 = vpack.c.b16 %v5458, %v5450
        %v6915 = vpack.c.b16 %v5467, %v5459
        %v6916 = vpack.c.b16 %v5468, %v5460
        %v6917 = vpack.c.b16 %v5469, %v5461
        %v6918 = vpack.c.b16 %v5470, %v5462
        %v6919 = vpack.c.b16 %v5471, %v5463
        %v6920 = vpack.c.b16 %v5472, %v5464
        %v6921 = vpack.c.b16 %v5473, %v5465
        %v6922 = vpack.c.b16 %v5474, %v5466
        %v6923 = vpack.c.b16 %v5483, %v5475
        %v6924 = vpack.c.b16 %v5484, %v5476
        %v6925 = vpack.c.b16 %v5485, %v5477
        %v6926 = vpack.c.b16 %v5486, %v5478
        %v6927 = vpack.c.b16 %v5487, %v5479
        %v6928 = vpack.c.b16 %v5488, %v5480
        %v6929 = vpack.c.b16 %v5489, %v5481
        %v6930 = vpack.c.b16 %v5490, %v5482
        %v6931 = vpack.c.b16 %v5499, %v5491
        %v6932 = vpack.c.b16 %v5500, %v5492
        %v6933 = vpack.c.b16 %v5501, %v5493
        %v6934 = vpack.c.b16 %v5502, %v5494
        %v6935 = vpack.c.b16 %v5503, %v5495
        %v6936 = vpack.c.b16 %v5504, %v5496
        %v6937 = vpack.c.b16 %v5505, %v5497
        %v6938 = vpack.c.b16 %v5506, %v5498
        %v6939 = vpack.c.b16 %v5515, %v5507
        %v6940 = vpack.c.b16 %v5516, %v5508
        %v6941 = vpack.c.b16 %v5517, %v5509
        %v6942 = vpack.c.b16 %v5518, %v5510
        %v6943 = vpack.c.b16 %v5519, %v5511
        %v6944 = vpack.c.b16 %v5520, %v5512
        %v6945 = vpack.c.b16 %v5521, %v5513
        %v6946 = vpack.c.b16 %v5522, %v5514
        %v6947 = vpack.c.b16 %v5531, %v5523
        %v6948 = vpack.c.b16 %v5532, %v5524
        %v6949 = vpack.c.b16 %v5533, %v5525
        %v6950 = vpack.c.b16 %v5534, %v5526
        %v6951 = vpack.c.b16 %v5535, %v5527
        %v6952 = vpack.c.b16 %v5536, %v5528
        %v6953 = vpack.c.b16 %v5537, %v5529
        %v6954 = vpack.c.b16 %v5538, %v5530
        %v6955 = vpack.c.b16 %v5547, %v5539
        %v6956 = vpack.c.b16 %v5548, %v5540
        %v6957 = vpack.c.b16 %v5549, %v5541
        %v6958 = vpack.c.b16 %v5550, %v5542
        %v6959 = vpack.c.b16 %v5551, %v5543
        %v6960 = vpack.c.b16 %v5552, %v5544
        %v6961 = vpack.c.b16 %v5553, %v5545
        %v6962 = vpack.c.b16 %v5554, %v5546
        %v6963 = vpack.c.b16 %v5563, %v5555
        %v6964 = vpack.c.b16 %v5564, %v5556
        %v6965 = vpack.c.b16 %v5565, %v5557
        %v6966 = vpack.c.b16 %v5566, %v5558
        %v6967 = vpack.c.b16 %v5567, %v5559
        %v6968 = vpack.c.b16 %v5568, %v5560
        %v6969 = vpack.c.b16 %v5569, %v5561
        %v6970 = vpack.c.b16 %v5570, %v5562
        %v6971 = vpack.c.b16 %v5579, %v5571
        %v6972 = vpack.c.b16 %v5580, %v5572
        %v6973 = vpack.c.b16 %v5581, %v5573
        %v6974 = vpack.c.b16 %v5582, %v5574
        %v6975 = vpack.c.b16 %v5583, %v5575
        %v6976 = vpack.c.b16 %v5584, %v5576
        %v6977 = vpack.c.b16 %v5585, %v5577
        %v6978 = vpack.c.b16 %v5586, %v5578
        %v6979 = vpack.c.b16 %v5595, %v5587
        %v6980 = vpack.c.b16 %v5596, %v5588
        %v6981 = vpack.c.b16 %v5597, %v5589
        %v6982 = vpack.c.b16 %v5598, %v5590
        %v6983 = vpack.c.b16 %v5599, %v5591
        %v6984 = vpack.c.b16 %v5600, %v5592
        %v6985 = vpack.c.b16 %v5601, %v5593
        %v6986 = vpack.c.b16 %v5602, %v5594
        %v6987 = vpack.c.b16 %v5611, %v5603
        %v6988 = vpack.c.b16 %v5612, %v5604
        %v6989 = vpack.c.b16 %v5613, %v5605
        %v6990 = vpack.c.b16 %v5614, %v5606
        %v6991 = vpack.c.b16 %v5615, %v5607
        %v6992 = vpack.c.b16 %v5616, %v5608
        %v6993 = vpack.c.b16 %v5617, %v5609
        %v6994 = vpack.c.b16 %v5618, %v5610
        %v6995 = vpack.c.b16 %v5627, %v5619
        %v6996 = vpack.c.b16 %v5628, %v5620
        %v6997 = vpack.c.b16 %v5629, %v5621
        %v6998 = vpack.c.b16 %v5630, %v5622
        %v6999 = vpack.c.b16 %v5631, %v5623
        %v7000 = vpack.c.b16 %v5632, %v5624
        %v7001 = vpack.c.b16 %v5633, %v5625
        %v7002 = vpack.c.b16 %v5634, %v5626
        %v7003 = vpack.c.b16 %v5643, %v5635
        %v7004 = vpack.c.b16 %v5644, %v5636
        %v7005 = vpack.c.b16 %v5645, %v5637
        %v7006 = vpack.c.b16 %v5646, %v5638
        %v7007 = vpack.c.b16 %v5647, %v5639
        %v7008 = vpack.c.b16 %v5648, %v5640
        %v7009 = vpack.c.b16 %v5649, %v5641
        %v7010 = vpack.c.b16 %v5650, %v5642
        %v7011 = vpack.c.b16 %v5659, %v5651
        %v7012 = vpack.c.b16 %v5660, %v5652
        %v7013 = vpack.c.b16 %v5661, %v5653
        %v7014 = vpack.c.b16 %v5662, %v5654
        %v7015 = vpack.c.b16 %v5663, %v5655
        %v7016 = vpack.c.b16 %v5664, %v5656
        %v7017 = vpack.c.b16 %v5665, %v5657
        %v7018 = vpack.c.b16 %v5666, %v5658
        %v7019 = vpack.c.b16 %v5675, %v5667
        %v7020 = vpack.c.b16 %v5676, %v5668
        %v7021 = vpack.c.b16 %v5677, %v5669
        %v7022 = vpack.c.b16 %v5678, %v5670
        %v7023 = vpack.c.b16 %v5679, %v5671
        %v7024 = vpack.c.b16 %v5680, %v5672
        %v7025 = vpack.c.b16 %v5681, %v5673
        %v7026 = vpack.c.b16 %v5682, %v5674
        %v7027 = vpack.c.b16 %v5691, %v5683
        %v7028 = vpack.c.b16 %v5692, %v5684
        %v7029 = vpack.c.b16 %v5693, %v5685
        %v7030 = vpack.c.b16 %v5694, %v5686
        %v7031 = vpack.c.b16 %v5695, %v5687
        %v7032 = vpack.c.b16 %v5696, %v5688
        %v7033 = vpack.c.b16 %v5697, %v5689
        %v7034 = vpack.c.b16 %v5698, %v5690
        %v7035 = vpack.c.b16 %v5707, %v5699
        %v7036 = vpack.c.b16 %v5708, %v5700
        %v7037 = vpack.c.b16 %v5709, %v5701
        %v7038 = vpack.c.b16 %v5710, %v5702
        %v7039 = vpack.c.b16 %v5711, %v5703
        %v7040 = vpack.c.b16 %v5712, %v5704
        %v7041 = vpack.c.b16 %v5713, %v5705
        %v7042 = vpack.c.b16 %v5714, %v5706
        %v7043 = vpack.c.b16 %v5723, %v5715
        %v7044 = vpack.c.b16 %v5724, %v5716
        %v7045 = vpack.c.b16 %v5725, %v5717
        %v7046 = vpack.c.b16 %v5726, %v5718
        %v7047 = vpack.c.b16 %v5727, %v5719
        %v7048 = vpack.c.b16 %v5728, %v5720
        %v7049 = vpack.c.b16 %v5729, %v5721
        %v7050 = vpack.c.b16 %v5730, %v5722
        %v7051 = vpack.c.b16 %v5739, %v5731
        %v7052 = vpack.c.b16 %v5740, %v5732
        %v7053 = vpack.c.b16 %v5741, %v5733
        %v7054 = vpack.c.b16 %v5742, %v5734
        %v7055 = vpack.c.b16 %v5743, %v5735
        %v7056 = vpack.c.b16 %v5744, %v5736
        %v7057 = vpack.c.b16 %v5745, %v5737
        %v7058 = vpack.c.b16 %v5746, %v5738
        %v7059 = vpack.c.b16 %v5755, %v5747
        %v7060 = vpack.c.b16 %v5756, %v5748
        %v7061 = vpack.c.b16 %v5757, %v5749
        %v7062 = vpack.c.b16 %v5758, %v5750
        %v7063 = vpack.c.b16 %v5759, %v5751
        %v7064 = vpack.c.b16 %v5760, %v5752
        %v7065 = vpack.c.b16 %v5761, %v5753
        %v7066 = vpack.c.b16 %v5762, %v5754
        %v7067 = vpack.c.b16 %v5771, %v5763
        %v7068 = vpack.c.b16 %v5772, %v5764
        %v7069 = vpack.c.b16 %v5773, %v5765
        %v7070 = vpack.c.b16 %v5774, %v5766
        %v7071 = vpack.c.b16 %v5775, %v5767
        %v7072 = vpack.c.b16 %v5776, %v5768
        %v7073 = vpack.c.b16 %v5777, %v5769
        %v7074 = vpack.c.b16 %v5778, %v5770
        %v7075 = vpack.c.b16 %v5787, %v5779
        %v7076 = vpack.c.b16 %v5788, %v5780
        %v7077 = vpack.c.b16 %v5789, %v5781
        %v7078 = vpack.c.b16 %v5790, %v5782
        %v7079 = vpack.c.b16 %v5791, %v5783
        %v7080 = vpack.c.b16 %v5792, %v5784
        %v7081 = vpack.c.b16 %v5793, %v5785
        %v7082 = vpack.c.b16 %v5794, %v5786
        %v7083 = vpack.c.b16 %v5803, %v5795
        %v7084 = vpack.c.b16 %v5804, %v5796
        %v7085 = vpack.c.b16 %v5805, %v5797
        %v7086 = vpack.c.b16 %v5806, %v5798
        %v7087 = vpack.c.b16 %v5807, %v5799
        %v7088 = vpack.c.b16 %v5808, %v5800
        %v7089 = vpack.c.b16 %v5809, %v5801
        %v7090 = vpack.c.b16 %v5810, %v5802
        %8371 = vmatprep.subr.bf16.mxu0 %v5812
        %8372 = vmatpush1.bf16.msra.mxu0 %v5811
        %8373 = vmatprep.subr.bf16.mxu0 %v5820
        %8374 = vmatpush1.bf16.msra.mxu0 %v5819
        %8375 = vmatprep.subr.bf16.mxu0 %v5828
        %8376 = vmatpush1.bf16.msra.mxu0 %v5827
        %8377 = vmatprep.subr.bf16.mxu0 %v5836
        %8378 = vmatpush1.bf16.msra.mxu0 %v5835
        %8379 = vmatprep.subr.bf16.mxu0 %v5844
        %8380 = vmatpush1.bf16.msra.mxu0 %v5843
        %8381 = vmatprep.subr.bf16.mxu0 %v5852
        %8382 = vmatpush1.bf16.msra.mxu0 %v5851
        %8383 = vmatprep.subr.bf16.mxu0 %v5860
        %8384 = vmatpush1.bf16.msra.mxu0 %v5859
        %8385 = vmatprep.subr.bf16.mxu0 %v5868
        %8386 = vmatpush1.bf16.msra.mxu0 %v5867
        %8387 = vmatprep.subr.bf16.mxu0 %v5876
        %8388 = vmatpush1.bf16.msra.mxu0 %v5875
        %8389 = vmatprep.subr.bf16.mxu0 %v5884
        %8390 = vmatpush1.bf16.msra.mxu0 %v5883
        %8391 = vmatprep.subr.bf16.mxu0 %v5892
        %8392 = vmatpush1.bf16.msra.mxu0 %v5891
        %8393 = vmatprep.subr.bf16.mxu0 %v5900
        %8394 = vmatpush1.bf16.msra.mxu0 %v5899
        %8395 = vmatprep.subr.bf16.mxu0 %v5908
        %8396 = vmatpush1.bf16.msra.mxu0 %v5907
        %8397 = vmatprep.subr.bf16.mxu0 %v5916
        %8398 = vmatpush1.bf16.msra.mxu0 %v5915
        %8399 = vmatprep.subr.bf16.mxu0 %v5924
        %8400 = vmatpush1.bf16.msra.mxu0 %v5923
        %8401 = vmatprep.subr.bf16.mxu0 %v5932
        %8402 = vmatpush1.bf16.msra.mxu0 %v5931
        %8403 = vmatprep.mubr.bf16.mxu0 %v1932
        %8404 = vmatmul.mubr.bf16.gmra.mrb[0].mxu0 %v1931
        %v8405 = vpop.f32.mrb[0].mxu0
        %v8406 = vadd.f32 0.0, %v8405
        %v8407 = vpop.f32.mrb[0].mxu0
        %v8408 = vadd.f32 0.0, %v8407
        %v8409 = vpop.f32.mrb[0].mxu0
        %v8410 = vpop.f32.mrb[0].mxu0
        %8411 = vdwg.mxu0
        %8412 = vmatprep.subr.bf16.mxu0 %v5940
        %8413 = vmatpush1.bf16.msra.mxu0 %v5939
        %8414 = vmatprep.subr.bf16.mxu0 %v5948
        %8415 = vmatpush1.bf16.msra.mxu0 %v5947
        %8416 = vmatprep.subr.bf16.mxu0 %v5956
        %8417 = vmatpush1.bf16.msra.mxu0 %v5955
        %8418 = vmatprep.subr.bf16.mxu0 %v5964
        %8419 = vmatpush1.bf16.msra.mxu0 %v5963
        %8420 = vmatprep.subr.bf16.mxu0 %v5972
        %8421 = vmatpush1.bf16.msra.mxu0 %v5971
        %8422 = vmatprep.subr.bf16.mxu0 %v5980
        %8423 = vmatpush1.bf16.msra.mxu0 %v5979
        %8424 = vmatprep.subr.bf16.mxu0 %v5988
        %8425 = vmatpush1.bf16.msra.mxu0 %v5987
        %8426 = vmatprep.subr.bf16.mxu0 %v5996
        %8427 = vmatpush1.bf16.msra.mxu0 %v5995
        %8428 = vmatprep.subr.bf16.mxu0 %v6004
        %8429 = vmatpush1.bf16.msra.mxu0 %v6003
        %8430 = vmatprep.subr.bf16.mxu0 %v6012
        %8431 = vmatpush1.bf16.msra.mxu0 %v6011
        %8432 = vmatprep.subr.bf16.mxu0 %v6020
        %8433 = vmatpush1.bf16.msra.mxu0 %v6019
        %8434 = vmatprep.subr.bf16.mxu0 %v6028
        %8435 = vmatpush1.bf16.msra.mxu0 %v6027
        %8436 = vmatprep.subr.bf16.mxu0 %v6036
        %8437 = vmatpush1.bf16.msra.mxu0 %v6035
        %8438 = vmatprep.subr.bf16.mxu0 %v6044
        %8439 = vmatpush1.bf16.msra.mxu0 %v6043
        %8440 = vmatprep.subr.bf16.mxu0 %v6052
        %8441 = vmatpush1.bf16.msra.mxu0 %v6051
        %8442 = vmatprep.subr.bf16.mxu0 %v6060
        %8443 = vmatpush1.bf16.msra.mxu0 %v6059
        %8444 = vmatprep.mubr.bf16.mxu0 %v1934
        %8445 = vmatmul.mubr.bf16.gmra.mrb[0].mxu0 %v1933
        %v8446 = vpop.f32.mrb[0].mxu0
        %v8447 = vadd.f32 %v8406, %v8446
        %v8448 = vpop.f32.mrb[0].mxu0
        %v8449 = vadd.f32 %v8408, %v8448
        %v8450 = vpop.f32.mrb[0].mxu0
        %v8451 = vpop.f32.mrb[0].mxu0
        %8452 = vdwg.mxu0
        %8453 = vmatprep.subr.bf16.mxu0 %v6068
        %8454 = vmatpush1.bf16.msra.mxu0 %v6067
        %8455 = vmatprep.subr.bf16.mxu0 %v6076
        %8456 = vmatpush1.bf16.msra.mxu0 %v6075
        %8457 = vmatprep.subr.bf16.mxu0 %v6084
        %8458 = vmatpush1.bf16.msra.mxu0 %v6083
        %8459 = vmatprep.subr.bf16.mxu0 %v6092
        %8460 = vmatpush1.bf16.msra.mxu0 %v6091
        %8461 = vmatprep.subr.bf16.mxu0 %v6100
        %8462 = vmatpush1.bf16.msra.mxu0 %v6099
        %8463 = vmatprep.subr.bf16.mxu0 %v6108
        %8464 = vmatpush1.bf16.msra.mxu0 %v6107
        %8465 = vmatprep.subr.bf16.mxu0 %v6116
        %8466 = vmatpush1.bf16.msra.mxu0 %v6115
        %8467 = vmatprep.subr.bf16.mxu0 %v6124
        %8468 = vmatpush1.bf16.msra.mxu0 %v6123
        %8469 = vmatprep.subr.bf16.mxu0 %v6132
        %8470 = vmatpush1.bf16.msra.mxu0 %v6131
        %8471 = vmatprep.subr.bf16.mxu0 %v6140
        %8472 = vmatpush1.bf16.msra.mxu0 %v6139
        %8473 = vmatprep.subr.bf16.mxu0 %v6148
        %8474 = vmatpush1.bf16.msra.mxu0 %v6147
        %8475 = vmatprep.subr.bf16.mxu0 %v6156
        %8476 = vmatpush1.bf16.msra.mxu0 %v6155
        %8477 = vmatprep.subr.bf16.mxu0 %v6164
        %8478 = vmatpush1.bf16.msra.mxu0 %v6163
        %8479 = vmatprep.subr.bf16.mxu0 %v6172
        %8480 = vmatpush1.bf16.msra.mxu0 %v6171
        %8481 = vmatprep.subr.bf16.mxu0 %v6180
        %8482 = vmatpush1.bf16.msra.mxu0 %v6179
        %8483 = vmatprep.subr.bf16.mxu0 %v6188
        %8484 = vmatpush1.bf16.msra.mxu0 %v6187
        %8485 = vmatprep.mubr.bf16.mxu0 %v1936
        %8486 = vmatmul.mubr.bf16.gmra.mrb[0].mxu0 %v1935
        %v8487 = vpop.f32.mrb[0].mxu0
        %v8488 = vadd.f32 %v8447, %v8487
        %v8489 = vpop.f32.mrb[0].mxu0
        %v8490 = vadd.f32 %v8449, %v8489
        %v8491 = vpop.f32.mrb[0].mxu0
        %v8492 = vpop.f32.mrb[0].mxu0
        %8493 = vdwg.mxu0
        %8494 = vmatprep.subr.bf16.mxu0 %v6196
        %8495 = vmatpush1.bf16.msra.mxu0 %v6195
        %8496 = vmatprep.subr.bf16.mxu0 %v6204
        %8497 = vmatpush1.bf16.msra.mxu0 %v6203
        %8498 = vmatprep.subr.bf16.mxu0 %v6212
        %8499 = vmatpush1.bf16.msra.mxu0 %v6211
        %8500 = vmatprep.subr.bf16.mxu0 %v6220
        %8501 = vmatpush1.bf16.msra.mxu0 %v6219
        %8502 = vmatprep.subr.bf16.mxu0 %v6228
        %8503 = vmatpush1.bf16.msra.mxu0 %v6227
        %8504 = vmatprep.subr.bf16.mxu0 %v6236
        %8505 = vmatpush1.bf16.msra.mxu0 %v6235
        %8506 = vmatprep.subr.bf16.mxu0 %v6244
        %8507 = vmatpush1.bf16.msra.mxu0 %v6243
        %8508 = vmatprep.subr.bf16.mxu0 %v6252
        %8509 = vmatpush1.bf16.msra.mxu0 %v6251
        %8510 = vmatprep.subr.bf16.mxu0 %v6260
        %8511 = vmatpush1.bf16.msra.mxu0 %v6259
        %8512 = vmatprep.subr.bf16.mxu0 %v6268
        %8513 = vmatpush1.bf16.msra.mxu0 %v6267
        %8514 = vmatprep.subr.bf16.mxu0 %v6276
        %8515 = vmatpush1.bf16.msra.mxu0 %v6275
        %8516 = vmatprep.subr.bf16.mxu0 %v6284
        %8517 = vmatpush1.bf16.msra.mxu0 %v6283
        %8518 = vmatprep.subr.bf16.mxu0 %v6292
        %8519 = vmatpush1.bf16.msra.mxu0 %v6291
        %8520 = vmatprep.subr.bf16.mxu0 %v6300
        %8521 = vmatpush1.bf16.msra.mxu0 %v6299
        %8522 = vmatprep.subr.bf16.mxu0 %v6308
        %8523 = vmatpush1.bf16.msra.mxu0 %v6307
        %8524 = vmatprep.subr.bf16.mxu0 %v6316
        %8525 = vmatpush1.bf16.msra.mxu0 %v6315
        %8526 = vmatprep.mubr.bf16.mxu0 %v1938
        %8527 = vmatmul.mubr.bf16.gmra.mrb[0].mxu0 %v1937
        %v8528 = vpop.f32.mrb[0].mxu0
        %v8529 = vadd.f32 %v8488, %v8528
        %v8530 = vpop.f32.mrb[0].mxu0
        %v8531 = vadd.f32 %v8490, %v8530
        %v8532 = vpop.f32.mrb[0].mxu0
        %v8533 = vpop.f32.mrb[0].mxu0
        %8534 = vdwg.mxu0
        %8535 = vmatprep.subr.bf16.mxu0 %v6324
        %8536 = vmatpush1.bf16.msra.mxu0 %v6323
        %8537 = vmatprep.subr.bf16.mxu0 %v6332
        %8538 = vmatpush1.bf16.msra.mxu0 %v6331
        %8539 = vmatprep.subr.bf16.mxu0 %v6340
        %8540 = vmatpush1.bf16.msra.mxu0 %v6339
        %8541 = vmatprep.subr.bf16.mxu0 %v6348
        %8542 = vmatpush1.bf16.msra.mxu0 %v6347
        %8543 = vmatprep.subr.bf16.mxu0 %v6356
        %8544 = vmatpush1.bf16.msra.mxu0 %v6355
        %8545 = vmatprep.subr.bf16.mxu0 %v6364
        %8546 = vmatpush1.bf16.msra.mxu0 %v6363
        %8547 = vmatprep.subr.bf16.mxu0 %v6372
        %8548 = vmatpush1.bf16.msra.mxu0 %v6371
        %8549 = vmatprep.subr.bf16.mxu0 %v6380
        %8550 = vmatpush1.bf16.msra.mxu0 %v6379
        %8551 = vmatprep.subr.bf16.mxu0 %v6388
        %8552 = vmatpush1.bf16.msra.mxu0 %v6387
        %8553 = vmatprep.subr.bf16.mxu0 %v6396
        %8554 = vmatpush1.bf16.msra.mxu0 %v6395
        %8555 = vmatprep.subr.bf16.mxu0 %v6404
        %8556 = vmatpush1.bf16.msra.mxu0 %v6403
        %8557 = vmatprep.subr.bf16.mxu0 %v6412
        %8558 = vmatpush1.bf16.msra.mxu0 %v6411
        %8559 = vmatprep.subr.bf16.mxu0 %v6420
        %8560 = vmatpush1.bf16.msra.mxu0 %v6419
        %8561 = vmatprep.subr.bf16.mxu0 %v6428
        %8562 = vmatpush1.bf16.msra.mxu0 %v6427
        %8563 = vmatprep.subr.bf16.mxu0 %v6436
        %8564 = vmatpush1.bf16.msra.mxu0 %v6435
        %8565 = vmatprep.subr.bf16.mxu0 %v6444
        %8566 = vmatpush1.bf16.msra.mxu0 %v6443
        %8567 = vmatprep.mubr.bf16.mxu0 %v1940
        %8568 = vmatmul.mubr.bf16.gmra.mrb[0].mxu0 %v1939
        %v8569 = vpop.f32.mrb[0].mxu0
        %v8570 = vadd.f32 %v8529, %v8569
        %v8571 = vpop.f32.mrb[0].mxu0
        %v8572 = vadd.f32 %v8531, %v8571
        %v8573 = vpop.f32.mrb[0].mxu0
        %v8574 = vpop.f32.mrb[0].mxu0
        %8575 = vdwg.mxu0
        %8576 = vmatprep.subr.bf16.mxu0 %v6452
        %8577 = vmatpush1.bf16.msra.mxu0 %v6451
        %8578 = vmatprep.subr.bf16.mxu0 %v6460
        %8579 = vmatpush1.bf16.msra.mxu0 %v6459
        %8580 = vmatprep.subr.bf16.mxu0 %v6468
        %8581 = vmatpush1.bf16.msra.mxu0 %v6467
        %8582 = vmatprep.subr.bf16.mxu0 %v6476
        %8583 = vmatpush1.bf16.msra.mxu0 %v6475
        %8584 = vmatprep.subr.bf16.mxu0 %v6484
        %8585 = vmatpush1.bf16.msra.mxu0 %v6483
        %8586 = vmatprep.subr.bf16.mxu0 %v6492
        %8587 = vmatpush1.bf16.msra.mxu0 %v6491
        %8588 = vmatprep.subr.bf16.mxu0 %v6500
        %8589 = vmatpush1.bf16.msra.mxu0 %v6499
        %8590 = vmatprep.subr.bf16.mxu0 %v6508
        %8591 = vmatpush1.bf16.msra.mxu0 %v6507
        %8592 = vmatprep.subr.bf16.mxu0 %v6516
        %8593 = vmatpush1.bf16.msra.mxu0 %v6515
        %8594 = vmatprep.subr.bf16.mxu0 %v6524
        %8595 = vmatpush1.bf16.msra.mxu0 %v6523
        %8596 = vmatprep.subr.bf16.mxu0 %v6532
        %8597 = vmatpush1.bf16.msra.mxu0 %v6531
        %8598 = vmatprep.subr.bf16.mxu0 %v6540
        %8599 = vmatpush1.bf16.msra.mxu0 %v6539
        %8600 = vmatprep.subr.bf16.mxu0 %v6548
        %8601 = vmatpush1.bf16.msra.mxu0 %v6547
        %8602 = vmatprep.subr.bf16.mxu0 %v6556
        %8603 = vmatpush1.bf16.msra.mxu0 %v6555
        %8604 = vmatprep.subr.bf16.mxu0 %v6564
        %8605 = vmatpush1.bf16.msra.mxu0 %v6563
        %8606 = vmatprep.subr.bf16.mxu0 %v6572
        %8607 = vmatpush1.bf16.msra.mxu0 %v6571
        %8608 = vmatprep.mubr.bf16.mxu0 %v1942
        %8609 = vmatmul.mubr.bf16.gmra.mrb[0].mxu0 %v1941
        %v8610 = vpop.f32.mrb[0].mxu0
        %v8611 = vadd.f32 %v8570, %v8610
        %v8612 = vpop.f32.mrb[0].mxu0
        %v8613 = vadd.f32 %v8572, %v8612
        %v8614 = vpop.f32.mrb[0].mxu0
        %v8615 = vpop.f32.mrb[0].mxu0
        %8616 = vdwg.mxu0
        %8617 = vmatprep.subr.bf16.mxu0 %v6580
        %8618 = vmatpush1.bf16.msra.mxu0 %v6579
        %8619 = vmatprep.subr.bf16.mxu0 %v6588
        %8620 = vmatpush1.bf16.msra.mxu0 %v6587
        %8621 = vmatprep.subr.bf16.mxu0 %v6596
        %8622 = vmatpush1.bf16.msra.mxu0 %v6595
        %8623 = vmatprep.subr.bf16.mxu0 %v6604
        %8624 = vmatpush1.bf16.msra.mxu0 %v6603
        %8625 = vmatprep.subr.bf16.mxu0 %v6612
        %8626 = vmatpush1.bf16.msra.mxu0 %v6611
        %8627 = vmatprep.subr.bf16.mxu0 %v6620
        %8628 = vmatpush1.bf16.msra.mxu0 %v6619
        %8629 = vmatprep.subr.bf16.mxu0 %v6628
        %8630 = vmatpush1.bf16.msra.mxu0 %v6627
        %8631 = vmatprep.subr.bf16.mxu0 %v6636
        %8632 = vmatpush1.bf16.msra.mxu0 %v6635
        %8633 = vmatprep.subr.bf16.mxu0 %v6644
        %8634 = vmatpush1.bf16.msra.mxu0 %v6643
        %8635 = vmatprep.subr.bf16.mxu0 %v6652
        %8636 = vmatpush1.bf16.msra.mxu0 %v6651
        %8637 = vmatprep.subr.bf16.mxu0 %v6660
        %8638 = vmatpush1.bf16.msra.mxu0 %v6659
        %8639 = vmatprep.subr.bf16.mxu0 %v6668
        %8640 = vmatpush1.bf16.msra.mxu0 %v6667
        %8641 = vmatprep.subr.bf16.mxu0 %v6676
        %8642 = vmatpush1.bf16.msra.mxu0 %v6675
        %8643 = vmatprep.subr.bf16.mxu0 %v6684
        %8644 = vmatpush1.bf16.msra.mxu0 %v6683
        %8645 = vmatprep.subr.bf16.mxu0 %v6692
        %8646 = vmatpush1.bf16.msra.mxu0 %v6691
        %8647 = vmatprep.subr.bf16.mxu0 %v6700
        %8648 = vmatpush1.bf16.msra.mxu0 %v6699
        %8649 = vmatprep.mubr.bf16.mxu0 %v1944
        %8650 = vmatmul.mubr.bf16.gmra.mrb[0].mxu0 %v1943
        %v8651 = vpop.f32.mrb[0].mxu0
        %v8652 = vadd.f32 %v8611, %v8651
        %v8653 = vpop.f32.mrb[0].mxu0
        %v8654 = vadd.f32 %v8613, %v8653
        %v8655 = vpop.f32.mrb[0].mxu0
        %v8656 = vpop.f32.mrb[0].mxu0
        %8657 = vdwg.mxu0
        %8658 = vmatprep.subr.bf16.mxu0 %v6708
        %8659 = vmatpush1.bf16.msra.mxu0 %v6707
        %8660 = vmatprep.subr.bf16.mxu0 %v6716
        %8661 = vmatpush1.bf16.msra.mxu0 %v6715
        %8662 = vmatprep.subr.bf16.mxu0 %v6724
        %8663 = vmatpush1.bf16.msra.mxu0 %v6723
        %8664 = vmatprep.subr.bf16.mxu0 %v6732
        %8665 = vmatpush1.bf16.msra.mxu0 %v6731
        %8666 = vmatprep.subr.bf16.mxu0 %v6740
        %8667 = vmatpush1.bf16.msra.mxu0 %v6739
        %8668 = vmatprep.subr.bf16.mxu0 %v6748
        %8669 = vmatpush1.bf16.msra.mxu0 %v6747
        %8670 = vmatprep.subr.bf16.mxu0 %v6756
        %8671 = vmatpush1.bf16.msra.mxu0 %v6755
        %8672 = vmatprep.subr.bf16.mxu0 %v6764
        %8673 = vmatpush1.bf16.msra.mxu0 %v6763
        %8674 = vmatprep.subr.bf16.mxu0 %v6772
        %8675 = vmatpush1.bf16.msra.mxu0 %v6771
        %8676 = vmatprep.subr.bf16.mxu0 %v6780
        %8677 = vmatpush1.bf16.msra.mxu0 %v6779
        %8678 = vmatprep.subr.bf16.mxu0 %v6788
        %8679 = vmatpush1.bf16.msra.mxu0 %v6787
        %8680 = vmatprep.subr.bf16.mxu0 %v6796
        %8681 = vmatpush1.bf16.msra.mxu0 %v6795
        %8682 = vmatprep.subr.bf16.mxu0 %v6804
        %8683 = vmatpush1.bf16.msra.mxu0 %v6803
        %8684 = vmatprep.subr.bf16.mxu0 %v6812
        %8685 = vmatpush1.bf16.msra.mxu0 %v6811
        %8686 = vmatprep.subr.bf16.mxu0 %v6820
        %8687 = vmatpush1.bf16.msra.mxu0 %v6819
        %8688 = vmatprep.subr.bf16.mxu0 %v6828
        %8689 = vmatpush1.bf16.msra.mxu0 %v6827
        %8690 = vmatprep.mubr.bf16.mxu0 %v1946
        %8691 = vmatmul.mubr.bf16.gmra.mrb[0].mxu0 %v1945
        %v8692 = vpop.f32.mrb[0].mxu0
        %v8693 = vadd.f32 %v8652, %v8692
        %v8694 = vpop.f32.mrb[0].mxu0
        %v8695 = vadd.f32 %v8654, %v8694
        %v8696 = vpop.f32.mrb[0].mxu0
        %v8697 = vpop.f32.mrb[0].mxu0
        %8698 = vdwg.mxu0
        %8699 = vmatprep.subr.bf16.mxu0 %v6836
        %8700 = vmatpush1.bf16.msra.mxu0 %v6835
        %8701 = vmatprep.subr.bf16.mxu0 %v6844
        %8702 = vmatpush1.bf16.msra.mxu0 %v6843
        %8703 = vmatprep.subr.bf16.mxu0 %v6852
        %8704 = vmatpush1.bf16.msra.mxu0 %v6851
        %8705 = vmatprep.subr.bf16.mxu0 %v6860
        %8706 = vmatpush1.bf16.msra.mxu0 %v6859
        %8707 = vmatprep.subr.bf16.mxu0 %v6868
        %8708 = vmatpush1.bf16.msra.mxu0 %v6867
        %8709 = vmatprep.subr.bf16.mxu0 %v6876
        %8710 = vmatpush1.bf16.msra.mxu0 %v6875
        %8711 = vmatprep.subr.bf16.mxu0 %v6884
        %8712 = vmatpush1.bf16.msra.mxu0 %v6883
        %8713 = vmatprep.subr.bf16.mxu0 %v6892
        %8714 = vmatpush1.bf16.msra.mxu0 %v6891
        %8715 = vmatprep.subr.bf16.mxu0 %v6900
        %8716 = vmatpush1.bf16.msra.mxu0 %v6899
        %8717 = vmatprep.subr.bf16.mxu0 %v6908
        %8718 = vmatpush1.bf16.msra.mxu0 %v6907
        %8719 = vmatprep.subr.bf16.mxu0 %v6916
        %8720 = vmatpush1.bf16.msra.mxu0 %v6915
        %8721 = vmatprep.subr.bf16.mxu0 %v6924
        %8722 = vmatpush1.bf16.msra.mxu0 %v6923
        %8723 = vmatprep.subr.bf16.mxu0 %v6932
        %8724 = vmatpush1.bf16.msra.mxu0 %v6931
        %8725 = vmatprep.subr.bf16.mxu0 %v6940
        %8726 = vmatpush1.bf16.msra.mxu0 %v6939
        %8727 = vmatprep.subr.bf16.mxu0 %v6948
        %8728 = vmatpush1.bf16.msra.mxu0 %v6947
        %8729 = vmatprep.subr.bf16.mxu0 %v6956
        %8730 = vmatpush1.bf16.msra.mxu0 %v6955
        %8731 = vmatprep.mubr.bf16.mxu0 %v1948
        %8732 = vmatmul.mubr.bf16.gmra.mrb[0].mxu0 %v1947
        %v8733 = vpop.f32.mrb[0].mxu0
        %v8734 = vadd.f32 %v8693, %v8733
        %v8735 = vpop.f32.mrb[0].mxu0
        %v8736 = vadd.f32 %v8695, %v8735
        %v8737 = vpop.f32.mrb[0].mxu0
        %v8738 = vpop.f32.mrb[0].mxu0
        %8739 = vdwg.mxu0
        %8740 = vmatprep.subr.bf16.mxu0 %v6964
        %8741 = vmatpush1.bf16.msra.mxu0 %v6963
        %8742 = vmatprep.subr.bf16.mxu0 %v6972
        %8743 = vmatpush1.bf16.msra.mxu0 %v6971
        %8744 = vmatprep.subr.bf16.mxu0 %v6980
        %8745 = vmatpush1.bf16.msra.mxu0 %v6979
        %8746 = vmatprep.subr.bf16.mxu0 %v6988
        %8747 = vmatpush1.bf16.msra.mxu0 %v6987
        %8748 = vmatprep.subr.bf16.mxu0 %v6996
        %8749 = vmatpush1.bf16.msra.mxu0 %v6995
        %8750 = vmatprep.subr.bf16.mxu0 %v7004
        %8751 = vmatpush1.bf16.msra.mxu0 %v7003
        %8752 = vmatprep.subr.bf16.mxu0 %v7012
        %8753 = vmatpush1.bf16.msra.mxu0 %v7011
        %8754 = vmatprep.subr.bf16.mxu0 %v7020
        %8755 = vmatpush1.bf16.msra.mxu0 %v7019
        %8756 = vmatprep.subr.bf16.mxu0 %v7028
        %8757 = vmatpush1.bf16.msra.mxu0 %v7027
        %8758 = vmatprep.subr.bf16.mxu0 %v7036
        %8759 = vmatpush1.bf16.msra.mxu0 %v7035
        %8760 = vmatprep.subr.bf16.mxu0 %v7044
        %8761 = vmatpush1.bf16.msra.mxu0 %v7043
        %8762 = vmatprep.subr.bf16.mxu0 %v7052
        %8763 = vmatpush1.bf16.msra.mxu0 %v7051
        %8764 = vmatprep.subr.bf16.mxu0 %v7060
        %8765 = vmatpush1.bf16.msra.mxu0 %v7059
        %8766 = vmatprep.subr.bf16.mxu0 %v7068
        %8767 = vmatpush1.bf16.msra.mxu0 %v7067
        %8768 = vmatprep.subr.bf16.mxu0 %v7076
        %8769 = vmatpush1.bf16.msra.mxu0 %v7075
        %8770 = vmatprep.subr.bf16.mxu0 %v7084
        %8771 = vmatpush1.bf16.msra.mxu0 %v7083
        %8772 = vmatprep.mubr.bf16.mxu0 %v1950
        %8773 = vmatmul.mubr.bf16.gmra.mrb[0].mxu0 %v1949
        %v8774 = vpop.f32.mrb[0].mxu0
        %v8775 = vadd.f32 %v8734, %v8774
        %v8776 = vpop.f32.mrb[0].mxu0
        %v8777 = vadd.f32 %v8736, %v8776
        %v8778 = vpop.f32.mrb[0].mxu0
        %v8779 = vpop.f32.mrb[0].mxu0
        %8780 = vdwg.mxu0
        %8781 = vmatprep.subr.bf16.mxu0 %v5814
        %8782 = vmatpush1.bf16.msra.mxu0 %v5813
        %8783 = vmatprep.subr.bf16.mxu0 %v5822
        %8784 = vmatpush1.bf16.msra.mxu0 %v5821
        %8785 = vmatprep.subr.bf16.mxu0 %v5830
        %8786 = vmatpush1.bf16.msra.mxu0 %v5829
        %8787 = vmatprep.subr.bf16.mxu0 %v5838
        %8788 = vmatpush1.bf16.msra.mxu0 %v5837
        %8789 = vmatprep.subr.bf16.mxu0 %v5846
        %8790 = vmatpush1.bf16.msra.mxu0 %v5845
        %8791 = vmatprep.subr.bf16.mxu0 %v5854
        %8792 = vmatpush1.bf16.msra.mxu0 %v5853
        %8793 = vmatprep.subr.bf16.mxu0 %v5862
        %8794 = vmatpush1.bf16.msra.mxu0 %v5861
        %8795 = vmatprep.subr.bf16.mxu0 %v5870
        %8796 = vmatpush1.bf16.msra.mxu0 %v5869
        %8797 = vmatprep.subr.bf16.mxu0 %v5878
        %8798 = vmatpush1.bf16.msra.mxu0 %v5877
        %8799 = vmatprep.subr.bf16.mxu0 %v5886
        %8800 = vmatpush1.bf16.msra.mxu0 %v5885
        %8801 = vmatprep.subr.bf16.mxu0 %v5894
        %8802 = vmatpush1.bf16.msra.mxu0 %v5893
        %8803 = vmatprep.subr.bf16.mxu0 %v5902
        %8804 = vmatpush1.bf16.msra.mxu0 %v5901
        %8805 = vmatprep.subr.bf16.mxu0 %v5910
        %8806 = vmatpush1.bf16.msra.mxu0 %v5909
        %8807 = vmatprep.subr.bf16.mxu0 %v5918
        %8808 = vmatpush1.bf16.msra.mxu0 %v5917
        %8809 = vmatprep.subr.bf16.mxu0 %v5926
        %8810 = vmatpush1.bf16.msra.mxu0 %v5925
        %8811 = vmatprep.subr.bf16.mxu0 %v5934
        %8812 = vmatpush1.bf16.msra.mxu0 %v5933
        %8813 = vmatprep.mubr.bf16.mxu0 %v1932
        %8814 = vmatmul.mubr.bf16.gmra.mrb[0].mxu0 %v1931
        %v8815 = vpop.f32.mrb[0].mxu0
        %v8816 = vadd.f32 0.0, %v8815
        %v8817 = vpop.f32.mrb[0].mxu0
        %v8818 = vadd.f32 0.0, %v8817
        %v8819 = vpop.f32.mrb[0].mxu0
        %v8820 = vpop.f32.mrb[0].mxu0
        %8821 = vdwg.mxu0
        %8822 = vmatprep.subr.bf16.mxu0 %v5942
        %8823 = vmatpush1.bf16.msra.mxu0 %v5941
        %8824 = vmatprep.subr.bf16.mxu0 %v5950
        %8825 = vmatpush1.bf16.msra.mxu0 %v5949
        %8826 = vmatprep.subr.bf16.mxu0 %v5958
        %8827 = vmatpush1.bf16.msra.mxu0 %v5957
        %8828 = vmatprep.subr.bf16.mxu0 %v5966
        %8829 = vmatpush1.bf16.msra.mxu0 %v5965
        %8830 = vmatprep.subr.bf16.mxu0 %v5974
        %8831 = vmatpush1.bf16.msra.mxu0 %v5973
        %8832 = vmatprep.subr.bf16.mxu0 %v5982
        %8833 = vmatpush1.bf16.msra.mxu0 %v5981
        %8834 = vmatprep.subr.bf16.mxu0 %v5990
        %8835 = vmatpush1.bf16.msra.mxu0 %v5989
        %8836 = vmatprep.subr.bf16.mxu0 %v5998
        %8837 = vmatpush1.bf16.msra.mxu0 %v5997
        %8838 = vmatprep.subr.bf16.mxu0 %v6006
        %8839 = vmatpush1.bf16.msra.mxu0 %v6005
        %8840 = vmatprep.subr.bf16.mxu0 %v6014
        %8841 = vmatpush1.bf16.msra.mxu0 %v6013
        %8842 = vmatprep.subr.bf16.mxu0 %v6022
        %8843 = vmatpush1.bf16.msra.mxu0 %v6021
        %8844 = vmatprep.subr.bf16.mxu0 %v6030
        %8845 = vmatpush1.bf16.msra.mxu0 %v6029
        %8846 = vmatprep.subr.bf16.mxu0 %v6038
        %8847 = vmatpush1.bf16.msra.mxu0 %v6037
        %8848 = vmatprep.subr.bf16.mxu0 %v6046
        %8849 = vmatpush1.bf16.msra.mxu0 %v6045
        %8850 = vmatprep.subr.bf16.mxu0 %v6054
        %8851 = vmatpush1.bf16.msra.mxu0 %v6053
        %8852 = vmatprep.subr.bf16.mxu0 %v6062
        %8853 = vmatpush1.bf16.msra.mxu0 %v6061
        %8854 = vmatprep.mubr.bf16.mxu0 %v1934
        %8855 = vmatmul.mubr.bf16.gmra.mrb[0].mxu0 %v1933
        %v8856 = vpop.f32.mrb[0].mxu0
        %v8857 = vadd.f32 %v8816, %v8856
        %v8858 = vpop.f32.mrb[0].mxu0
        %v8859 = vadd.f32 %v8818, %v8858
        %v8860 = vpop.f32.mrb[0].mxu0
        %v8861 = vpop.f32.mrb[0].mxu0
        %8862 = vdwg.mxu0
        %8863 = vmatprep.subr.bf16.mxu0 %v6070
        %8864 = vmatpush1.bf16.msra.mxu0 %v6069
        %8865 = vmatprep.subr.bf16.mxu0 %v6078
        %8866 = vmatpush1.bf16.msra.mxu0 %v6077
        %8867 = vmatprep.subr.bf16.mxu0 %v6086
        %8868 = vmatpush1.bf16.msra.mxu0 %v6085
        %8869 = vmatprep.subr.bf16.mxu0 %v6094
        %8870 = vmatpush1.bf16.msra.mxu0 %v6093
        %8871 = vmatprep.subr.bf16.mxu0 %v6102
        %8872 = vmatpush1.bf16.msra.mxu0 %v6101
        %8873 = vmatprep.subr.bf16.mxu0 %v6110
        %8874 = vmatpush1.bf16.msra.mxu0 %v6109
        %8875 = vmatprep.subr.bf16.mxu0 %v6118
        %8876 = vmatpush1.bf16.msra.mxu0 %v6117
        %8877 = vmatprep.subr.bf16.mxu0 %v6126
        %8878 = vmatpush1.bf16.msra.mxu0 %v6125
        %8879 = vmatprep.subr.bf16.mxu0 %v6134
        %8880 = vmatpush1.bf16.msra.mxu0 %v6133
        %8881 = vmatprep.subr.bf16.mxu0 %v6142
        %8882 = vmatpush1.bf16.msra.mxu0 %v6141
        %8883 = vmatprep.subr.bf16.mxu0 %v6150
        %8884 = vmatpush1.bf16.msra.mxu0 %v6149
        %8885 = vmatprep.subr.bf16.mxu0 %v6158
        %8886 = vmatpush1.bf16.msra.mxu0 %v6157
        %8887 = vmatprep.subr.bf16.mxu0 %v6166
        %8888 = vmatpush1.bf16.msra.mxu0 %v6165
        %8889 = vmatprep.subr.bf16.mxu0 %v6174
        %8890 = vmatpush1.bf16.msra.mxu0 %v6173
        %8891 = vmatprep.subr.bf16.mxu0 %v6182
        %8892 = vmatpush1.bf16.msra.mxu0 %v6181
        %8893 = vmatprep.subr.bf16.mxu0 %v6190
        %8894 = vmatpush1.bf16.msra.mxu0 %v6189
        %8895 = vmatprep.mubr.bf16.mxu0 %v1936
        %8896 = vmatmul.mubr.bf16.gmra.mrb[0].mxu0 %v1935
        %v8897 = vpop.f32.mrb[0].mxu0
        %v8898 = vadd.f32 %v8857, %v8897
        %v8899 = vpop.f32.mrb[0].mxu0
        %v8900 = vadd.f32 %v8859, %v8899
        %v8901 = vpop.f32.mrb[0].mxu0
        %v8902 = vpop.f32.mrb[0].mxu0
        %8903 = vdwg.mxu0
        %8904 = vmatprep.subr.bf16.mxu0 %v6198
        %8905 = vmatpush1.bf16.msra.mxu0 %v6197
        %8906 = vmatprep.subr.bf16.mxu0 %v6206
        %8907 = vmatpush1.bf16.msra.mxu0 %v6205
        %8908 = vmatprep.subr.bf16.mxu0 %v6214
        %8909 = vmatpush1.bf16.msra.mxu0 %v6213
        %8910 = vmatprep.subr.bf16.mxu0 %v6222
        %8911 = vmatpush1.bf16.msra.mxu0 %v6221
        %8912 = vmatprep.subr.bf16.mxu0 %v6230
        %8913 = vmatpush1.bf16.msra.mxu0 %v6229
        %8914 = vmatprep.subr.bf16.mxu0 %v6238
        %8915 = vmatpush1.bf16.msra.mxu0 %v6237
        %8916 = vmatprep.subr.bf16.mxu0 %v6246
        %8917 = vmatpush1.bf16.msra.mxu0 %v6245
        %8918 = vmatprep.subr.bf16.mxu0 %v6254
        %8919 = vmatpush1.bf16.msra.mxu0 %v6253
        %8920 = vmatprep.subr.bf16.mxu0 %v6262
        %8921 = vmatpush1.bf16.msra.mxu0 %v6261
        %8922 = vmatprep.subr.bf16.mxu0 %v6270
        %8923 = vmatpush1.bf16.msra.mxu0 %v6269
        %8924 = vmatprep.subr.bf16.mxu0 %v6278
        %8925 = vmatpush1.bf16.msra.mxu0 %v6277
        %8926 = vmatprep.subr.bf16.mxu0 %v6286
        %8927 = vmatpush1.bf16.msra.mxu0 %v6285
        %8928 = vmatprep.subr.bf16.mxu0 %v6294
        %8929 = vmatpush1.bf16.msra.mxu0 %v6293
        %8930 = vmatprep.subr.bf16.mxu0 %v6302
        %8931 = vmatpush1.bf16.msra.mxu0 %v6301
        %8932 = vmatprep.subr.bf16.mxu0 %v6310
        %8933 = vmatpush1.bf16.msra.mxu0 %v6309
        %8934 = vmatprep.subr.bf16.mxu0 %v6318
        %8935 = vmatpush1.bf16.msra.mxu0 %v6317
        %8936 = vmatprep.mubr.bf16.mxu0 %v1938
        %8937 = vmatmul.mubr.bf16.gmra.mrb[0].mxu0 %v1937
        %v8938 = vpop.f32.mrb[0].mxu0
        %v8939 = vadd.f32 %v8898, %v8938
        %v8940 = vpop.f32.mrb[0].mxu0
        %v8941 = vadd.f32 %v8900, %v8940
        %v8942 = vpop.f32.mrb[0].mxu0
        %v8943 = vpop.f32.mrb[0].mxu0
        %8944 = vdwg.mxu0
        %8945 = vmatprep.subr.bf16.mxu0 %v6326
        %8946 = vmatpush1.bf16.msra.mxu0 %v6325
        %8947 = vmatprep.subr.bf16.mxu0 %v6334
        %8948 = vmatpush1.bf16.msra.mxu0 %v6333
        %8949 = vmatprep.subr.bf16.mxu0 %v6342
        %8950 = vmatpush1.bf16.msra.mxu0 %v6341
        %8951 = vmatprep.subr.bf16.mxu0 %v6350
        %8952 = vmatpush1.bf16.msra.mxu0 %v6349
        %8953 = vmatprep.subr.bf16.mxu0 %v6358
        %8954 = vmatpush1.bf16.msra.mxu0 %v6357
        %8955 = vmatprep.subr.bf16.mxu0 %v6366
        %8956 = vmatpush1.bf16.msra.mxu0 %v6365
        %8957 = vmatprep.subr.bf16.mxu0 %v6374
        %8958 = vmatpush1.bf16.msra.mxu0 %v6373
        %8959 = vmatprep.subr.bf16.mxu0 %v6382
        %8960 = vmatpush1.bf16.msra.mxu0 %v6381
        %8961 = vmatprep.subr.bf16.mxu0 %v6390
        %8962 = vmatpush1.bf16.msra.mxu0 %v6389
        %8963 = vmatprep.subr.bf16.mxu0 %v6398
        %8964 = vmatpush1.bf16.msra.mxu0 %v6397
        %8965 = vmatprep.subr.bf16.mxu0 %v6406
        %8966 = vmatpush1.bf16.msra.mxu0 %v6405
        %8967 = vmatprep.subr.bf16.mxu0 %v6414
        %8968 = vmatpush1.bf16.msra.mxu0 %v6413
        %8969 = vmatprep.subr.bf16.mxu0 %v6422
        %8970 = vmatpush1.bf16.msra.mxu0 %v6421
        %8971 = vmatprep.subr.bf16.mxu0 %v6430
        %8972 = vmatpush1.bf16.msra.mxu0 %v6429
        %8973 = vmatprep.subr.bf16.mxu0 %v6438
        %8974 = vmatpush1.bf16.msra.mxu0 %v6437
        %8975 = vmatprep.subr.bf16.mxu0 %v6446
        %8976 = vmatpush1.bf16.msra.mxu0 %v6445
        %8977 = vmatprep.mubr.bf16.mxu0 %v1940
        %8978 = vmatmul.mubr.bf16.gmra.mrb[0].mxu0 %v1939
        %v8979 = vpop.f32.mrb[0].mxu0
        %v8980 = vadd.f32 %v8939, %v8979
        %v8981 = vpop.f32.mrb[0].mxu0
        %v8982 = vadd.f32 %v8941, %v8981
        %v8983 = vpop.f32.mrb[0].mxu0
        %v8984 = vpop.f32.mrb[0].mxu0
        %8985 = vdwg.mxu0
        %8986 = vmatprep.subr.bf16.mxu0 %v6454
        %8987 = vmatpush1.bf16.msra.mxu0 %v6453
        %8988 = vmatprep.subr.bf16.mxu0 %v6462
        %8989 = vmatpush1.bf16.msra.mxu0 %v6461
        %8990 = vmatprep.subr.bf16.mxu0 %v6470
        %8991 = vmatpush1.bf16.msra.mxu0 %v6469
        %8992 = vmatprep.subr.bf16.mxu0 %v6478
        %8993 = vmatpush1.bf16.msra.mxu0 %v6477
        %8994 = vmatprep.subr.bf16.mxu0 %v6486
        %8995 = vmatpush1.bf16.msra.mxu0 %v6485
        %8996 = vmatprep.subr.bf16.mxu0 %v6494
        %8997 = vmatpush1.bf16.msra.mxu0 %v6493
        %8998 = vmatprep.subr.bf16.mxu0 %v6502
        %8999 = vmatpush1.bf16.msra.mxu0 %v6501
        %9000 = vmatprep.subr.bf16.mxu0 %v6510
        %9001 = vmatpush1.bf16.msra.mxu0 %v6509
        %9002 = vmatprep.subr.bf16.mxu0 %v6518
        %9003 = vmatpush1.bf16.msra.mxu0 %v6517
        %9004 = vmatprep.subr.bf16.mxu0 %v6526
        %9005 = vmatpush1.bf16.msra.mxu0 %v6525
        %9006 = vmatprep.subr.bf16.mxu0 %v6534
        %9007 = vmatpush1.bf16.msra.mxu0 %v6533
        %9008 = vmatprep.subr.bf16.mxu0 %v6542
        %9009 = vmatpush1.bf16.msra.mxu0 %v6541
        %9010 = vmatprep.subr.bf16.mxu0 %v6550
        %9011 = vmatpush1.bf16.msra.mxu0 %v6549
        %9012 = vmatprep.subr.bf16.mxu0 %v6558
        %9013 = vmatpush1.bf16.msra.mxu0 %v6557
        %9014 = vmatprep.subr.bf16.mxu0 %v6566
        %9015 = vmatpush1.bf16.msra.mxu0 %v6565
        %9016 = vmatprep.subr.bf16.mxu0 %v6574
        %9017 = vmatpush1.bf16.msra.mxu0 %v6573
        %9018 = vmatprep.mubr.bf16.mxu0 %v1942
        %9019 = vmatmul.mubr.bf16.gmra.mrb[0].mxu0 %v1941
        %v9020 = vpop.f32.mrb[0].mxu0
        %v9021 = vadd.f32 %v8980, %v9020
        %v9022 = vpop.f32.mrb[0].mxu0
        %v9023 = vadd.f32 %v8982, %v9022
        %v9024 = vpop.f32.mrb[0].mxu0
        %v9025 = vpop.f32.mrb[0].mxu0
        %9026 = vdwg.mxu0
        %9027 = vmatprep.subr.bf16.mxu0 %v6582
        %9028 = vmatpush1.bf16.msra.mxu0 %v6581
        %9029 = vmatprep.subr.bf16.mxu0 %v6590
        %9030 = vmatpush1.bf16.msra.mxu0 %v6589
        %9031 = vmatprep.subr.bf16.mxu0 %v6598
        %9032 = vmatpush1.bf16.msra.mxu0 %v6597
        %9033 = vmatprep.subr.bf16.mxu0 %v6606
        %9034 = vmatpush1.bf16.msra.mxu0 %v6605
        %9035 = vmatprep.subr.bf16.mxu0 %v6614
        %9036 = vmatpush1.bf16.msra.mxu0 %v6613
        %9037 = vmatprep.subr.bf16.mxu0 %v6622
        %9038 = vmatpush1.bf16.msra.mxu0 %v6621
        %9039 = vmatprep.subr.bf16.mxu0 %v6630
        %9040 = vmatpush1.bf16.msra.mxu0 %v6629
        %9041 = vmatprep.subr.bf16.mxu0 %v6638
        %9042 = vmatpush1.bf16.msra.mxu0 %v6637
        %9043 = vmatprep.subr.bf16.mxu0 %v6646
        %9044 = vmatpush1.bf16.msra.mxu0 %v6645
        %9045 = vmatprep.subr.bf16.mxu0 %v6654
        %9046 = vmatpush1.bf16.msra.mxu0 %v6653
        %9047 = vmatprep.subr.bf16.mxu0 %v6662
        %9048 = vmatpush1.bf16.msra.mxu0 %v6661
        %9049 = vmatprep.subr.bf16.mxu0 %v6670
        %9050 = vmatpush1.bf16.msra.mxu0 %v6669
        %9051 = vmatprep.subr.bf16.mxu0 %v6678
        %9052 = vmatpush1.bf16.msra.mxu0 %v6677
        %9053 = vmatprep.subr.bf16.mxu0 %v6686
        %9054 = vmatpush1.bf16.msra.mxu0 %v6685
        %9055 = vmatprep.subr.bf16.mxu0 %v6694
        %9056 = vmatpush1.bf16.msra.mxu0 %v6693
        %9057 = vmatprep.subr.bf16.mxu0 %v6702
        %9058 = vmatpush1.bf16.msra.mxu0 %v6701
        %9059 = vmatprep.mubr.bf16.mxu0 %v1944
        %9060 = vmatmul.mubr.bf16.gmra.mrb[0].mxu0 %v1943
        %v9061 = vpop.f32.mrb[0].mxu0
        %v9062 = vadd.f32 %v9021, %v9061
        %v9063 = vpop.f32.mrb[0].mxu0
        %v9064 = vadd.f32 %v9023, %v9063
        %v9065 = vpop.f32.mrb[0].mxu0
        %v9066 = vpop.f32.mrb[0].mxu0
        %9067 = vdwg.mxu0
        %9068 = vmatprep.subr.bf16.mxu0 %v6710
        %9069 = vmatpush1.bf16.msra.mxu0 %v6709
        %9070 = vmatprep.subr.bf16.mxu0 %v6718
        %9071 = vmatpush1.bf16.msra.mxu0 %v6717
        %9072 = vmatprep.subr.bf16.mxu0 %v6726
        %9073 = vmatpush1.bf16.msra.mxu0 %v6725
        %9074 = vmatprep.subr.bf16.mxu0 %v6734
        %9075 = vmatpush1.bf16.msra.mxu0 %v6733
        %9076 = vmatprep.subr.bf16.mxu0 %v6742
        %9077 = vmatpush1.bf16.msra.mxu0 %v6741
        %9078 = vmatprep.subr.bf16.mxu0 %v6750
        %9079 = vmatpush1.bf16.msra.mxu0 %v6749
        %9080 = vmatprep.subr.bf16.mxu0 %v6758
        %9081 = vmatpush1.bf16.msra.mxu0 %v6757
        %9082 = vmatprep.subr.bf16.mxu0 %v6766
        %9083 = vmatpush1.bf16.msra.mxu0 %v6765
        %9084 = vmatprep.subr.bf16.mxu0 %v6774
        %9085 = vmatpush1.bf16.msra.mxu0 %v6773
        %9086 = vmatprep.subr.bf16.mxu0 %v6782
        %9087 = vmatpush1.bf16.msra.mxu0 %v6781
        %9088 = vmatprep.subr.bf16.mxu0 %v6790
        %9089 = vmatpush1.bf16.msra.mxu0 %v6789
        %9090 = vmatprep.subr.bf16.mxu0 %v6798
        %9091 = vmatpush1.bf16.msra.mxu0 %v6797
        %9092 = vmatprep.subr.bf16.mxu0 %v6806
        %9093 = vmatpush1.bf16.msra.mxu0 %v6805
        %9094 = vmatprep.subr.bf16.mxu0 %v6814
        %9095 = vmatpush1.bf16.msra.mxu0 %v6813
        %9096 = vmatprep.subr.bf16.mxu0 %v6822
        %9097 = vmatpush1.bf16.msra.mxu0 %v6821
        %9098 = vmatprep.subr.bf16.mxu0 %v6830
        %9099 = vmatpush1.bf16.msra.mxu0 %v6829
        %9100 = vmatprep.mubr.bf16.mxu0 %v1946
        %9101 = vmatmul.mubr.bf16.gmra.mrb[0].mxu0 %v1945
        %v9102 = vpop.f32.mrb[0].mxu0
        %v9103 = vadd.f32 %v9062, %v9102
        %v9104 = vpop.f32.mrb[0].mxu0
        %v9105 = vadd.f32 %v9064, %v9104
        %v9106 = vpop.f32.mrb[0].mxu0
        %v9107 = vpop.f32.mrb[0].mxu0
        %9108 = vdwg.mxu0
        %9109 = vmatprep.subr.bf16.mxu0 %v6838
        %9110 = vmatpush1.bf16.msra.mxu0 %v6837
        %9111 = vmatprep.subr.bf16.mxu0 %v6846
        %9112 = vmatpush1.bf16.msra.mxu0 %v6845
        %9113 = vmatprep.subr.bf16.mxu0 %v6854
        %9114 = vmatpush1.bf16.msra.mxu0 %v6853
        %9115 = vmatprep.subr.bf16.mxu0 %v6862
        %9116 = vmatpush1.bf16.msra.mxu0 %v6861
        %9117 = vmatprep.subr.bf16.mxu0 %v6870
        %9118 = vmatpush1.bf16.msra.mxu0 %v6869
        %9119 = vmatprep.subr.bf16.mxu0 %v6878
        %9120 = vmatpush1.bf16.msra.mxu0 %v6877
        %9121 = vmatprep.subr.bf16.mxu0 %v6886
        %9122 = vmatpush1.bf16.msra.mxu0 %v6885
        %9123 = vmatprep.subr.bf16.mxu0 %v6894
        %9124 = vmatpush1.bf16.msra.mxu0 %v6893
        %9125 = vmatprep.subr.bf16.mxu0 %v6902
        %9126 = vmatpush1.bf16.msra.mxu0 %v6901
        %9127 = vmatprep.subr.bf16.mxu0 %v6910
        %9128 = vmatpush1.bf16.msra.mxu0 %v6909
        %9129 = vmatprep.subr.bf16.mxu0 %v6918
        %9130 = vmatpush1.bf16.msra.mxu0 %v6917
        %9131 = vmatprep.subr.bf16.mxu0 %v6926
        %9132 = vmatpush1.bf16.msra.mxu0 %v6925
        %9133 = vmatprep.subr.bf16.mxu0 %v6934
        %9134 = vmatpush1.bf16.msra.mxu0 %v6933
        %9135 = vmatprep.subr.bf16.mxu0 %v6942
        %9136 = vmatpush1.bf16.msra.mxu0 %v6941
        %9137 = vmatprep.subr.bf16.mxu0 %v6950
        %9138 = vmatpush1.bf16.msra.mxu0 %v6949
        %9139 = vmatprep.subr.bf16.mxu0 %v6958
        %9140 = vmatpush1.bf16.msra.mxu0 %v6957
        %9141 = vmatprep.mubr.bf16.mxu0 %v1948
        %9142 = vmatmul.mubr.bf16.gmra.mrb[0].mxu0 %v1947
        %v9143 = vpop.f32.mrb[0].mxu0
        %v9144 = vadd.f32 %v9103, %v9143
        %v9145 = vpop.f32.mrb[0].mxu0
        %v9146 = vadd.f32 %v9105, %v9145
        %v9147 = vpop.f32.mrb[0].mxu0
        %v9148 = vpop.f32.mrb[0].mxu0
        %9149 = vdwg.mxu0
        %9150 = vmatprep.subr.bf16.mxu0 %v6966
        %9151 = vmatpush1.bf16.msra.mxu0 %v6965
        %9152 = vmatprep.subr.bf16.mxu0 %v6974
        %9153 = vmatpush1.bf16.msra.mxu0 %v6973
        %9154 = vmatprep.subr.bf16.mxu0 %v6982
        %9155 = vmatpush1.bf16.msra.mxu0 %v6981
        %9156 = vmatprep.subr.bf16.mxu0 %v6990
        %9157 = vmatpush1.bf16.msra.mxu0 %v6989
        %9158 = vmatprep.subr.bf16.mxu0 %v6998
        %9159 = vmatpush1.bf16.msra.mxu0 %v6997
        %9160 = vmatprep.subr.bf16.mxu0 %v7006
        %9161 = vmatpush1.bf16.msra.mxu0 %v7005
        %9162 = vmatprep.subr.bf16.mxu0 %v7014
        %9163 = vmatpush1.bf16.msra.mxu0 %v7013
        %9164 = vmatprep.subr.bf16.mxu0 %v7022
        %9165 = vmatpush1.bf16.msra.mxu0 %v7021
        %9166 = vmatprep.subr.bf16.mxu0 %v7030
        %9167 = vmatpush1.bf16.msra.mxu0 %v7029
        %9168 = vmatprep.subr.bf16.mxu0 %v7038
        %9169 = vmatpush1.bf16.msra.mxu0 %v7037
        %9170 = vmatprep.subr.bf16.mxu0 %v7046
        %9171 = vmatpush1.bf16.msra.mxu0 %v7045
        %9172 = vmatprep.subr.bf16.mxu0 %v7054
        %9173 = vmatpush1.bf16.msra.mxu0 %v7053
        %9174 = vmatprep.subr.bf16.mxu0 %v7062
        %9175 = vmatpush1.bf16.msra.mxu0 %v7061
        %9176 = vmatprep.subr.bf16.mxu0 %v7070
        %9177 = vmatpush1.bf16.msra.mxu0 %v7069
        %9178 = vmatprep.subr.bf16.mxu0 %v7078
        %9179 = vmatpush1.bf16.msra.mxu0 %v7077
        %9180 = vmatprep.subr.bf16.mxu0 %v7086
        %9181 = vmatpush1.bf16.msra.mxu0 %v7085
        %9182 = vmatprep.mubr.bf16.mxu0 %v1950
        %9183 = vmatmul.mubr.bf16.gmra.mrb[0].mxu0 %v1949
        %v9184 = vpop.f32.mrb[0].mxu0
        %v9185 = vadd.f32 %v9144, %v9184
        %v9186 = vpop.f32.mrb[0].mxu0
        %v9187 = vadd.f32 %v9146, %v9186
        %v9188 = vpop.f32.mrb[0].mxu0
        %v9189 = vpop.f32.mrb[0].mxu0
        %9190 = vdwg.mxu0
        %9191 = vmatprep.subr.bf16.mxu0 %v5816
        %9192 = vmatpush1.bf16.msra.mxu0 %v5815
        %9193 = vmatprep.subr.bf16.mxu0 %v5824
        %9194 = vmatpush1.bf16.msra.mxu0 %v5823
        %9195 = vmatprep.subr.bf16.mxu0 %v5832
        %9196 = vmatpush1.bf16.msra.mxu0 %v5831
        %9197 = vmatprep.subr.bf16.mxu0 %v5840
        %9198 = vmatpush1.bf16.msra.mxu0 %v5839
        %9199 = vmatprep.subr.bf16.mxu0 %v5848
        %9200 = vmatpush1.bf16.msra.mxu0 %v5847
        %9201 = vmatprep.subr.bf16.mxu0 %v5856
        %9202 = vmatpush1.bf16.msra.mxu0 %v5855
        %9203 = vmatprep.subr.bf16.mxu0 %v5864
        %9204 = vmatpush1.bf16.msra.mxu0 %v5863
        %9205 = vmatprep.subr.bf16.mxu0 %v5872
        %9206 = vmatpush1.bf16.msra.mxu0 %v5871
        %9207 = vmatprep.subr.bf16.mxu0 %v5880
        %9208 = vmatpush1.bf16.msra.mxu0 %v5879
        %9209 = vmatprep.subr.bf16.mxu0 %v5888
        %9210 = vmatpush1.bf16.msra.mxu0 %v5887
        %9211 = vmatprep.subr.bf16.mxu0 %v5896
        %9212 = vmatpush1.bf16.msra.mxu0 %v5895
        %9213 = vmatprep.subr.bf16.mxu0 %v5904
        %9214 = vmatpush1.bf16.msra.mxu0 %v5903
        %9215 = vmatprep.subr.bf16.mxu0 %v5912
        %9216 = vmatpush1.bf16.msra.mxu0 %v5911
        %9217 = vmatprep.subr.bf16.mxu0 %v5920
        %9218 = vmatpush1.bf16.msra.mxu0 %v5919
        %9219 = vmatprep.subr.bf16.mxu0 %v5928
        %9220 = vmatpush1.bf16.msra.mxu0 %v5927
        %9221 = vmatprep.subr.bf16.mxu0 %v5936
        %9222 = vmatpush1.bf16.msra.mxu0 %v5935
        %9223 = vmatprep.mubr.bf16.mxu0 %v1932
        %9224 = vmatmul.mubr.bf16.gmra.mrb[0].mxu0 %v1931
        %v9225 = vpop.f32.mrb[0].mxu0
        %v9226 = vadd.f32 0.0, %v9225
        %v9227 = vpop.f32.mrb[0].mxu0
        %v9228 = vadd.f32 0.0, %v9227
        %v9229 = vpop.f32.mrb[0].mxu0
        %v9230 = vpop.f32.mrb[0].mxu0
        %9231 = vdwg.mxu0
        %9232 = vmatprep.subr.bf16.mxu0 %v5944
        %9233 = vmatpush1.bf16.msra.mxu0 %v5943
        %9234 = vmatprep.subr.bf16.mxu0 %v5952
        %9235 = vmatpush1.bf16.msra.mxu0 %v5951
        %9236 = vmatprep.subr.bf16.mxu0 %v5960
        %9237 = vmatpush1.bf16.msra.mxu0 %v5959
        %9238 = vmatprep.subr.bf16.mxu0 %v5968
        %9239 = vmatpush1.bf16.msra.mxu0 %v5967
        %9240 = vmatprep.subr.bf16.mxu0 %v5976
        %9241 = vmatpush1.bf16.msra.mxu0 %v5975
        %9242 = vmatprep.subr.bf16.mxu0 %v5984
        %9243 = vmatpush1.bf16.msra.mxu0 %v5983
        %9244 = vmatprep.subr.bf16.mxu0 %v5992
        %9245 = vmatpush1.bf16.msra.mxu0 %v5991
        %9246 = vmatprep.subr.bf16.mxu0 %v6000
        %9247 = vmatpush1.bf16.msra.mxu0 %v5999
        %9248 = vmatprep.subr.bf16.mxu0 %v6008
        %9249 = vmatpush1.bf16.msra.mxu0 %v6007
        %9250 = vmatprep.subr.bf16.mxu0 %v6016
        %9251 = vmatpush1.bf16.msra.mxu0 %v6015
        %9252 = vmatprep.subr.bf16.mxu0 %v6024
        %9253 = vmatpush1.bf16.msra.mxu0 %v6023
        %9254 = vmatprep.subr.bf16.mxu0 %v6032
        %9255 = vmatpush1.bf16.msra.mxu0 %v6031
        %9256 = vmatprep.subr.bf16.mxu0 %v6040
        %9257 = vmatpush1.bf16.msra.mxu0 %v6039
        %9258 = vmatprep.subr.bf16.mxu0 %v6048
        %9259 = vmatpush1.bf16.msra.mxu0 %v6047
        %9260 = vmatprep.subr.bf16.mxu0 %v6056
        %9261 = vmatpush1.bf16.msra.mxu0 %v6055
        %9262 = vmatprep.subr.bf16.mxu0 %v6064
        %9263 = vmatpush1.bf16.msra.mxu0 %v6063
        %9264 = vmatprep.mubr.bf16.mxu0 %v1934
        %9265 = vmatmul.mubr.bf16.gmra.mrb[0].mxu0 %v1933
        %v9266 = vpop.f32.mrb[0].mxu0
        %v9267 = vadd.f32 %v9226, %v9266
        %v9268 = vpop.f32.mrb[0].mxu0
        %v9269 = vadd.f32 %v9228, %v9268
        %v9270 = vpop.f32.mrb[0].mxu0
        %v9271 = vpop.f32.mrb[0].mxu0
        %9272 = vdwg.mxu0
        %9273 = vmatprep.subr.bf16.mxu0 %v6072
        %9274 = vmatpush1.bf16.msra.mxu0 %v6071
        %9275 = vmatprep.subr.bf16.mxu0 %v6080
        %9276 = vmatpush1.bf16.msra.mxu0 %v6079
        %9277 = vmatprep.subr.bf16.mxu0 %v6088
        %9278 = vmatpush1.bf16.msra.mxu0 %v6087
        %9279 = vmatprep.subr.bf16.mxu0 %v6096
        %9280 = vmatpush1.bf16.msra.mxu0 %v6095
        %9281 = vmatprep.subr.bf16.mxu0 %v6104
        %9282 = vmatpush1.bf16.msra.mxu0 %v6103
        %9283 = vmatprep.subr.bf16.mxu0 %v6112
        %9284 = vmatpush1.bf16.msra.mxu0 %v6111
        %9285 = vmatprep.subr.bf16.mxu0 %v6120
        %9286 = vmatpush1.bf16.msra.mxu0 %v6119
        %9287 = vmatprep.subr.bf16.mxu0 %v6128
        %9288 = vmatpush1.bf16.msra.mxu0 %v6127
        %9289 = vmatprep.subr.bf16.mxu0 %v6136
        %9290 = vmatpush1.bf16.msra.mxu0 %v6135
        %9291 = vmatprep.subr.bf16.mxu0 %v6144
        %9292 = vmatpush1.bf16.msra.mxu0 %v6143
        %9293 = vmatprep.subr.bf16.mxu0 %v6152
        %9294 = vmatpush1.bf16.msra.mxu0 %v6151
        %9295 = vmatprep.subr.bf16.mxu0 %v6160
        %9296 = vmatpush1.bf16.msra.mxu0 %v6159
        %9297 = vmatprep.subr.bf16.mxu0 %v6168
        %9298 = vmatpush1.bf16.msra.mxu0 %v6167
        %9299 = vmatprep.subr.bf16.mxu0 %v6176
        %9300 = vmatpush1.bf16.msra.mxu0 %v6175
        %9301 = vmatprep.subr.bf16.mxu0 %v6184
        %9302 = vmatpush1.bf16.msra.mxu0 %v6183
        %9303 = vmatprep.subr.bf16.mxu0 %v6192
        %9304 = vmatpush1.bf16.msra.mxu0 %v6191
        %9305 = vmatprep.mubr.bf16.mxu0 %v1936
        %9306 = vmatmul.mubr.bf16.gmra.mrb[0].mxu0 %v1935
        %v9307 = vpop.f32.mrb[0].mxu0
        %v9308 = vadd.f32 %v9267, %v9307
        %v9309 = vpop.f32.mrb[0].mxu0
        %v9310 = vadd.f32 %v9269, %v9309
        %v9311 = vpop.f32.mrb[0].mxu0
        %v9312 = vpop.f32.mrb[0].mxu0
        %9313 = vdwg.mxu0
        %9314 = vmatprep.subr.bf16.mxu0 %v6200
        %9315 = vmatpush1.bf16.msra.mxu0 %v6199
        %9316 = vmatprep.subr.bf16.mxu0 %v6208
        %9317 = vmatpush1.bf16.msra.mxu0 %v6207
        %9318 = vmatprep.subr.bf16.mxu0 %v6216
        %9319 = vmatpush1.bf16.msra.mxu0 %v6215
        %9320 = vmatprep.subr.bf16.mxu0 %v6224
        %9321 = vmatpush1.bf16.msra.mxu0 %v6223
        %9322 = vmatprep.subr.bf16.mxu0 %v6232
        %9323 = vmatpush1.bf16.msra.mxu0 %v6231
        %9324 = vmatprep.subr.bf16.mxu0 %v6240
        %9325 = vmatpush1.bf16.msra.mxu0 %v6239
        %9326 = vmatprep.subr.bf16.mxu0 %v6248
        %9327 = vmatpush1.bf16.msra.mxu0 %v6247
        %9328 = vmatprep.subr.bf16.mxu0 %v6256
        %9329 = vmatpush1.bf16.msra.mxu0 %v6255
        %9330 = vmatprep.subr.bf16.mxu0 %v6264
        %9331 = vmatpush1.bf16.msra.mxu0 %v6263
        %9332 = vmatprep.subr.bf16.mxu0 %v6272
        %9333 = vmatpush1.bf16.msra.mxu0 %v6271
        %9334 = vmatprep.subr.bf16.mxu0 %v6280
        %9335 = vmatpush1.bf16.msra.mxu0 %v6279
        %9336 = vmatprep.subr.bf16.mxu0 %v6288
        %9337 = vmatpush1.bf16.msra.mxu0 %v6287
        %9338 = vmatprep.subr.bf16.mxu0 %v6296
        %9339 = vmatpush1.bf16.msra.mxu0 %v6295
        %9340 = vmatprep.subr.bf16.mxu0 %v6304
        %9341 = vmatpush1.bf16.msra.mxu0 %v6303
        %9342 = vmatprep.subr.bf16.mxu0 %v6312
        %9343 = vmatpush1.bf16.msra.mxu0 %v6311
        %9344 = vmatprep.subr.bf16.mxu0 %v6320
        %9345 = vmatpush1.bf16.msra.mxu0 %v6319
        %9346 = vmatprep.mubr.bf16.mxu0 %v1938
        %9347 = vmatmul.mubr.bf16.gmra.mrb[0].mxu0 %v1937
        %v9348 = vpop.f32.mrb[0].mxu0
        %v9349 = vadd.f32 %v9308, %v9348
        %v9350 = vpop.f32.mrb[0].mxu0
        %v9351 = vadd.f32 %v9310, %v9350
        %v9352 = vpop.f32.mrb[0].mxu0
        %v9353 = vpop.f32.mrb[0].mxu0
        %9354 = vdwg.mxu0
        %9355 = vmatprep.subr.bf16.mxu0 %v6328
        %9356 = vmatpush1.bf16.msra.mxu0 %v6327
        %9357 = vmatprep.subr.bf16.mxu0 %v6336
        %9358 = vmatpush1.bf16.msra.mxu0 %v6335
        %9359 = vmatprep.subr.bf16.mxu0 %v6344
        %9360 = vmatpush1.bf16.msra.mxu0 %v6343
        %9361 = vmatprep.subr.bf16.mxu0 %v6352
        %9362 = vmatpush1.bf16.msra.mxu0 %v6351
        %9363 = vmatprep.subr.bf16.mxu0 %v6360
        %9364 = vmatpush1.bf16.msra.mxu0 %v6359
        %9365 = vmatprep.subr.bf16.mxu0 %v6368
        %9366 = vmatpush1.bf16.msra.mxu0 %v6367
        %9367 = vmatprep.subr.bf16.mxu0 %v6376
        %9368 = vmatpush1.bf16.msra.mxu0 %v6375
        %9369 = vmatprep.subr.bf16.mxu0 %v6384
        %9370 = vmatpush1.bf16.msra.mxu0 %v6383
        %9371 = vmatprep.subr.bf16.mxu0 %v6392
        %9372 = vmatpush1.bf16.msra.mxu0 %v6391
        %9373 = vmatprep.subr.bf16.mxu0 %v6400
        %9374 = vmatpush1.bf16.msra.mxu0 %v6399
        %9375 = vmatprep.subr.bf16.mxu0 %v6408
        %9376 = vmatpush1.bf16.msra.mxu0 %v6407
        %9377 = vmatprep.subr.bf16.mxu0 %v6416
        %9378 = vmatpush1.bf16.msra.mxu0 %v6415
        %9379 = vmatprep.subr.bf16.mxu0 %v6424
        %9380 = vmatpush1.bf16.msra.mxu0 %v6423
        %9381 = vmatprep.subr.bf16.mxu0 %v6432
        %9382 = vmatpush1.bf16.msra.mxu0 %v6431
        %9383 = vmatprep.subr.bf16.mxu0 %v6440
        %9384 = vmatpush1.bf16.msra.mxu0 %v6439
        %9385 = vmatprep.subr.bf16.mxu0 %v6448
        %9386 = vmatpush1.bf16.msra.mxu0 %v6447
        %9387 = vmatprep.mubr.bf16.mxu0 %v1940
        %9388 = vmatmul.mubr.bf16.gmra.mrb[0].mxu0 %v1939
        %v9389 = vpop.f32.mrb[0].mxu0
        %v9390 = vadd.f32 %v9349, %v9389
        %v9391 = vpop.f32.mrb[0].mxu0
        %v9392 = vadd.f32 %v9351, %v9391
        %v9393 = vpop.f32.mrb[0].mxu0
        %v9394 = vpop.f32.mrb[0].mxu0
        %9395 = vdwg.mxu0
        %9396 = vmatprep.subr.bf16.mxu0 %v6456
        %9397 = vmatpush1.bf16.msra.mxu0 %v6455
        %9398 = vmatprep.subr.bf16.mxu0 %v6464
        %9399 = vmatpush1.bf16.msra.mxu0 %v6463
        %9400 = vmatprep.subr.bf16.mxu0 %v6472
        %9401 = vmatpush1.bf16.msra.mxu0 %v6471
        %9402 = vmatprep.subr.bf16.mxu0 %v6480
        %9403 = vmatpush1.bf16.msra.mxu0 %v6479
        %9404 = vmatprep.subr.bf16.mxu0 %v6488
        %9405 = vmatpush1.bf16.msra.mxu0 %v6487
        %9406 = vmatprep.subr.bf16.mxu0 %v6496
        %9407 = vmatpush1.bf16.msra.mxu0 %v6495
        %9408 = vmatprep.subr.bf16.mxu0 %v6504
        %9409 = vmatpush1.bf16.msra.mxu0 %v6503
        %9410 = vmatprep.subr.bf16.mxu0 %v6512
        %9411 = vmatpush1.bf16.msra.mxu0 %v6511
        %9412 = vmatprep.subr.bf16.mxu0 %v6520
        %9413 = vmatpush1.bf16.msra.mxu0 %v6519
        %9414 = vmatprep.subr.bf16.mxu0 %v6528
        %9415 = vmatpush1.bf16.msra.mxu0 %v6527
        %9416 = vmatprep.subr.bf16.mxu0 %v6536
        %9417 = vmatpush1.bf16.msra.mxu0 %v6535
        %9418 = vmatprep.subr.bf16.mxu0 %v6544
        %9419 = vmatpush1.bf16.msra.mxu0 %v6543
        %9420 = vmatprep.subr.bf16.mxu0 %v6552
        %9421 = vmatpush1.bf16.msra.mxu0 %v6551
        %9422 = vmatprep.subr.bf16.mxu0 %v6560
        %9423 = vmatpush1.bf16.msra.mxu0 %v6559
        %9424 = vmatprep.subr.bf16.mxu0 %v6568
        %9425 = vmatpush1.bf16.msra.mxu0 %v6567
        %9426 = vmatprep.subr.bf16.mxu0 %v6576
        %9427 = vmatpush1.bf16.msra.mxu0 %v6575
        %9428 = vmatprep.mubr.bf16.mxu0 %v1942
        %9429 = vmatmul.mubr.bf16.gmra.mrb[0].mxu0 %v1941
        %v9430 = vpop.f32.mrb[0].mxu0
        %v9431 = vadd.f32 %v9390, %v9430
        %v9432 = vpop.f32.mrb[0].mxu0
        %v9433 = vadd.f32 %v9392, %v9432
        %v9434 = vpop.f32.mrb[0].mxu0
        %v9435 = vpop.f32.mrb[0].mxu0
        %9436 = vdwg.mxu0
        %9437 = vmatprep.subr.bf16.mxu0 %v6584
        %9438 = vmatpush1.bf16.msra.mxu0 %v6583
        %9439 = vmatprep.subr.bf16.mxu0 %v6592
        %9440 = vmatpush1.bf16.msra.mxu0 %v6591
        %9441 = vmatprep.subr.bf16.mxu0 %v6600
        %9442 = vmatpush1.bf16.msra.mxu0 %v6599
        %9443 = vmatprep.subr.bf16.mxu0 %v6608
        %9444 = vmatpush1.bf16.msra.mxu0 %v6607
        %9445 = vmatprep.subr.bf16.mxu0 %v6616
        %9446 = vmatpush1.bf16.msra.mxu0 %v6615
        %9447 = vmatprep.subr.bf16.mxu0 %v6624
        %9448 = vmatpush1.bf16.msra.mxu0 %v6623
        %9449 = vmatprep.subr.bf16.mxu0 %v6632
        %9450 = vmatpush1.bf16.msra.mxu0 %v6631
        %9451 = vmatprep.subr.bf16.mxu0 %v6640
        %9452 = vmatpush1.bf16.msra.mxu0 %v6639
        %9453 = vmatprep.subr.bf16.mxu0 %v6648
        %9454 = vmatpush1.bf16.msra.mxu0 %v6647
        %9455 = vmatprep.subr.bf16.mxu0 %v6656
        %9456 = vmatpush1.bf16.msra.mxu0 %v6655
        %9457 = vmatprep.subr.bf16.mxu0 %v6664
        %9458 = vmatpush1.bf16.msra.mxu0 %v6663
        %9459 = vmatprep.subr.bf16.mxu0 %v6672
        %9460 = vmatpush1.bf16.msra.mxu0 %v6671
        %9461 = vmatprep.subr.bf16.mxu0 %v6680
        %9462 = vmatpush1.bf16.msra.mxu0 %v6679
        %9463 = vmatprep.subr.bf16.mxu0 %v6688
        %9464 = vmatpush1.bf16.msra.mxu0 %v6687
        %9465 = vmatprep.subr.bf16.mxu0 %v6696
        %9466 = vmatpush1.bf16.msra.mxu0 %v6695
        %9467 = vmatprep.subr.bf16.mxu0 %v6704
        %9468 = vmatpush1.bf16.msra.mxu0 %v6703
        %9469 = vmatprep.mubr.bf16.mxu0 %v1944
        %9470 = vmatmul.mubr.bf16.gmra.mrb[0].mxu0 %v1943
        %v9471 = vpop.f32.mrb[0].mxu0
        %v9472 = vadd.f32 %v9431, %v9471
        %v9473 = vpop.f32.mrb[0].mxu0
        %v9474 = vadd.f32 %v9433, %v9473
        %v9475 = vpop.f32.mrb[0].mxu0
        %v9476 = vpop.f32.mrb[0].mxu0
        %9477 = vdwg.mxu0
        %9478 = vmatprep.subr.bf16.mxu0 %v6712
        %9479 = vmatpush1.bf16.msra.mxu0 %v6711
        %9480 = vmatprep.subr.bf16.mxu0 %v6720
        %9481 = vmatpush1.bf16.msra.mxu0 %v6719
        %9482 = vmatprep.subr.bf16.mxu0 %v6728
        %9483 = vmatpush1.bf16.msra.mxu0 %v6727
        %9484 = vmatprep.subr.bf16.mxu0 %v6736
        %9485 = vmatpush1.bf16.msra.mxu0 %v6735
        %9486 = vmatprep.subr.bf16.mxu0 %v6744
        %9487 = vmatpush1.bf16.msra.mxu0 %v6743
        %9488 = vmatprep.subr.bf16.mxu0 %v6752
        %9489 = vmatpush1.bf16.msra.mxu0 %v6751
        %9490 = vmatprep.subr.bf16.mxu0 %v6760
        %9491 = vmatpush1.bf16.msra.mxu0 %v6759
        %9492 = vmatprep.subr.bf16.mxu0 %v6768
        %9493 = vmatpush1.bf16.msra.mxu0 %v6767
        %9494 = vmatprep.subr.bf16.mxu0 %v6776
        %9495 = vmatpush1.bf16.msra.mxu0 %v6775
        %9496 = vmatprep.subr.bf16.mxu0 %v6784
        %9497 = vmatpush1.bf16.msra.mxu0 %v6783
        %9498 = vmatprep.subr.bf16.mxu0 %v6792
        %9499 = vmatpush1.bf16.msra.mxu0 %v6791
        %9500 = vmatprep.subr.bf16.mxu0 %v6800
        %9501 = vmatpush1.bf16.msra.mxu0 %v6799
        %9502 = vmatprep.subr.bf16.mxu0 %v6808
        %9503 = vmatpush1.bf16.msra.mxu0 %v6807
        %9504 = vmatprep.subr.bf16.mxu0 %v6816
        %9505 = vmatpush1.bf16.msra.mxu0 %v6815
        %9506 = vmatprep.subr.bf16.mxu0 %v6824
        %9507 = vmatpush1.bf16.msra.mxu0 %v6823
        %9508 = vmatprep.subr.bf16.mxu0 %v6832
        %9509 = vmatpush1.bf16.msra.mxu0 %v6831
        %9510 = vmatprep.mubr.bf16.mxu0 %v1946
        %9511 = vmatmul.mubr.bf16.gmra.mrb[0].mxu0 %v1945
        %v9512 = vpop.f32.mrb[0].mxu0
        %v9513 = vadd.f32 %v9472, %v9512
        %v9514 = vpop.f32.mrb[0].mxu0
        %v9515 = vadd.f32 %v9474, %v9514
        %v9516 = vpop.f32.mrb[0].mxu0
        %v9517 = vpop.f32.mrb[0].mxu0
        %9518 = vdwg.mxu0
        %9519 = vmatprep.subr.bf16.mxu0 %v6840
        %9520 = vmatpush1.bf16.msra.mxu0 %v6839
        %9521 = vmatprep.subr.bf16.mxu0 %v6848
        %9522 = vmatpush1.bf16.msra.mxu0 %v6847
        %9523 = vmatprep.subr.bf16.mxu0 %v6856
        %9524 = vmatpush1.bf16.msra.mxu0 %v6855
        %9525 = vmatprep.subr.bf16.mxu0 %v6864
        %9526 = vmatpush1.bf16.msra.mxu0 %v6863
        %9527 = vmatprep.subr.bf16.mxu0 %v6872
        %9528 = vmatpush1.bf16.msra.mxu0 %v6871
        %9529 = vmatprep.subr.bf16.mxu0 %v6880
        %9530 = vmatpush1.bf16.msra.mxu0 %v6879
        %9531 = vmatprep.subr.bf16.mxu0 %v6888
        %9532 = vmatpush1.bf16.msra.mxu0 %v6887
        %9533 = vmatprep.subr.bf16.mxu0 %v6896
        %9534 = vmatpush1.bf16.msra.mxu0 %v6895
        %9535 = vmatprep.subr.bf16.mxu0 %v6904
        %9536 = vmatpush1.bf16.msra.mxu0 %v6903
        %9537 = vmatprep.subr.bf16.mxu0 %v6912
        %9538 = vmatpush1.bf16.msra.mxu0 %v6911
        %9539 = vmatprep.subr.bf16.mxu0 %v6920
        %9540 = vmatpush1.bf16.msra.mxu0 %v6919
        %9541 = vmatprep.subr.bf16.mxu0 %v6928
        %9542 = vmatpush1.bf16.msra.mxu0 %v6927
        %9543 = vmatprep.subr.bf16.mxu0 %v6936
        %9544 = vmatpush1.bf16.msra.mxu0 %v6935
        %9545 = vmatprep.subr.bf16.mxu0 %v6944
        %9546 = vmatpush1.bf16.msra.mxu0 %v6943
        %9547 = vmatprep.subr.bf16.mxu0 %v6952
        %9548 = vmatpush1.bf16.msra.mxu0 %v6951
        %9549 = vmatprep.subr.bf16.mxu0 %v6960
        %9550 = vmatpush1.bf16.msra.mxu0 %v6959
        %9551 = vmatprep.mubr.bf16.mxu0 %v1948
        %9552 = vmatmul.mubr.bf16.gmra.mrb[0].mxu0 %v1947
        %v9553 = vpop.f32.mrb[0].mxu0
        %v9554 = vadd.f32 %v9513, %v9553
        %v9555 = vpop.f32.mrb[0].mxu0
        %v9556 = vadd.f32 %v9515, %v9555
        %v9557 = vpop.f32.mrb[0].mxu0
        %v9558 = vpop.f32.mrb[0].mxu0
        %9559 = vdwg.mxu0
        %9560 = vmatprep.subr.bf16.mxu0 %v6968
        %9561 = vmatpush1.bf16.msra.mxu0 %v6967
        %9562 = vmatprep.subr.bf16.mxu0 %v6976
        %9563 = vmatpush1.bf16.msra.mxu0 %v6975
        %9564 = vmatprep.subr.bf16.mxu0 %v6984
        %9565 = vmatpush1.bf16.msra.mxu0 %v6983
        %9566 = vmatprep.subr.bf16.mxu0 %v6992
        %9567 = vmatpush1.bf16.msra.mxu0 %v6991
        %9568 = vmatprep.subr.bf16.mxu0 %v7000
        %9569 = vmatpush1.bf16.msra.mxu0 %v6999
        %9570 = vmatprep.subr.bf16.mxu0 %v7008
        %9571 = vmatpush1.bf16.msra.mxu0 %v7007
        %9572 = vmatprep.subr.bf16.mxu0 %v7016
        %9573 = vmatpush1.bf16.msra.mxu0 %v7015
        %9574 = vmatprep.subr.bf16.mxu0 %v7024
        %9575 = vmatpush1.bf16.msra.mxu0 %v7023
        %9576 = vmatprep.subr.bf16.mxu0 %v7032
        %9577 = vmatpush1.bf16.msra.mxu0 %v7031
        %9578 = vmatprep.subr.bf16.mxu0 %v7040
        %9579 = vmatpush1.bf16.msra.mxu0 %v7039
        %9580 = vmatprep.subr.bf16.mxu0 %v7048
        %9581 = vmatpush1.bf16.msra.mxu0 %v7047
        %9582 = vmatprep.subr.bf16.mxu0 %v7056
        %9583 = vmatpush1.bf16.msra.mxu0 %v7055
        %9584 = vmatprep.subr.bf16.mxu0 %v7064
        %9585 = vmatpush1.bf16.msra.mxu0 %v7063
        %9586 = vmatprep.subr.bf16.mxu0 %v7072
        %9587 = vmatpush1.bf16.msra.mxu0 %v7071
        %9588 = vmatprep.subr.bf16.mxu0 %v7080
        %9589 = vmatpush1.bf16.msra.mxu0 %v7079
        %9590 = vmatprep.subr.bf16.mxu0 %v7088
        %9591 = vmatpush1.bf16.msra.mxu0 %v7087
        %9592 = vmatprep.mubr.bf16.mxu0 %v1950
        %9593 = vmatmul.mubr.bf16.gmra.mrb[0].mxu0 %v1949
        %v9594 = vpop.f32.mrb[0].mxu0
        %v9595 = vadd.f32 %v9554, %v9594
        %v9596 = vpop.f32.mrb[0].mxu0
        %v9597 = vadd.f32 %v9556, %v9596
        %v9598 = vpop.f32.mrb[0].mxu0
        %v9599 = vpop.f32.mrb[0].mxu0
        %9600 = vdwg.mxu0
        %9601 = vmatprep.subr.bf16.mxu0 %v5818
        %9602 = vmatpush1.bf16.msra.mxu0 %v5817
        %9603 = vmatprep.subr.bf16.mxu0 %v5826
        %9604 = vmatpush1.bf16.msra.mxu0 %v5825
        %9605 = vmatprep.subr.bf16.mxu0 %v5834
        %9606 = vmatpush1.bf16.msra.mxu0 %v5833
        %9607 = vmatprep.subr.bf16.mxu0 %v5842
        %9608 = vmatpush1.bf16.msra.mxu0 %v5841
        %9609 = vmatprep.subr.bf16.mxu0 %v5850
        %9610 = vmatpush1.bf16.msra.mxu0 %v5849
        %9611 = vmatprep.subr.bf16.mxu0 %v5858
        %9612 = vmatpush1.bf16.msra.mxu0 %v5857
        %9613 = vmatprep.subr.bf16.mxu0 %v5866
        %9614 = vmatpush1.bf16.msra.mxu0 %v5865
        %9615 = vmatprep.subr.bf16.mxu0 %v5874
        %9616 = vmatpush1.bf16.msra.mxu0 %v5873
        %9617 = vmatprep.subr.bf16.mxu0 %v5882
        %9618 = vmatpush1.bf16.msra.mxu0 %v5881
        %9619 = vmatprep.subr.bf16.mxu0 %v5890
        %9620 = vmatpush1.bf16.msra.mxu0 %v5889
        %9621 = vmatprep.subr.bf16.mxu0 %v5898
        %9622 = vmatpush1.bf16.msra.mxu0 %v5897
        %9623 = vmatprep.subr.bf16.mxu0 %v5906
        %9624 = vmatpush1.bf16.msra.mxu0 %v5905
        %9625 = vmatprep.subr.bf16.mxu0 %v5914
        %9626 = vmatpush1.bf16.msra.mxu0 %v5913
        %9627 = vmatprep.subr.bf16.mxu0 %v5922
        %9628 = vmatpush1.bf16.msra.mxu0 %v5921
        %9629 = vmatprep.subr.bf16.mxu0 %v5930
        %9630 = vmatpush1.bf16.msra.mxu0 %v5929
        %9631 = vmatprep.subr.bf16.mxu0 %v5938
        %9632 = vmatpush1.bf16.msra.mxu0 %v5937
        %9633 = vmatprep.mubr.bf16.mxu0 %v1932
        %9634 = vmatmul.mubr.bf16.gmra.mrb[0].mxu0 %v1931
        %v9635 = vpop.f32.mrb[0].mxu0
        %v9636 = vadd.f32 0.0, %v9635
        %v9637 = vpop.f32.mrb[0].mxu0
        %v9638 = vadd.f32 0.0, %v9637
        %v9639 = vpop.f32.mrb[0].mxu0
        %v9640 = vpop.f32.mrb[0].mxu0
        %9641 = vdwg.mxu0
        %9642 = vmatprep.subr.bf16.mxu0 %v5946
        %9643 = vmatpush1.bf16.msra.mxu0 %v5945
        %9644 = vmatprep.subr.bf16.mxu0 %v5954
        %9645 = vmatpush1.bf16.msra.mxu0 %v5953
        %9646 = vmatprep.subr.bf16.mxu0 %v5962
        %9647 = vmatpush1.bf16.msra.mxu0 %v5961
        %9648 = vmatprep.subr.bf16.mxu0 %v5970
        %9649 = vmatpush1.bf16.msra.mxu0 %v5969
        %9650 = vmatprep.subr.bf16.mxu0 %v5978
        %9651 = vmatpush1.bf16.msra.mxu0 %v5977
        %9652 = vmatprep.subr.bf16.mxu0 %v5986
        %9653 = vmatpush1.bf16.msra.mxu0 %v5985
        %9654 = vmatprep.subr.bf16.mxu0 %v5994
        %9655 = vmatpush1.bf16.msra.mxu0 %v5993
        %9656 = vmatprep.subr.bf16.mxu0 %v6002
        %9657 = vmatpush1.bf16.msra.mxu0 %v6001
        %9658 = vmatprep.subr.bf16.mxu0 %v6010
        %9659 = vmatpush1.bf16.msra.mxu0 %v6009
        %9660 = vmatprep.subr.bf16.mxu0 %v6018
        %9661 = vmatpush1.bf16.msra.mxu0 %v6017
        %9662 = vmatprep.subr.bf16.mxu0 %v6026
        %9663 = vmatpush1.bf16.msra.mxu0 %v6025
        %9664 = vmatprep.subr.bf16.mxu0 %v6034
        %9665 = vmatpush1.bf16.msra.mxu0 %v6033
        %9666 = vmatprep.subr.bf16.mxu0 %v6042
        %9667 = vmatpush1.bf16.msra.mxu0 %v6041
        %9668 = vmatprep.subr.bf16.mxu0 %v6050
        %9669 = vmatpush1.bf16.msra.mxu0 %v6049
        %9670 = vmatprep.subr.bf16.mxu0 %v6058
        %9671 = vmatpush1.bf16.msra.mxu0 %v6057
        %9672 = vmatprep.subr.bf16.mxu0 %v6066
        %9673 = vmatpush1.bf16.msra.mxu0 %v6065
        %9674 = vmatprep.mubr.bf16.mxu0 %v1934
        %9675 = vmatmul.mubr.bf16.gmra.mrb[0].mxu0 %v1933
        %v9676 = vpop.f32.mrb[0].mxu0
        %v9677 = vadd.f32 %v9636, %v9676
        %v9678 = vpop.f32.mrb[0].mxu0
        %v9679 = vadd.f32 %v9638, %v9678
        %v9680 = vpop.f32.mrb[0].mxu0
        %v9681 = vpop.f32.mrb[0].mxu0
        %9682 = vdwg.mxu0
        %9683 = vmatprep.subr.bf16.mxu0 %v6074
        %9684 = vmatpush1.bf16.msra.mxu0 %v6073
        %9685 = vmatprep.subr.bf16.mxu0 %v6082
        %9686 = vmatpush1.bf16.msra.mxu0 %v6081
        %9687 = vmatprep.subr.bf16.mxu0 %v6090
        %9688 = vmatpush1.bf16.msra.mxu0 %v6089
        %9689 = vmatprep.subr.bf16.mxu0 %v6098
        %9690 = vmatpush1.bf16.msra.mxu0 %v6097
        %9691 = vmatprep.subr.bf16.mxu0 %v6106
        %9692 = vmatpush1.bf16.msra.mxu0 %v6105
        %9693 = vmatprep.subr.bf16.mxu0 %v6114
        %9694 = vmatpush1.bf16.msra.mxu0 %v6113
        %9695 = vmatprep.subr.bf16.mxu0 %v6122
        %9696 = vmatpush1.bf16.msra.mxu0 %v6121
        %9697 = vmatprep.subr.bf16.mxu0 %v6130
        %9698 = vmatpush1.bf16.msra.mxu0 %v6129
        %9699 = vmatprep.subr.bf16.mxu0 %v6138
        %9700 = vmatpush1.bf16.msra.mxu0 %v6137
        %9701 = vmatprep.subr.bf16.mxu0 %v6146
        %9702 = vmatpush1.bf16.msra.mxu0 %v6145
        %9703 = vmatprep.subr.bf16.mxu0 %v6154
        %9704 = vmatpush1.bf16.msra.mxu0 %v6153
        %9705 = vmatprep.subr.bf16.mxu0 %v6162
        %9706 = vmatpush1.bf16.msra.mxu0 %v6161
        %9707 = vmatprep.subr.bf16.mxu0 %v6170
        %9708 = vmatpush1.bf16.msra.mxu0 %v6169
        %9709 = vmatprep.subr.bf16.mxu0 %v6178
        %9710 = vmatpush1.bf16.msra.mxu0 %v6177
        %9711 = vmatprep.subr.bf16.mxu0 %v6186
        %9712 = vmatpush1.bf16.msra.mxu0 %v6185
        %9713 = vmatprep.subr.bf16.mxu0 %v6194
        %9714 = vmatpush1.bf16.msra.mxu0 %v6193
        %9715 = vmatprep.mubr.bf16.mxu0 %v1936
        %9716 = vmatmul.mubr.bf16.gmra.mrb[0].mxu0 %v1935
        %v9717 = vpop.f32.mrb[0].mxu0
        %v9718 = vadd.f32 %v9677, %v9717
        %v9719 = vpop.f32.mrb[0].mxu0
        %v9720 = vadd.f32 %v9679, %v9719
        %v9721 = vpop.f32.mrb[0].mxu0
        %v9722 = vpop.f32.mrb[0].mxu0
        %9723 = vdwg.mxu0
        %9724 = vmatprep.subr.bf16.mxu0 %v6202
        %9725 = vmatpush1.bf16.msra.mxu0 %v6201
        %9726 = vmatprep.subr.bf16.mxu0 %v6210
        %9727 = vmatpush1.bf16.msra.mxu0 %v6209
        %9728 = vmatprep.subr.bf16.mxu0 %v6218
        %9729 = vmatpush1.bf16.msra.mxu0 %v6217
        %9730 = vmatprep.subr.bf16.mxu0 %v6226
        %9731 = vmatpush1.bf16.msra.mxu0 %v6225
        %9732 = vmatprep.subr.bf16.mxu0 %v6234
        %9733 = vmatpush1.bf16.msra.mxu0 %v6233
        %9734 = vmatprep.subr.bf16.mxu0 %v6242
        %9735 = vmatpush1.bf16.msra.mxu0 %v6241
        %9736 = vmatprep.subr.bf16.mxu0 %v6250
        %9737 = vmatpush1.bf16.msra.mxu0 %v6249
        %9738 = vmatprep.subr.bf16.mxu0 %v6258
        %9739 = vmatpush1.bf16.msra.mxu0 %v6257
        %9740 = vmatprep.subr.bf16.mxu0 %v6266
        %9741 = vmatpush1.bf16.msra.mxu0 %v6265
        %9742 = vmatprep.subr.bf16.mxu0 %v6274
        %9743 = vmatpush1.bf16.msra.mxu0 %v6273
        %9744 = vmatprep.subr.bf16.mxu0 %v6282
        %9745 = vmatpush1.bf16.msra.mxu0 %v6281
        %9746 = vmatprep.subr.bf16.mxu0 %v6290
        %9747 = vmatpush1.bf16.msra.mxu0 %v6289
        %9748 = vmatprep.subr.bf16.mxu0 %v6298
        %9749 = vmatpush1.bf16.msra.mxu0 %v6297
        %9750 = vmatprep.subr.bf16.mxu0 %v6306
        %9751 = vmatpush1.bf16.msra.mxu0 %v6305
        %9752 = vmatprep.subr.bf16.mxu0 %v6314
        %9753 = vmatpush1.bf16.msra.mxu0 %v6313
        %9754 = vmatprep.subr.bf16.mxu0 %v6322
        %9755 = vmatpush1.bf16.msra.mxu0 %v6321
        %9756 = vmatprep.mubr.bf16.mxu0 %v1938
        %9757 = vmatmul.mubr.bf16.gmra.mrb[0].mxu0 %v1937
        %v9758 = vpop.f32.mrb[0].mxu0
        %v9759 = vadd.f32 %v9718, %v9758
        %v9760 = vpop.f32.mrb[0].mxu0
        %v9761 = vadd.f32 %v9720, %v9760
        %v9762 = vpop.f32.mrb[0].mxu0
        %v9763 = vpop.f32.mrb[0].mxu0
        %9764 = vdwg.mxu0
        %9765 = vmatprep.subr.bf16.mxu0 %v6330
        %9766 = vmatpush1.bf16.msra.mxu0 %v6329
        %9767 = vmatprep.subr.bf16.mxu0 %v6338
        %9768 = vmatpush1.bf16.msra.mxu0 %v6337
        %9769 = vmatprep.subr.bf16.mxu0 %v6346
        %9770 = vmatpush1.bf16.msra.mxu0 %v6345
        %9771 = vmatprep.subr.bf16.mxu0 %v6354
        %9772 = vmatpush1.bf16.msra.mxu0 %v6353
        %9773 = vmatprep.subr.bf16.mxu0 %v6362
        %9774 = vmatpush1.bf16.msra.mxu0 %v6361
        %9775 = vmatprep.subr.bf16.mxu0 %v6370
        %9776 = vmatpush1.bf16.msra.mxu0 %v6369
        %9777 = vmatprep.subr.bf16.mxu0 %v6378
        %9778 = vmatpush1.bf16.msra.mxu0 %v6377
        %9779 = vmatprep.subr.bf16.mxu0 %v6386
        %9780 = vmatpush1.bf16.msra.mxu0 %v6385
        %9781 = vmatprep.subr.bf16.mxu0 %v6394
        %9782 = vmatpush1.bf16.msra.mxu0 %v6393
        %9783 = vmatprep.subr.bf16.mxu0 %v6402
        %9784 = vmatpush1.bf16.msra.mxu0 %v6401
        %9785 = vmatprep.subr.bf16.mxu0 %v6410
        %9786 = vmatpush1.bf16.msra.mxu0 %v6409
        %9787 = vmatprep.subr.bf16.mxu0 %v6418
        %9788 = vmatpush1.bf16.msra.mxu0 %v6417
        %9789 = vmatprep.subr.bf16.mxu0 %v6426
        %9790 = vmatpush1.bf16.msra.mxu0 %v6425
        %9791 = vmatprep.subr.bf16.mxu0 %v6434
        %9792 = vmatpush1.bf16.msra.mxu0 %v6433
        %9793 = vmatprep.subr.bf16.mxu0 %v6442
        %9794 = vmatpush1.bf16.msra.mxu0 %v6441
        %9795 = vmatprep.subr.bf16.mxu0 %v6450
        %9796 = vmatpush1.bf16.msra.mxu0 %v6449
        %9797 = vmatprep.mubr.bf16.mxu0 %v1940
        %9798 = vmatmul.mubr.bf16.gmra.mrb[0].mxu0 %v1939
        %v9799 = vpop.f32.mrb[0].mxu0
        %v9800 = vadd.f32 %v9759, %v9799
        %v9801 = vpop.f32.mrb[0].mxu0
        %v9802 = vadd.f32 %v9761, %v9801
        %v9803 = vpop.f32.mrb[0].mxu0
        %v9804 = vpop.f32.mrb[0].mxu0
        %9805 = vdwg.mxu0
        %9806 = vmatprep.subr.bf16.mxu0 %v6458
        %9807 = vmatpush1.bf16.msra.mxu0 %v6457
        %9808 = vmatprep.subr.bf16.mxu0 %v6466
        %9809 = vmatpush1.bf16.msra.mxu0 %v6465
        %9810 = vmatprep.subr.bf16.mxu0 %v6474
        %9811 = vmatpush1.bf16.msra.mxu0 %v6473
        %9812 = vmatprep.subr.bf16.mxu0 %v6482
        %9813 = vmatpush1.bf16.msra.mxu0 %v6481
        %9814 = vmatprep.subr.bf16.mxu0 %v6490
        %9815 = vmatpush1.bf16.msra.mxu0 %v6489
        %9816 = vmatprep.subr.bf16.mxu0 %v6498
        %9817 = vmatpush1.bf16.msra.mxu0 %v6497
        %9818 = vmatprep.subr.bf16.mxu0 %v6506
        %9819 = vmatpush1.bf16.msra.mxu0 %v6505
        %9820 = vmatprep.subr.bf16.mxu0 %v6514
        %9821 = vmatpush1.bf16.msra.mxu0 %v6513
        %9822 = vmatprep.subr.bf16.mxu0 %v6522
        %9823 = vmatpush1.bf16.msra.mxu0 %v6521
        %9824 = vmatprep.subr.bf16.mxu0 %v6530
        %9825 = vmatpush1.bf16.msra.mxu0 %v6529
        %9826 = vmatprep.subr.bf16.mxu0 %v6538
        %9827 = vmatpush1.bf16.msra.mxu0 %v6537
        %9828 = vmatprep.subr.bf16.mxu0 %v6546
        %9829 = vmatpush1.bf16.msra.mxu0 %v6545
        %9830 = vmatprep.subr.bf16.mxu0 %v6554
        %9831 = vmatpush1.bf16.msra.mxu0 %v6553
        %9832 = vmatprep.subr.bf16.mxu0 %v6562
        %9833 = vmatpush1.bf16.msra.mxu0 %v6561
        %9834 = vmatprep.subr.bf16.mxu0 %v6570
        %9835 = vmatpush1.bf16.msra.mxu0 %v6569
        %9836 = vmatprep.subr.bf16.mxu0 %v6578
        %9837 = vmatpush1.bf16.msra.mxu0 %v6577
        %9838 = vmatprep.mubr.bf16.mxu0 %v1942
        %9839 = vmatmul.mubr.bf16.gmra.mrb[0].mxu0 %v1941
        %v9840 = vpop.f32.mrb[0].mxu0
        %v9841 = vadd.f32 %v9800, %v9840
        %v9842 = vpop.f32.mrb[0].mxu0
        %v9843 = vadd.f32 %v9802, %v9842
        %v9844 = vpop.f32.mrb[0].mxu0
        %v9845 = vpop.f32.mrb[0].mxu0
        %9846 = vdwg.mxu0
        %9847 = vmatprep.subr.bf16.mxu0 %v6586
        %9848 = vmatpush1.bf16.msra.mxu0 %v6585
        %9849 = vmatprep.subr.bf16.mxu0 %v6594
        %9850 = vmatpush1.bf16.msra.mxu0 %v6593
        %9851 = vmatprep.subr.bf16.mxu0 %v6602
        %9852 = vmatpush1.bf16.msra.mxu0 %v6601
        %9853 = vmatprep.subr.bf16.mxu0 %v6610
        %9854 = vmatpush1.bf16.msra.mxu0 %v6609
        %9855 = vmatprep.subr.bf16.mxu0 %v6618
        %9856 = vmatpush1.bf16.msra.mxu0 %v6617
        %9857 = vmatprep.subr.bf16.mxu0 %v6626
        %9858 = vmatpush1.bf16.msra.mxu0 %v6625
        %9859 = vmatprep.subr.bf16.mxu0 %v6634
        %9860 = vmatpush1.bf16.msra.mxu0 %v6633
        %9861 = vmatprep.subr.bf16.mxu0 %v6642
        %9862 = vmatpush1.bf16.msra.mxu0 %v6641
        %9863 = vmatprep.subr.bf16.mxu0 %v6650
        %9864 = vmatpush1.bf16.msra.mxu0 %v6649
        %9865 = vmatprep.subr.bf16.mxu0 %v6658
        %9866 = vmatpush1.bf16.msra.mxu0 %v6657
        %9867 = vmatprep.subr.bf16.mxu0 %v6666
        %9868 = vmatpush1.bf16.msra.mxu0 %v6665
        %9869 = vmatprep.subr.bf16.mxu0 %v6674
        %9870 = vmatpush1.bf16.msra.mxu0 %v6673
        %9871 = vmatprep.subr.bf16.mxu0 %v6682
        %9872 = vmatpush1.bf16.msra.mxu0 %v6681
        %9873 = vmatprep.subr.bf16.mxu0 %v6690
        %9874 = vmatpush1.bf16.msra.mxu0 %v6689
        %9875 = vmatprep.subr.bf16.mxu0 %v6698
        %9876 = vmatpush1.bf16.msra.mxu0 %v6697
        %9877 = vmatprep.subr.bf16.mxu0 %v6706
        %9878 = vmatpush1.bf16.msra.mxu0 %v6705
        %9879 = vmatprep.mubr.bf16.mxu0 %v1944
        %9880 = vmatmul.mubr.bf16.gmra.mrb[0].mxu0 %v1943
        %v9881 = vpop.f32.mrb[0].mxu0
        %v9882 = vadd.f32 %v9841, %v9881
        %v9883 = vpop.f32.mrb[0].mxu0
        %v9884 = vadd.f32 %v9843, %v9883
        %v9885 = vpop.f32.mrb[0].mxu0
        %v9886 = vpop.f32.mrb[0].mxu0
        %9887 = vdwg.mxu0
        %9888 = vmatprep.subr.bf16.mxu0 %v6714
        %9889 = vmatpush1.bf16.msra.mxu0 %v6713
        %9890 = vmatprep.subr.bf16.mxu0 %v6722
        %9891 = vmatpush1.bf16.msra.mxu0 %v6721
        %9892 = vmatprep.subr.bf16.mxu0 %v6730
        %9893 = vmatpush1.bf16.msra.mxu0 %v6729
        %9894 = vmatprep.subr.bf16.mxu0 %v6738
        %9895 = vmatpush1.bf16.msra.mxu0 %v6737
        %9896 = vmatprep.subr.bf16.mxu0 %v6746
        %9897 = vmatpush1.bf16.msra.mxu0 %v6745
        %9898 = vmatprep.subr.bf16.mxu0 %v6754
        %9899 = vmatpush1.bf16.msra.mxu0 %v6753
        %9900 = vmatprep.subr.bf16.mxu0 %v6762
        %9901 = vmatpush1.bf16.msra.mxu0 %v6761
        %9902 = vmatprep.subr.bf16.mxu0 %v6770
        %9903 = vmatpush1.bf16.msra.mxu0 %v6769
        %9904 = vmatprep.subr.bf16.mxu0 %v6778
        %9905 = vmatpush1.bf16.msra.mxu0 %v6777
        %9906 = vmatprep.subr.bf16.mxu0 %v6786
        %9907 = vmatpush1.bf16.msra.mxu0 %v6785
        %9908 = vmatprep.subr.bf16.mxu0 %v6794
        %9909 = vmatpush1.bf16.msra.mxu0 %v6793
        %9910 = vmatprep.subr.bf16.mxu0 %v6802
        %9911 = vmatpush1.bf16.msra.mxu0 %v6801
        %9912 = vmatprep.subr.bf16.mxu0 %v6810
        %9913 = vmatpush1.bf16.msra.mxu0 %v6809
        %9914 = vmatprep.subr.bf16.mxu0 %v6818
        %9915 = vmatpush1.bf16.msra.mxu0 %v6817
        %9916 = vmatprep.subr.bf16.mxu0 %v6826
        %9917 = vmatpush1.bf16.msra.mxu0 %v6825
        %9918 = vmatprep.subr.bf16.mxu0 %v6834
        %9919 = vmatpush1.bf16.msra.mxu0 %v6833
        %9920 = vmatprep.mubr.bf16.mxu0 %v1946
        %9921 = vmatmul.mubr.bf16.gmra.mrb[0].mxu0 %v1945
        %v9922 = vpop.f32.mrb[0].mxu0
        %v9923 = vadd.f32 %v9882, %v9922
        %v9924 = vpop.f32.mrb[0].mxu0
        %v9925 = vadd.f32 %v9884, %v9924
        %v9926 = vpop.f32.mrb[0].mxu0
        %v9927 = vpop.f32.mrb[0].mxu0
        %9928 = vdwg.mxu0
        %9929 = vmatprep.subr.bf16.mxu0 %v6842
        %9930 = vmatpush1.bf16.msra.mxu0 %v6841
        %9931 = vmatprep.subr.bf16.mxu0 %v6850
        %9932 = vmatpush1.bf16.msra.mxu0 %v6849
        %9933 = vmatprep.subr.bf16.mxu0 %v6858
        %9934 = vmatpush1.bf16.msra.mxu0 %v6857
        %9935 = vmatprep.subr.bf16.mxu0 %v6866
        %9936 = vmatpush1.bf16.msra.mxu0 %v6865
        %9937 = vmatprep.subr.bf16.mxu0 %v6874
        %9938 = vmatpush1.bf16.msra.mxu0 %v6873
        %9939 = vmatprep.subr.bf16.mxu0 %v6882
        %9940 = vmatpush1.bf16.msra.mxu0 %v6881
        %9941 = vmatprep.subr.bf16.mxu0 %v6890
        %9942 = vmatpush1.bf16.msra.mxu0 %v6889
        %9943 = vmatprep.subr.bf16.mxu0 %v6898
        %9944 = vmatpush1.bf16.msra.mxu0 %v6897
        %9945 = vmatprep.subr.bf16.mxu0 %v6906
        %9946 = vmatpush1.bf16.msra.mxu0 %v6905
        %9947 = vmatprep.subr.bf16.mxu0 %v6914
        %9948 = vmatpush1.bf16.msra.mxu0 %v6913
        %9949 = vmatprep.subr.bf16.mxu0 %v6922
        %9950 = vmatpush1.bf16.msra.mxu0 %v6921
        %9951 = vmatprep.subr.bf16.mxu0 %v6930
        %9952 = vmatpush1.bf16.msra.mxu0 %v6929
        %9953 = vmatprep.subr.bf16.mxu0 %v6938
        %9954 = vmatpush1.bf16.msra.mxu0 %v6937
        %9955 = vmatprep.subr.bf16.mxu0 %v6946
        %9956 = vmatpush1.bf16.msra.mxu0 %v6945
        %9957 = vmatprep.subr.bf16.mxu0 %v6954
        %9958 = vmatpush1.bf16.msra.mxu0 %v6953
        %9959 = vmatprep.subr.bf16.mxu0 %v6962
        %9960 = vmatpush1.bf16.msra.mxu0 %v6961
        %9961 = vmatprep.mubr.bf16.mxu0 %v1948
        %9962 = vmatmul.mubr.bf16.gmra.mrb[0].mxu0 %v1947
        %v9963 = vpop.f32.mrb[0].mxu0
        %v9964 = vadd.f32 %v9923, %v9963
        %v9965 = vpop.f32.mrb[0].mxu0
        %v9966 = vadd.f32 %v9925, %v9965
        %v9967 = vpop.f32.mrb[0].mxu0
        %v9968 = vpop.f32.mrb[0].mxu0
        %9969 = vdwg.mxu0
        %9970 = vmatprep.subr.bf16.mxu0 %v6970
        %9971 = vmatpush1.bf16.msra.mxu0 %v6969
        %9972 = vmatprep.subr.bf16.mxu0 %v6978
        %9973 = vmatpush1.bf16.msra.mxu0 %v6977
        %9974 = vmatprep.subr.bf16.mxu0 %v6986
        %9975 = vmatpush1.bf16.msra.mxu0 %v6985
        %9976 = vmatprep.subr.bf16.mxu0 %v6994
        %9977 = vmatpush1.bf16.msra.mxu0 %v6993
        %9978 = vmatprep.subr.bf16.mxu0 %v7002
        %9979 = vmatpush1.bf16.msra.mxu0 %v7001
        %9980 = vmatprep.subr.bf16.mxu0 %v7010
        %9981 = vmatpush1.bf16.msra.mxu0 %v7009
        %9982 = vmatprep.subr.bf16.mxu0 %v7018
        %9983 = vmatpush1.bf16.msra.mxu0 %v7017
        %9984 = vmatprep.subr.bf16.mxu0 %v7026
        %9985 = vmatpush1.bf16.msra.mxu0 %v7025
        %9986 = vmatprep.subr.bf16.mxu0 %v7034
        %9987 = vmatpush1.bf16.msra.mxu0 %v7033
        %9988 = vmatprep.subr.bf16.mxu0 %v7042
        %9989 = vmatpush1.bf16.msra.mxu0 %v7041
        %9990 = vmatprep.subr.bf16.mxu0 %v7050
        %9991 = vmatpush1.bf16.msra.mxu0 %v7049
        %9992 = vmatprep.subr.bf16.mxu0 %v7058
        %9993 = vmatpush1.bf16.msra.mxu0 %v7057
        %9994 = vmatprep.subr.bf16.mxu0 %v7066
        %9995 = vmatpush1.bf16.msra.mxu0 %v7065
        %9996 = vmatprep.subr.bf16.mxu0 %v7074
        %9997 = vmatpush1.bf16.msra.mxu0 %v7073
        %9998 = vmatprep.subr.bf16.mxu0 %v7082
        %9999 = vmatpush1.bf16.msra.mxu0 %v7081
        %10000 = vmatprep.subr.bf16.mxu0 %v7090
        %10001 = vmatpush1.bf16.msra.mxu0 %v7089
        %10002 = vmatprep.mubr.bf16.mxu0 %v1950
        %10003 = vmatmul.mubr.bf16.gmra.mrb[0].mxu0 %v1949
        %v10004 = vpop.f32.mrb[0].mxu0
        %v10005 = vadd.f32 %v9964, %v10004
        %v10006 = vpop.f32.mrb[0].mxu0
        %v10007 = vadd.f32 %v9966, %v10006
        %v10008 = vpop.f32.mrb[0].mxu0
        %v10009 = vpop.f32.mrb[0].mxu0
        %10010 = vdwg.mxu0
        %v10011 = vadd.f32 %v603, %v8775
        %v10012 = vadd.f32 %v604, %v8777
        %v10013 = vadd.f32 %v605, %v9185
        %v10014 = vadd.f32 %v606, %v9187
        %v10015 = vadd.f32 %v607, %v9595
        %v10016 = vadd.f32 %v608, %v9597
        %v10017 = vadd.f32 %v609, %v10005
        %v10018 = vadd.f32 %v610, %v10007
        %10019 = vst [vmem:[#allocation2] sm:$0xff] %v10011
        %10020 = vst [vmem:[#allocation2 + $0x8] sm:$0xff] %v10012
        %10021 = vst [vmem:[#allocation2 + $0x10] sm:$0xff] %v10013
        %10022 = vst [vmem:[#allocation2 + $0x18] sm:$0xff] %v10014
        %10023 = vst [vmem:[#allocation2 + $0x20] sm:$0xff] %v10015
        %10024 = vst [vmem:[#allocation2 + $0x28] sm:$0xff] %v10016
        %10025 = vst [vmem:[#allocation2 + $0x30] sm:$0xff] %v10017
        %10026 = vst [vmem:[#allocation2 + $0x38] sm:$0xff] %v10018
        %p10027 = scmp.eq.s32.totalorder %s33, 1
        // Predicated region
        $region117: #{_mydnn_forward_impl.1} parent=71 // pred_check
          %p10028 = pneg %p10027
        $region118: #{_mydnn_forward_impl.1} parent=71 // pred_check_branch
          %10030 = sbr.rel (%p10028) target = $region120
        $region119: #{_mydnn_forward_impl.1} parent=71 // pred_region
          %v10031 = vld [vmem:[#allocation2] sm:$0xff]
          %v10032 = vld [vmem:[#allocation2 + $0x8] sm:$0xff]
          %v10033 = vld [vmem:[#allocation2 + $0x10] sm:$0xff]
          %v10034 = vld [vmem:[#allocation2 + $0x18] sm:$0xff]
          %v10035 = vld [vmem:[#allocation2 + $0x20] sm:$0xff]
          %v10036 = vld [vmem:[#allocation2 + $0x28] sm:$0xff]
          %v10037 = vld [vmem:[#allocation2 + $0x30] sm:$0xff]
          %v10038 = vld [vmem:[#allocation2 + $0x38] sm:$0xff]
          %v10039 = vld [vmem:[#allocation6] sm:$0xff]
          %v10041 = vlaneseq
          %v10042 = vshrl.u32 %v10041, 7
          %v10043 = vsub.s32 0, %v10042
          %v10044 = vrot.slane %v10039, %v10043
          %v10045 = vlaneseq
          %v10046 = vshrl.u32 %v10045, 7
          %v10047 = vsub.s32 1, %v10046
          %v10048 = vrot.slane %v10039, %v10047
          %v10049 = vlaneseq
          %v10050 = vshrl.u32 %v10049, 7
          %v10051 = vsub.s32 2, %v10050
          %v10052 = vrot.slane %v10039, %v10051
          %v10053 = vlaneseq
          %v10054 = vshrl.u32 %v10053, 7
          %v10055 = vsub.s32 3, %v10054
          %v10056 = vrot.slane %v10039, %v10055
          %v10057 = vlaneseq
          %v10058 = vshrl.u32 %v10057, 7
          %v10059 = vsub.s32 4, %v10058
          %v10060 = vrot.slane %v10039, %v10059
          %v10061 = vlaneseq
          %v10062 = vshrl.u32 %v10061, 7
          %v10063 = vsub.s32 5, %v10062
          %v10064 = vrot.slane %v10039, %v10063
          %v10065 = vlaneseq
          %v10066 = vshrl.u32 %v10065, 7
          %v10067 = vsub.s32 6, %v10066
          %v10068 = vrot.slane %v10039, %v10067
          %v10069 = vlaneseq
          %v10070 = vshrl.u32 %v10069, 7
          %v10071 = vsub.s32 7, %v10070
          %v10072 = vrot.slane %v10039, %v10071
          %v10081 = vadd.f32 %v10031, %v10044
          %v10082 = vadd.f32 %v10032, %v10048
          %v10083 = vadd.f32 %v10033, %v10052
          %v10084 = vadd.f32 %v10034, %v10056
          %v10085 = vadd.f32 %v10035, %v10060
          %v10086 = vadd.f32 %v10036, %v10064
          %v10087 = vadd.f32 %v10037, %v10068
          %v10088 = vadd.f32 %v10038, %v10072
          %v10089 = vpack.c.bf16 %v10081, %v10081
          %v10090 = vpack.c.bf16 %v10082, %v10082
          %v10091 = vpack.c.bf16 %v10083, %v10083
          %v10092 = vpack.c.bf16 %v10084, %v10084
          %v10093 = vpack.c.bf16 %v10085, %v10085
          %v10094 = vpack.c.bf16 %v10086, %v10086
          %v10095 = vpack.c.bf16 %v10087, %v10087
          %v10096 = vpack.c.bf16 %v10088, %v10088
          %v10097 = vld [vmem:[#allocation8] sm:$0xff]
          %v10098 = vld [vmem:[#allocation8 + $0x8] sm:$0xff]
          %v10099 = vld [vmem:[#allocation8 + $0x10] sm:$0xff]
          %v10100 = vld [vmem:[#allocation8 + $0x18] sm:$0xff]
          %v10101 = vld [vmem:[#allocation8 + $0x20] sm:$0xff]
          %v10102 = vld [vmem:[#allocation8 + $0x28] sm:$0xff]
          %v10103 = vld [vmem:[#allocation8 + $0x30] sm:$0xff]
          %v10104 = vld [vmem:[#allocation8 + $0x38] sm:$0xff]
          %v10105 = vld [vmem:[#allocation8 + $0x40] sm:$0xff]
          %v10106 = vld [vmem:[#allocation8 + $0x48] sm:$0xff]
          %v10107 = vld [vmem:[#allocation8 + $0x50] sm:$0xff]
          %v10108 = vld [vmem:[#allocation8 + $0x58] sm:$0xff]
          %v10109 = vld [vmem:[#allocation8 + $0x60] sm:$0xff]
          %v10110 = vld [vmem:[#allocation8 + $0x68] sm:$0xff]
          %v10111 = vld [vmem:[#allocation8 + $0x70] sm:$0xff]
          %v10112 = vld [vmem:[#allocation8 + $0x78] sm:$0xff]
          %v10113 = vld [vmem:[#allocation8 + $0x80] sm:$0xff]
          %v10114 = vld [vmem:[#allocation8 + $0x88] sm:$0xff]
          %v10115 = vld [vmem:[#allocation8 + $0x90] sm:$0xff]
          %v10116 = vld [vmem:[#allocation8 + $0x98] sm:$0xff]
          %v10117 = vld [vmem:[#allocation8 + $0xa0] sm:$0xff]
          %v10118 = vld [vmem:[#allocation8 + $0xa8] sm:$0xff]
          %v10119 = vld [vmem:[#allocation8 + $0xb0] sm:$0xff]
          %v10120 = vld [vmem:[#allocation8 + $0xb8] sm:$0xff]
          %v10121 = vld [vmem:[#allocation8 + $0xc0] sm:$0xff]
          %v10122 = vld [vmem:[#allocation8 + $0xc8] sm:$0xff]
          %v10123 = vld [vmem:[#allocation8 + $0xd0] sm:$0xff]
          %v10124 = vld [vmem:[#allocation8 + $0xd8] sm:$0xff]
          %v10125 = vld [vmem:[#allocation8 + $0xe0] sm:$0xff]
          %v10126 = vld [vmem:[#allocation8 + $0xe8] sm:$0xff]
          %v10127 = vld [vmem:[#allocation8 + $0xf0] sm:$0xff]
          %v10128 = vld [vmem:[#allocation8 + $0xf8] sm:$0xff]
          %v10129 = vld [vmem:[#allocation8 + $0x100] sm:$0xff]
          %v10130 = vld [vmem:[#allocation8 + $0x108] sm:$0xff]
          %v10131 = vld [vmem:[#allocation8 + $0x110] sm:$0xff]
          %v10132 = vld [vmem:[#allocation8 + $0x118] sm:$0xff]
          %v10133 = vld [vmem:[#allocation8 + $0x120] sm:$0xff]
          %v10134 = vld [vmem:[#allocation8 + $0x128] sm:$0xff]
          %v10135 = vld [vmem:[#allocation8 + $0x130] sm:$0xff]
          %v10136 = vld [vmem:[#allocation8 + $0x138] sm:$0xff]
          %v10137 = vld [vmem:[#allocation8 + $0x140] sm:$0xff]
          %v10138 = vld [vmem:[#allocation8 + $0x148] sm:$0xff]
          %v10139 = vld [vmem:[#allocation8 + $0x150] sm:$0xff]
          %v10140 = vld [vmem:[#allocation8 + $0x158] sm:$0xff]
          %v10141 = vld [vmem:[#allocation8 + $0x160] sm:$0xff]
          %v10142 = vld [vmem:[#allocation8 + $0x168] sm:$0xff]
          %v10143 = vld [vmem:[#allocation8 + $0x170] sm:$0xff]
          %v10144 = vld [vmem:[#allocation8 + $0x178] sm:$0xff]
          %v10145 = vld [vmem:[#allocation8 + $0x180] sm:$0xff]
          %v10146 = vld [vmem:[#allocation8 + $0x188] sm:$0xff]
          %v10147 = vld [vmem:[#allocation8 + $0x190] sm:$0xff]
          %v10148 = vld [vmem:[#allocation8 + $0x198] sm:$0xff]
          %v10149 = vld [vmem:[#allocation8 + $0x1a0] sm:$0xff]
          %v10150 = vld [vmem:[#allocation8 + $0x1a8] sm:$0xff]
          %v10151 = vld [vmem:[#allocation8 + $0x1b0] sm:$0xff]
          %v10152 = vld [vmem:[#allocation8 + $0x1b8] sm:$0xff]
          %v10153 = vld [vmem:[#allocation8 + $0x1c0] sm:$0xff]
          %v10154 = vld [vmem:[#allocation8 + $0x1c8] sm:$0xff]
          %v10155 = vld [vmem:[#allocation8 + $0x1d0] sm:$0xff]
          %v10156 = vld [vmem:[#allocation8 + $0x1d8] sm:$0xff]
          %v10157 = vld [vmem:[#allocation8 + $0x1e0] sm:$0xff]
          %v10158 = vld [vmem:[#allocation8 + $0x1e8] sm:$0xff]
          %v10159 = vld [vmem:[#allocation8 + $0x1f0] sm:$0xff]
          %v10160 = vld [vmem:[#allocation8 + $0x1f8] sm:$0xff]
          %v10161 = vld [vmem:[#allocation8 + $0x200] sm:$0xff]
          %v10162 = vld [vmem:[#allocation8 + $0x208] sm:$0xff]
          %v10163 = vld [vmem:[#allocation8 + $0x210] sm:$0xff]
          %v10164 = vld [vmem:[#allocation8 + $0x218] sm:$0xff]
          %v10165 = vld [vmem:[#allocation8 + $0x220] sm:$0xff]
          %v10166 = vld [vmem:[#allocation8 + $0x228] sm:$0xff]
          %v10167 = vld [vmem:[#allocation8 + $0x230] sm:$0xff]
          %v10168 = vld [vmem:[#allocation8 + $0x238] sm:$0xff]
          %v10169 = vld [vmem:[#allocation8 + $0x240] sm:$0xff]
          %v10170 = vld [vmem:[#allocation8 + $0x248] sm:$0xff]
          %v10171 = vld [vmem:[#allocation8 + $0x250] sm:$0xff]
          %v10172 = vld [vmem:[#allocation8 + $0x258] sm:$0xff]
          %v10173 = vld [vmem:[#allocation8 + $0x260] sm:$0xff]
          %v10174 = vld [vmem:[#allocation8 + $0x268] sm:$0xff]
          %v10175 = vld [vmem:[#allocation8 + $0x270] sm:$0xff]
          %v10176 = vld [vmem:[#allocation8 + $0x278] sm:$0xff]
          %v10177 = vld [vmem:[#allocation8 + $0x280] sm:$0xff]
          %v10178 = vld [vmem:[#allocation8 + $0x288] sm:$0xff]
          %v10179 = vld [vmem:[#allocation8 + $0x290] sm:$0xff]
          %v10180 = vld [vmem:[#allocation8 + $0x298] sm:$0xff]
          %v10181 = vld [vmem:[#allocation8 + $0x2a0] sm:$0xff]
          %v10182 = vld [vmem:[#allocation8 + $0x2a8] sm:$0xff]
          %v10183 = vld [vmem:[#allocation8 + $0x2b0] sm:$0xff]
          %v10184 = vld [vmem:[#allocation8 + $0x2b8] sm:$0xff]
          %v10185 = vld [vmem:[#allocation8 + $0x2c0] sm:$0xff]
          %v10186 = vld [vmem:[#allocation8 + $0x2c8] sm:$0xff]
          %v10187 = vld [vmem:[#allocation8 + $0x2d0] sm:$0xff]
          %v10188 = vld [vmem:[#allocation8 + $0x2d8] sm:$0xff]
          %v10189 = vld [vmem:[#allocation8 + $0x2e0] sm:$0xff]
          %v10190 = vld [vmem:[#allocation8 + $0x2e8] sm:$0xff]
          %v10191 = vld [vmem:[#allocation8 + $0x2f0] sm:$0xff]
          %v10192 = vld [vmem:[#allocation8 + $0x2f8] sm:$0xff]
          %v10193 = vld [vmem:[#allocation8 + $0x300] sm:$0xff]
          %v10194 = vld [vmem:[#allocation8 + $0x308] sm:$0xff]
          %v10195 = vld [vmem:[#allocation8 + $0x310] sm:$0xff]
          %v10196 = vld [vmem:[#allocation8 + $0x318] sm:$0xff]
          %v10197 = vld [vmem:[#allocation8 + $0x320] sm:$0xff]
          %v10198 = vld [vmem:[#allocation8 + $0x328] sm:$0xff]
          %v10199 = vld [vmem:[#allocation8 + $0x330] sm:$0xff]
          %v10200 = vld [vmem:[#allocation8 + $0x338] sm:$0xff]
          %v10201 = vld [vmem:[#allocation8 + $0x340] sm:$0xff]
          %v10202 = vld [vmem:[#allocation8 + $0x348] sm:$0xff]
          %v10203 = vld [vmem:[#allocation8 + $0x350] sm:$0xff]
          %v10204 = vld [vmem:[#allocation8 + $0x358] sm:$0xff]
          %v10205 = vld [vmem:[#allocation8 + $0x360] sm:$0xff]
          %v10206 = vld [vmem:[#allocation8 + $0x368] sm:$0xff]
          %v10207 = vld [vmem:[#allocation8 + $0x370] sm:$0xff]
          %v10208 = vld [vmem:[#allocation8 + $0x378] sm:$0xff]
          %v10209 = vld [vmem:[#allocation8 + $0x380] sm:$0xff]
          %v10210 = vld [vmem:[#allocation8 + $0x388] sm:$0xff]
          %v10211 = vld [vmem:[#allocation8 + $0x390] sm:$0xff]
          %v10212 = vld [vmem:[#allocation8 + $0x398] sm:$0xff]
          %v10213 = vld [vmem:[#allocation8 + $0x3a0] sm:$0xff]
          %v10214 = vld [vmem:[#allocation8 + $0x3a8] sm:$0xff]
          %v10215 = vld [vmem:[#allocation8 + $0x3b0] sm:$0xff]
          %v10216 = vld [vmem:[#allocation8 + $0x3b8] sm:$0xff]
          %v10217 = vld [vmem:[#allocation8 + $0x3c0] sm:$0xff]
          %v10218 = vld [vmem:[#allocation8 + $0x3c8] sm:$0xff]
          %v10219 = vld [vmem:[#allocation8 + $0x3d0] sm:$0xff]
          %v10220 = vld [vmem:[#allocation8 + $0x3d8] sm:$0xff]
          %v10221 = vld [vmem:[#allocation8 + $0x3e0] sm:$0xff]
          %v10222 = vld [vmem:[#allocation8 + $0x3e8] sm:$0xff]
          %v10223 = vld [vmem:[#allocation8 + $0x3f0] sm:$0xff]
          %v10224 = vld [vmem:[#allocation8 + $0x3f8] sm:$0xff]
          %v10225 = vld [vmem:[#allocation8 + $0x400] sm:$0xff]
          %v10226 = vld [vmem:[#allocation8 + $0x408] sm:$0xff]
          %v10227 = vld [vmem:[#allocation8 + $0x410] sm:$0xff]
          %v10228 = vld [vmem:[#allocation8 + $0x418] sm:$0xff]
          %v10229 = vld [vmem:[#allocation8 + $0x420] sm:$0xff]
          %v10230 = vld [vmem:[#allocation8 + $0x428] sm:$0xff]
          %v10231 = vld [vmem:[#allocation8 + $0x430] sm:$0xff]
          %v10232 = vld [vmem:[#allocation8 + $0x438] sm:$0xff]
          %v10233 = vld [vmem:[#allocation8 + $0x440] sm:$0xff]
          %v10234 = vld [vmem:[#allocation8 + $0x448] sm:$0xff]
          %v10235 = vld [vmem:[#allocation8 + $0x450] sm:$0xff]
          %v10236 = vld [vmem:[#allocation8 + $0x458] sm:$0xff]
          %v10237 = vld [vmem:[#allocation8 + $0x460] sm:$0xff]
          %v10238 = vld [vmem:[#allocation8 + $0x468] sm:$0xff]
          %v10239 = vld [vmem:[#allocation8 + $0x470] sm:$0xff]
          %v10240 = vld [vmem:[#allocation8 + $0x478] sm:$0xff]
          %v10241 = vld [vmem:[#allocation8 + $0x480] sm:$0xff]
          %v10242 = vld [vmem:[#allocation8 + $0x488] sm:$0xff]
          %v10243 = vld [vmem:[#allocation8 + $0x490] sm:$0xff]
          %v10244 = vld [vmem:[#allocation8 + $0x498] sm:$0xff]
          %v10245 = vld [vmem:[#allocation8 + $0x4a0] sm:$0xff]
          %v10246 = vld [vmem:[#allocation8 + $0x4a8] sm:$0xff]
          %v10247 = vld [vmem:[#allocation8 + $0x4b0] sm:$0xff]
          %v10248 = vld [vmem:[#allocation8 + $0x4b8] sm:$0xff]
          %v10249 = vld [vmem:[#allocation8 + $0x4c0] sm:$0xff]
          %v10250 = vld [vmem:[#allocation8 + $0x4c8] sm:$0xff]
          %v10251 = vld [vmem:[#allocation8 + $0x4d0] sm:$0xff]
          %v10252 = vld [vmem:[#allocation8 + $0x4d8] sm:$0xff]
          %v10253 = vld [vmem:[#allocation8 + $0x4e0] sm:$0xff]
          %v10254 = vld [vmem:[#allocation8 + $0x4e8] sm:$0xff]
          %v10255 = vld [vmem:[#allocation8 + $0x4f0] sm:$0xff]
          %v10256 = vld [vmem:[#allocation8 + $0x4f8] sm:$0xff]
          %v10257 = vld [vmem:[#allocation8 + $0x500] sm:$0xff]
          %v10258 = vld [vmem:[#allocation8 + $0x508] sm:$0xff]
          %v10259 = vld [vmem:[#allocation8 + $0x510] sm:$0xff]
          %v10260 = vld [vmem:[#allocation8 + $0x518] sm:$0xff]
          %v10261 = vld [vmem:[#allocation8 + $0x520] sm:$0xff]
          %v10262 = vld [vmem:[#allocation8 + $0x528] sm:$0xff]
          %v10263 = vld [vmem:[#allocation8 + $0x530] sm:$0xff]
          %v10264 = vld [vmem:[#allocation8 + $0x538] sm:$0xff]
          %v10265 = vld [vmem:[#allocation8 + $0x540] sm:$0xff]
          %v10266 = vld [vmem:[#allocation8 + $0x548] sm:$0xff]
          %v10267 = vld [vmem:[#allocation8 + $0x550] sm:$0xff]
          %v10268 = vld [vmem:[#allocation8 + $0x558] sm:$0xff]
          %v10269 = vld [vmem:[#allocation8 + $0x560] sm:$0xff]
          %v10270 = vld [vmem:[#allocation8 + $0x568] sm:$0xff]
          %v10271 = vld [vmem:[#allocation8 + $0x570] sm:$0xff]
          %v10272 = vld [vmem:[#allocation8 + $0x578] sm:$0xff]
          %v10273 = vld [vmem:[#allocation8 + $0x580] sm:$0xff]
          %v10274 = vld [vmem:[#allocation8 + $0x588] sm:$0xff]
          %v10275 = vld [vmem:[#allocation8 + $0x590] sm:$0xff]
          %v10276 = vld [vmem:[#allocation8 + $0x598] sm:$0xff]
          %v10277 = vld [vmem:[#allocation8 + $0x5a0] sm:$0xff]
          %v10278 = vld [vmem:[#allocation8 + $0x5a8] sm:$0xff]
          %v10279 = vld [vmem:[#allocation8 + $0x5b0] sm:$0xff]
          %v10280 = vld [vmem:[#allocation8 + $0x5b8] sm:$0xff]
          %v10281 = vld [vmem:[#allocation8 + $0x5c0] sm:$0xff]
          %v10282 = vld [vmem:[#allocation8 + $0x5c8] sm:$0xff]
          %v10283 = vld [vmem:[#allocation8 + $0x5d0] sm:$0xff]
          %v10284 = vld [vmem:[#allocation8 + $0x5d8] sm:$0xff]
          %v10285 = vld [vmem:[#allocation8 + $0x5e0] sm:$0xff]
          %v10286 = vld [vmem:[#allocation8 + $0x5e8] sm:$0xff]
          %v10287 = vld [vmem:[#allocation8 + $0x5f0] sm:$0xff]
          %v10288 = vld [vmem:[#allocation8 + $0x5f8] sm:$0xff]
          %v10289 = vld [vmem:[#allocation8 + $0x600] sm:$0xff]
          %v10290 = vld [vmem:[#allocation8 + $0x608] sm:$0xff]
          %v10291 = vld [vmem:[#allocation8 + $0x610] sm:$0xff]
          %v10292 = vld [vmem:[#allocation8 + $0x618] sm:$0xff]
          %v10293 = vld [vmem:[#allocation8 + $0x620] sm:$0xff]
          %v10294 = vld [vmem:[#allocation8 + $0x628] sm:$0xff]
          %v10295 = vld [vmem:[#allocation8 + $0x630] sm:$0xff]
          %v10296 = vld [vmem:[#allocation8 + $0x638] sm:$0xff]
          %v10297 = vld [vmem:[#allocation8 + $0x640] sm:$0xff]
          %v10298 = vld [vmem:[#allocation8 + $0x648] sm:$0xff]
          %v10299 = vld [vmem:[#allocation8 + $0x650] sm:$0xff]
          %v10300 = vld [vmem:[#allocation8 + $0x658] sm:$0xff]
          %v10301 = vld [vmem:[#allocation8 + $0x660] sm:$0xff]
          %v10302 = vld [vmem:[#allocation8 + $0x668] sm:$0xff]
          %v10303 = vld [vmem:[#allocation8 + $0x670] sm:$0xff]
          %v10304 = vld [vmem:[#allocation8 + $0x678] sm:$0xff]
          %v10305 = vld [vmem:[#allocation8 + $0x680] sm:$0xff]
          %v10306 = vld [vmem:[#allocation8 + $0x688] sm:$0xff]
          %v10307 = vld [vmem:[#allocation8 + $0x690] sm:$0xff]
          %v10308 = vld [vmem:[#allocation8 + $0x698] sm:$0xff]
          %v10309 = vld [vmem:[#allocation8 + $0x6a0] sm:$0xff]
          %v10310 = vld [vmem:[#allocation8 + $0x6a8] sm:$0xff]
          %v10311 = vld [vmem:[#allocation8 + $0x6b0] sm:$0xff]
          %v10312 = vld [vmem:[#allocation8 + $0x6b8] sm:$0xff]
          %v10313 = vld [vmem:[#allocation8 + $0x6c0] sm:$0xff]
          %v10314 = vld [vmem:[#allocation8 + $0x6c8] sm:$0xff]
          %v10315 = vld [vmem:[#allocation8 + $0x6d0] sm:$0xff]
          %v10316 = vld [vmem:[#allocation8 + $0x6d8] sm:$0xff]
          %v10317 = vld [vmem:[#allocation8 + $0x6e0] sm:$0xff]
          %v10318 = vld [vmem:[#allocation8 + $0x6e8] sm:$0xff]
          %v10319 = vld [vmem:[#allocation8 + $0x6f0] sm:$0xff]
          %v10320 = vld [vmem:[#allocation8 + $0x6f8] sm:$0xff]
          %v10321 = vld [vmem:[#allocation8 + $0x700] sm:$0xff]
          %v10322 = vld [vmem:[#allocation8 + $0x708] sm:$0xff]
          %v10323 = vld [vmem:[#allocation8 + $0x710] sm:$0xff]
          %v10324 = vld [vmem:[#allocation8 + $0x718] sm:$0xff]
          %v10325 = vld [vmem:[#allocation8 + $0x720] sm:$0xff]
          %v10326 = vld [vmem:[#allocation8 + $0x728] sm:$0xff]
          %v10327 = vld [vmem:[#allocation8 + $0x730] sm:$0xff]
          %v10328 = vld [vmem:[#allocation8 + $0x738] sm:$0xff]
          %v10329 = vld [vmem:[#allocation8 + $0x740] sm:$0xff]
          %v10330 = vld [vmem:[#allocation8 + $0x748] sm:$0xff]
          %v10331 = vld [vmem:[#allocation8 + $0x750] sm:$0xff]
          %v10332 = vld [vmem:[#allocation8 + $0x758] sm:$0xff]
          %v10333 = vld [vmem:[#allocation8 + $0x760] sm:$0xff]
          %v10334 = vld [vmem:[#allocation8 + $0x768] sm:$0xff]
          %v10335 = vld [vmem:[#allocation8 + $0x770] sm:$0xff]
          %v10336 = vld [vmem:[#allocation8 + $0x778] sm:$0xff]
          %v10337 = vld [vmem:[#allocation8 + $0x780] sm:$0xff]
          %v10338 = vld [vmem:[#allocation8 + $0x788] sm:$0xff]
          %v10339 = vld [vmem:[#allocation8 + $0x790] sm:$0xff]
          %v10340 = vld [vmem:[#allocation8 + $0x798] sm:$0xff]
          %v10341 = vld [vmem:[#allocation8 + $0x7a0] sm:$0xff]
          %v10342 = vld [vmem:[#allocation8 + $0x7a8] sm:$0xff]
          %v10343 = vld [vmem:[#allocation8 + $0x7b0] sm:$0xff]
          %v10344 = vld [vmem:[#allocation8 + $0x7b8] sm:$0xff]
          %v10345 = vld [vmem:[#allocation8 + $0x7c0] sm:$0xff]
          %v10346 = vld [vmem:[#allocation8 + $0x7c8] sm:$0xff]
          %v10347 = vld [vmem:[#allocation8 + $0x7d0] sm:$0xff]
          %v10348 = vld [vmem:[#allocation8 + $0x7d8] sm:$0xff]
          %v10349 = vld [vmem:[#allocation8 + $0x7e0] sm:$0xff]
          %v10350 = vld [vmem:[#allocation8 + $0x7e8] sm:$0xff]
          %v10351 = vld [vmem:[#allocation8 + $0x7f0] sm:$0xff]
          %v10352 = vld [vmem:[#allocation8 + $0x7f8] sm:$0xff]
          %v10353 = vld [vmem:[#allocation9] sm:$0xf]
          %v10355 = vlaneseq
          %v10356 = vshrl.u32 %v10355, 7
          %v10357 = vsub.s32 0, %v10356
          %v10358 = vrot.slane %v10353, %v10357
          %v10359 = vlaneseq
          %v10360 = vshrl.u32 %v10359, 7
          %v10361 = vsub.s32 1, %v10360
          %v10362 = vrot.slane %v10353, %v10361
          %v10363 = vlaneseq
          %v10364 = vshrl.u32 %v10363, 7
          %v10365 = vsub.s32 2, %v10364
          %v10366 = vrot.slane %v10353, %v10365
          %v10367 = vlaneseq
          %v10368 = vshrl.u32 %v10367, 7
          %v10369 = vsub.s32 3, %v10368
          %v10370 = vrot.slane %v10353, %v10369
          %v10631 = vunpack.c.l.b16 %v10097
          %v10632 = vunpack.c.h.b16 %v10097
          %v10633 = vunpack.c.l.b16 %v10098
          %v10634 = vunpack.c.h.b16 %v10098
          %v10635 = vunpack.c.l.b16 %v10099
          %v10636 = vunpack.c.h.b16 %v10099
          %v10637 = vunpack.c.l.b16 %v10100
          %v10638 = vunpack.c.h.b16 %v10100
          %v10639 = vunpack.c.l.b16 %v10101
          %v10640 = vunpack.c.h.b16 %v10101
          %v10641 = vunpack.c.l.b16 %v10102
          %v10642 = vunpack.c.h.b16 %v10102
          %v10643 = vunpack.c.l.b16 %v10103
          %v10644 = vunpack.c.h.b16 %v10103
          %v10645 = vunpack.c.l.b16 %v10104
          %v10646 = vunpack.c.h.b16 %v10104
          %v10647 = vunpack.c.l.b16 %v10105
          %v10648 = vunpack.c.h.b16 %v10105
          %v10649 = vunpack.c.l.b16 %v10106
          %v10650 = vunpack.c.h.b16 %v10106
          %v10651 = vunpack.c.l.b16 %v10107
          %v10652 = vunpack.c.h.b16 %v10107
          %v10653 = vunpack.c.l.b16 %v10108
          %v10654 = vunpack.c.h.b16 %v10108
          %v10655 = vunpack.c.l.b16 %v10109
          %v10656 = vunpack.c.h.b16 %v10109
          %v10657 = vunpack.c.l.b16 %v10110
          %v10658 = vunpack.c.h.b16 %v10110
          %v10659 = vunpack.c.l.b16 %v10111
          %v10660 = vunpack.c.h.b16 %v10111
          %v10661 = vunpack.c.l.b16 %v10112
          %v10662 = vunpack.c.h.b16 %v10112
          %v10663 = vunpack.c.l.b16 %v10113
          %v10664 = vunpack.c.h.b16 %v10113
          %v10665 = vunpack.c.l.b16 %v10114
          %v10666 = vunpack.c.h.b16 %v10114
          %v10667 = vunpack.c.l.b16 %v10115
          %v10668 = vunpack.c.h.b16 %v10115
          %v10669 = vunpack.c.l.b16 %v10116
          %v10670 = vunpack.c.h.b16 %v10116
          %v10671 = vunpack.c.l.b16 %v10117
          %v10672 = vunpack.c.h.b16 %v10117
          %v10673 = vunpack.c.l.b16 %v10118
          %v10674 = vunpack.c.h.b16 %v10118
          %v10675 = vunpack.c.l.b16 %v10119
          %v10676 = vunpack.c.h.b16 %v10119
          %v10677 = vunpack.c.l.b16 %v10120
          %v10678 = vunpack.c.h.b16 %v10120
          %v10679 = vunpack.c.l.b16 %v10121
          %v10680 = vunpack.c.h.b16 %v10121
          %v10681 = vunpack.c.l.b16 %v10122
          %v10682 = vunpack.c.h.b16 %v10122
          %v10683 = vunpack.c.l.b16 %v10123
          %v10684 = vunpack.c.h.b16 %v10123
          %v10685 = vunpack.c.l.b16 %v10124
          %v10686 = vunpack.c.h.b16 %v10124
          %v10687 = vunpack.c.l.b16 %v10125
          %v10688 = vunpack.c.h.b16 %v10125
          %v10689 = vunpack.c.l.b16 %v10126
          %v10690 = vunpack.c.h.b16 %v10126
          %v10691 = vunpack.c.l.b16 %v10127
          %v10692 = vunpack.c.h.b16 %v10127
          %v10693 = vunpack.c.l.b16 %v10128
          %v10694 = vunpack.c.h.b16 %v10128
          %v10695 = vunpack.c.l.b16 %v10129
          %v10696 = vunpack.c.h.b16 %v10129
          %v10697 = vunpack.c.l.b16 %v10130
          %v10698 = vunpack.c.h.b16 %v10130
          %v10699 = vunpack.c.l.b16 %v10131
          %v10700 = vunpack.c.h.b16 %v10131
          %v10701 = vunpack.c.l.b16 %v10132
          %v10702 = vunpack.c.h.b16 %v10132
          %v10703 = vunpack.c.l.b16 %v10133
          %v10704 = vunpack.c.h.b16 %v10133
          %v10705 = vunpack.c.l.b16 %v10134
          %v10706 = vunpack.c.h.b16 %v10134
          %v10707 = vunpack.c.l.b16 %v10135
          %v10708 = vunpack.c.h.b16 %v10135
          %v10709 = vunpack.c.l.b16 %v10136
          %v10710 = vunpack.c.h.b16 %v10136
          %v10711 = vunpack.c.l.b16 %v10137
          %v10712 = vunpack.c.h.b16 %v10137
          %v10713 = vunpack.c.l.b16 %v10138
          %v10714 = vunpack.c.h.b16 %v10138
          %v10715 = vunpack.c.l.b16 %v10139
          %v10716 = vunpack.c.h.b16 %v10139
          %v10717 = vunpack.c.l.b16 %v10140
          %v10718 = vunpack.c.h.b16 %v10140
          %v10719 = vunpack.c.l.b16 %v10141
          %v10720 = vunpack.c.h.b16 %v10141
          %v10721 = vunpack.c.l.b16 %v10142
          %v10722 = vunpack.c.h.b16 %v10142
          %v10723 = vunpack.c.l.b16 %v10143
          %v10724 = vunpack.c.h.b16 %v10143
          %v10725 = vunpack.c.l.b16 %v10144
          %v10726 = vunpack.c.h.b16 %v10144
          %v10727 = vunpack.c.l.b16 %v10145
          %v10728 = vunpack.c.h.b16 %v10145
          %v10729 = vunpack.c.l.b16 %v10146
          %v10730 = vunpack.c.h.b16 %v10146
          %v10731 = vunpack.c.l.b16 %v10147
          %v10732 = vunpack.c.h.b16 %v10147
          %v10733 = vunpack.c.l.b16 %v10148
          %v10734 = vunpack.c.h.b16 %v10148
          %v10735 = vunpack.c.l.b16 %v10149
          %v10736 = vunpack.c.h.b16 %v10149
          %v10737 = vunpack.c.l.b16 %v10150
          %v10738 = vunpack.c.h.b16 %v10150
          %v10739 = vunpack.c.l.b16 %v10151
          %v10740 = vunpack.c.h.b16 %v10151
          %v10741 = vunpack.c.l.b16 %v10152
          %v10742 = vunpack.c.h.b16 %v10152
          %v10743 = vunpack.c.l.b16 %v10153
          %v10744 = vunpack.c.h.b16 %v10153
          %v10745 = vunpack.c.l.b16 %v10154
          %v10746 = vunpack.c.h.b16 %v10154
          %v10747 = vunpack.c.l.b16 %v10155
          %v10748 = vunpack.c.h.b16 %v10155
          %v10749 = vunpack.c.l.b16 %v10156
          %v10750 = vunpack.c.h.b16 %v10156
          %v10751 = vunpack.c.l.b16 %v10157
          %v10752 = vunpack.c.h.b16 %v10157
          %v10753 = vunpack.c.l.b16 %v10158
          %v10754 = vunpack.c.h.b16 %v10158
          %v10755 = vunpack.c.l.b16 %v10159
          %v10756 = vunpack.c.h.b16 %v10159
          %v10757 = vunpack.c.l.b16 %v10160
          %v10758 = vunpack.c.h.b16 %v10160
          %v10759 = vunpack.c.l.b16 %v10161
          %v10760 = vunpack.c.h.b16 %v10161
          %v10761 = vunpack.c.l.b16 %v10162
          %v10762 = vunpack.c.h.b16 %v10162
          %v10763 = vunpack.c.l.b16 %v10163
          %v10764 = vunpack.c.h.b16 %v10163
          %v10765 = vunpack.c.l.b16 %v10164
          %v10766 = vunpack.c.h.b16 %v10164
          %v10767 = vunpack.c.l.b16 %v10165
          %v10768 = vunpack.c.h.b16 %v10165
          %v10769 = vunpack.c.l.b16 %v10166
          %v10770 = vunpack.c.h.b16 %v10166
          %v10771 = vunpack.c.l.b16 %v10167
          %v10772 = vunpack.c.h.b16 %v10167
          %v10773 = vunpack.c.l.b16 %v10168
          %v10774 = vunpack.c.h.b16 %v10168
          %v10775 = vunpack.c.l.b16 %v10169
          %v10776 = vunpack.c.h.b16 %v10169
          %v10777 = vunpack.c.l.b16 %v10170
          %v10778 = vunpack.c.h.b16 %v10170
          %v10779 = vunpack.c.l.b16 %v10171
          %v10780 = vunpack.c.h.b16 %v10171
          %v10781 = vunpack.c.l.b16 %v10172
          %v10782 = vunpack.c.h.b16 %v10172
          %v10783 = vunpack.c.l.b16 %v10173
          %v10784 = vunpack.c.h.b16 %v10173
          %v10785 = vunpack.c.l.b16 %v10174
          %v10786 = vunpack.c.h.b16 %v10174
          %v10787 = vunpack.c.l.b16 %v10175
          %v10788 = vunpack.c.h.b16 %v10175
          %v10789 = vunpack.c.l.b16 %v10176
          %v10790 = vunpack.c.h.b16 %v10176
          %v10791 = vunpack.c.l.b16 %v10177
          %v10792 = vunpack.c.h.b16 %v10177
          %v10793 = vunpack.c.l.b16 %v10178
          %v10794 = vunpack.c.h.b16 %v10178
          %v10795 = vunpack.c.l.b16 %v10179
          %v10796 = vunpack.c.h.b16 %v10179
          %v10797 = vunpack.c.l.b16 %v10180
          %v10798 = vunpack.c.h.b16 %v10180
          %v10799 = vunpack.c.l.b16 %v10181
          %v10800 = vunpack.c.h.b16 %v10181
          %v10801 = vunpack.c.l.b16 %v10182
          %v10802 = vunpack.c.h.b16 %v10182
          %v10803 = vunpack.c.l.b16 %v10183
          %v10804 = vunpack.c.h.b16 %v10183
          %v10805 = vunpack.c.l.b16 %v10184
          %v10806 = vunpack.c.h.b16 %v10184
          %v10807 = vunpack.c.l.b16 %v10185
          %v10808 = vunpack.c.h.b16 %v10185
          %v10809 = vunpack.c.l.b16 %v10186
          %v10810 = vunpack.c.h.b16 %v10186
          %v10811 = vunpack.c.l.b16 %v10187
          %v10812 = vunpack.c.h.b16 %v10187
          %v10813 = vunpack.c.l.b16 %v10188
          %v10814 = vunpack.c.h.b16 %v10188
          %v10815 = vunpack.c.l.b16 %v10189
          %v10816 = vunpack.c.h.b16 %v10189
          %v10817 = vunpack.c.l.b16 %v10190
          %v10818 = vunpack.c.h.b16 %v10190
          %v10819 = vunpack.c.l.b16 %v10191
          %v10820 = vunpack.c.h.b16 %v10191
          %v10821 = vunpack.c.l.b16 %v10192
          %v10822 = vunpack.c.h.b16 %v10192
          %v10823 = vunpack.c.l.b16 %v10193
          %v10824 = vunpack.c.h.b16 %v10193
          %v10825 = vunpack.c.l.b16 %v10194
          %v10826 = vunpack.c.h.b16 %v10194
          %v10827 = vunpack.c.l.b16 %v10195
          %v10828 = vunpack.c.h.b16 %v10195
          %v10829 = vunpack.c.l.b16 %v10196
          %v10830 = vunpack.c.h.b16 %v10196
          %v10831 = vunpack.c.l.b16 %v10197
          %v10832 = vunpack.c.h.b16 %v10197
          %v10833 = vunpack.c.l.b16 %v10198
          %v10834 = vunpack.c.h.b16 %v10198
          %v10835 = vunpack.c.l.b16 %v10199
          %v10836 = vunpack.c.h.b16 %v10199
          %v10837 = vunpack.c.l.b16 %v10200
          %v10838 = vunpack.c.h.b16 %v10200
          %v10839 = vunpack.c.l.b16 %v10201
          %v10840 = vunpack.c.h.b16 %v10201
          %v10841 = vunpack.c.l.b16 %v10202
          %v10842 = vunpack.c.h.b16 %v10202
          %v10843 = vunpack.c.l.b16 %v10203
          %v10844 = vunpack.c.h.b16 %v10203
          %v10845 = vunpack.c.l.b16 %v10204
          %v10846 = vunpack.c.h.b16 %v10204
          %v10847 = vunpack.c.l.b16 %v10205
          %v10848 = vunpack.c.h.b16 %v10205
          %v10849 = vunpack.c.l.b16 %v10206
          %v10850 = vunpack.c.h.b16 %v10206
          %v10851 = vunpack.c.l.b16 %v10207
          %v10852 = vunpack.c.h.b16 %v10207
          %v10853 = vunpack.c.l.b16 %v10208
          %v10854 = vunpack.c.h.b16 %v10208
          %v10855 = vunpack.c.l.b16 %v10209
          %v10856 = vunpack.c.h.b16 %v10209
          %v10857 = vunpack.c.l.b16 %v10210
          %v10858 = vunpack.c.h.b16 %v10210
          %v10859 = vunpack.c.l.b16 %v10211
          %v10860 = vunpack.c.h.b16 %v10211
          %v10861 = vunpack.c.l.b16 %v10212
          %v10862 = vunpack.c.h.b16 %v10212
          %v10863 = vunpack.c.l.b16 %v10213
          %v10864 = vunpack.c.h.b16 %v10213
          %v10865 = vunpack.c.l.b16 %v10214
          %v10866 = vunpack.c.h.b16 %v10214
          %v10867 = vunpack.c.l.b16 %v10215
          %v10868 = vunpack.c.h.b16 %v10215
          %v10869 = vunpack.c.l.b16 %v10216
          %v10870 = vunpack.c.h.b16 %v10216
          %v10871 = vunpack.c.l.b16 %v10217
          %v10872 = vunpack.c.h.b16 %v10217
          %v10873 = vunpack.c.l.b16 %v10218
          %v10874 = vunpack.c.h.b16 %v10218
          %v10875 = vunpack.c.l.b16 %v10219
          %v10876 = vunpack.c.h.b16 %v10219
          %v10877 = vunpack.c.l.b16 %v10220
          %v10878 = vunpack.c.h.b16 %v10220
          %v10879 = vunpack.c.l.b16 %v10221
          %v10880 = vunpack.c.h.b16 %v10221
          %v10881 = vunpack.c.l.b16 %v10222
          %v10882 = vunpack.c.h.b16 %v10222
          %v10883 = vunpack.c.l.b16 %v10223
          %v10884 = vunpack.c.h.b16 %v10223
          %v10885 = vunpack.c.l.b16 %v10224
          %v10886 = vunpack.c.h.b16 %v10224
          %v10887 = vunpack.c.l.b16 %v10225
          %v10888 = vunpack.c.h.b16 %v10225
          %v10889 = vunpack.c.l.b16 %v10226
          %v10890 = vunpack.c.h.b16 %v10226
          %v10891 = vunpack.c.l.b16 %v10227
          %v10892 = vunpack.c.h.b16 %v10227
          %v10893 = vunpack.c.l.b16 %v10228
          %v10894 = vunpack.c.h.b16 %v10228
          %v10895 = vunpack.c.l.b16 %v10229
          %v10896 = vunpack.c.h.b16 %v10229
          %v10897 = vunpack.c.l.b16 %v10230
          %v10898 = vunpack.c.h.b16 %v10230
          %v10899 = vunpack.c.l.b16 %v10231
          %v10900 = vunpack.c.h.b16 %v10231
          %v10901 = vunpack.c.l.b16 %v10232
          %v10902 = vunpack.c.h.b16 %v10232
          %v10903 = vunpack.c.l.b16 %v10233
          %v10904 = vunpack.c.h.b16 %v10233
          %v10905 = vunpack.c.l.b16 %v10234
          %v10906 = vunpack.c.h.b16 %v10234
          %v10907 = vunpack.c.l.b16 %v10235
          %v10908 = vunpack.c.h.b16 %v10235
          %v10909 = vunpack.c.l.b16 %v10236
          %v10910 = vunpack.c.h.b16 %v10236
          %v10911 = vunpack.c.l.b16 %v10237
          %v10912 = vunpack.c.h.b16 %v10237
          %v10913 = vunpack.c.l.b16 %v10238
          %v10914 = vunpack.c.h.b16 %v10238
          %v10915 = vunpack.c.l.b16 %v10239
          %v10916 = vunpack.c.h.b16 %v10239
          %v10917 = vunpack.c.l.b16 %v10240
          %v10918 = vunpack.c.h.b16 %v10240
          %v10919 = vunpack.c.l.b16 %v10241
          %v10920 = vunpack.c.h.b16 %v10241
          %v10921 = vunpack.c.l.b16 %v10242
          %v10922 = vunpack.c.h.b16 %v10242
          %v10923 = vunpack.c.l.b16 %v10243
          %v10924 = vunpack.c.h.b16 %v10243
          %v10925 = vunpack.c.l.b16 %v10244
          %v10926 = vunpack.c.h.b16 %v10244
          %v10927 = vunpack.c.l.b16 %v10245
          %v10928 = vunpack.c.h.b16 %v10245
          %v10929 = vunpack.c.l.b16 %v10246
          %v10930 = vunpack.c.h.b16 %v10246
          %v10931 = vunpack.c.l.b16 %v10247
          %v10932 = vunpack.c.h.b16 %v10247
          %v10933 = vunpack.c.l.b16 %v10248
          %v10934 = vunpack.c.h.b16 %v10248
          %v10935 = vunpack.c.l.b16 %v10249
          %v10936 = vunpack.c.h.b16 %v10249
          %v10937 = vunpack.c.l.b16 %v10250
          %v10938 = vunpack.c.h.b16 %v10250
          %v10939 = vunpack.c.l.b16 %v10251
          %v10940 = vunpack.c.h.b16 %v10251
          %v10941 = vunpack.c.l.b16 %v10252
          %v10942 = vunpack.c.h.b16 %v10252
          %v10943 = vunpack.c.l.b16 %v10253
          %v10944 = vunpack.c.h.b16 %v10253
          %v10945 = vunpack.c.l.b16 %v10254
          %v10946 = vunpack.c.h.b16 %v10254
          %v10947 = vunpack.c.l.b16 %v10255
          %v10948 = vunpack.c.h.b16 %v10255
          %v10949 = vunpack.c.l.b16 %v10256
          %v10950 = vunpack.c.h.b16 %v10256
          %v10951 = vunpack.c.l.b16 %v10257
          %v10952 = vunpack.c.h.b16 %v10257
          %v10953 = vunpack.c.l.b16 %v10258
          %v10954 = vunpack.c.h.b16 %v10258
          %v10955 = vunpack.c.l.b16 %v10259
          %v10956 = vunpack.c.h.b16 %v10259
          %v10957 = vunpack.c.l.b16 %v10260
          %v10958 = vunpack.c.h.b16 %v10260
          %v10959 = vunpack.c.l.b16 %v10261
          %v10960 = vunpack.c.h.b16 %v10261
          %v10961 = vunpack.c.l.b16 %v10262
          %v10962 = vunpack.c.h.b16 %v10262
          %v10963 = vunpack.c.l.b16 %v10263
          %v10964 = vunpack.c.h.b16 %v10263
          %v10965 = vunpack.c.l.b16 %v10264
          %v10966 = vunpack.c.h.b16 %v10264
          %v10967 = vunpack.c.l.b16 %v10265
          %v10968 = vunpack.c.h.b16 %v10265
          %v10969 = vunpack.c.l.b16 %v10266
          %v10970 = vunpack.c.h.b16 %v10266
          %v10971 = vunpack.c.l.b16 %v10267
          %v10972 = vunpack.c.h.b16 %v10267
          %v10973 = vunpack.c.l.b16 %v10268
          %v10974 = vunpack.c.h.b16 %v10268
          %v10975 = vunpack.c.l.b16 %v10269
          %v10976 = vunpack.c.h.b16 %v10269
          %v10977 = vunpack.c.l.b16 %v10270
          %v10978 = vunpack.c.h.b16 %v10270
          %v10979 = vunpack.c.l.b16 %v10271
          %v10980 = vunpack.c.h.b16 %v10271
          %v10981 = vunpack.c.l.b16 %v10272
          %v10982 = vunpack.c.h.b16 %v10272
          %v10983 = vunpack.c.l.b16 %v10273
          %v10984 = vunpack.c.h.b16 %v10273
          %v10985 = vunpack.c.l.b16 %v10274
          %v10986 = vunpack.c.h.b16 %v10274
          %v10987 = vunpack.c.l.b16 %v10275
          %v10988 = vunpack.c.h.b16 %v10275
          %v10989 = vunpack.c.l.b16 %v10276
          %v10990 = vunpack.c.h.b16 %v10276
          %v10991 = vunpack.c.l.b16 %v10277
          %v10992 = vunpack.c.h.b16 %v10277
          %v10993 = vunpack.c.l.b16 %v10278
          %v10994 = vunpack.c.h.b16 %v10278
          %v10995 = vunpack.c.l.b16 %v10279
          %v10996 = vunpack.c.h.b16 %v10279
          %v10997 = vunpack.c.l.b16 %v10280
          %v10998 = vunpack.c.h.b16 %v10280
          %v10999 = vunpack.c.l.b16 %v10281
          %v11000 = vunpack.c.h.b16 %v10281
          %v11001 = vunpack.c.l.b16 %v10282
          %v11002 = vunpack.c.h.b16 %v10282
          %v11003 = vunpack.c.l.b16 %v10283
          %v11004 = vunpack.c.h.b16 %v10283
          %v11005 = vunpack.c.l.b16 %v10284
          %v11006 = vunpack.c.h.b16 %v10284
          %v11007 = vunpack.c.l.b16 %v10285
          %v11008 = vunpack.c.h.b16 %v10285
          %v11009 = vunpack.c.l.b16 %v10286
          %v11010 = vunpack.c.h.b16 %v10286
          %v11011 = vunpack.c.l.b16 %v10287
          %v11012 = vunpack.c.h.b16 %v10287
          %v11013 = vunpack.c.l.b16 %v10288
          %v11014 = vunpack.c.h.b16 %v10288
          %v11015 = vunpack.c.l.b16 %v10289
          %v11016 = vunpack.c.h.b16 %v10289
          %v11017 = vunpack.c.l.b16 %v10290
          %v11018 = vunpack.c.h.b16 %v10290
          %v11019 = vunpack.c.l.b16 %v10291
          %v11020 = vunpack.c.h.b16 %v10291
          %v11021 = vunpack.c.l.b16 %v10292
          %v11022 = vunpack.c.h.b16 %v10292
          %v11023 = vunpack.c.l.b16 %v10293
          %v11024 = vunpack.c.h.b16 %v10293
          %v11025 = vunpack.c.l.b16 %v10294
          %v11026 = vunpack.c.h.b16 %v10294
          %v11027 = vunpack.c.l.b16 %v10295
          %v11028 = vunpack.c.h.b16 %v10295
          %v11029 = vunpack.c.l.b16 %v10296
          %v11030 = vunpack.c.h.b16 %v10296
          %v11031 = vunpack.c.l.b16 %v10297
          %v11032 = vunpack.c.h.b16 %v10297
          %v11033 = vunpack.c.l.b16 %v10298
          %v11034 = vunpack.c.h.b16 %v10298
          %v11035 = vunpack.c.l.b16 %v10299
          %v11036 = vunpack.c.h.b16 %v10299
          %v11037 = vunpack.c.l.b16 %v10300
          %v11038 = vunpack.c.h.b16 %v10300
          %v11039 = vunpack.c.l.b16 %v10301
          %v11040 = vunpack.c.h.b16 %v10301
          %v11041 = vunpack.c.l.b16 %v10302
          %v11042 = vunpack.c.h.b16 %v10302
          %v11043 = vunpack.c.l.b16 %v10303
          %v11044 = vunpack.c.h.b16 %v10303
          %v11045 = vunpack.c.l.b16 %v10304
          %v11046 = vunpack.c.h.b16 %v10304
          %v11047 = vunpack.c.l.b16 %v10305
          %v11048 = vunpack.c.h.b16 %v10305
          %v11049 = vunpack.c.l.b16 %v10306
          %v11050 = vunpack.c.h.b16 %v10306
          %v11051 = vunpack.c.l.b16 %v10307
          %v11052 = vunpack.c.h.b16 %v10307
          %v11053 = vunpack.c.l.b16 %v10308
          %v11054 = vunpack.c.h.b16 %v10308
          %v11055 = vunpack.c.l.b16 %v10309
          %v11056 = vunpack.c.h.b16 %v10309
          %v11057 = vunpack.c.l.b16 %v10310
          %v11058 = vunpack.c.h.b16 %v10310
          %v11059 = vunpack.c.l.b16 %v10311
          %v11060 = vunpack.c.h.b16 %v10311
          %v11061 = vunpack.c.l.b16 %v10312
          %v11062 = vunpack.c.h.b16 %v10312
          %v11063 = vunpack.c.l.b16 %v10313
          %v11064 = vunpack.c.h.b16 %v10313
          %v11065 = vunpack.c.l.b16 %v10314
          %v11066 = vunpack.c.h.b16 %v10314
          %v11067 = vunpack.c.l.b16 %v10315
          %v11068 = vunpack.c.h.b16 %v10315
          %v11069 = vunpack.c.l.b16 %v10316
          %v11070 = vunpack.c.h.b16 %v10316
          %v11071 = vunpack.c.l.b16 %v10317
          %v11072 = vunpack.c.h.b16 %v10317
          %v11073 = vunpack.c.l.b16 %v10318
          %v11074 = vunpack.c.h.b16 %v10318
          %v11075 = vunpack.c.l.b16 %v10319
          %v11076 = vunpack.c.h.b16 %v10319
          %v11077 = vunpack.c.l.b16 %v10320
          %v11078 = vunpack.c.h.b16 %v10320
          %v11079 = vunpack.c.l.b16 %v10321
          %v11080 = vunpack.c.h.b16 %v10321
          %v11081 = vunpack.c.l.b16 %v10322
          %v11082 = vunpack.c.h.b16 %v10322
          %v11083 = vunpack.c.l.b16 %v10323
          %v11084 = vunpack.c.h.b16 %v10323
          %v11085 = vunpack.c.l.b16 %v10324
          %v11086 = vunpack.c.h.b16 %v10324
          %v11087 = vunpack.c.l.b16 %v10325
          %v11088 = vunpack.c.h.b16 %v10325
          %v11089 = vunpack.c.l.b16 %v10326
          %v11090 = vunpack.c.h.b16 %v10326
          %v11091 = vunpack.c.l.b16 %v10327
          %v11092 = vunpack.c.h.b16 %v10327
          %v11093 = vunpack.c.l.b16 %v10328
          %v11094 = vunpack.c.h.b16 %v10328
          %v11095 = vunpack.c.l.b16 %v10329
          %v11096 = vunpack.c.h.b16 %v10329
          %v11097 = vunpack.c.l.b16 %v10330
          %v11098 = vunpack.c.h.b16 %v10330
          %v11099 = vunpack.c.l.b16 %v10331
          %v11100 = vunpack.c.h.b16 %v10331
          %v11101 = vunpack.c.l.b16 %v10332
          %v11102 = vunpack.c.h.b16 %v10332
          %v11103 = vunpack.c.l.b16 %v10333
          %v11104 = vunpack.c.h.b16 %v10333
          %v11105 = vunpack.c.l.b16 %v10334
          %v11106 = vunpack.c.h.b16 %v10334
          %v11107 = vunpack.c.l.b16 %v10335
          %v11108 = vunpack.c.h.b16 %v10335
          %v11109 = vunpack.c.l.b16 %v10336
          %v11110 = vunpack.c.h.b16 %v10336
          %v11111 = vunpack.c.l.b16 %v10337
          %v11112 = vunpack.c.h.b16 %v10337
          %v11113 = vunpack.c.l.b16 %v10338
          %v11114 = vunpack.c.h.b16 %v10338
          %v11115 = vunpack.c.l.b16 %v10339
          %v11116 = vunpack.c.h.b16 %v10339
          %v11117 = vunpack.c.l.b16 %v10340
          %v11118 = vunpack.c.h.b16 %v10340
          %v11119 = vunpack.c.l.b16 %v10341
          %v11120 = vunpack.c.h.b16 %v10341
          %v11121 = vunpack.c.l.b16 %v10342
          %v11122 = vunpack.c.h.b16 %v10342
          %v11123 = vunpack.c.l.b16 %v10343
          %v11124 = vunpack.c.h.b16 %v10343
          %v11125 = vunpack.c.l.b16 %v10344
          %v11126 = vunpack.c.h.b16 %v10344
          %v11127 = vunpack.c.l.b16 %v10345
          %v11128 = vunpack.c.h.b16 %v10345
          %v11129 = vunpack.c.l.b16 %v10346
          %v11130 = vunpack.c.h.b16 %v10346
          %v11131 = vunpack.c.l.b16 %v10347
          %v11132 = vunpack.c.h.b16 %v10347
          %v11133 = vunpack.c.l.b16 %v10348
          %v11134 = vunpack.c.h.b16 %v10348
          %v11135 = vunpack.c.l.b16 %v10349
          %v11136 = vunpack.c.h.b16 %v10349
          %v11137 = vunpack.c.l.b16 %v10350
          %v11138 = vunpack.c.h.b16 %v10350
          %v11139 = vunpack.c.l.b16 %v10351
          %v11140 = vunpack.c.h.b16 %v10351
          %v11141 = vunpack.c.l.b16 %v10352
          %v11142 = vunpack.c.h.b16 %v10352
          %v11143 = vpack.c.b16 %v10635, %v10631
          %v11144 = vpack.c.b16 %v10636, %v10632
          %v11145 = vpack.c.b16 %v10637, %v10633
          %v11146 = vpack.c.b16 %v10638, %v10634
          %v11147 = vpack.c.b16 %v10643, %v10639
          %v11148 = vpack.c.b16 %v10644, %v10640
          %v11149 = vpack.c.b16 %v10645, %v10641
          %v11150 = vpack.c.b16 %v10646, %v10642
          %v11151 = vpack.c.b16 %v10651, %v10647
          %v11152 = vpack.c.b16 %v10652, %v10648
          %v11153 = vpack.c.b16 %v10653, %v10649
          %v11154 = vpack.c.b16 %v10654, %v10650
          %v11155 = vpack.c.b16 %v10659, %v10655
          %v11156 = vpack.c.b16 %v10660, %v10656
          %v11157 = vpack.c.b16 %v10661, %v10657
          %v11158 = vpack.c.b16 %v10662, %v10658
          %v11159 = vpack.c.b16 %v10667, %v10663
          %v11160 = vpack.c.b16 %v10668, %v10664
          %v11161 = vpack.c.b16 %v10669, %v10665
          %v11162 = vpack.c.b16 %v10670, %v10666
          %v11163 = vpack.c.b16 %v10675, %v10671
          %v11164 = vpack.c.b16 %v10676, %v10672
          %v11165 = vpack.c.b16 %v10677, %v10673
          %v11166 = vpack.c.b16 %v10678, %v10674
          %v11167 = vpack.c.b16 %v10683, %v10679
          %v11168 = vpack.c.b16 %v10684, %v10680
          %v11169 = vpack.c.b16 %v10685, %v10681
          %v11170 = vpack.c.b16 %v10686, %v10682
          %v11171 = vpack.c.b16 %v10691, %v10687
          %v11172 = vpack.c.b16 %v10692, %v10688
          %v11173 = vpack.c.b16 %v10693, %v10689
          %v11174 = vpack.c.b16 %v10694, %v10690
          %v11175 = vpack.c.b16 %v10699, %v10695
          %v11176 = vpack.c.b16 %v10700, %v10696
          %v11177 = vpack.c.b16 %v10701, %v10697
          %v11178 = vpack.c.b16 %v10702, %v10698
          %v11179 = vpack.c.b16 %v10707, %v10703
          %v11180 = vpack.c.b16 %v10708, %v10704
          %v11181 = vpack.c.b16 %v10709, %v10705
          %v11182 = vpack.c.b16 %v10710, %v10706
          %v11183 = vpack.c.b16 %v10715, %v10711
          %v11184 = vpack.c.b16 %v10716, %v10712
          %v11185 = vpack.c.b16 %v10717, %v10713
          %v11186 = vpack.c.b16 %v10718, %v10714
          %v11187 = vpack.c.b16 %v10723, %v10719
          %v11188 = vpack.c.b16 %v10724, %v10720
          %v11189 = vpack.c.b16 %v10725, %v10721
          %v11190 = vpack.c.b16 %v10726, %v10722
          %v11191 = vpack.c.b16 %v10731, %v10727
          %v11192 = vpack.c.b16 %v10732, %v10728
          %v11193 = vpack.c.b16 %v10733, %v10729
          %v11194 = vpack.c.b16 %v10734, %v10730
          %v11195 = vpack.c.b16 %v10739, %v10735
          %v11196 = vpack.c.b16 %v10740, %v10736
          %v11197 = vpack.c.b16 %v10741, %v10737
          %v11198 = vpack.c.b16 %v10742, %v10738
          %v11199 = vpack.c.b16 %v10747, %v10743
          %v11200 = vpack.c.b16 %v10748, %v10744
          %v11201 = vpack.c.b16 %v10749, %v10745
          %v11202 = vpack.c.b16 %v10750, %v10746
          %v11203 = vpack.c.b16 %v10755, %v10751
          %v11204 = vpack.c.b16 %v10756, %v10752
          %v11205 = vpack.c.b16 %v10757, %v10753
          %v11206 = vpack.c.b16 %v10758, %v10754
          %v11207 = vpack.c.b16 %v10763, %v10759
          %v11208 = vpack.c.b16 %v10764, %v10760
          %v11209 = vpack.c.b16 %v10765, %v10761
          %v11210 = vpack.c.b16 %v10766, %v10762
          %v11211 = vpack.c.b16 %v10771, %v10767
          %v11212 = vpack.c.b16 %v10772, %v10768
          %v11213 = vpack.c.b16 %v10773, %v10769
          %v11214 = vpack.c.b16 %v10774, %v10770
          %v11215 = vpack.c.b16 %v10779, %v10775
          %v11216 = vpack.c.b16 %v10780, %v10776
          %v11217 = vpack.c.b16 %v10781, %v10777
          %v11218 = vpack.c.b16 %v10782, %v10778
          %v11219 = vpack.c.b16 %v10787, %v10783
          %v11220 = vpack.c.b16 %v10788, %v10784
          %v11221 = vpack.c.b16 %v10789, %v10785
          %v11222 = vpack.c.b16 %v10790, %v10786
          %v11223 = vpack.c.b16 %v10795, %v10791
          %v11224 = vpack.c.b16 %v10796, %v10792
          %v11225 = vpack.c.b16 %v10797, %v10793
          %v11226 = vpack.c.b16 %v10798, %v10794
          %v11227 = vpack.c.b16 %v10803, %v10799
          %v11228 = vpack.c.b16 %v10804, %v10800
          %v11229 = vpack.c.b16 %v10805, %v10801
          %v11230 = vpack.c.b16 %v10806, %v10802
          %v11231 = vpack.c.b16 %v10811, %v10807
          %v11232 = vpack.c.b16 %v10812, %v10808
          %v11233 = vpack.c.b16 %v10813, %v10809
          %v11234 = vpack.c.b16 %v10814, %v10810
          %v11235 = vpack.c.b16 %v10819, %v10815
          %v11236 = vpack.c.b16 %v10820, %v10816
          %v11237 = vpack.c.b16 %v10821, %v10817
          %v11238 = vpack.c.b16 %v10822, %v10818
          %v11239 = vpack.c.b16 %v10827, %v10823
          %v11240 = vpack.c.b16 %v10828, %v10824
          %v11241 = vpack.c.b16 %v10829, %v10825
          %v11242 = vpack.c.b16 %v10830, %v10826
          %v11243 = vpack.c.b16 %v10835, %v10831
          %v11244 = vpack.c.b16 %v10836, %v10832
          %v11245 = vpack.c.b16 %v10837, %v10833
          %v11246 = vpack.c.b16 %v10838, %v10834
          %v11247 = vpack.c.b16 %v10843, %v10839
          %v11248 = vpack.c.b16 %v10844, %v10840
          %v11249 = vpack.c.b16 %v10845, %v10841
          %v11250 = vpack.c.b16 %v10846, %v10842
          %v11251 = vpack.c.b16 %v10851, %v10847
          %v11252 = vpack.c.b16 %v10852, %v10848
          %v11253 = vpack.c.b16 %v10853, %v10849
          %v11254 = vpack.c.b16 %v10854, %v10850
          %v11255 = vpack.c.b16 %v10859, %v10855
          %v11256 = vpack.c.b16 %v10860, %v10856
          %v11257 = vpack.c.b16 %v10861, %v10857
          %v11258 = vpack.c.b16 %v10862, %v10858
          %v11259 = vpack.c.b16 %v10867, %v10863
          %v11260 = vpack.c.b16 %v10868, %v10864
          %v11261 = vpack.c.b16 %v10869, %v10865
          %v11262 = vpack.c.b16 %v10870, %v10866
          %v11263 = vpack.c.b16 %v10875, %v10871
          %v11264 = vpack.c.b16 %v10876, %v10872
          %v11265 = vpack.c.b16 %v10877, %v10873
          %v11266 = vpack.c.b16 %v10878, %v10874
          %v11267 = vpack.c.b16 %v10883, %v10879
          %v11268 = vpack.c.b16 %v10884, %v10880
          %v11269 = vpack.c.b16 %v10885, %v10881
          %v11270 = vpack.c.b16 %v10886, %v10882
          %v11271 = vpack.c.b16 %v10891, %v10887
          %v11272 = vpack.c.b16 %v10892, %v10888
          %v11273 = vpack.c.b16 %v10893, %v10889
          %v11274 = vpack.c.b16 %v10894, %v10890
          %v11275 = vpack.c.b16 %v10899, %v10895
          %v11276 = vpack.c.b16 %v10900, %v10896
          %v11277 = vpack.c.b16 %v10901, %v10897
          %v11278 = vpack.c.b16 %v10902, %v10898
          %v11279 = vpack.c.b16 %v10907, %v10903
          %v11280 = vpack.c.b16 %v10908, %v10904
          %v11281 = vpack.c.b16 %v10909, %v10905
          %v11282 = vpack.c.b16 %v10910, %v10906
          %v11283 = vpack.c.b16 %v10915, %v10911
          %v11284 = vpack.c.b16 %v10916, %v10912
          %v11285 = vpack.c.b16 %v10917, %v10913
          %v11286 = vpack.c.b16 %v10918, %v10914
          %v11287 = vpack.c.b16 %v10923, %v10919
          %v11288 = vpack.c.b16 %v10924, %v10920
          %v11289 = vpack.c.b16 %v10925, %v10921
          %v11290 = vpack.c.b16 %v10926, %v10922
          %v11291 = vpack.c.b16 %v10931, %v10927
          %v11292 = vpack.c.b16 %v10932, %v10928
          %v11293 = vpack.c.b16 %v10933, %v10929
          %v11294 = vpack.c.b16 %v10934, %v10930
          %v11295 = vpack.c.b16 %v10939, %v10935
          %v11296 = vpack.c.b16 %v10940, %v10936
          %v11297 = vpack.c.b16 %v10941, %v10937
          %v11298 = vpack.c.b16 %v10942, %v10938
          %v11299 = vpack.c.b16 %v10947, %v10943
          %v11300 = vpack.c.b16 %v10948, %v10944
          %v11301 = vpack.c.b16 %v10949, %v10945
          %v11302 = vpack.c.b16 %v10950, %v10946
          %v11303 = vpack.c.b16 %v10955, %v10951
          %v11304 = vpack.c.b16 %v10956, %v10952
          %v11305 = vpack.c.b16 %v10957, %v10953
          %v11306 = vpack.c.b16 %v10958, %v10954
          %v11307 = vpack.c.b16 %v10963, %v10959
          %v11308 = vpack.c.b16 %v10964, %v10960
          %v11309 = vpack.c.b16 %v10965, %v10961
          %v11310 = vpack.c.b16 %v10966, %v10962
          %v11311 = vpack.c.b16 %v10971, %v10967
          %v11312 = vpack.c.b16 %v10972, %v10968
          %v11313 = vpack.c.b16 %v10973, %v10969
          %v11314 = vpack.c.b16 %v10974, %v10970
          %v11315 = vpack.c.b16 %v10979, %v10975
          %v11316 = vpack.c.b16 %v10980, %v10976
          %v11317 = vpack.c.b16 %v10981, %v10977
          %v11318 = vpack.c.b16 %v10982, %v10978
          %v11319 = vpack.c.b16 %v10987, %v10983
          %v11320 = vpack.c.b16 %v10988, %v10984
          %v11321 = vpack.c.b16 %v10989, %v10985
          %v11322 = vpack.c.b16 %v10990, %v10986
          %v11323 = vpack.c.b16 %v10995, %v10991
          %v11324 = vpack.c.b16 %v10996, %v10992
          %v11325 = vpack.c.b16 %v10997, %v10993
          %v11326 = vpack.c.b16 %v10998, %v10994
          %v11327 = vpack.c.b16 %v11003, %v10999
          %v11328 = vpack.c.b16 %v11004, %v11000
          %v11329 = vpack.c.b16 %v11005, %v11001
          %v11330 = vpack.c.b16 %v11006, %v11002
          %v11331 = vpack.c.b16 %v11011, %v11007
          %v11332 = vpack.c.b16 %v11012, %v11008
          %v11333 = vpack.c.b16 %v11013, %v11009
          %v11334 = vpack.c.b16 %v11014, %v11010
          %v11335 = vpack.c.b16 %v11019, %v11015
          %v11336 = vpack.c.b16 %v11020, %v11016
          %v11337 = vpack.c.b16 %v11021, %v11017
          %v11338 = vpack.c.b16 %v11022, %v11018
          %v11339 = vpack.c.b16 %v11027, %v11023
          %v11340 = vpack.c.b16 %v11028, %v11024
          %v11341 = vpack.c.b16 %v11029, %v11025
          %v11342 = vpack.c.b16 %v11030, %v11026
          %v11343 = vpack.c.b16 %v11035, %v11031
          %v11344 = vpack.c.b16 %v11036, %v11032
          %v11345 = vpack.c.b16 %v11037, %v11033
          %v11346 = vpack.c.b16 %v11038, %v11034
          %v11347 = vpack.c.b16 %v11043, %v11039
          %v11348 = vpack.c.b16 %v11044, %v11040
          %v11349 = vpack.c.b16 %v11045, %v11041
          %v11350 = vpack.c.b16 %v11046, %v11042
          %v11351 = vpack.c.b16 %v11051, %v11047
          %v11352 = vpack.c.b16 %v11052, %v11048
          %v11353 = vpack.c.b16 %v11053, %v11049
          %v11354 = vpack.c.b16 %v11054, %v11050
          %v11355 = vpack.c.b16 %v11059, %v11055
          %v11356 = vpack.c.b16 %v11060, %v11056
          %v11357 = vpack.c.b16 %v11061, %v11057
          %v11358 = vpack.c.b16 %v11062, %v11058
          %v11359 = vpack.c.b16 %v11067, %v11063
          %v11360 = vpack.c.b16 %v11068, %v11064
          %v11361 = vpack.c.b16 %v11069, %v11065
          %v11362 = vpack.c.b16 %v11070, %v11066
          %v11363 = vpack.c.b16 %v11075, %v11071
          %v11364 = vpack.c.b16 %v11076, %v11072
          %v11365 = vpack.c.b16 %v11077, %v11073
          %v11366 = vpack.c.b16 %v11078, %v11074
          %v11367 = vpack.c.b16 %v11083, %v11079
          %v11368 = vpack.c.b16 %v11084, %v11080
          %v11369 = vpack.c.b16 %v11085, %v11081
          %v11370 = vpack.c.b16 %v11086, %v11082
          %v11371 = vpack.c.b16 %v11091, %v11087
          %v11372 = vpack.c.b16 %v11092, %v11088
          %v11373 = vpack.c.b16 %v11093, %v11089
          %v11374 = vpack.c.b16 %v11094, %v11090
          %v11375 = vpack.c.b16 %v11099, %v11095
          %v11376 = vpack.c.b16 %v11100, %v11096
          %v11377 = vpack.c.b16 %v11101, %v11097
          %v11378 = vpack.c.b16 %v11102, %v11098
          %v11379 = vpack.c.b16 %v11107, %v11103
          %v11380 = vpack.c.b16 %v11108, %v11104
          %v11381 = vpack.c.b16 %v11109, %v11105
          %v11382 = vpack.c.b16 %v11110, %v11106
          %v11383 = vpack.c.b16 %v11115, %v11111
          %v11384 = vpack.c.b16 %v11116, %v11112
          %v11385 = vpack.c.b16 %v11117, %v11113
          %v11386 = vpack.c.b16 %v11118, %v11114
          %v11387 = vpack.c.b16 %v11123, %v11119
          %v11388 = vpack.c.b16 %v11124, %v11120
          %v11389 = vpack.c.b16 %v11125, %v11121
          %v11390 = vpack.c.b16 %v11126, %v11122
          %v11391 = vpack.c.b16 %v11131, %v11127
          %v11392 = vpack.c.b16 %v11132, %v11128
          %v11393 = vpack.c.b16 %v11133, %v11129
          %v11394 = vpack.c.b16 %v11134, %v11130
          %v11395 = vpack.c.b16 %v11139, %v11135
          %v11396 = vpack.c.b16 %v11140, %v11136
          %v11397 = vpack.c.b16 %v11141, %v11137
          %v11398 = vpack.c.b16 %v11142, %v11138
          %11655 = vmatprep.subr.bf16.mxu0 %v11144
          %11656 = vmatpush1.bf16.msra.mxu0 %v11143
          %11657 = vmatprep.subr.bf16.mxu0 %v11148
          %11658 = vmatpush1.bf16.msra.mxu0 %v11147
          %11659 = vmatprep.subr.bf16.mxu0 %v11152
          %11660 = vmatpush1.bf16.msra.mxu0 %v11151
          %11661 = vmatprep.subr.bf16.mxu0 %v11156
          %11662 = vmatpush1.bf16.msra.mxu0 %v11155
          %11663 = vmatprep.subr.bf16.mxu0 %v11160
          %11664 = vmatpush1.bf16.msra.mxu0 %v11159
          %11665 = vmatprep.subr.bf16.mxu0 %v11164
          %11666 = vmatpush1.bf16.msra.mxu0 %v11163
          %11667 = vmatprep.subr.bf16.mxu0 %v11168
          %11668 = vmatpush1.bf16.msra.mxu0 %v11167
          %11669 = vmatprep.subr.bf16.mxu0 %v11172
          %11670 = vmatpush1.bf16.msra.mxu0 %v11171
          %11671 = vmatprep.subr.bf16.mxu0 %v11176
          %11672 = vmatpush1.bf16.msra.mxu0 %v11175
          %11673 = vmatprep.subr.bf16.mxu0 %v11180
          %11674 = vmatpush1.bf16.msra.mxu0 %v11179
          %11675 = vmatprep.subr.bf16.mxu0 %v11184
          %11676 = vmatpush1.bf16.msra.mxu0 %v11183
          %11677 = vmatprep.subr.bf16.mxu0 %v11188
          %11678 = vmatpush1.bf16.msra.mxu0 %v11187
          %11679 = vmatprep.subr.bf16.mxu0 %v11192
          %11680 = vmatpush1.bf16.msra.mxu0 %v11191
          %11681 = vmatprep.subr.bf16.mxu0 %v11196
          %11682 = vmatpush1.bf16.msra.mxu0 %v11195
          %11683 = vmatprep.subr.bf16.mxu0 %v11200
          %11684 = vmatpush1.bf16.msra.mxu0 %v11199
          %11685 = vmatprep.subr.bf16.mxu0 %v11204
          %11686 = vmatpush1.bf16.msra.mxu0 %v11203
          %11687 = vmatprep.mubr.bf16.mxu0 %v10090
          %11688 = vmatmul.mubr.bf16.gmra.mrb[0].mxu0 %v10089
          %v11689 = vpop.f32.mrb[0].mxu0
          %v11690 = vadd.f32 %v10358, %v11689
          %v11691 = vpop.f32.mrb[0].mxu0
          %v11692 = vadd.f32 %v10362, %v11691
          %v11693 = vpop.f32.mrb[0].mxu0
          %v11694 = vpop.f32.mrb[0].mxu0
          %11695 = vdwg.mxu0
          %11696 = vmatprep.subr.bf16.mxu0 %v11208
          %11697 = vmatpush1.bf16.msra.mxu0 %v11207
          %11698 = vmatprep.subr.bf16.mxu0 %v11212
          %11699 = vmatpush1.bf16.msra.mxu0 %v11211
          %11700 = vmatprep.subr.bf16.mxu0 %v11216
          %11701 = vmatpush1.bf16.msra.mxu0 %v11215
          %11702 = vmatprep.subr.bf16.mxu0 %v11220
          %11703 = vmatpush1.bf16.msra.mxu0 %v11219
          %11704 = vmatprep.subr.bf16.mxu0 %v11224
          %11705 = vmatpush1.bf16.msra.mxu0 %v11223
          %11706 = vmatprep.subr.bf16.mxu0 %v11228
          %11707 = vmatpush1.bf16.msra.mxu0 %v11227
          %11708 = vmatprep.subr.bf16.mxu0 %v11232
          %11709 = vmatpush1.bf16.msra.mxu0 %v11231
          %11710 = vmatprep.subr.bf16.mxu0 %v11236
          %11711 = vmatpush1.bf16.msra.mxu0 %v11235
          %11712 = vmatprep.subr.bf16.mxu0 %v11240
          %11713 = vmatpush1.bf16.msra.mxu0 %v11239
          %11714 = vmatprep.subr.bf16.mxu0 %v11244
          %11715 = vmatpush1.bf16.msra.mxu0 %v11243
          %11716 = vmatprep.subr.bf16.mxu0 %v11248
          %11717 = vmatpush1.bf16.msra.mxu0 %v11247
          %11718 = vmatprep.subr.bf16.mxu0 %v11252
          %11719 = vmatpush1.bf16.msra.mxu0 %v11251
          %11720 = vmatprep.subr.bf16.mxu0 %v11256
          %11721 = vmatpush1.bf16.msra.mxu0 %v11255
          %11722 = vmatprep.subr.bf16.mxu0 %v11260
          %11723 = vmatpush1.bf16.msra.mxu0 %v11259
          %11724 = vmatprep.subr.bf16.mxu0 %v11264
          %11725 = vmatpush1.bf16.msra.mxu0 %v11263
          %11726 = vmatprep.subr.bf16.mxu0 %v11268
          %11727 = vmatpush1.bf16.msra.mxu0 %v11267
          %11728 = vmatprep.mubr.bf16.mxu0 %v10092
          %11729 = vmatmul.mubr.bf16.gmra.mrb[0].mxu0 %v10091
          %v11730 = vpop.f32.mrb[0].mxu0
          %v11731 = vadd.f32 %v11690, %v11730
          %v11732 = vpop.f32.mrb[0].mxu0
          %v11733 = vadd.f32 %v11692, %v11732
          %v11734 = vpop.f32.mrb[0].mxu0
          %v11735 = vpop.f32.mrb[0].mxu0
          %11736 = vdwg.mxu0
          %11737 = vmatprep.subr.bf16.mxu0 %v11272
          %11738 = vmatpush1.bf16.msra.mxu0 %v11271
          %11739 = vmatprep.subr.bf16.mxu0 %v11276
          %11740 = vmatpush1.bf16.msra.mxu0 %v11275
          %11741 = vmatprep.subr.bf16.mxu0 %v11280
          %11742 = vmatpush1.bf16.msra.mxu0 %v11279
          %11743 = vmatprep.subr.bf16.mxu0 %v11284
          %11744 = vmatpush1.bf16.msra.mxu0 %v11283
          %11745 = vmatprep.subr.bf16.mxu0 %v11288
          %11746 = vmatpush1.bf16.msra.mxu0 %v11287
          %11747 = vmatprep.subr.bf16.mxu0 %v11292
          %11748 = vmatpush1.bf16.msra.mxu0 %v11291
          %11749 = vmatprep.subr.bf16.mxu0 %v11296
          %11750 = vmatpush1.bf16.msra.mxu0 %v11295
          %11751 = vmatprep.subr.bf16.mxu0 %v11300
          %11752 = vmatpush1.bf16.msra.mxu0 %v11299
          %11753 = vmatprep.subr.bf16.mxu0 %v11304
          %11754 = vmatpush1.bf16.msra.mxu0 %v11303
          %11755 = vmatprep.subr.bf16.mxu0 %v11308
          %11756 = vmatpush1.bf16.msra.mxu0 %v11307
          %11757 = vmatprep.subr.bf16.mxu0 %v11312
          %11758 = vmatpush1.bf16.msra.mxu0 %v11311
          %11759 = vmatprep.subr.bf16.mxu0 %v11316
          %11760 = vmatpush1.bf16.msra.mxu0 %v11315
          %11761 = vmatprep.subr.bf16.mxu0 %v11320
          %11762 = vmatpush1.bf16.msra.mxu0 %v11319
          %11763 = vmatprep.subr.bf16.mxu0 %v11324
          %11764 = vmatpush1.bf16.msra.mxu0 %v11323
          %11765 = vmatprep.subr.bf16.mxu0 %v11328
          %11766 = vmatpush1.bf16.msra.mxu0 %v11327
          %11767 = vmatprep.subr.bf16.mxu0 %v11332
          %11768 = vmatpush1.bf16.msra.mxu0 %v11331
          %11769 = vmatprep.mubr.bf16.mxu0 %v10094
          %11770 = vmatmul.mubr.bf16.gmra.mrb[0].mxu0 %v10093
          %v11771 = vpop.f32.mrb[0].mxu0
          %v11772 = vadd.f32 %v11731, %v11771
          %v11773 = vpop.f32.mrb[0].mxu0
          %v11774 = vadd.f32 %v11733, %v11773
          %v11775 = vpop.f32.mrb[0].mxu0
          %v11776 = vpop.f32.mrb[0].mxu0
          %11777 = vdwg.mxu0
          %11778 = vmatprep.subr.bf16.mxu0 %v11336
          %11779 = vmatpush1.bf16.msra.mxu0 %v11335
          %11780 = vmatprep.subr.bf16.mxu0 %v11340
          %11781 = vmatpush1.bf16.msra.mxu0 %v11339
          %11782 = vmatprep.subr.bf16.mxu0 %v11344
          %11783 = vmatpush1.bf16.msra.mxu0 %v11343
          %11784 = vmatprep.subr.bf16.mxu0 %v11348
          %11785 = vmatpush1.bf16.msra.mxu0 %v11347
          %11786 = vmatprep.subr.bf16.mxu0 %v11352
          %11787 = vmatpush1.bf16.msra.mxu0 %v11351
          %11788 = vmatprep.subr.bf16.mxu0 %v11356
          %11789 = vmatpush1.bf16.msra.mxu0 %v11355
          %11790 = vmatprep.subr.bf16.mxu0 %v11360
          %11791 = vmatpush1.bf16.msra.mxu0 %v11359
          %11792 = vmatprep.subr.bf16.mxu0 %v11364
          %11793 = vmatpush1.bf16.msra.mxu0 %v11363
          %11794 = vmatprep.subr.bf16.mxu0 %v11368
          %11795 = vmatpush1.bf16.msra.mxu0 %v11367
          %11796 = vmatprep.subr.bf16.mxu0 %v11372
          %11797 = vmatpush1.bf16.msra.mxu0 %v11371
          %11798 = vmatprep.subr.bf16.mxu0 %v11376
          %11799 = vmatpush1.bf16.msra.mxu0 %v11375
          %11800 = vmatprep.subr.bf16.mxu0 %v11380
          %11801 = vmatpush1.bf16.msra.mxu0 %v11379
          %11802 = vmatprep.subr.bf16.mxu0 %v11384
          %11803 = vmatpush1.bf16.msra.mxu0 %v11383
          %11804 = vmatprep.subr.bf16.mxu0 %v11388
          %11805 = vmatpush1.bf16.msra.mxu0 %v11387
          %11806 = vmatprep.subr.bf16.mxu0 %v11392
          %11807 = vmatpush1.bf16.msra.mxu0 %v11391
          %11808 = vmatprep.subr.bf16.mxu0 %v11396
          %11809 = vmatpush1.bf16.msra.mxu0 %v11395
          %11810 = vmatprep.mubr.bf16.mxu0 %v10096
          %11811 = vmatmul.mubr.bf16.gmra.mrb[0].mxu0 %v10095
          %v11812 = vpop.f32.mrb[0].mxu0
          %v11813 = vadd.f32 %v11772, %v11812
          %v11814 = vpop.f32.mrb[0].mxu0
          %v11815 = vadd.f32 %v11774, %v11814
          %v11816 = vpop.f32.mrb[0].mxu0
          %v11817 = vpop.f32.mrb[0].mxu0
          %11818 = vdwg.mxu0
          %11819 = vmatprep.subr.bf16.mxu0 %v11146
          %11820 = vmatpush1.bf16.msra.mxu0 %v11145
          %11821 = vmatprep.subr.bf16.mxu0 %v11150
          %11822 = vmatpush1.bf16.msra.mxu0 %v11149
          %11823 = vmatprep.subr.bf16.mxu0 %v11154
          %11824 = vmatpush1.bf16.msra.mxu0 %v11153
          %11825 = vmatprep.subr.bf16.mxu0 %v11158
          %11826 = vmatpush1.bf16.msra.mxu0 %v11157
          %11827 = vmatprep.subr.bf16.mxu0 %v11162
          %11828 = vmatpush1.bf16.msra.mxu0 %v11161
          %11829 = vmatprep.subr.bf16.mxu0 %v11166
          %11830 = vmatpush1.bf16.msra.mxu0 %v11165
          %11831 = vmatprep.subr.bf16.mxu0 %v11170
          %11832 = vmatpush1.bf16.msra.mxu0 %v11169
          %11833 = vmatprep.subr.bf16.mxu0 %v11174
          %11834 = vmatpush1.bf16.msra.mxu0 %v11173
          %11835 = vmatprep.subr.bf16.mxu0 %v11178
          %11836 = vmatpush1.bf16.msra.mxu0 %v11177
          %11837 = vmatprep.subr.bf16.mxu0 %v11182
          %11838 = vmatpush1.bf16.msra.mxu0 %v11181
          %11839 = vmatprep.subr.bf16.mxu0 %v11186
          %11840 = vmatpush1.bf16.msra.mxu0 %v11185
          %11841 = vmatprep.subr.bf16.mxu0 %v11190
          %11842 = vmatpush1.bf16.msra.mxu0 %v11189
          %11843 = vmatprep.subr.bf16.mxu0 %v11194
          %11844 = vmatpush1.bf16.msra.mxu0 %v11193
          %11845 = vmatprep.subr.bf16.mxu0 %v11198
          %11846 = vmatpush1.bf16.msra.mxu0 %v11197
          %11847 = vmatprep.subr.bf16.mxu0 %v11202
          %11848 = vmatpush1.bf16.msra.mxu0 %v11201
          %11849 = vmatprep.subr.bf16.mxu0 %v11206
          %11850 = vmatpush1.bf16.msra.mxu0 %v11205
          %11851 = vmatprep.mubr.bf16.mxu0 %v10090
          %11852 = vmatmul.mubr.bf16.gmra.mrb[0].mxu0 %v10089
          %v11853 = vpop.f32.mrb[0].mxu0
          %v11854 = vadd.f32 %v10366, %v11853
          %v11855 = vpop.f32.mrb[0].mxu0
          %v11856 = vadd.f32 %v10370, %v11855
          %v11857 = vpop.f32.mrb[0].mxu0
          %v11858 = vpop.f32.mrb[0].mxu0
          %11859 = vdwg.mxu0
          %11860 = vmatprep.subr.bf16.mxu0 %v11210
          %11861 = vmatpush1.bf16.msra.mxu0 %v11209
          %11862 = vmatprep.subr.bf16.mxu0 %v11214
          %11863 = vmatpush1.bf16.msra.mxu0 %v11213
          %11864 = vmatprep.subr.bf16.mxu0 %v11218
          %11865 = vmatpush1.bf16.msra.mxu0 %v11217
          %11866 = vmatprep.subr.bf16.mxu0 %v11222
          %11867 = vmatpush1.bf16.msra.mxu0 %v11221
          %11868 = vmatprep.subr.bf16.mxu0 %v11226
          %11869 = vmatpush1.bf16.msra.mxu0 %v11225
          %11870 = vmatprep.subr.bf16.mxu0 %v11230
          %11871 = vmatpush1.bf16.msra.mxu0 %v11229
          %11872 = vmatprep.subr.bf16.mxu0 %v11234
          %11873 = vmatpush1.bf16.msra.mxu0 %v11233
          %11874 = vmatprep.subr.bf16.mxu0 %v11238
          %11875 = vmatpush1.bf16.msra.mxu0 %v11237
          %11876 = vmatprep.subr.bf16.mxu0 %v11242
          %11877 = vmatpush1.bf16.msra.mxu0 %v11241
          %11878 = vmatprep.subr.bf16.mxu0 %v11246
          %11879 = vmatpush1.bf16.msra.mxu0 %v11245
          %11880 = vmatprep.subr.bf16.mxu0 %v11250
          %11881 = vmatpush1.bf16.msra.mxu0 %v11249
          %11882 = vmatprep.subr.bf16.mxu0 %v11254
          %11883 = vmatpush1.bf16.msra.mxu0 %v11253
          %11884 = vmatprep.subr.bf16.mxu0 %v11258
          %11885 = vmatpush1.bf16.msra.mxu0 %v11257
          %11886 = vmatprep.subr.bf16.mxu0 %v11262
          %11887 = vmatpush1.bf16.msra.mxu0 %v11261
          %11888 = vmatprep.subr.bf16.mxu0 %v11266
          %11889 = vmatpush1.bf16.msra.mxu0 %v11265
          %11890 = vmatprep.subr.bf16.mxu0 %v11270
          %11891 = vmatpush1.bf16.msra.mxu0 %v11269
          %11892 = vmatprep.mubr.bf16.mxu0 %v10092
          %11893 = vmatmul.mubr.bf16.gmra.mrb[0].mxu0 %v10091
          %v11894 = vpop.f32.mrb[0].mxu0
          %v11895 = vadd.f32 %v11854, %v11894
          %v11896 = vpop.f32.mrb[0].mxu0
          %v11897 = vadd.f32 %v11856, %v11896
          %v11898 = vpop.f32.mrb[0].mxu0
          %v11899 = vpop.f32.mrb[0].mxu0
          %11900 = vdwg.mxu0
          %11901 = vmatprep.subr.bf16.mxu0 %v11274
          %11902 = vmatpush1.bf16.msra.mxu0 %v11273
          %11903 = vmatprep.subr.bf16.mxu0 %v11278
          %11904 = vmatpush1.bf16.msra.mxu0 %v11277
          %11905 = vmatprep.subr.bf16.mxu0 %v11282
          %11906 = vmatpush1.bf16.msra.mxu0 %v11281
          %11907 = vmatprep.subr.bf16.mxu0 %v11286
          %11908 = vmatpush1.bf16.msra.mxu0 %v11285
          %11909 = vmatprep.subr.bf16.mxu0 %v11290
          %11910 = vmatpush1.bf16.msra.mxu0 %v11289
          %11911 = vmatprep.subr.bf16.mxu0 %v11294
          %11912 = vmatpush1.bf16.msra.mxu0 %v11293
          %11913 = vmatprep.subr.bf16.mxu0 %v11298
          %11914 = vmatpush1.bf16.msra.mxu0 %v11297
          %11915 = vmatprep.subr.bf16.mxu0 %v11302
          %11916 = vmatpush1.bf16.msra.mxu0 %v11301
          %11917 = vmatprep.subr.bf16.mxu0 %v11306
          %11918 = vmatpush1.bf16.msra.mxu0 %v11305
          %11919 = vmatprep.subr.bf16.mxu0 %v11310
          %11920 = vmatpush1.bf16.msra.mxu0 %v11309
          %11921 = vmatprep.subr.bf16.mxu0 %v11314
          %11922 = vmatpush1.bf16.msra.mxu0 %v11313
          %11923 = vmatprep.subr.bf16.mxu0 %v11318
          %11924 = vmatpush1.bf16.msra.mxu0 %v11317
          %11925 = vmatprep.subr.bf16.mxu0 %v11322
          %11926 = vmatpush1.bf16.msra.mxu0 %v11321
          %11927 = vmatprep.subr.bf16.mxu0 %v11326
          %11928 = vmatpush1.bf16.msra.mxu0 %v11325
          %11929 = vmatprep.subr.bf16.mxu0 %v11330
          %11930 = vmatpush1.bf16.msra.mxu0 %v11329
          %11931 = vmatprep.subr.bf16.mxu0 %v11334
          %11932 = vmatpush1.bf16.msra.mxu0 %v11333
          %11933 = vmatprep.mubr.bf16.mxu0 %v10094
          %11934 = vmatmul.mubr.bf16.gmra.mrb[0].mxu0 %v10093
          %v11935 = vpop.f32.mrb[0].mxu0
          %v11936 = vadd.f32 %v11895, %v11935
          %v11937 = vpop.f32.mrb[0].mxu0
          %v11938 = vadd.f32 %v11897, %v11937
          %v11939 = vpop.f32.mrb[0].mxu0
          %v11940 = vpop.f32.mrb[0].mxu0
          %11941 = vdwg.mxu0
          %11942 = vmatprep.subr.bf16.mxu0 %v11338
          %11943 = vmatpush1.bf16.msra.mxu0 %v11337
          %11944 = vmatprep.subr.bf16.mxu0 %v11342
          %11945 = vmatpush1.bf16.msra.mxu0 %v11341
          %11946 = vmatprep.subr.bf16.mxu0 %v11346
          %11947 = vmatpush1.bf16.msra.mxu0 %v11345
          %11948 = vmatprep.subr.bf16.mxu0 %v11350
          %11949 = vmatpush1.bf16.msra.mxu0 %v11349
          %11950 = vmatprep.subr.bf16.mxu0 %v11354
          %11951 = vmatpush1.bf16.msra.mxu0 %v11353
          %11952 = vmatprep.subr.bf16.mxu0 %v11358
          %11953 = vmatpush1.bf16.msra.mxu0 %v11357
          %11954 = vmatprep.subr.bf16.mxu0 %v11362
          %11955 = vmatpush1.bf16.msra.mxu0 %v11361
          %11956 = vmatprep.subr.bf16.mxu0 %v11366
          %11957 = vmatpush1.bf16.msra.mxu0 %v11365
          %11958 = vmatprep.subr.bf16.mxu0 %v11370
          %11959 = vmatpush1.bf16.msra.mxu0 %v11369
          %11960 = vmatprep.subr.bf16.mxu0 %v11374
          %11961 = vmatpush1.bf16.msra.mxu0 %v11373
          %11962 = vmatprep.subr.bf16.mxu0 %v11378
          %11963 = vmatpush1.bf16.msra.mxu0 %v11377
          %11964 = vmatprep.subr.bf16.mxu0 %v11382
          %11965 = vmatpush1.bf16.msra.mxu0 %v11381
          %11966 = vmatprep.subr.bf16.mxu0 %v11386
          %11967 = vmatpush1.bf16.msra.mxu0 %v11385
          %11968 = vmatprep.subr.bf16.mxu0 %v11390
          %11969 = vmatpush1.bf16.msra.mxu0 %v11389
          %11970 = vmatprep.subr.bf16.mxu0 %v11394
          %11971 = vmatpush1.bf16.msra.mxu0 %v11393
          %11972 = vmatprep.subr.bf16.mxu0 %v11398
          %11973 = vmatpush1.bf16.msra.mxu0 %v11397
          %11974 = vmatprep.mubr.bf16.mxu0 %v10096
          %11975 = vmatmul.mubr.bf16.gmra.mrb[0].mxu0 %v10095
          %v11976 = vpop.f32.mrb[0].mxu0
          %v11977 = vadd.f32 %v11936, %v11976
          %v11978 = vpop.f32.mrb[0].mxu0
          %v11979 = vadd.f32 %v11938, %v11978
          %v11980 = vpop.f32.mrb[0].mxu0
          %v11981 = vpop.f32.mrb[0].mxu0
          %11982 = vdwg.mxu0
          %v11983 = vpack.c.bf16 %v11813, %v11813
          %v11984 = vpack.c.bf16 %v11815, %v11815
          %v11985 = vpack.c.bf16 %v11977, %v11977
          %v11986 = vpack.c.bf16 %v11979, %v11979
          %v11987 = vld [vmem:[#allocation11] sm:$0xff]
          %v11988 = vld [vmem:[#allocation11 + $0x8] sm:$0xff]
          %v11989 = vld [vmem:[#allocation11 + $0x10] sm:$0xff]
          %v11990 = vld [vmem:[#allocation11 + $0x18] sm:$0xff]
          %v11991 = vld [vmem:[#allocation11 + $0x20] sm:$0xff]
          %v11992 = vld [vmem:[#allocation11 + $0x28] sm:$0xff]
          %v11993 = vld [vmem:[#allocation11 + $0x30] sm:$0xff]
          %v11994 = vld [vmem:[#allocation11 + $0x38] sm:$0xff]
          %v11995 = vld [vmem:[#allocation11 + $0x40] sm:$0xff]
          %v11996 = vld [vmem:[#allocation11 + $0x48] sm:$0xff]
          %v11997 = vld [vmem:[#allocation11 + $0x50] sm:$0xff]
          %v11998 = vld [vmem:[#allocation11 + $0x58] sm:$0xff]
          %v11999 = vld [vmem:[#allocation11 + $0x60] sm:$0xff]
          %v12000 = vld [vmem:[#allocation11 + $0x68] sm:$0xff]
          %v12001 = vld [vmem:[#allocation11 + $0x70] sm:$0xff]
          %v12002 = vld [vmem:[#allocation11 + $0x78] sm:$0xff]
          %v12003 = vld [vmem:[#allocation11 + $0x80] sm:$0xff]
          %v12004 = vld [vmem:[#allocation11 + $0x88] sm:$0xff]
          %v12005 = vld [vmem:[#allocation11 + $0x90] sm:$0xff]
          %v12006 = vld [vmem:[#allocation11 + $0x98] sm:$0xff]
          %v12007 = vld [vmem:[#allocation11 + $0xa0] sm:$0xff]
          %v12008 = vld [vmem:[#allocation11 + $0xa8] sm:$0xff]
          %v12009 = vld [vmem:[#allocation11 + $0xb0] sm:$0xff]
          %v12010 = vld [vmem:[#allocation11 + $0xb8] sm:$0xff]
          %v12011 = vld [vmem:[#allocation11 + $0xc0] sm:$0xff]
          %v12012 = vld [vmem:[#allocation11 + $0xc8] sm:$0xff]
          %v12013 = vld [vmem:[#allocation11 + $0xd0] sm:$0xff]
          %v12014 = vld [vmem:[#allocation11 + $0xd8] sm:$0xff]
          %v12015 = vld [vmem:[#allocation11 + $0xe0] sm:$0xff]
          %v12016 = vld [vmem:[#allocation11 + $0xe8] sm:$0xff]
          %v12017 = vld [vmem:[#allocation11 + $0xf0] sm:$0xff]
          %v12018 = vld [vmem:[#allocation11 + $0xf8] sm:$0xff]
          %v12019 = vld [vmem:[#allocation11 + $0x100] sm:$0xff]
          %v12020 = vld [vmem:[#allocation11 + $0x108] sm:$0xff]
          %v12021 = vld [vmem:[#allocation11 + $0x110] sm:$0xff]
          %v12022 = vld [vmem:[#allocation11 + $0x118] sm:$0xff]
          %v12023 = vld [vmem:[#allocation11 + $0x120] sm:$0xff]
          %v12024 = vld [vmem:[#allocation11 + $0x128] sm:$0xff]
          %v12025 = vld [vmem:[#allocation11 + $0x130] sm:$0xff]
          %v12026 = vld [vmem:[#allocation11 + $0x138] sm:$0xff]
          %v12027 = vld [vmem:[#allocation11 + $0x140] sm:$0xff]
          %v12028 = vld [vmem:[#allocation11 + $0x148] sm:$0xff]
          %v12029 = vld [vmem:[#allocation11 + $0x150] sm:$0xff]
          %v12030 = vld [vmem:[#allocation11 + $0x158] sm:$0xff]
          %v12031 = vld [vmem:[#allocation11 + $0x160] sm:$0xff]
          %v12032 = vld [vmem:[#allocation11 + $0x168] sm:$0xff]
          %v12033 = vld [vmem:[#allocation11 + $0x170] sm:$0xff]
          %v12034 = vld [vmem:[#allocation11 + $0x178] sm:$0xff]
          %v12035 = vld [vmem:[#allocation11 + $0x180] sm:$0xff]
          %v12036 = vld [vmem:[#allocation11 + $0x188] sm:$0xff]
          %v12037 = vld [vmem:[#allocation11 + $0x190] sm:$0xff]
          %v12038 = vld [vmem:[#allocation11 + $0x198] sm:$0xff]
          %v12039 = vld [vmem:[#allocation11 + $0x1a0] sm:$0xff]
          %v12040 = vld [vmem:[#allocation11 + $0x1a8] sm:$0xff]
          %v12041 = vld [vmem:[#allocation11 + $0x1b0] sm:$0xff]
          %v12042 = vld [vmem:[#allocation11 + $0x1b8] sm:$0xff]
          %v12043 = vld [vmem:[#allocation11 + $0x1c0] sm:$0xff]
          %v12044 = vld [vmem:[#allocation11 + $0x1c8] sm:$0xff]
          %v12045 = vld [vmem:[#allocation11 + $0x1d0] sm:$0xff]
          %v12046 = vld [vmem:[#allocation11 + $0x1d8] sm:$0xff]
          %v12047 = vld [vmem:[#allocation11 + $0x1e0] sm:$0xff]
          %v12048 = vld [vmem:[#allocation11 + $0x1e8] sm:$0xff]
          %v12049 = vld [vmem:[#allocation11 + $0x1f0] sm:$0xff]
          %v12050 = vld [vmem:[#allocation11 + $0x1f8] sm:$0xff]
          %v12051 = vld [vmem:[#allocation12] sm:$0x3]
          %v12053 = vlaneseq
          %v12054 = vshrl.u32 %v12053, 7
          %v12055 = vsub.s32 0, %v12054
          %v12056 = vrot.slane %v12051, %v12055
          %v12057 = vlaneseq
          %v12058 = vshrl.u32 %v12057, 7
          %v12059 = vsub.s32 1, %v12058
          %v12060 = vrot.slane %v12051, %v12059
          %v12127 = vunpack.c.l.b16 %v11987
          %v12128 = vunpack.c.h.b16 %v11987
          %v12129 = vunpack.c.l.b16 %v11988
          %v12130 = vunpack.c.h.b16 %v11988
          %v12131 = vunpack.c.l.b16 %v11989
          %v12132 = vunpack.c.h.b16 %v11989
          %v12133 = vunpack.c.l.b16 %v11990
          %v12134 = vunpack.c.h.b16 %v11990
          %v12135 = vunpack.c.l.b16 %v11991
          %v12136 = vunpack.c.h.b16 %v11991
          %v12137 = vunpack.c.l.b16 %v11992
          %v12138 = vunpack.c.h.b16 %v11992
          %v12139 = vunpack.c.l.b16 %v11993
          %v12140 = vunpack.c.h.b16 %v11993
          %v12141 = vunpack.c.l.b16 %v11994
          %v12142 = vunpack.c.h.b16 %v11994
          %v12143 = vunpack.c.l.b16 %v11995
          %v12144 = vunpack.c.h.b16 %v11995
          %v12145 = vunpack.c.l.b16 %v11996
          %v12146 = vunpack.c.h.b16 %v11996
          %v12147 = vunpack.c.l.b16 %v11997
          %v12148 = vunpack.c.h.b16 %v11997
          %v12149 = vunpack.c.l.b16 %v11998
          %v12150 = vunpack.c.h.b16 %v11998
          %v12151 = vunpack.c.l.b16 %v11999
          %v12152 = vunpack.c.h.b16 %v11999
          %v12153 = vunpack.c.l.b16 %v12000
          %v12154 = vunpack.c.h.b16 %v12000
          %v12155 = vunpack.c.l.b16 %v12001
          %v12156 = vunpack.c.h.b16 %v12001
          %v12157 = vunpack.c.l.b16 %v12002
          %v12158 = vunpack.c.h.b16 %v12002
          %v12159 = vunpack.c.l.b16 %v12003
          %v12160 = vunpack.c.h.b16 %v12003
          %v12161 = vunpack.c.l.b16 %v12004
          %v12162 = vunpack.c.h.b16 %v12004
          %v12163 = vunpack.c.l.b16 %v12005
          %v12164 = vunpack.c.h.b16 %v12005
          %v12165 = vunpack.c.l.b16 %v12006
          %v12166 = vunpack.c.h.b16 %v12006
          %v12167 = vunpack.c.l.b16 %v12007
          %v12168 = vunpack.c.h.b16 %v12007
          %v12169 = vunpack.c.l.b16 %v12008
          %v12170 = vunpack.c.h.b16 %v12008
          %v12171 = vunpack.c.l.b16 %v12009
          %v12172 = vunpack.c.h.b16 %v12009
          %v12173 = vunpack.c.l.b16 %v12010
          %v12174 = vunpack.c.h.b16 %v12010
          %v12175 = vunpack.c.l.b16 %v12011
          %v12176 = vunpack.c.h.b16 %v12011
          %v12177 = vunpack.c.l.b16 %v12012
          %v12178 = vunpack.c.h.b16 %v12012
          %v12179 = vunpack.c.l.b16 %v12013
          %v12180 = vunpack.c.h.b16 %v12013
          %v12181 = vunpack.c.l.b16 %v12014
          %v12182 = vunpack.c.h.b16 %v12014
          %v12183 = vunpack.c.l.b16 %v12015
          %v12184 = vunpack.c.h.b16 %v12015
          %v12185 = vunpack.c.l.b16 %v12016
          %v12186 = vunpack.c.h.b16 %v12016
          %v12187 = vunpack.c.l.b16 %v12017
          %v12188 = vunpack.c.h.b16 %v12017
          %v12189 = vunpack.c.l.b16 %v12018
          %v12190 = vunpack.c.h.b16 %v12018
          %v12191 = vunpack.c.l.b16 %v12019
          %v12192 = vunpack.c.h.b16 %v12019
          %v12193 = vunpack.c.l.b16 %v12020
          %v12194 = vunpack.c.h.b16 %v12020
          %v12195 = vunpack.c.l.b16 %v12021
          %v12196 = vunpack.c.h.b16 %v12021
          %v12197 = vunpack.c.l.b16 %v12022
          %v12198 = vunpack.c.h.b16 %v12022
          %v12199 = vunpack.c.l.b16 %v12023
          %v12200 = vunpack.c.h.b16 %v12023
          %v12201 = vunpack.c.l.b16 %v12024
          %v12202 = vunpack.c.h.b16 %v12024
          %v12203 = vunpack.c.l.b16 %v12025
          %v12204 = vunpack.c.h.b16 %v12025
          %v12205 = vunpack.c.l.b16 %v12026
          %v12206 = vunpack.c.h.b16 %v12026
          %v12207 = vunpack.c.l.b16 %v12027
          %v12208 = vunpack.c.h.b16 %v12027
          %v12209 = vunpack.c.l.b16 %v12028
          %v12210 = vunpack.c.h.b16 %v12028
          %v12211 = vunpack.c.l.b16 %v12029
          %v12212 = vunpack.c.h.b16 %v12029
          %v12213 = vunpack.c.l.b16 %v12030
          %v12214 = vunpack.c.h.b16 %v12030
          %v12215 = vunpack.c.l.b16 %v12031
          %v12216 = vunpack.c.h.b16 %v12031
          %v12217 = vunpack.c.l.b16 %v12032
          %v12218 = vunpack.c.h.b16 %v12032
          %v12219 = vunpack.c.l.b16 %v12033
          %v12220 = vunpack.c.h.b16 %v12033
          %v12221 = vunpack.c.l.b16 %v12034
          %v12222 = vunpack.c.h.b16 %v12034
          %v12223 = vunpack.c.l.b16 %v12035
          %v12224 = vunpack.c.h.b16 %v12035
          %v12225 = vunpack.c.l.b16 %v12036
          %v12226 = vunpack.c.h.b16 %v12036
          %v12227 = vunpack.c.l.b16 %v12037
          %v12228 = vunpack.c.h.b16 %v12037
          %v12229 = vunpack.c.l.b16 %v12038
          %v12230 = vunpack.c.h.b16 %v12038
          %v12231 = vunpack.c.l.b16 %v12039
          %v12232 = vunpack.c.h.b16 %v12039
          %v12233 = vunpack.c.l.b16 %v12040
          %v12234 = vunpack.c.h.b16 %v12040
          %v12235 = vunpack.c.l.b16 %v12041
          %v12236 = vunpack.c.h.b16 %v12041
          %v12237 = vunpack.c.l.b16 %v12042
          %v12238 = vunpack.c.h.b16 %v12042
          %v12239 = vunpack.c.l.b16 %v12043
          %v12240 = vunpack.c.h.b16 %v12043
          %v12241 = vunpack.c.l.b16 %v12044
          %v12242 = vunpack.c.h.b16 %v12044
          %v12243 = vunpack.c.l.b16 %v12045
          %v12244 = vunpack.c.h.b16 %v12045
          %v12245 = vunpack.c.l.b16 %v12046
          %v12246 = vunpack.c.h.b16 %v12046
          %v12247 = vunpack.c.l.b16 %v12047
          %v12248 = vunpack.c.h.b16 %v12047
          %v12249 = vunpack.c.l.b16 %v12048
          %v12250 = vunpack.c.h.b16 %v12048
          %v12251 = vunpack.c.l.b16 %v12049
          %v12252 = vunpack.c.h.b16 %v12049
          %v12253 = vunpack.c.l.b16 %v12050
          %v12254 = vunpack.c.h.b16 %v12050
          %v12255 = vpack.c.b16 %v12129, %v12127
          %v12256 = vpack.c.b16 %v12130, %v12128
          %v12257 = vpack.c.b16 %v12133, %v12131
          %v12258 = vpack.c.b16 %v12134, %v12132
          %v12259 = vpack.c.b16 %v12137, %v12135
          %v12260 = vpack.c.b16 %v12138, %v12136
          %v12261 = vpack.c.b16 %v12141, %v12139
          %v12262 = vpack.c.b16 %v12142, %v12140
          %v12263 = vpack.c.b16 %v12145, %v12143
          %v12264 = vpack.c.b16 %v12146, %v12144
          %v12265 = vpack.c.b16 %v12149, %v12147
          %v12266 = vpack.c.b16 %v12150, %v12148
          %v12267 = vpack.c.b16 %v12153, %v12151
          %v12268 = vpack.c.b16 %v12154, %v12152
          %v12269 = vpack.c.b16 %v12157, %v12155
          %v12270 = vpack.c.b16 %v12158, %v12156
          %v12271 = vpack.c.b16 %v12161, %v12159
          %v12272 = vpack.c.b16 %v12162, %v12160
          %v12273 = vpack.c.b16 %v12165, %v12163
          %v12274 = vpack.c.b16 %v12166, %v12164
          %v12275 = vpack.c.b16 %v12169, %v12167
          %v12276 = vpack.c.b16 %v12170, %v12168
          %v12277 = vpack.c.b16 %v12173, %v12171
          %v12278 = vpack.c.b16 %v12174, %v12172
          %v12279 = vpack.c.b16 %v12177, %v12175
          %v12280 = vpack.c.b16 %v12178, %v12176
          %v12281 = vpack.c.b16 %v12181, %v12179
          %v12282 = vpack.c.b16 %v12182, %v12180
          %v12283 = vpack.c.b16 %v12185, %v12183
          %v12284 = vpack.c.b16 %v12186, %v12184
          %v12285 = vpack.c.b16 %v12189, %v12187
          %v12286 = vpack.c.b16 %v12190, %v12188
          %v12287 = vpack.c.b16 %v12193, %v12191
          %v12288 = vpack.c.b16 %v12194, %v12192
          %v12289 = vpack.c.b16 %v12197, %v12195
          %v12290 = vpack.c.b16 %v12198, %v12196
          %v12291 = vpack.c.b16 %v12201, %v12199
          %v12292 = vpack.c.b16 %v12202, %v12200
          %v12293 = vpack.c.b16 %v12205, %v12203
          %v12294 = vpack.c.b16 %v12206, %v12204
          %v12295 = vpack.c.b16 %v12209, %v12207
          %v12296 = vpack.c.b16 %v12210, %v12208
          %v12297 = vpack.c.b16 %v12213, %v12211
          %v12298 = vpack.c.b16 %v12214, %v12212
          %v12299 = vpack.c.b16 %v12217, %v12215
          %v12300 = vpack.c.b16 %v12218, %v12216
          %v12301 = vpack.c.b16 %v12221, %v12219
          %v12302 = vpack.c.b16 %v12222, %v12220
          %v12303 = vpack.c.b16 %v12225, %v12223
          %v12304 = vpack.c.b16 %v12226, %v12224
          %v12305 = vpack.c.b16 %v12229, %v12227
          %v12306 = vpack.c.b16 %v12230, %v12228
          %v12307 = vpack.c.b16 %v12233, %v12231
          %v12308 = vpack.c.b16 %v12234, %v12232
          %v12309 = vpack.c.b16 %v12237, %v12235
          %v12310 = vpack.c.b16 %v12238, %v12236
          %v12311 = vpack.c.b16 %v12241, %v12239
          %v12312 = vpack.c.b16 %v12242, %v12240
          %v12313 = vpack.c.b16 %v12245, %v12243
          %v12314 = vpack.c.b16 %v12246, %v12244
          %v12315 = vpack.c.b16 %v12249, %v12247
          %v12316 = vpack.c.b16 %v12250, %v12248
          %v12317 = vpack.c.b16 %v12253, %v12251
          %v12318 = vpack.c.b16 %v12254, %v12252
          %12383 = vmatprep.subr.bf16.mxu0 %v12256
          %12384 = vmatpush1.bf16.msra.mxu0 %v12255
          %12385 = vmatprep.subr.bf16.mxu0 %v12258
          %12386 = vmatpush1.bf16.msra.mxu0 %v12257
          %12387 = vmatprep.subr.bf16.mxu0 %v12260
          %12388 = vmatpush1.bf16.msra.mxu0 %v12259
          %12389 = vmatprep.subr.bf16.mxu0 %v12262
          %12390 = vmatpush1.bf16.msra.mxu0 %v12261
          %12391 = vmatprep.subr.bf16.mxu0 %v12264
          %12392 = vmatpush1.bf16.msra.mxu0 %v12263
          %12393 = vmatprep.subr.bf16.mxu0 %v12266
          %12394 = vmatpush1.bf16.msra.mxu0 %v12265
          %12395 = vmatprep.subr.bf16.mxu0 %v12268
          %12396 = vmatpush1.bf16.msra.mxu0 %v12267
          %12397 = vmatprep.subr.bf16.mxu0 %v12270
          %12398 = vmatpush1.bf16.msra.mxu0 %v12269
          %12399 = vmatprep.subr.bf16.mxu0 %v12272
          %12400 = vmatpush1.bf16.msra.mxu0 %v12271
          %12401 = vmatprep.subr.bf16.mxu0 %v12274
          %12402 = vmatpush1.bf16.msra.mxu0 %v12273
          %12403 = vmatprep.subr.bf16.mxu0 %v12276
          %12404 = vmatpush1.bf16.msra.mxu0 %v12275
          %12405 = vmatprep.subr.bf16.mxu0 %v12278
          %12406 = vmatpush1.bf16.msra.mxu0 %v12277
          %12407 = vmatprep.subr.bf16.mxu0 %v12280
          %12408 = vmatpush1.bf16.msra.mxu0 %v12279
          %12409 = vmatprep.subr.bf16.mxu0 %v12282
          %12410 = vmatpush1.bf16.msra.mxu0 %v12281
          %12411 = vmatprep.subr.bf16.mxu0 %v12284
          %12412 = vmatpush1.bf16.msra.mxu0 %v12283
          %12413 = vmatprep.subr.bf16.mxu0 %v12286
          %12414 = vmatpush1.bf16.msra.mxu0 %v12285
          %12415 = vmatprep.mubr.bf16.mxu0 %v11984
          %12416 = vmatmul.mubr.bf16.gmra.mrb[0].mxu0 %v11983
          %v12417 = vpop.f32.mrb[0].mxu0
          %v12418 = vadd.f32 %v12056, %v12417
          %v12419 = vpop.f32.mrb[0].mxu0
          %v12420 = vadd.f32 %v12060, %v12419
          %v12421 = vpop.f32.mrb[0].mxu0
          %v12422 = vpop.f32.mrb[0].mxu0
          %12423 = vdwg.mxu0
          %12424 = vmatprep.subr.bf16.mxu0 %v12288
          %12425 = vmatpush1.bf16.msra.mxu0 %v12287
          %12426 = vmatprep.subr.bf16.mxu0 %v12290
          %12427 = vmatpush1.bf16.msra.mxu0 %v12289
          %12428 = vmatprep.subr.bf16.mxu0 %v12292
          %12429 = vmatpush1.bf16.msra.mxu0 %v12291
          %12430 = vmatprep.subr.bf16.mxu0 %v12294
          %12431 = vmatpush1.bf16.msra.mxu0 %v12293
          %12432 = vmatprep.subr.bf16.mxu0 %v12296
          %12433 = vmatpush1.bf16.msra.mxu0 %v12295
          %12434 = vmatprep.subr.bf16.mxu0 %v12298
          %12435 = vmatpush1.bf16.msra.mxu0 %v12297
          %12436 = vmatprep.subr.bf16.mxu0 %v12300
          %12437 = vmatpush1.bf16.msra.mxu0 %v12299
          %12438 = vmatprep.subr.bf16.mxu0 %v12302
          %12439 = vmatpush1.bf16.msra.mxu0 %v12301
          %12440 = vmatprep.subr.bf16.mxu0 %v12304
          %12441 = vmatpush1.bf16.msra.mxu0 %v12303
          %12442 = vmatprep.subr.bf16.mxu0 %v12306
          %12443 = vmatpush1.bf16.msra.mxu0 %v12305
          %12444 = vmatprep.subr.bf16.mxu0 %v12308
          %12445 = vmatpush1.bf16.msra.mxu0 %v12307
          %12446 = vmatprep.subr.bf16.mxu0 %v12310
          %12447 = vmatpush1.bf16.msra.mxu0 %v12309
          %12448 = vmatprep.subr.bf16.mxu0 %v12312
          %12449 = vmatpush1.bf16.msra.mxu0 %v12311
          %12450 = vmatprep.subr.bf16.mxu0 %v12314
          %12451 = vmatpush1.bf16.msra.mxu0 %v12313
          %12452 = vmatprep.subr.bf16.mxu0 %v12316
          %12453 = vmatpush1.bf16.msra.mxu0 %v12315
          %12454 = vmatprep.subr.bf16.mxu0 %v12318
          %12455 = vmatpush1.bf16.msra.mxu0 %v12317
          %12456 = vmatprep.mubr.bf16.mxu0 %v11986
          %12457 = vmatmul.mubr.bf16.gmra.mrb[0].mxu0 %v11985
          %v12458 = vpop.f32.mrb[0].mxu0
          %v12459 = vadd.f32 %v12418, %v12458
          %v12460 = vpop.f32.mrb[0].mxu0
          %v12461 = vadd.f32 %v12420, %v12460
          %v12462 = vpop.f32.mrb[0].mxu0
          %v12463 = vpop.f32.mrb[0].mxu0
          %12464 = vdwg.mxu0
          %v12465 = vpack.c.bf16 %v12459, %v12459
          %v12466 = vpack.c.bf16 %v12461, %v12461
          %v12467 = vld [vmem:[#allocation14] sm:$0xf]
          %v12468 = vld [vmem:[#allocation14 + $0x4] sm:$0xf]
          %v12469 = vld [vmem:[#allocation14 + $0x8] sm:$0xf]
          %v12470 = vld [vmem:[#allocation14 + $0xc] sm:$0xf]
          %v12471 = vld [vmem:[#allocation14 + $0x10] sm:$0xf]
          %v12472 = vld [vmem:[#allocation14 + $0x14] sm:$0xf]
          %v12473 = vld [vmem:[#allocation14 + $0x18] sm:$0xf]
          %v12474 = vld [vmem:[#allocation14 + $0x1c] sm:$0xf]
          %v12475 = vld [vmem:[#allocation14 + $0x20] sm:$0xf]
          %v12476 = vld [vmem:[#allocation14 + $0x24] sm:$0xf]
          %v12477 = vld [vmem:[#allocation14 + $0x28] sm:$0xf]
          %v12478 = vld [vmem:[#allocation14 + $0x2c] sm:$0xf]
          %v12479 = vld [vmem:[#allocation14 + $0x30] sm:$0xf]
          %v12480 = vld [vmem:[#allocation14 + $0x34] sm:$0xf]
          %v12481 = vld [vmem:[#allocation14 + $0x38] sm:$0xf]
          %v12482 = vld [vmem:[#allocation14 + $0x3c] sm:$0xf]
          %v12483 = vld [vmem:[#allocation14 + $0x40] sm:$0xf]
          %v12484 = vld [vmem:[#allocation14 + $0x44] sm:$0xf]
          %v12485 = vld [vmem:[#allocation14 + $0x48] sm:$0xf]
          %v12486 = vld [vmem:[#allocation14 + $0x4c] sm:$0xf]
          %v12487 = vld [vmem:[#allocation14 + $0x50] sm:$0xf]
          %v12488 = vld [vmem:[#allocation14 + $0x54] sm:$0xf]
          %v12489 = vld [vmem:[#allocation14 + $0x58] sm:$0xf]
          %v12490 = vld [vmem:[#allocation14 + $0x5c] sm:$0xf]
          %v12491 = vld [vmem:[#allocation14 + $0x60] sm:$0xf]
          %v12492 = vld [vmem:[#allocation14 + $0x64] sm:$0xf]
          %v12493 = vld [vmem:[#allocation14 + $0x68] sm:$0xf]
          %v12494 = vld [vmem:[#allocation14 + $0x6c] sm:$0xf]
          %v12495 = vld [vmem:[#allocation14 + $0x70] sm:$0xf]
          %v12496 = vld [vmem:[#allocation14 + $0x74] sm:$0xf]
          %v12497 = vld [vmem:[#allocation14 + $0x78] sm:$0xf]
          %v12498 = vld [vmem:[#allocation14 + $0x7c] sm:$0xf]
          %v12499 = vld [vmem:[#allocation15] sm:$0x1]
          %v12501 = vlaneseq
          %v12502 = vshrl.u32 %v12501, 7
          %v12503 = vsub.s32 0, %v12502
          %v12504 = vrot.slane %v12499, %v12503
          %v12538 = vunpack.c.l.b16 %v12467
          %v12539 = vunpack.c.l.b16 %v12468
          %v12540 = vunpack.c.l.b16 %v12469
          %v12541 = vunpack.c.l.b16 %v12470
          %v12542 = vunpack.c.l.b16 %v12471
          %v12543 = vunpack.c.l.b16 %v12472
          %v12544 = vunpack.c.l.b16 %v12473
          %v12545 = vunpack.c.l.b16 %v12474
          %v12546 = vunpack.c.l.b16 %v12475
          %v12547 = vunpack.c.l.b16 %v12476
          %v12548 = vunpack.c.l.b16 %v12477
          %v12549 = vunpack.c.l.b16 %v12478
          %v12550 = vunpack.c.l.b16 %v12479
          %v12551 = vunpack.c.l.b16 %v12480
          %v12552 = vunpack.c.l.b16 %v12481
          %v12553 = vunpack.c.l.b16 %v12482
          %v12554 = vunpack.c.l.b16 %v12483
          %v12555 = vunpack.c.l.b16 %v12484
          %v12556 = vunpack.c.l.b16 %v12485
          %v12557 = vunpack.c.l.b16 %v12486
          %v12558 = vunpack.c.l.b16 %v12487
          %v12559 = vunpack.c.l.b16 %v12488
          %v12560 = vunpack.c.l.b16 %v12489
          %v12561 = vunpack.c.l.b16 %v12490
          %v12562 = vunpack.c.l.b16 %v12491
          %v12563 = vunpack.c.l.b16 %v12492
          %v12564 = vunpack.c.l.b16 %v12493
          %v12565 = vunpack.c.l.b16 %v12494
          %v12566 = vunpack.c.l.b16 %v12495
          %v12567 = vunpack.c.l.b16 %v12496
          %v12568 = vunpack.c.l.b16 %v12497
          %v12569 = vunpack.c.l.b16 %v12498
          %v12570 = vpack.c.b16 %v12539, %v12538
          %v12571 = vpack.c.b16 %v12541, %v12540
          %v12572 = vpack.c.b16 %v12543, %v12542
          %v12573 = vpack.c.b16 %v12545, %v12544
          %v12574 = vpack.c.b16 %v12547, %v12546
          %v12575 = vpack.c.b16 %v12549, %v12548
          %v12576 = vpack.c.b16 %v12551, %v12550
          %v12577 = vpack.c.b16 %v12553, %v12552
          %v12578 = vpack.c.b16 %v12555, %v12554
          %v12579 = vpack.c.b16 %v12557, %v12556
          %v12580 = vpack.c.b16 %v12559, %v12558
          %v12581 = vpack.c.b16 %v12561, %v12560
          %v12582 = vpack.c.b16 %v12563, %v12562
          %v12583 = vpack.c.b16 %v12565, %v12564
          %v12584 = vpack.c.b16 %v12567, %v12566
          %v12585 = vpack.c.b16 %v12569, %v12568
          %12602 = vmatprep.subr.bf16.mxu0 0
          %12603 = vmatpush1.bf16.msra.mxu0 %v12570
          %12604 = vmatprep.subr.bf16.mxu0 0
          %12605 = vmatpush1.bf16.msra.mxu0 %v12571
          %12606 = vmatprep.subr.bf16.mxu0 0
          %12607 = vmatpush1.bf16.msra.mxu0 %v12572
          %12608 = vmatprep.subr.bf16.mxu0 0
          %12609 = vmatpush1.bf16.msra.mxu0 %v12573
          %12610 = vmatprep.subr.bf16.mxu0 0
          %12611 = vmatpush1.bf16.msra.mxu0 %v12574
          %12612 = vmatprep.subr.bf16.mxu0 0
          %12613 = vmatpush1.bf16.msra.mxu0 %v12575
          %12614 = vmatprep.subr.bf16.mxu0 0
          %12615 = vmatpush1.bf16.msra.mxu0 %v12576
          %12616 = vmatprep.subr.bf16.mxu0 0
          %12617 = vmatpush1.bf16.msra.mxu0 %v12577
          %12618 = vmatprep.subr.bf16.mxu0 0
          %12619 = vmatpush1.bf16.msra.mxu0 %v12578
          %12620 = vmatprep.subr.bf16.mxu0 0
          %12621 = vmatpush1.bf16.msra.mxu0 %v12579
          %12622 = vmatprep.subr.bf16.mxu0 0
          %12623 = vmatpush1.bf16.msra.mxu0 %v12580
          %12624 = vmatprep.subr.bf16.mxu0 0
          %12625 = vmatpush1.bf16.msra.mxu0 %v12581
          %12626 = vmatprep.subr.bf16.mxu0 0
          %12627 = vmatpush1.bf16.msra.mxu0 %v12582
          %12628 = vmatprep.subr.bf16.mxu0 0
          %12629 = vmatpush1.bf16.msra.mxu0 %v12583
          %12630 = vmatprep.subr.bf16.mxu0 0
          %12631 = vmatpush1.bf16.msra.mxu0 %v12584
          %12632 = vmatprep.subr.bf16.mxu0 0
          %12633 = vmatpush1.bf16.msra.mxu0 %v12585
          %12634 = vmatprep.mubr.bf16.mxu0 %v12466
          %12635 = vmatmul.mubr.bf16.gmra.mrb[0].mxu0 %v12465
          %v12636 = vpop.f32.mrb[0].mxu0
          %v12637 = vadd.f32 %v12504, %v12636
          %v12638 = vpop.f32.mrb[0].mxu0
          %v12639 = vpop.f32.mrb[0].mxu0
          %v12640 = vpop.f32.mrb[0].mxu0
          %12641 = vdwg.mxu0
          %v12642 = vpack.c.bf16 %v12637, %v12637
          %v12643 = vld [vmem:[%s9] sm:$0xf]
          %v12644 = vld [vmem:[%s9 + $0x4] sm:$0xf]
          %v12645 = vld [vmem:[%s9 + $0x8] sm:$0xf]
          %v12646 = vld [vmem:[%s9 + $0xc] sm:$0xf]
          %v12647 = vld [vmem:[%s9 + $0x10] sm:$0xf]
          %v12648 = vld [vmem:[%s9 + $0x14] sm:$0xf]
          %v12649 = vld [vmem:[%s9 + $0x18] sm:$0xf]
          %v12650 = vld [vmem:[%s9 + $0x1c] sm:$0xf]
          %v12651 = vld [vmem:[%s9 + $0x20] sm:$0xf]
          %v12652 = vld [vmem:[%s9 + $0x24] sm:$0xf]
          %v12653 = vld [vmem:[%s9 + $0x28] sm:$0xf]
          %v12654 = vld [vmem:[%s9 + $0x2c] sm:$0xf]
          %v12655 = vld [vmem:[%s9 + $0x30] sm:$0xf]
          %v12656 = vld [vmem:[%s9 + $0x34] sm:$0xf]
          %v12657 = vld [vmem:[%s9 + $0x38] sm:$0xf]
          %v12658 = vld [vmem:[%s9 + $0x3c] sm:$0xf]
          %v12659 = vld [vmem:[#allocation17] sm:$0x1]
          %v12661 = vlaneseq
          %v12662 = vshrl.u32 %v12661, 7
          %v12663 = vsub.s32 0, %v12662
          %v12664 = vrot.slane %v12659, %v12663
          %v12682 = vunpack.c.l.b16 %v12643
          %v12683 = vunpack.c.l.b16 %v12644
          %v12684 = vunpack.c.l.b16 %v12645
          %v12685 = vunpack.c.l.b16 %v12646
          %v12686 = vunpack.c.l.b16 %v12647
          %v12687 = vunpack.c.l.b16 %v12648
          %v12688 = vunpack.c.l.b16 %v12649
          %v12689 = vunpack.c.l.b16 %v12650
          %v12690 = vunpack.c.l.b16 %v12651
          %v12691 = vunpack.c.l.b16 %v12652
          %v12692 = vunpack.c.l.b16 %v12653
          %v12693 = vunpack.c.l.b16 %v12654
          %v12694 = vunpack.c.l.b16 %v12655
          %v12695 = vunpack.c.l.b16 %v12656
          %v12696 = vunpack.c.l.b16 %v12657
          %v12697 = vunpack.c.l.b16 %v12658
          %v12698 = vpack.c.b16 %v12683, %v12682
          %v12699 = vpack.c.b16 %v12685, %v12684
          %v12700 = vpack.c.b16 %v12687, %v12686
          %v12701 = vpack.c.b16 %v12689, %v12688
          %v12702 = vpack.c.b16 %v12691, %v12690
          %v12703 = vpack.c.b16 %v12693, %v12692
          %v12704 = vpack.c.b16 %v12695, %v12694
          %v12705 = vpack.c.b16 %v12697, %v12696
          %12714 = vmatprep.subr.bf16.mxu0 0
          %12715 = vmatpush1.bf16.msra.mxu0 %v12698
          %12716 = vmatprep.subr.bf16.mxu0 0
          %12717 = vmatpush1.bf16.msra.mxu0 %v12699
          %12718 = vmatprep.subr.bf16.mxu0 0
          %12719 = vmatpush1.bf16.msra.mxu0 %v12700
          %12720 = vmatprep.subr.bf16.mxu0 0
          %12721 = vmatpush1.bf16.msra.mxu0 %v12701
          %12722 = vmatprep.subr.bf16.mxu0 0
          %12723 = vmatpush1.bf16.msra.mxu0 %v12702
          %12724 = vmatprep.subr.bf16.mxu0 0
          %12725 = vmatpush1.bf16.msra.mxu0 %v12703
          %12726 = vmatprep.subr.bf16.mxu0 0
          %12727 = vmatpush1.bf16.msra.mxu0 %v12704
          %12728 = vmatprep.subr.bf16.mxu0 0
          %12729 = vmatpush1.bf16.msra.mxu0 %v12705
          %12730 = vmatprep.subr.bf16.mxu0 0
          %12731 = vmatpush1.bf16.msra.mxu0 0
          %12732 = vmatprep.subr.bf16.mxu0 0
          %12733 = vmatpush1.bf16.msra.mxu0 0
          %12734 = vmatprep.subr.bf16.mxu0 0
          %12735 = vmatpush1.bf16.msra.mxu0 0
          %12736 = vmatprep.subr.bf16.mxu0 0
          %12737 = vmatpush1.bf16.msra.mxu0 0
          %12738 = vmatprep.subr.bf16.mxu0 0
          %12739 = vmatpush1.bf16.msra.mxu0 0
          %12740 = vmatprep.subr.bf16.mxu0 0
          %12741 = vmatpush1.bf16.msra.mxu0 0
          %12742 = vmatprep.subr.bf16.mxu0 0
          %12743 = vmatpush1.bf16.msra.mxu0 0
          %12744 = vmatprep.subr.bf16.mxu0 0
          %12745 = vmatpush1.bf16.msra.mxu0 0
          %12746 = vmatprep.mubr.bf16.mxu0 0
          %12747 = vmatmul.mubr.bf16.gmra.mrb[0].mxu0 %v12642
          %v12748 = vpop.f32.mrb[0].mxu0
          %v12749 = vadd.f32 %v12664, %v12748
          %v12750 = vpop.f32.mrb[0].mxu0
          %v12751 = vpop.f32.mrb[0].mxu0
          %v12752 = vpop.f32.mrb[0].mxu0
          %12753 = vdwg.mxu0
          %v12754 = vpack.c.bf16 %v12749, %v12749
          %v12755 = vld [vmem:[%s11] sm:$0xf]
          %v12756 = vld [vmem:[%s11 + $0x4] sm:$0xf]
          %v12757 = vld [vmem:[%s11 + $0x8] sm:$0xf]
          %v12758 = vld [vmem:[%s11 + $0xc] sm:$0xf]
          %v12759 = vld [vmem:[%s11 + $0x10] sm:$0xf]
          %v12760 = vld [vmem:[%s11 + $0x14] sm:$0xf]
          %v12761 = vld [vmem:[%s11 + $0x18] sm:$0xf]
          %v12762 = vld [vmem:[%s11 + $0x1c] sm:$0xf]
          %v12763 = vld [vmem:[#allocation18] sm:$0x1]
          %v12765 = vlaneseq
          %v12766 = vshrl.u32 %v12765, 7
          %v12767 = vsub.s32 0, %v12766
          %v12768 = vrot.slane %v12763, %v12767
          %v12778 = vunpack.c.l.b16 %v12755
          %v12779 = vunpack.c.l.b16 %v12756
          %v12780 = vunpack.c.l.b16 %v12757
          %v12781 = vunpack.c.l.b16 %v12758
          %v12782 = vunpack.c.l.b16 %v12759
          %v12783 = vunpack.c.l.b16 %v12760
          %v12784 = vunpack.c.l.b16 %v12761
          %v12785 = vunpack.c.l.b16 %v12762
          %v12786 = vpack.c.b16 %v12779, %v12778
          %v12787 = vpack.c.b16 %v12781, %v12780
          %v12788 = vpack.c.b16 %v12783, %v12782
          %v12789 = vpack.c.b16 %v12785, %v12784
          %vm12794 = vcmask 523264
          %v12796 = vsel %vm12794, %v12754, 0
          %12798 = vmatprep.subr.bf16.mxu0 0
          %12799 = vmatpush1.bf16.msra.mxu0 %v12786
          %12800 = vmatprep.subr.bf16.mxu0 0
          %12801 = vmatpush1.bf16.msra.mxu0 %v12787
          %12802 = vmatprep.subr.bf16.mxu0 0
          %12803 = vmatpush1.bf16.msra.mxu0 %v12788
          %12804 = vmatprep.subr.bf16.mxu0 0
          %12805 = vmatpush1.bf16.msra.mxu0 %v12789
          %12806 = vmatprep.subr.bf16.mxu0 0
          %12807 = vmatpush1.bf16.msra.mxu0 0
          %12808 = vmatprep.subr.bf16.mxu0 0
          %12809 = vmatpush1.bf16.msra.mxu0 0
          %12810 = vmatprep.subr.bf16.mxu0 0
          %12811 = vmatpush1.bf16.msra.mxu0 0
          %12812 = vmatprep.subr.bf16.mxu0 0
          %12813 = vmatpush1.bf16.msra.mxu0 0
          %12814 = vmatprep.subr.bf16.mxu0 0
          %12815 = vmatpush1.bf16.msra.mxu0 0
          %12816 = vmatprep.subr.bf16.mxu0 0
          %12817 = vmatpush1.bf16.msra.mxu0 0
          %12818 = vmatprep.subr.bf16.mxu0 0
          %12819 = vmatpush1.bf16.msra.mxu0 0
          %12820 = vmatprep.subr.bf16.mxu0 0
          %12821 = vmatpush1.bf16.msra.mxu0 0
          %12822 = vmatprep.subr.bf16.mxu0 0
          %12823 = vmatpush1.bf16.msra.mxu0 0
          %12824 = vmatprep.subr.bf16.mxu0 0
          %12825 = vmatpush1.bf16.msra.mxu0 0
          %12826 = vmatprep.subr.bf16.mxu0 0
          %12827 = vmatpush1.bf16.msra.mxu0 0
          %12828 = vmatprep.subr.bf16.mxu0 0
          %12829 = vmatpush1.bf16.msra.mxu0 0
          %12830 = vmatprep.mubr.bf16.mxu0 0
          %12831 = vmatmul.mubr.bf16.gmra.mrb[0].mxu0 %v12796
          %v12832 = vpop.f32.mrb[0].mxu0
          %v12833 = vadd.f32 %v12768, %v12832
          %v12834 = vpop.f32.mrb[0].mxu0
          %v12835 = vpop.f32.mrb[0].mxu0
          %v12836 = vpop.f32.mrb[0].mxu0
          %12837 = vdwg.mxu0
          %vm12838 = vcmask 39936
          %12839 = vst.msk [vmem:[#allocation20] sm:$0xff] %vm12838, %v12833
        $region120: #{_mydnn_forward_impl.1} parent=71 // pred_fallthru
          _
        // Predicated region
        $region121: #{_mydnn_forward_impl.1} parent=71 // pred_check
          %p12840 = pneg %p329
        $region122: #{_mydnn_forward_impl.1} parent=71 // pred_check_branch
          %12842 = sbr.rel (%p12840) target = $region124
        $region123: #{_mydnn_forward_impl.1} parent=71 // pred_region
          %s12844 = ssub.s32 128, 128
          %12845 = vsyncadd [#allocation5], %s12844
          %s12847 = sshll.u32 [#allocation20], 4
          %s12848 = int_to_ptr.vmem [resolvable:$true] %s12847
          %12850 = dma.vmem_to_hbm [thread:$0]  %s12848, 128, %s13, [#allocation5]
        $region124: #{_mydnn_forward_impl.1} parent=71 // pred_fallthru
          _
        // Predicated region
        $region125: #{_mydnn_forward_impl.1} parent=71 // pred_check
          %p12851 = pneg %p329
        $region126: #{_mydnn_forward_impl.1} parent=71 // pred_check_branch
          %12853 = sbr.rel (%p12851) target = $region128
        $region127: #{_mydnn_forward_impl.1} parent=71 // pred_region
          %12854 = dma.done [#allocation5], 128
        $region128: #{_mydnn_forward_impl.1} parent=71 // pred_fallthru
          _
      $region72: #{_mydnn_forward_impl.1} parent=5 // pred_fallthru
        _
      %p12855 = scmp.le.s32.totalorder 2, %s28
      // Predicated region
      $region129: #{_mydnn_forward_impl.1} parent=5 // pred_check
        %p12856 = pneg %p12855
      $region130: #{_mydnn_forward_impl.1} parent=5 // pred_check_branch
        %12858 = sbr.rel (%p12856) target = $region132
      $region131: #{_mydnn_forward_impl.1} parent=5 // pred_region
        %s12859 = ssub.s32 %s28, 2
      $region132: #{_mydnn_forward_impl.1} parent=5 // pred_fallthru
        _
    $region6: #{_mydnn_forward_impl.1} parent=1 // loop_footer
      %s32 = sadd.s32 1, %s28
    $region7: #{_mydnn_forward_impl.1} parent=1 // loop_footer_branch
      %27 = sbr.rel target = $region3
    $region8: #{_mydnn_forward_impl.1} parent=1 // loop_exit
      _
    %12860 = vsyncpa [#allocation4], 1
    %s12861 = scalar_lea.sflag [#allocation4], 1
    %12862 = vsyncpa %s12861, 1
    %12863 = vsyncpa [#allocation7], 1
    %12864 = vsyncpa [#allocation10], 1
    %12865 = vsyncpa [#allocation13], 1
    %12866 = vsyncpa [#allocation16], 1
    %12867 = vsyncpa [#allocation19], 1
    %12868 = vsyncpa [#allocation5], 1
    %s12869 = scalar_lea.sflag [#allocation5], 1
    %12870 = vsyncpa %s12869, 1

</llo_original>
